<compile_context>
chip_gen: v5e
topology: v5e:2x2
jax: 0.10.0
libtpu: 0.0.40
codegen_flags: <defaults>
</compile_context>

<pallas_src>
import math

import jax
import jax.numpy as jnp
from jax import lax
from jax.experimental import pallas as pl
from jax.experimental.pallas import tpu as pltpu

BN_EPS = 1e-5


# ----------------------------- in-kernel helpers -----------------------------

def _conv3x3_unit(v, xp_ref, w_ref, stride):
    """One folded unit: dense 3x3 conv (pad=1, given stride) + ReLU, channel-major.

    v:      (Cin, H, W)  f32 value (activation, already on-chip)
    xp_ref: VMEM scratch (Cin, H+2, W+2) used as the zero-padded input tile
    w_ref:  (Cout, 9*Cin) folded weight; column index = tap*Cin + ci
    returns (Cout, Ho*Wo) f32 value (spatial-flat -> lane-dense)
    """
    cin, h, w = v.shape
    cout = w_ref.shape[0]
    ho = (h - 1) // stride + 1
    wo = (w - 1) // stride + 1

    # Zero only the 1-pixel halo; the interior is fully overwritten below.
    xp_ref[:, 0:1, :] = jnp.zeros((cin, 1, w + 2), jnp.float32)
    xp_ref[:, h + 1:h + 2, :] = jnp.zeros((cin, 1, w + 2), jnp.float32)
    xp_ref[:, 1:h + 1, 0:1] = jnp.zeros((cin, h, 1), jnp.float32)
    xp_ref[:, 1:h + 1, w + 1:w + 2] = jnp.zeros((cin, h, 1), jnp.float32)
    xp_ref[:, 1:h + 1, 1:w + 1] = v

    if stride == 2:
        # Split the padded tile into its 4 spatial parity planes once; every
        # stride-2 tap below is then a contiguous slice (no strided loads).
        xp5 = xp_ref[...].reshape(cin, (h + 2) // 2, 2, (w + 2) // 2, 2)
        planes = [[xp5[:, :, p, :, q] for q in range(2)] for p in range(2)]

    # im2col as 9 accumulated (Cout,Cin) x (Cin,Ho*Wo) MXU dots.
    acc = jnp.zeros((cout, ho * wo), jnp.float32)
    for kh in range(3):
        for kw in range(3):
            if stride == 1:
                tap = xp_ref[:, kh:kh + ho, kw:kw + wo]
            else:
                plane = planes[kh % 2][kw % 2]
                tap = plane[:, kh // 2:kh // 2 + ho, kw // 2:kw // 2 + wo]
            t = kh * 3 + kw
            acc = acc + jnp.dot(w_ref[:, t * cin:(t + 1) * cin],
                                tap.reshape(cin, ho * wo),
                                preferred_element_type=jnp.float32)
    return jnp.maximum(acc, 0.0)                       # ReLU


def _make_stride1_kernel(H, W, cin, mid, out_b):
    """Whole stride-1 block: cb_main(x_even) plus x_odd passthrough, in VMEM."""

    def kernel(x_ref, w0_ref, w1_ref, w2_ref, o_ref, xp0, xp12):
        # x_ref: (cin, 2, H*W); [:,0,:] = even original channels (x1),
        #                       [:,1,:] = odd  original channels (x2).
        x1 = x_ref[:, 0, :].astype(jnp.float32).reshape(cin, H, W)
        v = _conv3x3_unit(x1, xp0, w0_ref, 1)                      # (mid, H*W)
        v = _conv3x3_unit(v.reshape(mid, H, W), xp12, w1_ref, 1)   # (mid, H*W)
        v = _conv3x3_unit(v.reshape(mid, H, W), xp12, w2_ref, 1)   # (out_b, H*W)
        o_ref[0:out_b, :] = v.astype(o_ref.dtype)
        o_ref[out_b:, :] = x_ref[:, 1, :].astype(o_ref.dtype)      # x2 passthrough

    return kernel


def _make_stride2_kernel(H, W, cin, mid, out_b):
    """Whole stride-2 block: cb_main(x) and cb_proj(x) fused in ONE call."""
    Ho = (H - 1) // 2 + 1
    Wo = (W - 1) // 2 + 1

    def kernel(x_ref, w0_ref, w1_ref, w2_ref, o_ref, xp0, xp12):
        x = x_ref[...].astype(jnp.float32).reshape(cin, H, W)
        # cb_main unit-0 and cb_proj share x's padded tile and taps: their
        # folded weights were concatenated along Cout (w0 is (mid+cin, 9*cin)).
        v0 = _conv3x3_unit(x, xp0, w0_ref, 2)                      # (mid+cin, Ho*Wo)
        v = _conv3x3_unit(v0[:mid, :].reshape(mid, Ho, Wo), xp12, w1_ref, 1)
        v = _conv3x3_unit(v.reshape(mid, Ho, Wo), xp12, w2_ref, 1)  # (out_b, Ho*Wo)
        o_ref[0:out_b, :] = v.astype(o_ref.dtype)
        o_ref[out_b:, :] = v0[mid:, :].astype(o_ref.dtype)          # proj branch

    return kernel


# ------------------------------ pallas_call wrap ------------------------------

def _branch_pallas_call(kernel, x, weights, out_c, m_out, scratch_shapes,
                        scratch_elems, flops):
    """One fused block = one pallas_call; grid over the batch (parallel)."""
    N = x.shape[0]
    ndim = x.ndim
    in_block = (None,) + tuple(x.shape[1:])
    in_specs = [pl.BlockSpec(in_block, lambda n: (n,) + (0,) * (ndim - 1))]
    for w in weights:
        in_specs.append(pl.BlockSpec(w.shape, lambda n: (0, 0)))
    out_specs = pl.BlockSpec((None, out_c, m_out), lambda n: (n, 0, 0))

    itemsize = jnp.dtype(x.dtype).itemsize
    in_block_bytes = math.prod(x.shape[1:]) * itemsize
    out_block_bytes = out_c * m_out * itemsize
    w_bytes = sum(int(w.size) * jnp.dtype(w.dtype).itemsize for w in weights)
    # Actual working set: double-buffered in/out blocks, (double-buffered)
    # grid-constant weights, scratch, plus compiler headroom. Capped for v7x.
    vmem_limit = (2 * (in_block_bytes + out_block_bytes) + 2 * w_bytes
                  + 4 * scratch_elems + (2 << 20))
    vmem_limit = int(min(max(vmem_limit, 4 << 20), 64 << 20))

    return pl.pallas_call(
        kernel,
        out_shape=jax.ShapeDtypeStruct((N, out_c, m_out), x.dtype),
        grid=(N,),
        in_specs=in_specs,
        out_specs=out_specs,
        scratch_shapes=scratch_shapes,
        compiler_params=pltpu.CompilerParams(
            dimension_semantics=("parallel",),
            vmem_limit_bytes=vmem_limit),
        cost_estimate=pl.CostEstimate(
            flops=int(flops), transcendentals=0,
            bytes_accessed=int(N * (in_block_bytes + out_block_bytes) + w_bytes)),
    )(x, *weights)


# ------------------------------- weight folding -------------------------------

def _fold_unit_cm(dw9c, s_dw, pw, s_pw):
    """Channel-major folded weight: W[co, t*Cin+ci] = s_dw[ci]*dw[t,ci]*pw[ci,co]*s_pw[co]."""
    cin, cout = pw.shape
    w = (dw9c * s_dw[None, :])[:, :, None] * (pw * s_pw[None, :])[None, :, :]   # (9,cin,cout)
    return jnp.transpose(w, (2, 0, 1)).reshape(cout, 9 * cin).astype(jnp.float32)


# ---------------------------------- the module --------------------------------

class ChoiceBlockX:
    """JAX/Pallas port of Choice_Block_x (supernet=True -> BN affine=False)."""

    def __init__(self, key, in_channels, out_channels, stride, supernet=True):
        assert stride in (1, 2)
        self.stride = stride
        self.in_channels = in_channels
        self.mid_channels = out_channels // 2
        self.out_branch = out_channels - in_channels
        self.total_out = out_channels

        def bn_scale(c):
            return jnp.full((c,), 1.0 / math.sqrt(1.0 + BN_EPS), jnp.float32)

        def dw_w(k, c):
            return jax.random.normal(k, (9, c), jnp.float32) * 0.2

        def pw_w(k, ci, co):
            return jax.random.normal(k, (ci, co), jnp.float32) * 0.2

        ks = jax.random.split(key, 8)
        ic, mc, ob = in_channels, self.mid_channels, self.out_branch
        # raw params kept for the pure-JAX reference; kernels use folded weights
        self.main = [
            dict(dw=dw_w(ks[0], ic), dw_s=bn_scale(ic),
                 pw=pw_w(ks[1], ic, mc), pw_s=bn_scale(mc)),
            dict(dw=dw_w(ks[2], mc), dw_s=bn_scale(mc),
                 pw=pw_w(ks[3], mc, mc), pw_s=bn_scale(mc)),
            dict(dw=dw_w(ks[4], mc), dw_s=bn_scale(mc),
                 pw=pw_w(ks[5], mc, ob), pw_s=bn_scale(ob)),
        ]
        w_main = [_fold_unit_cm(u["dw"], u["dw_s"], u["pw"], u["pw_s"])
                  for u in self.main]
        if stride == 2:
            self.proj = dict(dw=dw_w(ks[6], ic), dw_s=bn_scale(ic),
                             pw=pw_w(ks[7], ic, ic), pw_s=bn_scale(ic))
            w_proj = _fold_unit_cm(self.proj["dw"], self.proj["dw_s"],
                                   self.proj["pw"], self.proj["pw_s"])
            # cb_main unit-0 and cb_proj see the same stride-2 3x3 window on x:
            # run them as ONE set of matmuls by concatenating along Cout.
            w_main[0] = jnp.concatenate([w_main[0], w_proj], axis=0)
        self.weights = w_main

    def __call__(self, x_nchw):
        N, C, H, W = x_nchw.shape
        ic, mc, ob = self.in_channels, self.mid_channels, self.out_branch
        if self.stride == 1:
            assert C == 2 * ic
            # channel_shuffle(x) -> (even channels, odd channels): a free
            # reshape exposes the parity axis (no gather, no transpose).
            x_in = x_nchw.reshape(N, ic, 2, H * W)
            kernel = _make_stride1_kernel(H, W, ic, mc, ob)
            ho, wo = H, W
            scratch = [pltpu.VMEM((ic, H + 2, W + 2), jnp.float32),
                       pltpu.VMEM((mc, H + 2, W + 2), jnp.float32)]
            scratch_elems = (ic + mc) * (H + 2) * (W + 2)
            flops = N * 2 * H * W * 9 * (ic * mc + mc * mc + mc * ob)
        else:
            assert C == ic and H % 2 == 0 and W % 2 == 0
            x_in = x_nchw.reshape(N, ic, H * W)
            kernel = _make_stride2_kernel(H, W, ic, mc, ob)
            ho, wo = H // 2, W // 2
            scratch = [pltpu.VMEM((ic, H + 2, W + 2), jnp.float32),
                       pltpu.VMEM((mc, ho + 2, wo + 2), jnp.float32)]
            scratch_elems = ic * (H + 2) * (W + 2) + mc * (ho + 2) * (wo + 2)
            flops = N * 2 * ho * wo * 9 * (ic * (mc + ic) + mc * mc + mc * ob)
        y = _branch_pallas_call(kernel, x_in, self.weights, self.total_out,
                                ho * wo, scratch, scratch_elems, flops)
        # free reshape back to NCHW
        return y.reshape(N, self.total_out, ho, wo)


# -------------------------- pure-JAX reference (check) ------------------------

def _ref_dw(x, w9c, scale, stride):
    C = x.shape[1]
    w = jnp.transpose(w9c.reshape(3, 3, C), (2, 0, 1))[:, None]  # (C,1,3,3)
    y = lax.conv_general_dilated(x, w, (stride, stride), ((1, 1), (1, 1)),
                                 dimension_numbers=('NCHW', 'OIHW', 'NCHW'),
                                 feature_group_count=C)
    return y * scale[None, :, None, None]


def _ref_pw(x, w_io, scale, relu=True):
    w = jnp.transpose(w_io)[:, :, None, None]
    y = lax.conv_general_dilated(x, w, (1, 1), ((0, 0), (0, 0)),
                                 dimension_numbers=('NCHW', 'OIHW', 'NCHW'))
    y = y * scale[None, :, None, None]
    return jnp.maximum(y, 0.0) if relu else y


def _ref_forward(block, x):
    def cb_main(h):
        for i, u in enumerate(block.main):
            s = block.stride if i == 0 else 1
            h = _ref_dw(h, u["dw"], u["dw_s"], s)
            h = _ref_pw(h, u["pw"], u["pw_s"])
        return h
    if block.stride == 1:
        x1, x2 = x[:, 0::2], x[:, 1::2]          # channel_shuffle -> (even, odd)
        return jnp.concatenate([cb_main(x1), x2], axis=1)
    u = block.proj
    proj = _ref_pw(_ref_dw(x, u["dw"], u["dw_s"], 2), u["pw"], u["pw_s"])
    return jnp.concatenate([cb_main(x), proj], axis=1)


# ------------------------------------- main ------------------------------------

if __name__ == "__main__":
    key = jax.random.PRNGKey(0)
    k_x1, k_x2, k_b1, k_b2 = jax.random.split(key, 4)

    # stride == 1: channel_shuffle halves x's channels, so x has 2*in_channels.
    blk1 = ChoiceBlockX(k_b1, in_channels=4, out_channels=8, stride=1)
    x_s1 = jax.random.normal(k_x1, (2, 8, 16, 16), jnp.float32)
    y1 = jax.block_until_ready(jax.jit(blk1.__call__)(x_s1))
    assert y1.shape == (2, 8, 16, 16), y1.shape

    # stride == 2: cb_main + cb_proj branches (fused into one pallas_call).
    blk2 = ChoiceBlockX(k_b2, in_channels=4, out_channels=16, stride=2)
    x_s2 = jax.random.normal(k_x2, (2, 4, 16, 16), jnp.float32)
    y2 = jax.block_until_ready(jax.jit(blk2.__call__)(x_s2))
    assert y2.shape == (2, 16, 8, 8), y2.shape

    # correctness vs plain-JAX (lax.conv) reference
    r1 = _ref_forward(blk1, x_s1)
    r2 = _ref_forward(blk2, x_s2)
    assert jnp.allclose(y1, r1, rtol=2e-3, atol=2e-3), float(jnp.max(jnp.abs(y1 - r1)))
    assert jnp.allclose(y2, r2, rtol=2e-3, atol=2e-3), float(jnp.max(jnp.abs(y2 - r2)))

    print("KERNEL_OK")
</pallas_src>

<mosaic_0001>
module attributes {stable_mosaic.version = 11 : i64} {
  func.func @kernel(%arg0: i32, %arg1: memref<1x4x2x256xf32, #tpu.memory_space<vmem>>, %arg2: memref<4x36xf32, #tpu.memory_space<vmem>>, %arg3: memref<4x36xf32, #tpu.memory_space<vmem>>, %arg4: memref<4x36xf32, #tpu.memory_space<vmem>>, %arg5: memref<1x8x256xf32, #tpu.memory_space<vmem>>, %arg6: memref<4x18x18xf32, #tpu.memory_space<vmem>>, %arg7: memref<4x18x18xf32, #tpu.memory_space<vmem>>) attributes {dimension_semantics = [#tpu.dimension_semantics<parallel>], iteration_bounds = array<i64: 2>, scalar_prefetch = 0 : i64, scratch_operands = 2 : i64, tpu.core_type = #tpu.core_type<tc>, window_params = [{transform_indices = @transform_0, window_bounds = array<i64: 1, 4, 2, 256>}, {pipeline_mode = #tpu.pipeline_mode<synchronous>, transform_indices = @transform_1, window_bounds = array<i64: 4, 36>}, {pipeline_mode = #tpu.pipeline_mode<synchronous>, transform_indices = @transform_2, window_bounds = array<i64: 4, 36>}, {pipeline_mode = #tpu.pipeline_mode<synchronous>, transform_indices = @transform_3, window_bounds = array<i64: 4, 36>}, {transform_indices = @transform_4, window_bounds = array<i64: 1, 8, 256>}]} {
    %c0 = arith.constant 0 : index
    %c0_0 = arith.constant 0 : index
    %c0_1 = arith.constant 0 : index
    %c0_2 = arith.constant 0 : index
    %0 = vector.load %arg1[%c0, %c0_0, %c0_1, %c0_2] : memref<1x4x2x256xf32, #tpu.memory_space<vmem>>, vector<1x4x1x256xf32>
    %1 = vector.shape_cast %0 : vector<1x4x1x256xf32> to vector<4x256xf32>
    %2 = vector.shape_cast %1 : vector<4x256xf32> to vector<4x16x16xf32>
    %cst = arith.constant 0.000000e+00 : f32
    %3 = vector.broadcast %cst : f32 to vector<4x1x18xf32>
    %c0_3 = arith.constant 0 : index
    %c0_4 = arith.constant 0 : index
    %c0_5 = arith.constant 0 : index
    %4 = vector.load %arg6[%c0_3, %c0_4, %c0_5] : memref<4x18x18xf32, #tpu.memory_space<vmem>>, vector<4x1x18xf32>
    tpu.vector_store %arg6[%c0_3, %c0_4, %c0_5], %3 {strides = array<i32>} : memref<4x18x18xf32, #tpu.memory_space<vmem>>, vector<4x1x18xf32>,
    %cst_6 = arith.constant 0.000000e+00 : f32
    %5 = vector.broadcast %cst_6 : f32 to vector<4x1x18xf32>
    %c0_7 = arith.constant 0 : index
    %c17 = arith.constant 17 : index
    %c0_8 = arith.constant 0 : index
    %6 = vector.load %arg6[%c0_7, %c17, %c0_8] : memref<4x18x18xf32, #tpu.memory_space<vmem>>, vector<4x1x18xf32>
    tpu.vector_store %arg6[%c0_7, %c17, %c0_8], %5 {strides = array<i32>} : memref<4x18x18xf32, #tpu.memory_space<vmem>>, vector<4x1x18xf32>,
    %cst_9 = arith.constant 0.000000e+00 : f32
    %7 = vector.broadcast %cst_9 : f32 to vector<4x16x1xf32>
    %c0_10 = arith.constant 0 : index
    %c1 = arith.constant 1 : index
    %c0_11 = arith.constant 0 : index
    %8 = vector.load %arg6[%c0_10, %c1, %c0_11] : memref<4x18x18xf32, #tpu.memory_space<vmem>>, vector<4x16x1xf32>
    tpu.vector_store %arg6[%c0_10, %c1, %c0_11], %7 {strides = array<i32>} : memref<4x18x18xf32, #tpu.memory_space<vmem>>, vector<4x16x1xf32>,
    %cst_12 = arith.constant 0.000000e+00 : f32
    %9 = vector.broadcast %cst_12 : f32 to vector<4x16x1xf32>
    %c0_13 = arith.constant 0 : index
    %c1_14 = arith.constant 1 : index
    %c17_15 = arith.constant 17 : index
    %10 = vector.load %arg6[%c0_13, %c1_14, %c17_15] : memref<4x18x18xf32, #tpu.memory_space<vmem>>, vector<4x16x1xf32>
    tpu.vector_store %arg6[%c0_13, %c1_14, %c17_15], %9 {strides = array<i32>} : memref<4x18x18xf32, #tpu.memory_space<vmem>>, vector<4x16x1xf32>,
    %c0_16 = arith.constant 0 : index
    %c1_17 = arith.constant 1 : index
    %c1_18 = arith.constant 1 : index
    %11 = vector.load %arg6[%c0_16, %c1_17, %c1_18] : memref<4x18x18xf32, #tpu.memory_space<vmem>>, vector<4x16x16xf32>
    tpu.vector_store %arg6[%c0_16, %c1_17, %c1_18], %2 {strides = array<i32>} : memref<4x18x18xf32, #tpu.memory_space<vmem>>, vector<4x16x16xf32>,
    %cst_19 = arith.constant 0.000000e+00 : f32
    %12 = vector.broadcast %cst_19 : f32 to vector<4x256xf32>
    %c0_20 = arith.constant 0 : index
    %c0_21 = arith.constant 0 : index
    %c0_22 = arith.constant 0 : index
    %13 = vector.load %arg6[%c0_20, %c0_21, %c0_22] : memref<4x18x18xf32, #tpu.memory_space<vmem>>, vector<4x16x16xf32>
    %c0_23 = arith.constant 0 : index
    %c0_24 = arith.constant 0 : index
    %14 = vector.load %arg2[%c0_23, %c0_24] : memref<4x36xf32, #tpu.memory_space<vmem>>, vector<4x4xf32>
    %15 = vector.shape_cast %13 : vector<4x16x16xf32> to vector<4x256xf32>
    %cst_25 = arith.constant dense<0.000000e+00> : vector<4x256xf32>
    %16 = tpu.matmul %14, %15, %cst_25 {dimension_numbers = #tpu.dot_dimension_numbers<[1], [0], [0], [1], [0, 0, 1, 1], [], []>} : vector<4x4xf32>, vector<4x256xf32>, vector<4x256xf32> -> vector<4x256xf32>
    %17 = arith.addf %12, %16 : vector<4x256xf32>
    %c0_26 = arith.constant 0 : index
    %c0_27 = arith.constant 0 : index
    %c1_28 = arith.constant 1 : index
    %18 = vector.load %arg6[%c0_26, %c0_27, %c1_28] : memref<4x18x18xf32, #tpu.memory_space<vmem>>, vector<4x16x16xf32>
    %c0_29 = arith.constant 0 : index
    %c4 = arith.constant 4 : index
    %19 = vector.load %arg2[%c0_29, %c4] : memref<4x36xf32, #tpu.memory_space<vmem>>, vector<4x4xf32>
    %20 = vector.shape_cast %18 : vector<4x16x16xf32> to vector<4x256xf32>
    %cst_30 = arith.constant dense<0.000000e+00> : vector<4x256xf32>
    %21 = tpu.matmul %19, %20, %cst_30 {dimension_numbers = #tpu.dot_dimension_numbers<[1], [0], [0], [1], [0, 0, 1, 1], [], []>} : vector<4x4xf32>, vector<4x256xf32>, vector<4x256xf32> -> vector<4x256xf32>
    %22 = arith.addf %17, %21 : vector<4x256xf32>
    %c0_31 = arith.constant 0 : index
    %c0_32 = arith.constant 0 : index
    %c2 = arith.constant 2 : index
    %23 = vector.load %arg6[%c0_31, %c0_32, %c2] : memref<4x18x18xf32, #tpu.memory_space<vmem>>, vector<4x16x16xf32>
    %c0_33 = arith.constant 0 : index
    %c8 = arith.constant 8 : index
    %24 = vector.load %arg2[%c0_33, %c8] : memref<4x36xf32, #tpu.memory_space<vmem>>, vector<4x4xf32>
    %25 = vector.shape_cast %23 : vector<4x16x16xf32> to vector<4x256xf32>
    %cst_34 = arith.constant dense<0.000000e+00> : vector<4x256xf32>
    %26 = tpu.matmul %24, %25, %cst_34 {dimension_numbers = #tpu.dot_dimension_numbers<[1], [0], [0], [1], [0, 0, 1, 1], [], []>} : vector<4x4xf32>, vector<4x256xf32>, vector<4x256xf32> -> vector<4x256xf32>
    %27 = arith.addf %22, %26 : vector<4x256xf32>
    %c0_35 = arith.constant 0 : index
    %c1_36 = arith.constant 1 : index
    %c0_37 = arith.constant 0 : index
    %28 = vector.load %arg6[%c0_35, %c1_36, %c0_37] : memref<4x18x18xf32, #tpu.memory_space<vmem>>, vector<4x16x16xf32>
    %c0_38 = arith.constant 0 : index
    %c12 = arith.constant 12 : index
    %29 = vector.load %arg2[%c0_38, %c12] : memref<4x36xf32, #tpu.memory_space<vmem>>, vector<4x4xf32>
    %30 = vector.shape_cast %28 : vector<4x16x16xf32> to vector<4x256xf32>
    %cst_39 = arith.constant dense<0.000000e+00> : vector<4x256xf32>
    %31 = tpu.matmul %29, %30, %cst_39 {dimension_numbers = #tpu.dot_dimension_numbers<[1], [0], [0], [1], [0, 0, 1, 1], [], []>} : vector<4x4xf32>, vector<4x256xf32>, vector<4x256xf32> -> vector<4x256xf32>
    %32 = arith.addf %27, %31 : vector<4x256xf32>
    %c0_40 = arith.constant 0 : index
    %c1_41 = arith.constant 1 : index
    %c1_42 = arith.constant 1 : index
    %33 = vector.load %arg6[%c0_40, %c1_41, %c1_42] : memref<4x18x18xf32, #tpu.memory_space<vmem>>, vector<4x16x16xf32>
    %c0_43 = arith.constant 0 : index
    %c16 = arith.constant 16 : index
    %34 = vector.load %arg2[%c0_43, %c16] : memref<4x36xf32, #tpu.memory_space<vmem>>, vector<4x4xf32>
    %35 = vector.shape_cast %33 : vector<4x16x16xf32> to vector<4x256xf32>
    %cst_44 = arith.constant dense<0.000000e+00> : vector<4x256xf32>
    %36 = tpu.matmul %34, %35, %cst_44 {dimension_numbers = #tpu.dot_dimension_numbers<[1], [0], [0], [1], [0, 0, 1, 1], [], []>} : vector<4x4xf32>, vector<4x256xf32>, vector<4x256xf32> -> vector<4x256xf32>
    %37 = arith.addf %32, %36 : vector<4x256xf32>
    %c0_45 = arith.constant 0 : index
    %c1_46 = arith.constant 1 : index
    %c2_47 = arith.constant 2 : index
    %38 = vector.load %arg6[%c0_45, %c1_46, %c2_47] : memref<4x18x18xf32, #tpu.memory_space<vmem>>, vector<4x16x16xf32>
    %c0_48 = arith.constant 0 : index
    %c20 = arith.constant 20 : index
    %39 = vector.load %arg2[%c0_48, %c20] : memref<4x36xf32, #tpu.memory_space<vmem>>, vector<4x4xf32>
    %40 = vector.shape_cast %38 : vector<4x16x16xf32> to vector<4x256xf32>
    %cst_49 = arith.constant dense<0.000000e+00> : vector<4x256xf32>
    %41 = tpu.matmul %39, %40, %cst_49 {dimension_numbers = #tpu.dot_dimension_numbers<[1], [0], [0], [1], [0, 0, 1, 1], [], []>} : vector<4x4xf32>, vector<4x256xf32>, vector<4x256xf32> -> vector<4x256xf32>
    %42 = arith.addf %37, %41 : vector<4x256xf32>
    %c0_50 = arith.constant 0 : index
    %c2_51 = arith.constant 2 : index
    %c0_52 = arith.constant 0 : index
    %43 = vector.load %arg6[%c0_50, %c2_51, %c0_52] : memref<4x18x18xf32, #tpu.memory_space<vmem>>, vector<4x16x16xf32>
    %c0_53 = arith.constant 0 : index
    %c24 = arith.constant 24 : index
    %44 = vector.load %arg2[%c0_53, %c24] : memref<4x36xf32, #tpu.memory_space<vmem>>, vector<4x4xf32>
    %45 = vector.shape_cast %43 : vector<4x16x16xf32> to vector<4x256xf32>
    %cst_54 = arith.constant dense<0.000000e+00> : vector<4x256xf32>
    %46 = tpu.matmul %44, %45, %cst_54 {dimension_numbers = #tpu.dot_dimension_numbers<[1], [0], [0], [1], [0, 0, 1, 1], [], []>} : vector<4x4xf32>, vector<4x256xf32>, vector<4x256xf32> -> vector<4x256xf32>
    %47 = arith.addf %42, %46 : vector<4x256xf32>
    %c0_55 = arith.constant 0 : index
    %c2_56 = arith.constant 2 : index
    %c1_57 = arith.constant 1 : index
    %48 = vector.load %arg6[%c0_55, %c2_56, %c1_57] : memref<4x18x18xf32, #tpu.memory_space<vmem>>, vector<4x16x16xf32>
    %c0_58 = arith.constant 0 : index
    %c28 = arith.constant 28 : index
    %49 = vector.load %arg2[%c0_58, %c28] : memref<4x36xf32, #tpu.memory_space<vmem>>, vector<4x4xf32>
    %50 = vector.shape_cast %48 : vector<4x16x16xf32> to vector<4x256xf32>
    %cst_59 = arith.constant dense<0.000000e+00> : vector<4x256xf32>
    %51 = tpu.matmul %49, %50, %cst_59 {dimension_numbers = #tpu.dot_dimension_numbers<[1], [0], [0], [1], [0, 0, 1, 1], [], []>} : vector<4x4xf32>, vector<4x256xf32>, vector<4x256xf32> -> vector<4x256xf32>
    %52 = arith.addf %47, %51 : vector<4x256xf32>
    %c0_60 = arith.constant 0 : index
    %c2_61 = arith.constant 2 : index
    %c2_62 = arith.constant 2 : index
    %53 = vector.load %arg6[%c0_60, %c2_61, %c2_62] : memref<4x18x18xf32, #tpu.memory_space<vmem>>, vector<4x16x16xf32>
    %c0_63 = arith.constant 0 : index
    %c32 = arith.constant 32 : index
    %54 = vector.load %arg2[%c0_63, %c32] : memref<4x36xf32, #tpu.memory_space<vmem>>, vector<4x4xf32>
    %55 = vector.shape_cast %53 : vector<4x16x16xf32> to vector<4x256xf32>
    %cst_64 = arith.constant dense<0.000000e+00> : vector<4x256xf32>
    %56 = tpu.matmul %54, %55, %cst_64 {dimension_numbers = #tpu.dot_dimension_numbers<[1], [0], [0], [1], [0, 0, 1, 1], [], []>} : vector<4x4xf32>, vector<4x256xf32>, vector<4x256xf32> -> vector<4x256xf32>
    %57 = arith.addf %52, %56 : vector<4x256xf32>
    %cst_65 = arith.constant 0.000000e+00 : f32
    %58 = vector.broadcast %cst_65 : f32 to vector<4x256xf32>
    %59 = arith.maximumf %57, %58 : vector<4x256xf32>
    %60 = vector.shape_cast %59 : vector<4x256xf32> to vector<4x16x16xf32>
    %cst_66 = arith.constant 0.000000e+00 : f32
    %61 = vector.broadcast %cst_66 : f32 to vector<4x1x18xf32>
    %c0_67 = arith.constant 0 : index
    %c0_68 = arith.constant 0 : index
    %c0_69 = arith.constant 0 : index
    %62 = vector.load %arg7[%c0_67, %c0_68, %c0_69] : memref<4x18x18xf32, #tpu.memory_space<vmem>>, vector<4x1x18xf32>
    tpu.vector_store %arg7[%c0_67, %c0_68, %c0_69], %61 {strides = array<i32>} : memref<4x18x18xf32, #tpu.memory_space<vmem>>, vector<4x1x18xf32>,
    %cst_70 = arith.constant 0.000000e+00 : f32
    %63 = vector.broadcast %cst_70 : f32 to vector<4x1x18xf32>
    %c0_71 = arith.constant 0 : index
    %c17_72 = arith.constant 17 : index
    %c0_73 = arith.constant 0 : index
    %64 = vector.load %arg7[%c0_71, %c17_72, %c0_73] : memref<4x18x18xf32, #tpu.memory_space<vmem>>, vector<4x1x18xf32>
    tpu.vector_store %arg7[%c0_71, %c17_72, %c0_73], %63 {strides = array<i32>} : memref<4x18x18xf32, #tpu.memory_space<vmem>>, vector<4x1x18xf32>,
    %cst_74 = arith.constant 0.000000e+00 : f32
    %65 = vector.broadcast %cst_74 : f32 to vector<4x16x1xf32>
    %c0_75 = arith.constant 0 : index
    %c1_76 = arith.constant 1 : index
    %c0_77 = arith.constant 0 : index
    %66 = vector.load %arg7[%c0_75, %c1_76, %c0_77] : memref<4x18x18xf32, #tpu.memory_space<vmem>>, vector<4x16x1xf32>
    tpu.vector_store %arg7[%c0_75, %c1_76, %c0_77], %65 {strides = array<i32>} : memref<4x18x18xf32, #tpu.memory_space<vmem>>, vector<4x16x1xf32>,
    %cst_78 = arith.constant 0.000000e+00 : f32
    %67 = vector.broadcast %cst_78 : f32 to vector<4x16x1xf32>
    %c0_79 = arith.constant 0 : index
    %c1_80 = arith.constant 1 : index
    %c17_81 = arith.constant 17 : index
    %68 = vector.load %arg7[%c0_79, %c1_80, %c17_81] : memref<4x18x18xf32, #tpu.memory_space<vmem>>, vector<4x16x1xf32>
    tpu.vector_store %arg7[%c0_79, %c1_80, %c17_81], %67 {strides = array<i32>} : memref<4x18x18xf32, #tpu.memory_space<vmem>>, vector<4x16x1xf32>,
    %c0_82 = arith.constant 0 : index
    %c1_83 = arith.constant 1 : index
    %c1_84 = arith.constant 1 : index
    %69 = vector.load %arg7[%c0_82, %c1_83, %c1_84] : memref<4x18x18xf32, #tpu.memory_space<vmem>>, vector<4x16x16xf32>
    tpu.vector_store %arg7[%c0_82, %c1_83, %c1_84], %60 {strides = array<i32>} : memref<4x18x18xf32, #tpu.memory_space<vmem>>, vector<4x16x16xf32>,
    %cst_85 = arith.constant 0.000000e+00 : f32
    %70 = vector.broadcast %cst_85 : f32 to vector<4x256xf32>
    %c0_86 = arith.constant 0 : index
    %c0_87 = arith.constant 0 : index
    %c0_88 = arith.constant 0 : index
    %71 = vector.load %arg7[%c0_86, %c0_87, %c0_88] : memref<4x18x18xf32, #tpu.memory_space<vmem>>, vector<4x16x16xf32>
    %c0_89 = arith.constant 0 : index
    %c0_90 = arith.constant 0 : index
    %72 = vector.load %arg3[%c0_89, %c0_90] : memref<4x36xf32, #tpu.memory_space<vmem>>, vector<4x4xf32>
    %73 = vector.shape_cast %71 : vector<4x16x16xf32> to vector<4x256xf32>
    %cst_91 = arith.constant dense<0.000000e+00> : vector<4x256xf32>
    %74 = tpu.matmul %72, %73, %cst_91 {dimension_numbers = #tpu.dot_dimension_numbers<[1], [0], [0], [1], [0, 0, 1, 1], [], []>} : vector<4x4xf32>, vector<4x256xf32>, vector<4x256xf32> -> vector<4x256xf32>
    %75 = arith.addf %70, %74 : vector<4x256xf32>
    %c0_92 = arith.constant 0 : index
    %c0_93 = arith.constant 0 : index
    %c1_94 = arith.constant 1 : index
    %76 = vector.load %arg7[%c0_92, %c0_93, %c1_94] : memref<4x18x18xf32, #tpu.memory_space<vmem>>, vector<4x16x16xf32>
    %c0_95 = arith.constant 0 : index
    %c4_96 = arith.constant 4 : index
    %77 = vector.load %arg3[%c0_95, %c4_96] : memref<4x36xf32, #tpu.memory_space<vmem>>, vector<4x4xf32>
    %78 = vector.shape_cast %76 : vector<4x16x16xf32> to vector<4x256xf32>
    %cst_97 = arith.constant dense<0.000000e+00> : vector<4x256xf32>
    %79 = tpu.matmul %77, %78, %cst_97 {dimension_numbers = #tpu.dot_dimension_numbers<[1], [0], [0], [1], [0, 0, 1, 1], [], []>} : vector<4x4xf32>, vector<4x256xf32>, vector<4x256xf32> -> vector<4x256xf32>
    %80 = arith.addf %75, %79 : vector<4x256xf32>
    %c0_98 = arith.constant 0 : index
    %c0_99 = arith.constant 0 : index
    %c2_100 = arith.constant 2 : index
    %81 = vector.load %arg7[%c0_98, %c0_99, %c2_100] : memref<4x18x18xf32, #tpu.memory_space<vmem>>, vector<4x16x16xf32>
    %c0_101 = arith.constant 0 : index
    %c8_102 = arith.constant 8 : index
    %82 = vector.load %arg3[%c0_101, %c8_102] : memref<4x36xf32, #tpu.memory_space<vmem>>, vector<4x4xf32>
    %83 = vector.shape_cast %81 : vector<4x16x16xf32> to vector<4x256xf32>
    %cst_103 = arith.constant dense<0.000000e+00> : vector<4x256xf32>
    %84 = tpu.matmul %82, %83, %cst_103 {dimension_numbers = #tpu.dot_dimension_numbers<[1], [0], [0], [1], [0, 0, 1, 1], [], []>} : vector<4x4xf32>, vector<4x256xf32>, vector<4x256xf32> -> vector<4x256xf32>
    %85 = arith.addf %80, %84 : vector<4x256xf32>
    %c0_104 = arith.constant 0 : index
    %c1_105 = arith.constant 1 : index
    %c0_106 = arith.constant 0 : index
    %86 = vector.load %arg7[%c0_104, %c1_105, %c0_106] : memref<4x18x18xf32, #tpu.memory_space<vmem>>, vector<4x16x16xf32>
    %c0_107 = arith.constant 0 : index
    %c12_108 = arith.constant 12 : index
    %87 = vector.load %arg3[%c0_107, %c12_108] : memref<4x36xf32, #tpu.memory_space<vmem>>, vector<4x4xf32>
    %88 = vector.shape_cast %86 : vector<4x16x16xf32> to vector<4x256xf32>
    %cst_109 = arith.constant dense<0.000000e+00> : vector<4x256xf32>
    %89 = tpu.matmul %87, %88, %cst_109 {dimension_numbers = #tpu.dot_dimension_numbers<[1], [0], [0], [1], [0, 0, 1, 1], [], []>} : vector<4x4xf32>, vector<4x256xf32>, vector<4x256xf32> -> vector<4x256xf32>
    %90 = arith.addf %85, %89 : vector<4x256xf32>
    %c0_110 = arith.constant 0 : index
    %c1_111 = arith.constant 1 : index
    %c1_112 = arith.constant 1 : index
    %91 = vector.load %arg7[%c0_110, %c1_111, %c1_112] : memref<4x18x18xf32, #tpu.memory_space<vmem>>, vector<4x16x16xf32>
    %c0_113 = arith.constant 0 : index
    %c16_114 = arith.constant 16 : index
    %92 = vector.load %arg3[%c0_113, %c16_114] : memref<4x36xf32, #tpu.memory_space<vmem>>, vector<4x4xf32>
    %93 = vector.shape_cast %91 : vector<4x16x16xf32> to vector<4x256xf32>
    %cst_115 = arith.constant dense<0.000000e+00> : vector<4x256xf32>
    %94 = tpu.matmul %92, %93, %cst_115 {dimension_numbers = #tpu.dot_dimension_numbers<[1], [0], [0], [1], [0, 0, 1, 1], [], []>} : vector<4x4xf32>, vector<4x256xf32>, vector<4x256xf32> -> vector<4x256xf32>
    %95 = arith.addf %90, %94 : vector<4x256xf32>
    %c0_116 = arith.constant 0 : index
    %c1_117 = arith.constant 1 : index
    %c2_118 = arith.constant 2 : index
    %96 = vector.load %arg7[%c0_116, %c1_117, %c2_118] : memref<4x18x18xf32, #tpu.memory_space<vmem>>, vector<4x16x16xf32>
    %c0_119 = arith.constant 0 : index
    %c20_120 = arith.constant 20 : index
    %97 = vector.load %arg3[%c0_119, %c20_120] : memref<4x36xf32, #tpu.memory_space<vmem>>, vector<4x4xf32>
    %98 = vector.shape_cast %96 : vector<4x16x16xf32> to vector<4x256xf32>
    %cst_121 = arith.constant dense<0.000000e+00> : vector<4x256xf32>
    %99 = tpu.matmul %97, %98, %cst_121 {dimension_numbers = #tpu.dot_dimension_numbers<[1], [0], [0], [1], [0, 0, 1, 1], [], []>} : vector<4x4xf32>, vector<4x256xf32>, vector<4x256xf32> -> vector<4x256xf32>
    %100 = arith.addf %95, %99 : vector<4x256xf32>
    %c0_122 = arith.constant 0 : index
    %c2_123 = arith.constant 2 : index
    %c0_124 = arith.constant 0 : index
    %101 = vector.load %arg7[%c0_122, %c2_123, %c0_124] : memref<4x18x18xf32, #tpu.memory_space<vmem>>, vector<4x16x16xf32>
    %c0_125 = arith.constant 0 : index
    %c24_126 = arith.constant 24 : index
    %102 = vector.load %arg3[%c0_125, %c24_126] : memref<4x36xf32, #tpu.memory_space<vmem>>, vector<4x4xf32>
    %103 = vector.shape_cast %101 : vector<4x16x16xf32> to vector<4x256xf32>
    %cst_127 = arith.constant dense<0.000000e+00> : vector<4x256xf32>
    %104 = tpu.matmul %102, %103, %cst_127 {dimension_numbers = #tpu.dot_dimension_numbers<[1], [0], [0], [1], [0, 0, 1, 1], [], []>} : vector<4x4xf32>, vector<4x256xf32>, vector<4x256xf32> -> vector<4x256xf32>
    %105 = arith.addf %100, %104 : vector<4x256xf32>
    %c0_128 = arith.constant 0 : index
    %c2_129 = arith.constant 2 : index
    %c1_130 = arith.constant 1 : index
    %106 = vector.load %arg7[%c0_128, %c2_129, %c1_130] : memref<4x18x18xf32, #tpu.memory_space<vmem>>, vector<4x16x16xf32>
    %c0_131 = arith.constant 0 : index
    %c28_132 = arith.constant 28 : index
    %107 = vector.load %arg3[%c0_131, %c28_132] : memref<4x36xf32, #tpu.memory_space<vmem>>, vector<4x4xf32>
    %108 = vector.shape_cast %106 : vector<4x16x16xf32> to vector<4x256xf32>
    %cst_133 = arith.constant dense<0.000000e+00> : vector<4x256xf32>
    %109 = tpu.matmul %107, %108, %cst_133 {dimension_numbers = #tpu.dot_dimension_numbers<[1], [0], [0], [1], [0, 0, 1, 1], [], []>} : vector<4x4xf32>, vector<4x256xf32>, vector<4x256xf32> -> vector<4x256xf32>
    %110 = arith.addf %105, %109 : vector<4x256xf32>
    %c0_134 = arith.constant 0 : index
    %c2_135 = arith.constant 2 : index
    %c2_136 = arith.constant 2 : index
    %111 = vector.load %arg7[%c0_134, %c2_135, %c2_136] : memref<4x18x18xf32, #tpu.memory_space<vmem>>, vector<4x16x16xf32>
    %c0_137 = arith.constant 0 : index
    %c32_138 = arith.constant 32 : index
    %112 = vector.load %arg3[%c0_137, %c32_138] : memref<4x36xf32, #tpu.memory_space<vmem>>, vector<4x4xf32>
    %113 = vector.shape_cast %111 : vector<4x16x16xf32> to vector<4x256xf32>
    %cst_139 = arith.constant dense<0.000000e+00> : vector<4x256xf32>
    %114 = tpu.matmul %112, %113, %cst_139 {dimension_numbers = #tpu.dot_dimension_numbers<[1], [0], [0], [1], [0, 0, 1, 1], [], []>} : vector<4x4xf32>, vector<4x256xf32>, vector<4x256xf32> -> vector<4x256xf32>
    %115 = arith.addf %110, %114 : vector<4x256xf32>
    %cst_140 = arith.constant 0.000000e+00 : f32
    %116 = vector.broadcast %cst_140 : f32 to vector<4x256xf32>
    %117 = arith.maximumf %115, %116 : vector<4x256xf32>
    %118 = vector.shape_cast %117 : vector<4x256xf32> to vector<4x16x16xf32>
    %cst_141 = arith.constant 0.000000e+00 : f32
    %119 = vector.broadcast %cst_141 : f32 to vector<4x1x18xf32>
    %c0_142 = arith.constant 0 : index
    %c0_143 = arith.constant 0 : index
    %c0_144 = arith.constant 0 : index
    %120 = vector.load %arg7[%c0_142, %c0_143, %c0_144] : memref<4x18x18xf32, #tpu.memory_space<vmem>>, vector<4x1x18xf32>
    tpu.vector_store %arg7[%c0_142, %c0_143, %c0_144], %119 {strides = array<i32>} : memref<4x18x18xf32, #tpu.memory_space<vmem>>, vector<4x1x18xf32>,
    %cst_145 = arith.constant 0.000000e+00 : f32
    %121 = vector.broadcast %cst_145 : f32 to vector<4x1x18xf32>
    %c0_146 = arith.constant 0 : index
    %c17_147 = arith.constant 17 : index
    %c0_148 = arith.constant 0 : index
    %122 = vector.load %arg7[%c0_146, %c17_147, %c0_148] : memref<4x18x18xf32, #tpu.memory_space<vmem>>, vector<4x1x18xf32>
    tpu.vector_store %arg7[%c0_146, %c17_147, %c0_148], %121 {strides = array<i32>} : memref<4x18x18xf32, #tpu.memory_space<vmem>>, vector<4x1x18xf32>,
    %cst_149 = arith.constant 0.000000e+00 : f32
    %123 = vector.broadcast %cst_149 : f32 to vector<4x16x1xf32>
    %c0_150 = arith.constant 0 : index
    %c1_151 = arith.constant 1 : index
    %c0_152 = arith.constant 0 : index
    %124 = vector.load %arg7[%c0_150, %c1_151, %c0_152] : memref<4x18x18xf32, #tpu.memory_space<vmem>>, vector<4x16x1xf32>
    tpu.vector_store %arg7[%c0_150, %c1_151, %c0_152], %123 {strides = array<i32>} : memref<4x18x18xf32, #tpu.memory_space<vmem>>, vector<4x16x1xf32>,
    %cst_153 = arith.constant 0.000000e+00 : f32
    %125 = vector.broadcast %cst_153 : f32 to vector<4x16x1xf32>
    %c0_154 = arith.constant 0 : index
    %c1_155 = arith.constant 1 : index
    %c17_156 = arith.constant 17 : index
    %126 = vector.load %arg7[%c0_154, %c1_155, %c17_156] : memref<4x18x18xf32, #tpu.memory_space<vmem>>, vector<4x16x1xf32>
    tpu.vector_store %arg7[%c0_154, %c1_155, %c17_156], %125 {strides = array<i32>} : memref<4x18x18xf32, #tpu.memory_space<vmem>>, vector<4x16x1xf32>,
    %c0_157 = arith.constant 0 : index
    %c1_158 = arith.constant 1 : index
    %c1_159 = arith.constant 1 : index
    %127 = vector.load %arg7[%c0_157, %c1_158, %c1_159] : memref<4x18x18xf32, #tpu.memory_space<vmem>>, vector<4x16x16xf32>
    tpu.vector_store %arg7[%c0_157, %c1_158, %c1_159], %118 {strides = array<i32>} : memref<4x18x18xf32, #tpu.memory_space<vmem>>, vector<4x16x16xf32>,
    %cst_160 = arith.constant 0.000000e+00 : f32
    %128 = vector.broadcast %cst_160 : f32 to vector<4x256xf32>
    %c0_161 = arith.constant 0 : index
    %c0_162 = arith.constant 0 : index
    %c0_163 = arith.constant 0 : index
    %129 = vector.load %arg7[%c0_161, %c0_162, %c0_163] : memref<4x18x18xf32, #tpu.memory_space<vmem>>, vector<4x16x16xf32>
    %c0_164 = arith.constant 0 : index
    %c0_165 = arith.constant 0 : index
    %130 = vector.load %arg4[%c0_164, %c0_165] : memref<4x36xf32, #tpu.memory_space<vmem>>, vector<4x4xf32>
    %131 = vector.shape_cast %129 : vector<4x16x16xf32> to vector<4x256xf32>
    %cst_166 = arith.constant dense<0.000000e+00> : vector<4x256xf32>
    %132 = tpu.matmul %130, %131, %cst_166 {dimension_numbers = #tpu.dot_dimension_numbers<[1], [0], [0], [1], [0, 0, 1, 1], [], []>} : vector<4x4xf32>, vector<4x256xf32>, vector<4x256xf32> -> vector<4x256xf32>
    %133 = arith.addf %128, %132 : vector<4x256xf32>
    %c0_167 = arith.constant 0 : index
    %c0_168 = arith.constant 0 : index
    %c1_169 = arith.constant 1 : index
    %134 = vector.load %arg7[%c0_167, %c0_168, %c1_169] : memref<4x18x18xf32, #tpu.memory_space<vmem>>, vector<4x16x16xf32>
    %c0_170 = arith.constant 0 : index
    %c4_171 = arith.constant 4 : index
    %135 = vector.load %arg4[%c0_170, %c4_171] : memref<4x36xf32, #tpu.memory_space<vmem>>, vector<4x4xf32>
    %136 = vector.shape_cast %134 : vector<4x16x16xf32> to vector<4x256xf32>
    %cst_172 = arith.constant dense<0.000000e+00> : vector<4x256xf32>
    %137 = tpu.matmul %135, %136, %cst_172 {dimension_numbers = #tpu.dot_dimension_numbers<[1], [0], [0], [1], [0, 0, 1, 1], [], []>} : vector<4x4xf32>, vector<4x256xf32>, vector<4x256xf32> -> vector<4x256xf32>
    %138 = arith.addf %133, %137 : vector<4x256xf32>
    %c0_173 = arith.constant 0 : index
    %c0_174 = arith.constant 0 : index
    %c2_175 = arith.constant 2 : index
    %139 = vector.load %arg7[%c0_173, %c0_174, %c2_175] : memref<4x18x18xf32, #tpu.memory_space<vmem>>, vector<4x16x16xf32>
    %c0_176 = arith.constant 0 : index
    %c8_177 = arith.constant 8 : index
    %140 = vector.load %arg4[%c0_176, %c8_177] : memref<4x36xf32, #tpu.memory_space<vmem>>, vector<4x4xf32>
    %141 = vector.shape_cast %139 : vector<4x16x16xf32> to vector<4x256xf32>
    %cst_178 = arith.constant dense<0.000000e+00> : vector<4x256xf32>
    %142 = tpu.matmul %140, %141, %cst_178 {dimension_numbers = #tpu.dot_dimension_numbers<[1], [0], [0], [1], [0, 0, 1, 1], [], []>} : vector<4x4xf32>, vector<4x256xf32>, vector<4x256xf32> -> vector<4x256xf32>
    %143 = arith.addf %138, %142 : vector<4x256xf32>
    %c0_179 = arith.constant 0 : index
    %c1_180 = arith.constant 1 : index
    %c0_181 = arith.constant 0 : index
    %144 = vector.load %arg7[%c0_179, %c1_180, %c0_181] : memref<4x18x18xf32, #tpu.memory_space<vmem>>, vector<4x16x16xf32>
    %c0_182 = arith.constant 0 : index
    %c12_183 = arith.constant 12 : index
    %145 = vector.load %arg4[%c0_182, %c12_183] : memref<4x36xf32, #tpu.memory_space<vmem>>, vector<4x4xf32>
    %146 = vector.shape_cast %144 : vector<4x16x16xf32> to vector<4x256xf32>
    %cst_184 = arith.constant dense<0.000000e+00> : vector<4x256xf32>
    %147 = tpu.matmul %145, %146, %cst_184 {dimension_numbers = #tpu.dot_dimension_numbers<[1], [0], [0], [1], [0, 0, 1, 1], [], []>} : vector<4x4xf32>, vector<4x256xf32>, vector<4x256xf32> -> vector<4x256xf32>
    %148 = arith.addf %143, %147 : vector<4x256xf32>
    %c0_185 = arith.constant 0 : index
    %c1_186 = arith.constant 1 : index
    %c1_187 = arith.constant 1 : index
    %149 = vector.load %arg7[%c0_185, %c1_186, %c1_187] : memref<4x18x18xf32, #tpu.memory_space<vmem>>, vector<4x16x16xf32>
    %c0_188 = arith.constant 0 : index
    %c16_189 = arith.constant 16 : index
    %150 = vector.load %arg4[%c0_188, %c16_189] : memref<4x36xf32, #tpu.memory_space<vmem>>, vector<4x4xf32>
    %151 = vector.shape_cast %149 : vector<4x16x16xf32> to vector<4x256xf32>
    %cst_190 = arith.constant dense<0.000000e+00> : vector<4x256xf32>
    %152 = tpu.matmul %150, %151, %cst_190 {dimension_numbers = #tpu.dot_dimension_numbers<[1], [0], [0], [1], [0, 0, 1, 1], [], []>} : vector<4x4xf32>, vector<4x256xf32>, vector<4x256xf32> -> vector<4x256xf32>
    %153 = arith.addf %148, %152 : vector<4x256xf32>
    %c0_191 = arith.constant 0 : index
    %c1_192 = arith.constant 1 : index
    %c2_193 = arith.constant 2 : index
    %154 = vector.load %arg7[%c0_191, %c1_192, %c2_193] : memref<4x18x18xf32, #tpu.memory_space<vmem>>, vector<4x16x16xf32>
    %c0_194 = arith.constant 0 : index
    %c20_195 = arith.constant 20 : index
    %155 = vector.load %arg4[%c0_194, %c20_195] : memref<4x36xf32, #tpu.memory_space<vmem>>, vector<4x4xf32>
    %156 = vector.shape_cast %154 : vector<4x16x16xf32> to vector<4x256xf32>
    %cst_196 = arith.constant dense<0.000000e+00> : vector<4x256xf32>
    %157 = tpu.matmul %155, %156, %cst_196 {dimension_numbers = #tpu.dot_dimension_numbers<[1], [0], [0], [1], [0, 0, 1, 1], [], []>} : vector<4x4xf32>, vector<4x256xf32>, vector<4x256xf32> -> vector<4x256xf32>
    %158 = arith.addf %153, %157 : vector<4x256xf32>
    %c0_197 = arith.constant 0 : index
    %c2_198 = arith.constant 2 : index
    %c0_199 = arith.constant 0 : index
    %159 = vector.load %arg7[%c0_197, %c2_198, %c0_199] : memref<4x18x18xf32, #tpu.memory_space<vmem>>, vector<4x16x16xf32>
    %c0_200 = arith.constant 0 : index
    %c24_201 = arith.constant 24 : index
    %160 = vector.load %arg4[%c0_200, %c24_201] : memref<4x36xf32, #tpu.memory_space<vmem>>, vector<4x4xf32>
    %161 = vector.shape_cast %159 : vector<4x16x16xf32> to vector<4x256xf32>
    %cst_202 = arith.constant dense<0.000000e+00> : vector<4x256xf32>
    %162 = tpu.matmul %160, %161, %cst_202 {dimension_numbers = #tpu.dot_dimension_numbers<[1], [0], [0], [1], [0, 0, 1, 1], [], []>} : vector<4x4xf32>, vector<4x256xf32>, vector<4x256xf32> -> vector<4x256xf32>
    %163 = arith.addf %158, %162 : vector<4x256xf32>
    %c0_203 = arith.constant 0 : index
    %c2_204 = arith.constant 2 : index
    %c1_205 = arith.constant 1 : index
    %164 = vector.load %arg7[%c0_203, %c2_204, %c1_205] : memref<4x18x18xf32, #tpu.memory_space<vmem>>, vector<4x16x16xf32>
    %c0_206 = arith.constant 0 : index
    %c28_207 = arith.constant 28 : index
    %165 = vector.load %arg4[%c0_206, %c28_207] : memref<4x36xf32, #tpu.memory_space<vmem>>, vector<4x4xf32>
    %166 = vector.shape_cast %164 : vector<4x16x16xf32> to vector<4x256xf32>
    %cst_208 = arith.constant dense<0.000000e+00> : vector<4x256xf32>
    %167 = tpu.matmul %165, %166, %cst_208 {dimension_numbers = #tpu.dot_dimension_numbers<[1], [0], [0], [1], [0, 0, 1, 1], [], []>} : vector<4x4xf32>, vector<4x256xf32>, vector<4x256xf32> -> vector<4x256xf32>
    %168 = arith.addf %163, %167 : vector<4x256xf32>
    %c0_209 = arith.constant 0 : index
    %c2_210 = arith.constant 2 : index
    %c2_211 = arith.constant 2 : index
    %169 = vector.load %arg7[%c0_209, %c2_210, %c2_211] : memref<4x18x18xf32, #tpu.memory_space<vmem>>, vector<4x16x16xf32>
    %c0_212 = arith.constant 0 : index
    %c32_213 = arith.constant 32 : index
    %170 = vector.load %arg4[%c0_212, %c32_213] : memref<4x36xf32, #tpu.memory_space<vmem>>, vector<4x4xf32>
    %171 = vector.shape_cast %169 : vector<4x16x16xf32> to vector<4x256xf32>
    %cst_214 = arith.constant dense<0.000000e+00> : vector<4x256xf32>
    %172 = tpu.matmul %170, %171, %cst_214 {dimension_numbers = #tpu.dot_dimension_numbers<[1], [0], [0], [1], [0, 0, 1, 1], [], []>} : vector<4x4xf32>, vector<4x256xf32>, vector<4x256xf32> -> vector<4x256xf32>
    %173 = arith.addf %168, %172 : vector<4x256xf32>
    %cst_215 = arith.constant 0.000000e+00 : f32
    %174 = vector.broadcast %cst_215 : f32 to vector<4x256xf32>
    %175 = arith.maximumf %173, %174 : vector<4x256xf32>
    %c0_216 = arith.constant 0 : index
    %c0_217 = arith.constant 0 : index
    %c0_218 = arith.constant 0 : index
    %176 = vector.load %arg5[%c0_216, %c0_217, %c0_218] : memref<1x8x256xf32, #tpu.memory_space<vmem>>, vector<1x4x256xf32>
    %177 = vector.shape_cast %176 : vector<1x4x256xf32> to vector<4x256xf32>
    %178 = vector.shape_cast %175 : vector<4x256xf32> to vector<1x4x256xf32>
    tpu.vector_store %arg5[%c0_216, %c0_217, %c0_218], %178 {strides = array<i32>} : memref<1x8x256xf32, #tpu.memory_space<vmem>>, vector<1x4x256xf32>,
    %c0_219 = arith.constant 0 : index
    %c0_220 = arith.constant 0 : index
    %c1_221 = arith.constant 1 : index
    %c0_222 = arith.constant 0 : index
    %179 = vector.load %arg1[%c0_219, %c0_220, %c1_221, %c0_222] : memref<1x4x2x256xf32, #tpu.memory_space<vmem>>, vector<1x4x1x256xf32>
    %180 = vector.shape_cast %179 : vector<1x4x1x256xf32> to vector<4x256xf32>
    %c0_223 = arith.constant 0 : index
    %c4_224 = arith.constant 4 : index
    %c0_225 = arith.constant 0 : index
    %181 = vector.load %arg5[%c0_223, %c4_224, %c0_225] : memref<1x8x256xf32, #tpu.memory_space<vmem>>, vector<1x4x256xf32>
    %182 = vector.shape_cast %181 : vector<1x4x256xf32> to vector<4x256xf32>
    %183 = vector.shape_cast %180 : vector<4x256xf32> to vector<1x4x256xf32>
    tpu.vector_store %arg5[%c0_223, %c4_224, %c0_225], %183 {strides = array<i32>} : memref<1x8x256xf32, #tpu.memory_space<vmem>>, vector<1x4x256xf32>,
    return
  }
  func.func @transform_0(%arg0: i32) -> (i32, i32, i32, i32) {
    %c0_i32 = arith.constant 0 : i32
    %c0_i32_0 = arith.constant 0 : i32
    %c0_i32_1 = arith.constant 0 : i32
    %c0_i32_2 = arith.constant 0 : i32
    return %arg0, %c0_i32, %c0_i32_0, %c0_i32_1 : i32, i32, i32, i32
  }
  func.func @transform_1(%arg0: i32) -> (i32, i32) {
    %c0_i32 = arith.constant 0 : i32
    %c0_i32_0 = arith.constant 0 : i32
    %c0_i32_1 = arith.constant 0 : i32
    return %c0_i32, %c0_i32_0 : i32, i32
  }
  func.func @transform_2(%arg0: i32) -> (i32, i32) {
    %c0_i32 = arith.constant 0 : i32
    %c0_i32_0 = arith.constant 0 : i32
    %c0_i32_1 = arith.constant 0 : i32
    return %c0_i32, %c0_i32_0 : i32, i32
  }
  func.func @transform_3(%arg0: i32) -> (i32, i32) {
    %c0_i32 = arith.constant 0 : i32
    %c0_i32_0 = arith.constant 0 : i32
    %c0_i32_1 = arith.constant 0 : i32
    return %c0_i32, %c0_i32_0 : i32, i32
  }
  func.func @transform_4(%arg0: i32) -> (i32, i32, i32) {
    %c0_i32 = arith.constant 0 : i32
    %c0_i32_0 = arith.constant 0 : i32
    %c0_i32_1 = arith.constant 0 : i32
    return %arg0, %c0_i32, %c0_i32_0 : i32, i32, i32
  }
}

</mosaic_0001>

<llo_original>
// kernel: a_call__.1
$region0: #{a_call__.1}
  #allocation0 [shape = 'u32[]', space=smem, size = 0x4, offset = 0x4, fixed_abs, tag = 'smem constant byte address 0x4 - core index']
  #allocation1 [shape = 'u32[72,128]{1,0:T(1,128)}', space=vmem, size = 0x9000, scoped, tag = 'internal scratch']
  #allocation2 [shape = 'f32[4,18,18]{2,1,0:T(8,128)}', space=vmem, size = 0xc000, scoped, tag = 'scratch operand']
  #allocation3 [shape = 'f32[4,18,18]{2,1,0:T(8,128)}', space=vmem, size = 0xc000, scoped, tag = 'scratch operand']
  %s0 = inlined_call_operand.vmem [shape: f32[2,4,2,256], index: 0, kind: input, shape index: {}]
  %s1 = inlined_call_operand.vmem [shape: f32[4,36], index: 1, kind: input, shape index: {}]
  %s2 = inlined_call_operand.vmem [shape: f32[4,36], index: 2, kind: input, shape index: {}]
  %s3 = inlined_call_operand.vmem [shape: f32[4,36], index: 3, kind: input, shape index: {}]
  %s4 = inlined_call_operand.vmem [shape: f32[2,8,256], index: 4, kind: output, shape index: {}]
  %s5 = sld [smem:[#allocation0]]
  $region49: #{a_call__.1} parent=0
    _
  %s7 = ssub.s32 1, %s5
  %s8 = scalar_select 0, %s7, %s5
  loop: start=0, step=1, limit=4
  $region2: #{a_call__.1} parent=0 // loop_pre_header
    _
  $region3: #{a_call__.1} parent=0 // loop_header
    %s10 = sphi 0, %s14
    %p11 = scmp.ge.s32.totalorder %s10, 4
    %s20 = sphi 0, %s22
    %s23 = sphi 0, %s20
    %s24 = sphi 0, %s23
    %s40 = sphi 0, %s24
    %s44 = sphi 0, %s44
    %s46 = sphi 0, %s44
    %s47 = sphi 0, %s46
    %s61 = sphi 0, %s47
    %s65 = sphi 0, %s65
    %s67 = sphi 0, %s65
    %s68 = sphi 0, %s67
    %s82 = sphi 0, %s68
    %s86 = sphi 0, %s86
    %s88 = sphi 0, %s86
    %s89 = sphi 0, %s88
    %s103 = sphi 0, %s89
    %s109 = sphi 0, %s111
    %s112 = sphi 0, %s109
    %s113 = sphi 0, %s112
    %s129 = sphi 0, %s113
  $region4: #{a_call__.1} parent=0 // loop_header_branch
    %13 = sbr.rel (%p11) target = $region8
  $region5: #{a_call__.1} parent=0 // loop_body
    %s15 = ssub.s32 %s10, 1
    %s16 = ssub.s32 %s10, 2
    %s17 = sadd.s32 %s10, 1
    %s18 = ssub.s32 %s10, %s17
    %p19 = scmp.eq.s32.totalorder %s18, 0
    %s21 = sadd.s32 %s20, 1
    %s22 = scalar_select %p19, %s20, %s21
    %p25 = pneg %p19
    %p26 = scmp.eq.s32.totalorder %s10, 1
    %p27 = por %p25, %p26
    %p28 = scmp.ne.s32.totalorder %s20, %s23
    %p29 = scmp.eq.s32.totalorder %s10, 0
    %p30 = por %p28, %p29
    %p31 = scmp.ne.s32.totalorder %s20, %s23
    %p32 = scmp.eq.s32.totalorder %s15, 1
    %p33 = por %p31, %p32
    %p34 = scmp.ne.s32.totalorder %s23, %s24
    %p35 = scmp.eq.s32.totalorder %s15, 0
    %p36 = por %p34, %p35
    %p37 = scmp.ne.s32.totalorder %s23, %s24
    %p38 = scmp.eq.s32.totalorder %s16, 1
    %p39 = por %p37, %p38
    %p41 = scmp.ne.s32.totalorder %s24, %s40
    %p42 = scmp.eq.s32.totalorder %s16, 0
    %p43 = por %p41, %p42
    %s45 = sadd.s32 %s44, 1
    %p48 = scmp.eq.s32.totalorder %s10, 1
    %p49 = scmp.ne.s32.totalorder %s44, %s46
    %p50 = scmp.eq.s32.totalorder %s10, 0
    %p51 = por %p49, %p50
    %p52 = scmp.ne.s32.totalorder %s44, %s46
    %p53 = scmp.eq.s32.totalorder %s15, 1
    %p54 = por %p52, %p53
    %p55 = scmp.ne.s32.totalorder %s46, %s47
    %p56 = scmp.eq.s32.totalorder %s15, 0
    %p57 = por %p55, %p56
    %p58 = scmp.ne.s32.totalorder %s46, %s47
    %p59 = scmp.eq.s32.totalorder %s16, 1
    %p60 = por %p58, %p59
    %p62 = scmp.ne.s32.totalorder %s47, %s61
    %p63 = scmp.eq.s32.totalorder %s16, 0
    %p64 = por %p62, %p63
    %s66 = sadd.s32 %s65, 1
    %p69 = scmp.eq.s32.totalorder %s10, 1
    %p70 = scmp.ne.s32.totalorder %s65, %s67
    %p71 = scmp.eq.s32.totalorder %s10, 0
    %p72 = por %p70, %p71
    %p73 = scmp.ne.s32.totalorder %s65, %s67
    %p74 = scmp.eq.s32.totalorder %s15, 1
    %p75 = por %p73, %p74
    %p76 = scmp.ne.s32.totalorder %s67, %s68
    %p77 = scmp.eq.s32.totalorder %s15, 0
    %p78 = por %p76, %p77
    %p79 = scmp.ne.s32.totalorder %s67, %s68
    %p80 = scmp.eq.s32.totalorder %s16, 1
    %p81 = por %p79, %p80
    %p83 = scmp.ne.s32.totalorder %s68, %s82
    %p84 = scmp.eq.s32.totalorder %s16, 0
    %p85 = por %p83, %p84
    %s87 = sadd.s32 %s86, 1
    %p90 = scmp.eq.s32.totalorder %s10, 1
    %p91 = scmp.ne.s32.totalorder %s86, %s88
    %p92 = scmp.eq.s32.totalorder %s10, 0
    %p93 = por %p91, %p92
    %p94 = scmp.ne.s32.totalorder %s86, %s88
    %p95 = scmp.eq.s32.totalorder %s15, 1
    %p96 = por %p94, %p95
    %p97 = scmp.ne.s32.totalorder %s88, %s89
    %p98 = scmp.eq.s32.totalorder %s15, 0
    %p99 = por %p97, %p98
    %p100 = scmp.ne.s32.totalorder %s88, %s89
    %p101 = scmp.eq.s32.totalorder %s16, 1
    %p102 = por %p100, %p101
    %p104 = scmp.ne.s32.totalorder %s89, %s103
    %p105 = scmp.eq.s32.totalorder %s16, 0
    %p106 = por %p104, %p105
    %s107 = ssub.s32 %s10, %s17
    %p108 = scmp.eq.s32.totalorder %s107, 0
    %s110 = sadd.s32 %s109, 1
    %s111 = scalar_select %p108, %s109, %s110
    %p114 = pneg %p108
    %p115 = scmp.eq.s32.totalorder %s10, 1
    %p116 = por %p114, %p115
    %p117 = scmp.ne.s32.totalorder %s109, %s112
    %p118 = scmp.eq.s32.totalorder %s10, 0
    %p119 = por %p117, %p118
    %p120 = scmp.ne.s32.totalorder %s109, %s112
    %p121 = scmp.eq.s32.totalorder %s15, 1
    %p122 = por %p120, %p121
    %p123 = scmp.ne.s32.totalorder %s112, %s113
    %p124 = scmp.eq.s32.totalorder %s15, 0
    %p125 = por %p123, %p124
    %p126 = scmp.ne.s32.totalorder %s112, %s113
    %p127 = scmp.eq.s32.totalorder %s16, 1
    %p128 = por %p126, %p127
    %p130 = scmp.ne.s32.totalorder %s113, %s129
    %p131 = scmp.eq.s32.totalorder %s16, 0
    %p132 = por %p130, %p131
    %p133 = scmp.le.s32.totalorder 1, %s10
    %p134 = scmp.lt.s32.totalorder %s10, 3
    %p135 = pnand %p133, %p134
    %p136 = pneg %p135
    // Predicated region
    $region9: #{a_call__.1} parent=5 // pred_check
      _
    $region10: #{a_call__.1} parent=5 // pred_check_branch
      %138 = sbr.rel (%p135) target = $region12
    $region11: #{a_call__.1} parent=5 // pred_region
      %s139 = ssub.s32 %s10, 1
      // Predicated region
      $region13: #{a_call__.1} parent=11 // pred_check
        %p140 = pneg %p57
      $region14: #{a_call__.1} parent=11 // pred_check_branch
        %142 = sbr.rel (%p140) target = $region16
      $region15: #{a_call__.1} parent=11 // pred_region
        _
      $region16: #{a_call__.1} parent=11 // pred_fallthru
        _
      // Predicated region
      $region17: #{a_call__.1} parent=11 // pred_check
        %p143 = pneg %p78
      $region18: #{a_call__.1} parent=11 // pred_check_branch
        %145 = sbr.rel (%p143) target = $region20
      $region19: #{a_call__.1} parent=11 // pred_region
        _
      $region20: #{a_call__.1} parent=11 // pred_fallthru
        _
      // Predicated region
      $region21: #{a_call__.1} parent=11 // pred_check
        %p146 = pneg %p99
      $region22: #{a_call__.1} parent=11 // pred_check_branch
        %148 = sbr.rel (%p146) target = $region24
      $region23: #{a_call__.1} parent=11 // pred_region
        _
      $region24: #{a_call__.1} parent=11 // pred_fallthru
        _
    $region12: #{a_call__.1} parent=5 // pred_fallthru
      _
    %p149 = scmp.lt.s32.totalorder %s10, 2
    // Predicated region
    $region25: #{a_call__.1} parent=5 // pred_check
      %p150 = pneg %p149
    $region26: #{a_call__.1} parent=5 // pred_check_branch
      %152 = sbr.rel (%p150) target = $region28
    $region27: #{a_call__.1} parent=5 // pred_region
      // Predicated region
      $region29: #{a_call__.1} parent=27 // pred_check
        %p153 = pneg %p30
      $region30: #{a_call__.1} parent=27 // pred_check_branch
        %155 = sbr.rel (%p153) target = $region32
      $region31: #{a_call__.1} parent=27 // pred_region
        %p156 = scmp.lt.s32.totalorder %s10, 1
        %s157 = scalar_select %p156, %s10, 1
        %s158 = smul.addr %s157, 8
        %s159 = smul.addr %s158, 2
        %s160 = scalar_lea.vmem %s0, %s159
      $region32: #{a_call__.1} parent=27 // pred_fallthru
        _
    $region28: #{a_call__.1} parent=5 // pred_fallthru
      _
    %p161 = scmp.le.s32.totalorder 1, %s10
    %p162 = scmp.lt.s32.totalorder %s10, 3
    %p163 = pnand %p161, %p162
    %p164 = pneg %p163
    // Predicated region
    $region33: #{a_call__.1} parent=5 // pred_check
      _
    $region34: #{a_call__.1} parent=5 // pred_check_branch
      %166 = sbr.rel (%p163) target = $region36
    $region35: #{a_call__.1} parent=5 // pred_region
      %s167 = ssub.s32 %s10, 1
      %p168 = scmp.lt.s32.totalorder %s15, 1
      %s169 = scalar_select %p168, %s15, 1
      %s170 = smul.addr %s169, 8
      %s171 = smul.addr %s170, 2
      %s172 = scalar_lea.vmem %s0, %s171
      %p173 = pneg %p36
      %p174 = pneg %p33
      %p175 = pneg %p57
      %p176 = pneg %p54
      %p177 = pneg %p78
      %p178 = pneg %p75
      %p179 = pneg %p99
      %p180 = pneg %p96
      %p181 = pneg %p125
      %p182 = pneg %p122
      %p183 = scmp.lt.s32.totalorder %s15, 1
      %s184 = scalar_select %p183, %s15, 1
      %s185 = smul.addr %s184, 2
      %s186 = smul.addr %s185, 8
      %s187 = scalar_lea.vmem %s4, %s186
      %p188 = scmp.lt.s32.totalorder %s15, 1
      %s189 = scalar_select %p188, %s15, 1
      %s190 = smul.addr %s189, 8
      %s191 = smul.addr %s190, 2
      %s192 = scalar_lea.vmem %s0, %s191
      %p193 = scmp.lt.s32.totalorder %s15, 1
      %s194 = scalar_select %p193, %s15, 1
      %s195 = smul.addr %s194, 2
      %s196 = smul.addr %s195, 8
      %s197 = scalar_lea.vmem %s4, %s196
      %v198 = vld [vmem:[%s192] ss:$2 sm:$0x3]
      %s199 = scalar_lea.vmem %s192, 4
      %v200 = vld [vmem:[%s199] ss:$2 sm:$0x3]
      %s201 = scalar_lea.vmem %s192, 8
      %v202 = vld [vmem:[%s201] ss:$2 sm:$0x3]
      %s203 = scalar_lea.vmem %s192, 12
      %v204 = vld [vmem:[%s203] ss:$2 sm:$0x3]
      %v209 = vrot.slane %v198, 1
      %v210 = vrot.slane %v200, 1
      %v211 = vrot.slane %v202, 1
      %v212 = vrot.slane %v204, 1
      %213 = vrot.lane.b32.xlu0 %v198, 112
      %v214 = vpop.permute.xlu0 %213
      %215 = vrot.lane.b32.xlu0 %v200, 112
      %v216 = vpop.permute.xlu0 %215
      %217 = vrot.lane.b32.xlu0 %v202, 112
      %v218 = vpop.permute.xlu0 %217
      %219 = vrot.lane.b32.xlu0 %v204, 112
      %v220 = vpop.permute.xlu0 %219
      %v221 = vrot.slane %v214, 1
      %v222 = vrot.slane %v216, 1
      %v223 = vrot.slane %v218, 1
      %v224 = vrot.slane %v220, 1
      %225 = vrot.lane.b32.xlu0 %v198, 96
      %v226 = vpop.permute.xlu0 %225
      %227 = vrot.lane.b32.xlu0 %v200, 96
      %v228 = vpop.permute.xlu0 %227
      %229 = vrot.lane.b32.xlu0 %v202, 96
      %v230 = vpop.permute.xlu0 %229
      %231 = vrot.lane.b32.xlu0 %v204, 96
      %v232 = vpop.permute.xlu0 %231
      %v233 = vrot.slane %v226, 1
      %v234 = vrot.slane %v228, 1
      %v235 = vrot.slane %v230, 1
      %v236 = vrot.slane %v232, 1
      %237 = vrot.lane.b32.xlu0 %v198, 80
      %v238 = vpop.permute.xlu0 %237
      %239 = vrot.lane.b32.xlu0 %v200, 80
      %v240 = vpop.permute.xlu0 %239
      %241 = vrot.lane.b32.xlu0 %v202, 80
      %v242 = vpop.permute.xlu0 %241
      %243 = vrot.lane.b32.xlu0 %v204, 80
      %v244 = vpop.permute.xlu0 %243
      %v245 = vrot.slane %v238, 1
      %v246 = vrot.slane %v240, 1
      %v247 = vrot.slane %v242, 1
      %v248 = vrot.slane %v244, 1
      %249 = vrot.lane.b32.xlu0 %v198, 64
      %v250 = vpop.permute.xlu0 %249
      %251 = vrot.lane.b32.xlu0 %v200, 64
      %v252 = vpop.permute.xlu0 %251
      %253 = vrot.lane.b32.xlu0 %v202, 64
      %v254 = vpop.permute.xlu0 %253
      %255 = vrot.lane.b32.xlu0 %v204, 64
      %v256 = vpop.permute.xlu0 %255
      %v257 = vrot.slane %v250, 1
      %v258 = vrot.slane %v252, 1
      %v259 = vrot.slane %v254, 1
      %v260 = vrot.slane %v256, 1
      %261 = vrot.lane.b32.xlu0 %v198, 48
      %v262 = vpop.permute.xlu0 %261
      %263 = vrot.lane.b32.xlu0 %v200, 48
      %v264 = vpop.permute.xlu0 %263
      %265 = vrot.lane.b32.xlu0 %v202, 48
      %v266 = vpop.permute.xlu0 %265
      %267 = vrot.lane.b32.xlu0 %v204, 48
      %v268 = vpop.permute.xlu0 %267
      %v269 = vrot.slane %v262, 1
      %v270 = vrot.slane %v264, 1
      %v271 = vrot.slane %v266, 1
      %v272 = vrot.slane %v268, 1
      %273 = vrot.lane.b32.xlu0 %v198, 32
      %v274 = vpop.permute.xlu0 %273
      %275 = vrot.lane.b32.xlu0 %v200, 32
      %v276 = vpop.permute.xlu0 %275
      %277 = vrot.lane.b32.xlu0 %v202, 32
      %v278 = vpop.permute.xlu0 %277
      %279 = vrot.lane.b32.xlu0 %v204, 32
      %v280 = vpop.permute.xlu0 %279
      %v281 = vrot.slane %v274, 1
      %v282 = vrot.slane %v276, 1
      %v283 = vrot.slane %v278, 1
      %v284 = vrot.slane %v280, 1
      %285 = vrot.lane.b32.xlu0 %v198, 16
      %v286 = vpop.permute.xlu0 %285
      %287 = vrot.lane.b32.xlu0 %v200, 16
      %v288 = vpop.permute.xlu0 %287
      %289 = vrot.lane.b32.xlu0 %v202, 16
      %v290 = vpop.permute.xlu0 %289
      %291 = vrot.lane.b32.xlu0 %v204, 16
      %v292 = vpop.permute.xlu0 %291
      %v293 = vrot.slane %v286, 1
      %v294 = vrot.slane %v288, 1
      %v295 = vrot.slane %v290, 1
      %v296 = vrot.slane %v292, 1
      %vm297 = vcmask 139264
      %298 = vst.msk [vmem:[#allocation2] sm:$0x1] %vm297, 0.0
      %299 = vst.msk [vmem:[#allocation2 + $0x18] sm:$0x1] %vm297, 0.0
      %300 = vst.msk [vmem:[#allocation2 + $0x30] sm:$0x1] %vm297, 0.0
      %301 = vst.msk [vmem:[#allocation2 + $0x48] sm:$0x1] %vm297, 0.0
      %302 = vst.msk [vmem:[#allocation2 + $0x11] sm:$0x1] %vm297, 0.0
      %303 = vst.msk [vmem:[#allocation2 + $0x29] sm:$0x1] %vm297, 0.0
      %304 = vst.msk [vmem:[#allocation2 + $0x41] sm:$0x1] %vm297, 0.0
      %305 = vst.msk [vmem:[#allocation2 + $0x59] sm:$0x1] %vm297, 0.0
      %vm306 = vcmask 7168
      %307 = vst.msk [vmem:[#allocation2 + $0x1] sm:$0xff] %vm306, 0.0
      %308 = vst.msk [vmem:[#allocation2 + $0x9] sm:$0xff] %vm306, 0.0
      %309 = vst.msk [vmem:[#allocation2 + $0x19] sm:$0xff] %vm306, 0.0
      %310 = vst.msk [vmem:[#allocation2 + $0x21] sm:$0xff] %vm306, 0.0
      %311 = vst.msk [vmem:[#allocation2 + $0x31] sm:$0xff] %vm306, 0.0
      %312 = vst.msk [vmem:[#allocation2 + $0x39] sm:$0xff] %vm306, 0.0
      %313 = vst.msk [vmem:[#allocation2 + $0x49] sm:$0xff] %vm306, 0.0
      %314 = vst.msk [vmem:[#allocation2 + $0x51] sm:$0xff] %vm306, 0.0
      %vm315 = vcmask 146568
      %316 = vst.msk [vmem:[#allocation2 + $0x1] sm:$0xff] %vm315, 0.0
      %317 = vst.msk [vmem:[#allocation2 + $0x9] sm:$0xff] %vm315, 0.0
      %318 = vst.msk [vmem:[#allocation2 + $0x19] sm:$0xff] %vm315, 0.0
      %319 = vst.msk [vmem:[#allocation2 + $0x21] sm:$0xff] %vm315, 0.0
      %320 = vst.msk [vmem:[#allocation2 + $0x31] sm:$0xff] %vm315, 0.0
      %321 = vst.msk [vmem:[#allocation2 + $0x39] sm:$0xff] %vm315, 0.0
      %322 = vst.msk [vmem:[#allocation2 + $0x49] sm:$0xff] %vm315, 0.0
      %323 = vst.msk [vmem:[#allocation2 + $0x51] sm:$0xff] %vm315, 0.0
      %324 = vst [vmem:[#allocation1] ss:$9 sm:$0xff] %v198
      %s325 = scalar_lea.vmem [#allocation1], 1
      %326 = vst [vmem:[%s325] ss:$9 sm:$0xff] %v214
      %s327 = scalar_lea.vmem [#allocation1], 2
      %328 = vst [vmem:[%s327] ss:$9 sm:$0xff] %v226
      %s329 = scalar_lea.vmem [#allocation1], 3
      %330 = vst [vmem:[%s329] ss:$9 sm:$0xff] %v238
      %s331 = scalar_lea.vmem [#allocation1], 4
      %332 = vst [vmem:[%s331] ss:$9 sm:$0xff] %v250
      %s333 = scalar_lea.vmem [#allocation1], 5
      %334 = vst [vmem:[%s333] ss:$9 sm:$0xff] %v262
      %s335 = scalar_lea.vmem [#allocation1], 6
      %336 = vst [vmem:[%s335] ss:$9 sm:$0xff] %v274
      %s337 = scalar_lea.vmem [#allocation1], 7
      %338 = vst [vmem:[%s337] ss:$9 sm:$0xff] %v286
      %v339 = vld [vmem:[#allocation1] sm:$0xff]
      %340 = vst [vmem:[#allocation1] ss:$9 sm:$0xff] %v209
      %341 = vst [vmem:[%s325] ss:$9 sm:$0xff] %v221
      %342 = vst [vmem:[%s327] ss:$9 sm:$0xff] %v233
      %343 = vst [vmem:[%s329] ss:$9 sm:$0xff] %v245
      %344 = vst [vmem:[%s331] ss:$9 sm:$0xff] %v257
      %345 = vst [vmem:[%s333] ss:$9 sm:$0xff] %v269
      %346 = vst [vmem:[%s335] ss:$9 sm:$0xff] %v281
      %347 = vst [vmem:[%s337] ss:$9 sm:$0xff] %v293
      %v348 = vld [vmem:[#allocation1] sm:$0xff]
      %349 = vst [vmem:[#allocation1] ss:$9 sm:$0xff] %v200
      %350 = vst [vmem:[%s325] ss:$9 sm:$0xff] %v216
      %351 = vst [vmem:[%s327] ss:$9 sm:$0xff] %v228
      %352 = vst [vmem:[%s329] ss:$9 sm:$0xff] %v240
      %353 = vst [vmem:[%s331] ss:$9 sm:$0xff] %v252
      %354 = vst [vmem:[%s333] ss:$9 sm:$0xff] %v264
      %355 = vst [vmem:[%s335] ss:$9 sm:$0xff] %v276
      %356 = vst [vmem:[%s337] ss:$9 sm:$0xff] %v288
      %v357 = vld [vmem:[#allocation1] sm:$0xff]
      %358 = vst [vmem:[#allocation1] ss:$9 sm:$0xff] %v210
      %359 = vst [vmem:[%s325] ss:$9 sm:$0xff] %v222
      %360 = vst [vmem:[%s327] ss:$9 sm:$0xff] %v234
      %361 = vst [vmem:[%s329] ss:$9 sm:$0xff] %v246
      %362 = vst [vmem:[%s331] ss:$9 sm:$0xff] %v258
      %363 = vst [vmem:[%s333] ss:$9 sm:$0xff] %v270
      %364 = vst [vmem:[%s335] ss:$9 sm:$0xff] %v282
      %365 = vst [vmem:[%s337] ss:$9 sm:$0xff] %v294
      %v366 = vld [vmem:[#allocation1] sm:$0xff]
      %367 = vst [vmem:[#allocation1] ss:$9 sm:$0xff] %v202
      %368 = vst [vmem:[%s325] ss:$9 sm:$0xff] %v218
      %369 = vst [vmem:[%s327] ss:$9 sm:$0xff] %v230
      %370 = vst [vmem:[%s329] ss:$9 sm:$0xff] %v242
      %371 = vst [vmem:[%s331] ss:$9 sm:$0xff] %v254
      %372 = vst [vmem:[%s333] ss:$9 sm:$0xff] %v266
      %373 = vst [vmem:[%s335] ss:$9 sm:$0xff] %v278
      %374 = vst [vmem:[%s337] ss:$9 sm:$0xff] %v290
      %v375 = vld [vmem:[#allocation1] sm:$0xff]
      %376 = vst [vmem:[#allocation1] ss:$9 sm:$0xff] %v211
      %377 = vst [vmem:[%s325] ss:$9 sm:$0xff] %v223
      %378 = vst [vmem:[%s327] ss:$9 sm:$0xff] %v235
      %379 = vst [vmem:[%s329] ss:$9 sm:$0xff] %v247
      %380 = vst [vmem:[%s331] ss:$9 sm:$0xff] %v259
      %381 = vst [vmem:[%s333] ss:$9 sm:$0xff] %v271
      %382 = vst [vmem:[%s335] ss:$9 sm:$0xff] %v283
      %383 = vst [vmem:[%s337] ss:$9 sm:$0xff] %v295
      %v384 = vld [vmem:[#allocation1] sm:$0xff]
      %385 = vst [vmem:[#allocation1] ss:$9 sm:$0xff] %v204
      %386 = vst [vmem:[%s325] ss:$9 sm:$0xff] %v220
      %387 = vst [vmem:[%s327] ss:$9 sm:$0xff] %v232
      %388 = vst [vmem:[%s329] ss:$9 sm:$0xff] %v244
      %389 = vst [vmem:[%s331] ss:$9 sm:$0xff] %v256
      %390 = vst [vmem:[%s333] ss:$9 sm:$0xff] %v268
      %391 = vst [vmem:[%s335] ss:$9 sm:$0xff] %v280
      %392 = vst [vmem:[%s337] ss:$9 sm:$0xff] %v292
      %v393 = vld [vmem:[#allocation1] sm:$0xff]
      %394 = vst [vmem:[#allocation1] ss:$9 sm:$0xff] %v212
      %395 = vst [vmem:[%s325] ss:$9 sm:$0xff] %v224
      %396 = vst [vmem:[%s327] ss:$9 sm:$0xff] %v236
      %397 = vst [vmem:[%s329] ss:$9 sm:$0xff] %v248
      %398 = vst [vmem:[%s331] ss:$9 sm:$0xff] %v260
      %399 = vst [vmem:[%s333] ss:$9 sm:$0xff] %v272
      %400 = vst [vmem:[%s335] ss:$9 sm:$0xff] %v284
      %401 = vst [vmem:[%s337] ss:$9 sm:$0xff] %v296
      %v402 = vld [vmem:[#allocation1] sm:$0xff]
      %403 = vrot.lane.b32.xlu0 %v339, 1
      %v404 = vpop.permute.xlu0 %403
      %405 = vrot.lane.b32.xlu0 %v348, 1
      %v406 = vpop.permute.xlu0 %405
      %407 = vrot.lane.b32.xlu0 %v357, 1
      %v408 = vpop.permute.xlu0 %407
      %409 = vrot.lane.b32.xlu0 %v366, 1
      %v410 = vpop.permute.xlu0 %409
      %411 = vrot.lane.b32.xlu0 %v375, 1
      %v412 = vpop.permute.xlu0 %411
      %413 = vrot.lane.b32.xlu0 %v384, 1
      %v414 = vpop.permute.xlu0 %413
      %415 = vrot.lane.b32.xlu0 %v393, 1
      %v416 = vpop.permute.xlu0 %415
      %417 = vrot.lane.b32.xlu0 %v402, 1
      %v418 = vpop.permute.xlu0 %417
      %vm427 = vcmask 138248
      %428 = vst.msk [vmem:[#allocation2 + $0x1] sm:$0xff] %vm427, %v404
      %429 = vst.msk [vmem:[#allocation2 + $0x9] sm:$0xff] %vm427, %v406
      %430 = vst.msk [vmem:[#allocation2 + $0x19] sm:$0xff] %vm427, %v408
      %431 = vst.msk [vmem:[#allocation2 + $0x21] sm:$0xff] %vm427, %v410
      %432 = vst.msk [vmem:[#allocation2 + $0x31] sm:$0xff] %vm427, %v412
      %433 = vst.msk [vmem:[#allocation2 + $0x39] sm:$0xff] %vm427, %v414
      %434 = vst.msk [vmem:[#allocation2 + $0x49] sm:$0xff] %vm427, %v416
      %435 = vst.msk [vmem:[#allocation2 + $0x51] sm:$0xff] %vm427, %v418
      %v436 = vld [vmem:[#allocation2] sm:$0xff]
      %v437 = vld [vmem:[#allocation2 + $0x8] sm:$0xff]
      %v438 = vld [vmem:[#allocation2 + $0x18] sm:$0xff]
      %v439 = vld [vmem:[#allocation2 + $0x20] sm:$0xff]
      %v440 = vld [vmem:[#allocation2 + $0x30] sm:$0xff]
      %v441 = vld [vmem:[#allocation2 + $0x38] sm:$0xff]
      %v442 = vld [vmem:[#allocation2 + $0x48] sm:$0xff]
      %v443 = vld [vmem:[#allocation2 + $0x50] sm:$0xff]
      %v444 = vld [vmem:[%s1] sm:$0xf]
      %v445 = vrot.slane %v440, 4
      %vm446 = vcmask 1047556
      %v447 = vsel %vm446, %v445, %v436
      %v448 = vrot.slane %v436, 4
      %v449 = vsel %vm446, %v440, %v448
      %v451 = vunpack.c.l.s4 1983009808
      %v452 = vunpack.c.0.s8 %v451
      %v453 = vperm.slane %v447, %v452
      %v455 = vunpack.c.l.s4 1983009808
      %v456 = vunpack.c.0.s8 %v455
      %v457 = vperm.slane %v449, %v456
      %v458 = vrot.slane %v442, 4
      %v459 = vsel %vm446, %v458, %v438
      %v460 = vrot.slane %v438, 4
      %v461 = vsel %vm446, %v442, %v460
      %v463 = vunpack.c.l.s4 1983009808
      %v464 = vunpack.c.0.s8 %v463
      %v465 = vperm.slane %v459, %v464
      %v467 = vunpack.c.l.s4 1983009808
      %v468 = vunpack.c.0.s8 %v467
      %v469 = vperm.slane %v461, %v468
      %v470 = vrot.slane %v465, 4
      %v471 = vsel %vm446, %v470, %v453
      %v472 = vrot.slane %v453, 4
      %v473 = vsel %vm446, %v465, %v472
      %v475 = vunpack.c.l.s4 1934713408
      %v476 = vunpack.c.0.s8 %v475
      %v477 = vperm.slane %v471, %v476
      %v479 = vunpack.c.l.s4 1934713408
      %v480 = vunpack.c.0.s8 %v479
      %v481 = vperm.slane %v473, %v480
      %v482 = vrot.slane %v469, 4
      %v483 = vsel %vm446, %v482, %v457
      %v484 = vrot.slane %v457, 4
      %v485 = vsel %vm446, %v469, %v484
      %v487 = vunpack.c.l.s4 1934713408
      %v488 = vunpack.c.0.s8 %v487
      %v489 = vperm.slane %v483, %v488
      %v491 = vunpack.c.l.s4 1934713408
      %v492 = vunpack.c.0.s8 %v491
      %v493 = vperm.slane %v485, %v492
      %v494 = vrot.slane %v477, 4
      %v495 = vsel %vm446, 0.0, %v494
      %v496 = vrot.slane %v481, 4
      %v497 = vsel %vm446, 0.0, %v496
      %v498 = vrot.slane %v489, 4
      %v499 = vsel %vm446, 0.0, %v498
      %v500 = vrot.slane %v493, 4
      %v501 = vsel %vm446, 0.0, %v500
      %v502 = vrot.slane %v441, 4
      %v503 = vsel %vm446, %v502, %v437
      %v504 = vrot.slane %v437, 4
      %v505 = vsel %vm446, %v441, %v504
      %v507 = vunpack.c.l.s4 1983009808
      %v508 = vunpack.c.0.s8 %v507
      %v509 = vperm.slane %v503, %v508
      %v511 = vunpack.c.l.s4 1983009808
      %v512 = vunpack.c.0.s8 %v511
      %v513 = vperm.slane %v505, %v512
      %v514 = vrot.slane %v443, 4
      %v515 = vsel %vm446, %v514, %v439
      %v516 = vrot.slane %v439, 4
      %v517 = vsel %vm446, %v443, %v516
      %v519 = vunpack.c.l.s4 1983009808
      %v520 = vunpack.c.0.s8 %v519
      %v521 = vperm.slane %v515, %v520
      %v523 = vunpack.c.l.s4 1983009808
      %v524 = vunpack.c.0.s8 %v523
      %v525 = vperm.slane %v517, %v524
      %v526 = vrot.slane %v521, 4
      %v527 = vsel %vm446, %v526, %v509
      %v528 = vrot.slane %v509, 4
      %v529 = vsel %vm446, %v521, %v528
      %v531 = vunpack.c.l.s4 1934713408
      %v532 = vunpack.c.0.s8 %v531
      %v533 = vperm.slane %v527, %v532
      %v535 = vunpack.c.l.s4 1934713408
      %v536 = vunpack.c.0.s8 %v535
      %v537 = vperm.slane %v529, %v536
      %v538 = vrot.slane %v525, 4
      %v539 = vsel %vm446, %v538, %v513
      %v540 = vrot.slane %v513, 4
      %v541 = vsel %vm446, %v525, %v540
      %v543 = vunpack.c.l.s4 1934713408
      %v544 = vunpack.c.0.s8 %v543
      %v545 = vperm.slane %v539, %v544
      %v547 = vunpack.c.l.s4 1934713408
      %v548 = vunpack.c.0.s8 %v547
      %v549 = vperm.slane %v541, %v548
      %v550 = vrot.slane %v533, 4
      %v551 = vsel %vm446, 0.0, %v550
      %v552 = vrot.slane %v537, 4
      %v553 = vsel %vm446, 0.0, %v552
      %v554 = vrot.slane %v545, 4
      %v555 = vsel %vm446, 0.0, %v554
      %v556 = vrot.slane %v549, 4
      %v557 = vsel %vm446, 0.0, %v556
      %559 = vrot.lane.b32.xlu0 %v495, 16
      %v560 = vpop.permute.xlu0 %559
      %563 = vrot.lane.b32.xlu0 %v481, 32
      %v564 = vpop.permute.xlu0 %563
      %567 = vrot.lane.b32.xlu0 %v497, 48
      %v568 = vpop.permute.xlu0 %567
      %571 = vrot.lane.b32.xlu0 %v489, 64
      %v572 = vpop.permute.xlu0 %571
      %575 = vrot.lane.b32.xlu0 %v499, 80
      %v576 = vpop.permute.xlu0 %575
      %579 = vrot.lane.b32.xlu0 %v493, 96
      %v580 = vpop.permute.xlu0 %579
      %583 = vrot.lane.b32.xlu0 %v501, 112
      %v584 = vpop.permute.xlu0 %583
      %587 = vrot.lane.b32.xlu0 %v551, 16
      %v588 = vpop.permute.xlu0 %587
      %591 = vrot.lane.b32.xlu0 %v537, 32
      %v592 = vpop.permute.xlu0 %591
      %595 = vrot.lane.b32.xlu0 %v553, 48
      %v596 = vpop.permute.xlu0 %595
      %599 = vrot.lane.b32.xlu0 %v545, 64
      %v600 = vpop.permute.xlu0 %599
      %603 = vrot.lane.b32.xlu0 %v555, 80
      %v604 = vpop.permute.xlu0 %603
      %607 = vrot.lane.b32.xlu0 %v549, 96
      %v608 = vpop.permute.xlu0 %607
      %611 = vrot.lane.b32.xlu0 %v557, 112
      %v612 = vpop.permute.xlu0 %611
      %vm614 = vcmask 130048
      %v615 = vsel %vm614, %v477, %v560
      %vm616 = vcmask 261120
      %v617 = vsel %vm616, %v615, %v564
      %vm618 = vcmask 392192
      %v619 = vsel %vm618, %v617, %v568
      %vm620 = vcmask 523264
      %v621 = vsel %vm620, %v619, %v572
      %vm622 = vcmask 654336
      %v623 = vsel %vm622, %v621, %v576
      %vm624 = vcmask 785408
      %v625 = vsel %vm624, %v623, %v580
      %vm626 = vcmask 916480
      %v627 = vsel %vm626, %v625, %v584
      %v628 = vsel %vm614, %v533, %v588
      %v629 = vsel %vm616, %v628, %v592
      %v630 = vsel %vm618, %v629, %v596
      %v631 = vsel %vm620, %v630, %v600
      %v632 = vsel %vm622, %v631, %v604
      %v633 = vsel %vm624, %v632, %v608
      %v634 = vsel %vm626, %v633, %v612
      %643 = vrot.lane.b32.xlu0 %v436, 127
      %v644 = vpop.permute.xlu0 %643
      %645 = vrot.lane.b32.xlu0 %v437, 127
      %v646 = vpop.permute.xlu0 %645
      %647 = vrot.lane.b32.xlu0 %v438, 127
      %v648 = vpop.permute.xlu0 %647
      %649 = vrot.lane.b32.xlu0 %v439, 127
      %v650 = vpop.permute.xlu0 %649
      %651 = vrot.lane.b32.xlu0 %v440, 127
      %v652 = vpop.permute.xlu0 %651
      %653 = vrot.lane.b32.xlu0 %v441, 127
      %v654 = vpop.permute.xlu0 %653
      %655 = vrot.lane.b32.xlu0 %v442, 127
      %v656 = vpop.permute.xlu0 %655
      %657 = vrot.lane.b32.xlu0 %v443, 127
      %v658 = vpop.permute.xlu0 %657
      %v667 = vrot.slane %v652, 4
      %v668 = vsel %vm446, %v667, %v644
      %v669 = vrot.slane %v644, 4
      %v670 = vsel %vm446, %v652, %v669
      %v672 = vunpack.c.l.s4 1983009808
      %v673 = vunpack.c.0.s8 %v672
      %v674 = vperm.slane %v668, %v673
      %v676 = vunpack.c.l.s4 1983009808
      %v677 = vunpack.c.0.s8 %v676
      %v678 = vperm.slane %v670, %v677
      %v679 = vrot.slane %v656, 4
      %v680 = vsel %vm446, %v679, %v648
      %v681 = vrot.slane %v648, 4
      %v682 = vsel %vm446, %v656, %v681
      %v684 = vunpack.c.l.s4 1983009808
      %v685 = vunpack.c.0.s8 %v684
      %v686 = vperm.slane %v680, %v685
      %v688 = vunpack.c.l.s4 1983009808
      %v689 = vunpack.c.0.s8 %v688
      %v690 = vperm.slane %v682, %v689
      %v691 = vrot.slane %v686, 4
      %v692 = vsel %vm446, %v691, %v674
      %v693 = vrot.slane %v674, 4
      %v694 = vsel %vm446, %v686, %v693
      %v696 = vunpack.c.l.s4 1934713408
      %v697 = vunpack.c.0.s8 %v696
      %v698 = vperm.slane %v692, %v697
      %v700 = vunpack.c.l.s4 1934713408
      %v701 = vunpack.c.0.s8 %v700
      %v702 = vperm.slane %v694, %v701
      %v703 = vrot.slane %v690, 4
      %v704 = vsel %vm446, %v703, %v678
      %v705 = vrot.slane %v678, 4
      %v706 = vsel %vm446, %v690, %v705
      %v708 = vunpack.c.l.s4 1934713408
      %v709 = vunpack.c.0.s8 %v708
      %v710 = vperm.slane %v704, %v709
      %v712 = vunpack.c.l.s4 1934713408
      %v713 = vunpack.c.0.s8 %v712
      %v714 = vperm.slane %v706, %v713
      %v715 = vrot.slane %v698, 4
      %v716 = vsel %vm446, 0.0, %v715
      %v717 = vrot.slane %v702, 4
      %v718 = vsel %vm446, 0.0, %v717
      %v719 = vrot.slane %v710, 4
      %v720 = vsel %vm446, 0.0, %v719
      %v721 = vrot.slane %v714, 4
      %v722 = vsel %vm446, 0.0, %v721
      %v723 = vrot.slane %v654, 4
      %v724 = vsel %vm446, %v723, %v646
      %v725 = vrot.slane %v646, 4
      %v726 = vsel %vm446, %v654, %v725
      %v728 = vunpack.c.l.s4 1983009808
      %v729 = vunpack.c.0.s8 %v728
      %v730 = vperm.slane %v724, %v729
      %v732 = vunpack.c.l.s4 1983009808
      %v733 = vunpack.c.0.s8 %v732
      %v734 = vperm.slane %v726, %v733
      %v735 = vrot.slane %v658, 4
      %v736 = vsel %vm446, %v735, %v650
      %v737 = vrot.slane %v650, 4
      %v738 = vsel %vm446, %v658, %v737
      %v740 = vunpack.c.l.s4 1983009808
      %v741 = vunpack.c.0.s8 %v740
      %v742 = vperm.slane %v736, %v741
      %v744 = vunpack.c.l.s4 1983009808
      %v745 = vunpack.c.0.s8 %v744
      %v746 = vperm.slane %v738, %v745
      %v747 = vrot.slane %v742, 4
      %v748 = vsel %vm446, %v747, %v730
      %v749 = vrot.slane %v730, 4
      %v750 = vsel %vm446, %v742, %v749
      %v752 = vunpack.c.l.s4 1934713408
      %v753 = vunpack.c.0.s8 %v752
      %v754 = vperm.slane %v748, %v753
      %v756 = vunpack.c.l.s4 1934713408
      %v757 = vunpack.c.0.s8 %v756
      %v758 = vperm.slane %v750, %v757
      %v759 = vrot.slane %v746, 4
      %v760 = vsel %vm446, %v759, %v734
      %v761 = vrot.slane %v734, 4
      %v762 = vsel %vm446, %v746, %v761
      %v764 = vunpack.c.l.s4 1934713408
      %v765 = vunpack.c.0.s8 %v764
      %v766 = vperm.slane %v760, %v765
      %v768 = vunpack.c.l.s4 1934713408
      %v769 = vunpack.c.0.s8 %v768
      %v770 = vperm.slane %v762, %v769
      %v771 = vrot.slane %v754, 4
      %v772 = vsel %vm446, 0.0, %v771
      %v773 = vrot.slane %v758, 4
      %v774 = vsel %vm446, 0.0, %v773
      %v775 = vrot.slane %v766, 4
      %v776 = vsel %vm446, 0.0, %v775
      %v777 = vrot.slane %v770, 4
      %v778 = vsel %vm446, 0.0, %v777
      %780 = vrot.lane.b32.xlu0 %v716, 16
      %v781 = vpop.permute.xlu0 %780
      %784 = vrot.lane.b32.xlu0 %v702, 32
      %v785 = vpop.permute.xlu0 %784
      %788 = vrot.lane.b32.xlu0 %v718, 48
      %v789 = vpop.permute.xlu0 %788
      %792 = vrot.lane.b32.xlu0 %v710, 64
      %v793 = vpop.permute.xlu0 %792
      %796 = vrot.lane.b32.xlu0 %v720, 80
      %v797 = vpop.permute.xlu0 %796
      %800 = vrot.lane.b32.xlu0 %v714, 96
      %v801 = vpop.permute.xlu0 %800
      %804 = vrot.lane.b32.xlu0 %v722, 112
      %v805 = vpop.permute.xlu0 %804
      %808 = vrot.lane.b32.xlu0 %v772, 16
      %v809 = vpop.permute.xlu0 %808
      %812 = vrot.lane.b32.xlu0 %v758, 32
      %v813 = vpop.permute.xlu0 %812
      %816 = vrot.lane.b32.xlu0 %v774, 48
      %v817 = vpop.permute.xlu0 %816
      %820 = vrot.lane.b32.xlu0 %v766, 64
      %v821 = vpop.permute.xlu0 %820
      %824 = vrot.lane.b32.xlu0 %v776, 80
      %v825 = vpop.permute.xlu0 %824
      %828 = vrot.lane.b32.xlu0 %v770, 96
      %v829 = vpop.permute.xlu0 %828
      %832 = vrot.lane.b32.xlu0 %v778, 112
      %v833 = vpop.permute.xlu0 %832
      %v835 = vsel %vm614, %v698, %v781
      %v836 = vsel %vm616, %v835, %v785
      %v837 = vsel %vm618, %v836, %v789
      %v838 = vsel %vm620, %v837, %v793
      %v839 = vsel %vm622, %v838, %v797
      %v840 = vsel %vm624, %v839, %v801
      %v841 = vsel %vm626, %v840, %v805
      %v842 = vsel %vm614, %v754, %v809
      %v843 = vsel %vm616, %v842, %v813
      %v844 = vsel %vm618, %v843, %v817
      %v845 = vsel %vm620, %v844, %v821
      %v846 = vsel %vm622, %v845, %v825
      %v847 = vsel %vm624, %v846, %v829
      %v848 = vsel %vm626, %v847, %v833
      %850 = vrot.lane.b32.xlu0 %v444, 124
      %v851 = vpop.permute.xlu0 %850
      %vm852 = vcmask 31744
      %v853 = vsel %vm852, %v851, 0
      %vm855 = vcmask 1043456
      %v857 = vsel %vm855, %v841, 0
      %v860 = vsel %vm855, %v848, 0
      %862 = vmatpush.msra.mxu0 0.0
      %863 = vmatpush.msra.mxu0 0.0
      %864 = vmatpush.msra.mxu0 0.0
      %865 = vmatpush.msra.mxu0 0.0
      %866 = vmatpush.msra.mxu0 0.0
      %867 = vmatpush.msra.mxu0 0.0
      %868 = vmatpush.msra.mxu0 0.0
      %869 = vmatpush.msra.mxu0 0.0
      %870 = vmatpush.msra.mxu0 0.0
      %871 = vmatpush.msra.mxu0 0.0
      %872 = vmatpush.msra.mxu0 0.0
      %873 = vmatpush.msra.mxu0 0.0
      %874 = vmatpush.msra.mxu0 0.0
      %875 = vmatpush.msra.mxu0 0.0
      %876 = vmatpush.msra.mxu0 0.0
      %877 = vmatpush.msra.mxu0 %v857
      %878 = vmatmul.f32.gmra.mxu0 %v853
      %v879 = vpop.f32.mrf.mxu0
      %v880 = vadd.f32 0.0, %v879
      %881 = vdwg.mxu0
      %882 = vmatpush.msra.mxu0 0.0
      %883 = vmatpush.msra.mxu0 0.0
      %884 = vmatpush.msra.mxu0 0.0
      %885 = vmatpush.msra.mxu0 0.0
      %886 = vmatpush.msra.mxu0 0.0
      %887 = vmatpush.msra.mxu0 0.0
      %888 = vmatpush.msra.mxu0 0.0
      %889 = vmatpush.msra.mxu0 0.0
      %890 = vmatpush.msra.mxu0 0.0
      %891 = vmatpush.msra.mxu0 0.0
      %892 = vmatpush.msra.mxu0 0.0
      %893 = vmatpush.msra.mxu0 0.0
      %894 = vmatpush.msra.mxu0 0.0
      %895 = vmatpush.msra.mxu0 0.0
      %896 = vmatpush.msra.mxu0 0.0
      %897 = vmatpush.msra.mxu0 %v860
      %898 = vmatmul.f32.gmra.mxu0 %v853
      %v899 = vpop.f32.mrf.mxu0
      %v900 = vadd.f32 0.0, %v899
      %901 = vdwg.mxu0
      %v902 = vsel %vm852, %v444, 0
      %v905 = vsel %vm855, %v627, 0
      %v908 = vsel %vm855, %v634, 0
      %910 = vmatpush.msra.mxu0 0.0
      %911 = vmatpush.msra.mxu0 0.0
      %912 = vmatpush.msra.mxu0 0.0
      %913 = vmatpush.msra.mxu0 0.0
      %914 = vmatpush.msra.mxu0 0.0
      %915 = vmatpush.msra.mxu0 0.0
      %916 = vmatpush.msra.mxu0 0.0
      %917 = vmatpush.msra.mxu0 0.0
      %918 = vmatpush.msra.mxu0 0.0
      %919 = vmatpush.msra.mxu0 0.0
      %920 = vmatpush.msra.mxu0 0.0
      %921 = vmatpush.msra.mxu0 0.0
      %922 = vmatpush.msra.mxu0 0.0
      %923 = vmatpush.msra.mxu0 0.0
      %924 = vmatpush.msra.mxu0 0.0
      %925 = vmatpush.msra.mxu0 %v905
      %926 = vmatmul.f32.gmra.mxu0 %v902
      %v927 = vpop.f32.mrf.mxu0
      %v928 = vadd.f32 %v880, %v927
      %929 = vdwg.mxu0
      %930 = vmatpush.msra.mxu0 0.0
      %931 = vmatpush.msra.mxu0 0.0
      %932 = vmatpush.msra.mxu0 0.0
      %933 = vmatpush.msra.mxu0 0.0
      %934 = vmatpush.msra.mxu0 0.0
      %935 = vmatpush.msra.mxu0 0.0
      %936 = vmatpush.msra.mxu0 0.0
      %937 = vmatpush.msra.mxu0 0.0
      %938 = vmatpush.msra.mxu0 0.0
      %939 = vmatpush.msra.mxu0 0.0
      %940 = vmatpush.msra.mxu0 0.0
      %941 = vmatpush.msra.mxu0 0.0
      %942 = vmatpush.msra.mxu0 0.0
      %943 = vmatpush.msra.mxu0 0.0
      %944 = vmatpush.msra.mxu0 0.0
      %945 = vmatpush.msra.mxu0 %v908
      %946 = vmatmul.f32.gmra.mxu0 %v902
      %v947 = vpop.f32.mrf.mxu0
      %v948 = vadd.f32 %v900, %v947
      %949 = vdwg.mxu0
      %v950 = vld [vmem:[#allocation2] sm:$0xff]
      %v951 = vld [vmem:[#allocation2 + $0x8] sm:$0xff]
      %v952 = vld [vmem:[#allocation2 + $0x18] sm:$0xff]
      %v953 = vld [vmem:[#allocation2 + $0x20] sm:$0xff]
      %v954 = vld [vmem:[#allocation2 + $0x30] sm:$0xff]
      %v955 = vld [vmem:[#allocation2 + $0x38] sm:$0xff]
      %v956 = vld [vmem:[#allocation2 + $0x48] sm:$0xff]
      %v957 = vld [vmem:[#allocation2 + $0x50] sm:$0xff]
      %v958 = vld [vmem:[%s1] sm:$0xf]
      %967 = vrot.lane.b32.xlu0 %v950, 126
      %v968 = vpop.permute.xlu0 %967
      %969 = vrot.lane.b32.xlu0 %v951, 126
      %v970 = vpop.permute.xlu0 %969
      %971 = vrot.lane.b32.xlu0 %v952, 126
      %v972 = vpop.permute.xlu0 %971
      %973 = vrot.lane.b32.xlu0 %v953, 126
      %v974 = vpop.permute.xlu0 %973
      %975 = vrot.lane.b32.xlu0 %v954, 126
      %v976 = vpop.permute.xlu0 %975
      %977 = vrot.lane.b32.xlu0 %v955, 126
      %v978 = vpop.permute.xlu0 %977
      %979 = vrot.lane.b32.xlu0 %v956, 126
      %v980 = vpop.permute.xlu0 %979
      %981 = vrot.lane.b32.xlu0 %v957, 126
      %v982 = vpop.permute.xlu0 %981
      %v991 = vrot.slane %v976, 4
      %v992 = vsel %vm446, %v991, %v968
      %v993 = vrot.slane %v968, 4
      %v994 = vsel %vm446, %v976, %v993
      %v996 = vunpack.c.l.s4 1983009808
      %v997 = vunpack.c.0.s8 %v996
      %v998 = vperm.slane %v992, %v997
      %v1000 = vunpack.c.l.s4 1983009808
      %v1001 = vunpack.c.0.s8 %v1000
      %v1002 = vperm.slane %v994, %v1001
      %v1003 = vrot.slane %v980, 4
      %v1004 = vsel %vm446, %v1003, %v972
      %v1005 = vrot.slane %v972, 4
      %v1006 = vsel %vm446, %v980, %v1005
      %v1008 = vunpack.c.l.s4 1983009808
      %v1009 = vunpack.c.0.s8 %v1008
      %v1010 = vperm.slane %v1004, %v1009
      %v1012 = vunpack.c.l.s4 1983009808
      %v1013 = vunpack.c.0.s8 %v1012
      %v1014 = vperm.slane %v1006, %v1013
      %v1015 = vrot.slane %v1010, 4
      %v1016 = vsel %vm446, %v1015, %v998
      %v1017 = vrot.slane %v998, 4
      %v1018 = vsel %vm446, %v1010, %v1017
      %v1020 = vunpack.c.l.s4 1934713408
      %v1021 = vunpack.c.0.s8 %v1020
      %v1022 = vperm.slane %v1016, %v1021
      %v1024 = vunpack.c.l.s4 1934713408
      %v1025 = vunpack.c.0.s8 %v1024
      %v1026 = vperm.slane %v1018, %v1025
      %v1027 = vrot.slane %v1014, 4
      %v1028 = vsel %vm446, %v1027, %v1002
      %v1029 = vrot.slane %v1002, 4
      %v1030 = vsel %vm446, %v1014, %v1029
      %v1032 = vunpack.c.l.s4 1934713408
      %v1033 = vunpack.c.0.s8 %v1032
      %v1034 = vperm.slane %v1028, %v1033
      %v1036 = vunpack.c.l.s4 1934713408
      %v1037 = vunpack.c.0.s8 %v1036
      %v1038 = vperm.slane %v1030, %v1037
      %v1039 = vrot.slane %v1022, 4
      %v1040 = vsel %vm446, 0.0, %v1039
      %v1041 = vrot.slane %v1026, 4
      %v1042 = vsel %vm446, 0.0, %v1041
      %v1043 = vrot.slane %v1034, 4
      %v1044 = vsel %vm446, 0.0, %v1043
      %v1045 = vrot.slane %v1038, 4
      %v1046 = vsel %vm446, 0.0, %v1045
      %v1047 = vrot.slane %v978, 4
      %v1048 = vsel %vm446, %v1047, %v970
      %v1049 = vrot.slane %v970, 4
      %v1050 = vsel %vm446, %v978, %v1049
      %v1052 = vunpack.c.l.s4 1983009808
      %v1053 = vunpack.c.0.s8 %v1052
      %v1054 = vperm.slane %v1048, %v1053
      %v1056 = vunpack.c.l.s4 1983009808
      %v1057 = vunpack.c.0.s8 %v1056
      %v1058 = vperm.slane %v1050, %v1057
      %v1059 = vrot.slane %v982, 4
      %v1060 = vsel %vm446, %v1059, %v974
      %v1061 = vrot.slane %v974, 4
      %v1062 = vsel %vm446, %v982, %v1061
      %v1064 = vunpack.c.l.s4 1983009808
      %v1065 = vunpack.c.0.s8 %v1064
      %v1066 = vperm.slane %v1060, %v1065
      %v1068 = vunpack.c.l.s4 1983009808
      %v1069 = vunpack.c.0.s8 %v1068
      %v1070 = vperm.slane %v1062, %v1069
      %v1071 = vrot.slane %v1066, 4
      %v1072 = vsel %vm446, %v1071, %v1054
      %v1073 = vrot.slane %v1054, 4
      %v1074 = vsel %vm446, %v1066, %v1073
      %v1076 = vunpack.c.l.s4 1934713408
      %v1077 = vunpack.c.0.s8 %v1076
      %v1078 = vperm.slane %v1072, %v1077
      %v1080 = vunpack.c.l.s4 1934713408
      %v1081 = vunpack.c.0.s8 %v1080
      %v1082 = vperm.slane %v1074, %v1081
      %v1083 = vrot.slane %v1070, 4
      %v1084 = vsel %vm446, %v1083, %v1058
      %v1085 = vrot.slane %v1058, 4
      %v1086 = vsel %vm446, %v1070, %v1085
      %v1088 = vunpack.c.l.s4 1934713408
      %v1089 = vunpack.c.0.s8 %v1088
      %v1090 = vperm.slane %v1084, %v1089
      %v1092 = vunpack.c.l.s4 1934713408
      %v1093 = vunpack.c.0.s8 %v1092
      %v1094 = vperm.slane %v1086, %v1093
      %v1095 = vrot.slane %v1078, 4
      %v1096 = vsel %vm446, 0.0, %v1095
      %v1097 = vrot.slane %v1082, 4
      %v1098 = vsel %vm446, 0.0, %v1097
      %v1099 = vrot.slane %v1090, 4
      %v1100 = vsel %vm446, 0.0, %v1099
      %v1101 = vrot.slane %v1094, 4
      %v1102 = vsel %vm446, 0.0, %v1101
      %1104 = vrot.lane.b32.xlu0 %v1040, 16
      %v1105 = vpop.permute.xlu0 %1104
      %1108 = vrot.lane.b32.xlu0 %v1026, 32
      %v1109 = vpop.permute.xlu0 %1108
      %1112 = vrot.lane.b32.xlu0 %v1042, 48
      %v1113 = vpop.permute.xlu0 %1112
      %1116 = vrot.lane.b32.xlu0 %v1034, 64
      %v1117 = vpop.permute.xlu0 %1116
      %1120 = vrot.lane.b32.xlu0 %v1044, 80
      %v1121 = vpop.permute.xlu0 %1120
      %1124 = vrot.lane.b32.xlu0 %v1038, 96
      %v1125 = vpop.permute.xlu0 %1124
      %1128 = vrot.lane.b32.xlu0 %v1046, 112
      %v1129 = vpop.permute.xlu0 %1128
      %1132 = vrot.lane.b32.xlu0 %v1096, 16
      %v1133 = vpop.permute.xlu0 %1132
      %1136 = vrot.lane.b32.xlu0 %v1082, 32
      %v1137 = vpop.permute.xlu0 %1136
      %1140 = vrot.lane.b32.xlu0 %v1098, 48
      %v1141 = vpop.permute.xlu0 %1140
      %1144 = vrot.lane.b32.xlu0 %v1090, 64
      %v1145 = vpop.permute.xlu0 %1144
      %1148 = vrot.lane.b32.xlu0 %v1100, 80
      %v1149 = vpop.permute.xlu0 %1148
      %1152 = vrot.lane.b32.xlu0 %v1094, 96
      %v1153 = vpop.permute.xlu0 %1152
      %1156 = vrot.lane.b32.xlu0 %v1102, 112
      %v1157 = vpop.permute.xlu0 %1156
      %v1159 = vsel %vm614, %v1022, %v1105
      %v1160 = vsel %vm616, %v1159, %v1109
      %v1161 = vsel %vm618, %v1160, %v1113
      %v1162 = vsel %vm620, %v1161, %v1117
      %v1163 = vsel %vm622, %v1162, %v1121
      %v1164 = vsel %vm624, %v1163, %v1125
      %v1165 = vsel %vm626, %v1164, %v1129
      %v1166 = vsel %vm614, %v1078, %v1133
      %v1167 = vsel %vm616, %v1166, %v1137
      %v1168 = vsel %vm618, %v1167, %v1141
      %v1169 = vsel %vm620, %v1168, %v1145
      %v1170 = vsel %vm622, %v1169, %v1149
      %v1171 = vsel %vm624, %v1170, %v1153
      %v1172 = vsel %vm626, %v1171, %v1157
      %1174 = vrot.lane.b32.xlu0 %v958, 120
      %v1175 = vpop.permute.xlu0 %1174
      %v1176 = vsel %vm852, %v1175, 0
      %v1179 = vsel %vm855, %v1165, 0
      %v1182 = vsel %vm855, %v1172, 0
      %1184 = vmatpush.msra.mxu0 0.0
      %1185 = vmatpush.msra.mxu0 0.0
      %1186 = vmatpush.msra.mxu0 0.0
      %1187 = vmatpush.msra.mxu0 0.0
      %1188 = vmatpush.msra.mxu0 0.0
      %1189 = vmatpush.msra.mxu0 0.0
      %1190 = vmatpush.msra.mxu0 0.0
      %1191 = vmatpush.msra.mxu0 0.0
      %1192 = vmatpush.msra.mxu0 0.0
      %1193 = vmatpush.msra.mxu0 0.0
      %1194 = vmatpush.msra.mxu0 0.0
      %1195 = vmatpush.msra.mxu0 0.0
      %1196 = vmatpush.msra.mxu0 0.0
      %1197 = vmatpush.msra.mxu0 0.0
      %1198 = vmatpush.msra.mxu0 0.0
      %1199 = vmatpush.msra.mxu0 %v1179
      %1200 = vmatmul.f32.gmra.mxu0 %v1176
      %v1201 = vpop.f32.mrf.mxu0
      %v1202 = vadd.f32 0.0, %v1201
      %1203 = vdwg.mxu0
      %1204 = vmatpush.msra.mxu0 0.0
      %1205 = vmatpush.msra.mxu0 0.0
      %1206 = vmatpush.msra.mxu0 0.0
      %1207 = vmatpush.msra.mxu0 0.0
      %1208 = vmatpush.msra.mxu0 0.0
      %1209 = vmatpush.msra.mxu0 0.0
      %1210 = vmatpush.msra.mxu0 0.0
      %1211 = vmatpush.msra.mxu0 0.0
      %1212 = vmatpush.msra.mxu0 0.0
      %1213 = vmatpush.msra.mxu0 0.0
      %1214 = vmatpush.msra.mxu0 0.0
      %1215 = vmatpush.msra.mxu0 0.0
      %1216 = vmatpush.msra.mxu0 0.0
      %1217 = vmatpush.msra.mxu0 0.0
      %1218 = vmatpush.msra.mxu0 0.0
      %1219 = vmatpush.msra.mxu0 %v1182
      %1220 = vmatmul.f32.gmra.mxu0 %v1176
      %v1221 = vpop.f32.mrf.mxu0
      %v1222 = vadd.f32 0.0, %v1221
      %1223 = vdwg.mxu0
      %v1224 = vadd.f32 %v928, %v1202
      %v1225 = vadd.f32 %v948, %v1222
      %v1226 = vld [vmem:[#allocation2 + $0x1] sm:$0xff]
      %v1227 = vld [vmem:[#allocation2 + $0x9] sm:$0xff]
      %v1228 = vld [vmem:[#allocation2 + $0x19] sm:$0xff]
      %v1229 = vld [vmem:[#allocation2 + $0x21] sm:$0xff]
      %v1230 = vld [vmem:[#allocation2 + $0x31] sm:$0xff]
      %v1231 = vld [vmem:[#allocation2 + $0x39] sm:$0xff]
      %v1232 = vld [vmem:[#allocation2 + $0x49] sm:$0xff]
      %v1233 = vld [vmem:[#allocation2 + $0x51] sm:$0xff]
      %v1234 = vld [vmem:[%s1] sm:$0xf]
      %v1235 = vrot.slane %v1230, 4
      %v1236 = vsel %vm446, %v1235, %v1226
      %v1237 = vrot.slane %v1226, 4
      %v1238 = vsel %vm446, %v1230, %v1237
      %v1240 = vunpack.c.l.s4 1983009808
      %v1241 = vunpack.c.0.s8 %v1240
      %v1242 = vperm.slane %v1236, %v1241
      %v1244 = vunpack.c.l.s4 1983009808
      %v1245 = vunpack.c.0.s8 %v1244
      %v1246 = vperm.slane %v1238, %v1245
      %v1247 = vrot.slane %v1232, 4
      %v1248 = vsel %vm446, %v1247, %v1228
      %v1249 = vrot.slane %v1228, 4
      %v1250 = vsel %vm446, %v1232, %v1249
      %v1252 = vunpack.c.l.s4 1983009808
      %v1253 = vunpack.c.0.s8 %v1252
      %v1254 = vperm.slane %v1248, %v1253
      %v1256 = vunpack.c.l.s4 1983009808
      %v1257 = vunpack.c.0.s8 %v1256
      %v1258 = vperm.slane %v1250, %v1257
      %v1259 = vrot.slane %v1254, 4
      %v1260 = vsel %vm446, %v1259, %v1242
      %v1261 = vrot.slane %v1242, 4
      %v1262 = vsel %vm446, %v1254, %v1261
      %v1264 = vunpack.c.l.s4 1934713408
      %v1265 = vunpack.c.0.s8 %v1264
      %v1266 = vperm.slane %v1260, %v1265
      %v1268 = vunpack.c.l.s4 1934713408
      %v1269 = vunpack.c.0.s8 %v1268
      %v1270 = vperm.slane %v1262, %v1269
      %v1271 = vrot.slane %v1258, 4
      %v1272 = vsel %vm446, %v1271, %v1246
      %v1273 = vrot.slane %v1246, 4
      %v1274 = vsel %vm446, %v1258, %v1273
      %v1276 = vunpack.c.l.s4 1934713408
      %v1277 = vunpack.c.0.s8 %v1276
      %v1278 = vperm.slane %v1272, %v1277
      %v1280 = vunpack.c.l.s4 1934713408
      %v1281 = vunpack.c.0.s8 %v1280
      %v1282 = vperm.slane %v1274, %v1281
      %v1283 = vrot.slane %v1266, 4
      %v1284 = vsel %vm446, 0.0, %v1283
      %v1285 = vrot.slane %v1270, 4
      %v1286 = vsel %vm446, 0.0, %v1285
      %v1287 = vrot.slane %v1278, 4
      %v1288 = vsel %vm446, 0.0, %v1287
      %v1289 = vrot.slane %v1282, 4
      %v1290 = vsel %vm446, 0.0, %v1289
      %v1291 = vrot.slane %v1231, 4
      %v1292 = vsel %vm446, %v1291, %v1227
      %v1293 = vrot.slane %v1227, 4
      %v1294 = vsel %vm446, %v1231, %v1293
      %v1296 = vunpack.c.l.s4 1983009808
      %v1297 = vunpack.c.0.s8 %v1296
      %v1298 = vperm.slane %v1292, %v1297
      %v1300 = vunpack.c.l.s4 1983009808
      %v1301 = vunpack.c.0.s8 %v1300
      %v1302 = vperm.slane %v1294, %v1301
      %v1303 = vrot.slane %v1233, 4
      %v1304 = vsel %vm446, %v1303, %v1229
      %v1305 = vrot.slane %v1229, 4
      %v1306 = vsel %vm446, %v1233, %v1305
      %v1308 = vunpack.c.l.s4 1983009808
      %v1309 = vunpack.c.0.s8 %v1308
      %v1310 = vperm.slane %v1304, %v1309
      %v1312 = vunpack.c.l.s4 1983009808
      %v1313 = vunpack.c.0.s8 %v1312
      %v1314 = vperm.slane %v1306, %v1313
      %v1315 = vrot.slane %v1310, 4
      %v1316 = vsel %vm446, %v1315, %v1298
      %v1317 = vrot.slane %v1298, 4
      %v1318 = vsel %vm446, %v1310, %v1317
      %v1320 = vunpack.c.l.s4 1934713408
      %v1321 = vunpack.c.0.s8 %v1320
      %v1322 = vperm.slane %v1316, %v1321
      %v1324 = vunpack.c.l.s4 1934713408
      %v1325 = vunpack.c.0.s8 %v1324
      %v1326 = vperm.slane %v1318, %v1325
      %v1327 = vrot.slane %v1314, 4
      %v1328 = vsel %vm446, %v1327, %v1302
      %v1329 = vrot.slane %v1302, 4
      %v1330 = vsel %vm446, %v1314, %v1329
      %v1332 = vunpack.c.l.s4 1934713408
      %v1333 = vunpack.c.0.s8 %v1332
      %v1334 = vperm.slane %v1328, %v1333
      %v1336 = vunpack.c.l.s4 1934713408
      %v1337 = vunpack.c.0.s8 %v1336
      %v1338 = vperm.slane %v1330, %v1337
      %v1339 = vrot.slane %v1322, 4
      %v1340 = vsel %vm446, 0.0, %v1339
      %v1341 = vrot.slane %v1326, 4
      %v1342 = vsel %vm446, 0.0, %v1341
      %v1343 = vrot.slane %v1334, 4
      %v1344 = vsel %vm446, 0.0, %v1343
      %v1345 = vrot.slane %v1338, 4
      %v1346 = vsel %vm446, 0.0, %v1345
      %1348 = vrot.lane.b32.xlu0 %v1284, 16
      %v1349 = vpop.permute.xlu0 %1348
      %1352 = vrot.lane.b32.xlu0 %v1270, 32
      %v1353 = vpop.permute.xlu0 %1352
      %1356 = vrot.lane.b32.xlu0 %v1286, 48
      %v1357 = vpop.permute.xlu0 %1356
      %1360 = vrot.lane.b32.xlu0 %v1278, 64
      %v1361 = vpop.permute.xlu0 %1360
      %1364 = vrot.lane.b32.xlu0 %v1288, 80
      %v1365 = vpop.permute.xlu0 %1364
      %1368 = vrot.lane.b32.xlu0 %v1282, 96
      %v1369 = vpop.permute.xlu0 %1368
      %1372 = vrot.lane.b32.xlu0 %v1290, 112
      %v1373 = vpop.permute.xlu0 %1372
      %1376 = vrot.lane.b32.xlu0 %v1340, 16
      %v1377 = vpop.permute.xlu0 %1376
      %1380 = vrot.lane.b32.xlu0 %v1326, 32
      %v1381 = vpop.permute.xlu0 %1380
      %1384 = vrot.lane.b32.xlu0 %v1342, 48
      %v1385 = vpop.permute.xlu0 %1384
      %1388 = vrot.lane.b32.xlu0 %v1334, 64
      %v1389 = vpop.permute.xlu0 %1388
      %1392 = vrot.lane.b32.xlu0 %v1344, 80
      %v1393 = vpop.permute.xlu0 %1392
      %1396 = vrot.lane.b32.xlu0 %v1338, 96
      %v1397 = vpop.permute.xlu0 %1396
      %1400 = vrot.lane.b32.xlu0 %v1346, 112
      %v1401 = vpop.permute.xlu0 %1400
      %v1403 = vsel %vm614, %v1266, %v1349
      %v1404 = vsel %vm616, %v1403, %v1353
      %v1405 = vsel %vm618, %v1404, %v1357
      %v1406 = vsel %vm620, %v1405, %v1361
      %v1407 = vsel %vm622, %v1406, %v1365
      %v1408 = vsel %vm624, %v1407, %v1369
      %v1409 = vsel %vm626, %v1408, %v1373
      %v1410 = vsel %vm614, %v1322, %v1377
      %v1411 = vsel %vm616, %v1410, %v1381
      %v1412 = vsel %vm618, %v1411, %v1385
      %v1413 = vsel %vm620, %v1412, %v1389
      %v1414 = vsel %vm622, %v1413, %v1393
      %v1415 = vsel %vm624, %v1414, %v1397
      %v1416 = vsel %vm626, %v1415, %v1401
      %1418 = vrot.lane.b32.xlu0 %v1234, 116
      %v1419 = vpop.permute.xlu0 %1418
      %v1420 = vsel %vm852, %v1419, 0
      %v1423 = vsel %vm855, %v1409, 0
      %v1426 = vsel %vm855, %v1416, 0
      %1428 = vmatpush.msra.mxu0 0.0
      %1429 = vmatpush.msra.mxu0 0.0
      %1430 = vmatpush.msra.mxu0 0.0
      %1431 = vmatpush.msra.mxu0 0.0
      %1432 = vmatpush.msra.mxu0 0.0
      %1433 = vmatpush.msra.mxu0 0.0
      %1434 = vmatpush.msra.mxu0 0.0
      %1435 = vmatpush.msra.mxu0 0.0
      %1436 = vmatpush.msra.mxu0 0.0
      %1437 = vmatpush.msra.mxu0 0.0
      %1438 = vmatpush.msra.mxu0 0.0
      %1439 = vmatpush.msra.mxu0 0.0
      %1440 = vmatpush.msra.mxu0 0.0
      %1441 = vmatpush.msra.mxu0 0.0
      %1442 = vmatpush.msra.mxu0 0.0
      %1443 = vmatpush.msra.mxu0 %v1423
      %1444 = vmatmul.f32.gmra.mxu0 %v1420
      %v1445 = vpop.f32.mrf.mxu0
      %v1446 = vadd.f32 0.0, %v1445
      %1447 = vdwg.mxu0
      %1448 = vmatpush.msra.mxu0 0.0
      %1449 = vmatpush.msra.mxu0 0.0
      %1450 = vmatpush.msra.mxu0 0.0
      %1451 = vmatpush.msra.mxu0 0.0
      %1452 = vmatpush.msra.mxu0 0.0
      %1453 = vmatpush.msra.mxu0 0.0
      %1454 = vmatpush.msra.mxu0 0.0
      %1455 = vmatpush.msra.mxu0 0.0
      %1456 = vmatpush.msra.mxu0 0.0
      %1457 = vmatpush.msra.mxu0 0.0
      %1458 = vmatpush.msra.mxu0 0.0
      %1459 = vmatpush.msra.mxu0 0.0
      %1460 = vmatpush.msra.mxu0 0.0
      %1461 = vmatpush.msra.mxu0 0.0
      %1462 = vmatpush.msra.mxu0 0.0
      %1463 = vmatpush.msra.mxu0 %v1426
      %1464 = vmatmul.f32.gmra.mxu0 %v1420
      %v1465 = vpop.f32.mrf.mxu0
      %v1466 = vadd.f32 0.0, %v1465
      %1467 = vdwg.mxu0
      %v1468 = vadd.f32 %v1224, %v1446
      %v1469 = vadd.f32 %v1225, %v1466
      %v1470 = vld [vmem:[#allocation2 + $0x1] sm:$0xff]
      %v1471 = vld [vmem:[#allocation2 + $0x9] sm:$0xff]
      %v1472 = vld [vmem:[#allocation2 + $0x19] sm:$0xff]
      %v1473 = vld [vmem:[#allocation2 + $0x21] sm:$0xff]
      %v1474 = vld [vmem:[#allocation2 + $0x31] sm:$0xff]
      %v1475 = vld [vmem:[#allocation2 + $0x39] sm:$0xff]
      %v1476 = vld [vmem:[#allocation2 + $0x49] sm:$0xff]
      %v1477 = vld [vmem:[#allocation2 + $0x51] sm:$0xff]
      %v1478 = vld [vmem:[%s1] sm:$0xf]
      %1487 = vrot.lane.b32.xlu0 %v1470, 127
      %v1488 = vpop.permute.xlu0 %1487
      %1489 = vrot.lane.b32.xlu0 %v1471, 127
      %v1490 = vpop.permute.xlu0 %1489
      %1491 = vrot.lane.b32.xlu0 %v1472, 127
      %v1492 = vpop.permute.xlu0 %1491
      %1493 = vrot.lane.b32.xlu0 %v1473, 127
      %v1494 = vpop.permute.xlu0 %1493
      %1495 = vrot.lane.b32.xlu0 %v1474, 127
      %v1496 = vpop.permute.xlu0 %1495
      %1497 = vrot.lane.b32.xlu0 %v1475, 127
      %v1498 = vpop.permute.xlu0 %1497
      %1499 = vrot.lane.b32.xlu0 %v1476, 127
      %v1500 = vpop.permute.xlu0 %1499
      %1501 = vrot.lane.b32.xlu0 %v1477, 127
      %v1502 = vpop.permute.xlu0 %1501
      %v1511 = vrot.slane %v1496, 4
      %v1512 = vsel %vm446, %v1511, %v1488
      %v1513 = vrot.slane %v1488, 4
      %v1514 = vsel %vm446, %v1496, %v1513
      %v1516 = vunpack.c.l.s4 1983009808
      %v1517 = vunpack.c.0.s8 %v1516
      %v1518 = vperm.slane %v1512, %v1517
      %v1520 = vunpack.c.l.s4 1983009808
      %v1521 = vunpack.c.0.s8 %v1520
      %v1522 = vperm.slane %v1514, %v1521
      %v1523 = vrot.slane %v1500, 4
      %v1524 = vsel %vm446, %v1523, %v1492
      %v1525 = vrot.slane %v1492, 4
      %v1526 = vsel %vm446, %v1500, %v1525
      %v1528 = vunpack.c.l.s4 1983009808
      %v1529 = vunpack.c.0.s8 %v1528
      %v1530 = vperm.slane %v1524, %v1529
      %v1532 = vunpack.c.l.s4 1983009808
      %v1533 = vunpack.c.0.s8 %v1532
      %v1534 = vperm.slane %v1526, %v1533
      %v1535 = vrot.slane %v1530, 4
      %v1536 = vsel %vm446, %v1535, %v1518
      %v1537 = vrot.slane %v1518, 4
      %v1538 = vsel %vm446, %v1530, %v1537
      %v1540 = vunpack.c.l.s4 1934713408
      %v1541 = vunpack.c.0.s8 %v1540
      %v1542 = vperm.slane %v1536, %v1541
      %v1544 = vunpack.c.l.s4 1934713408
      %v1545 = vunpack.c.0.s8 %v1544
      %v1546 = vperm.slane %v1538, %v1545
      %v1547 = vrot.slane %v1534, 4
      %v1548 = vsel %vm446, %v1547, %v1522
      %v1549 = vrot.slane %v1522, 4
      %v1550 = vsel %vm446, %v1534, %v1549
      %v1552 = vunpack.c.l.s4 1934713408
      %v1553 = vunpack.c.0.s8 %v1552
      %v1554 = vperm.slane %v1548, %v1553
      %v1556 = vunpack.c.l.s4 1934713408
      %v1557 = vunpack.c.0.s8 %v1556
      %v1558 = vperm.slane %v1550, %v1557
      %v1559 = vrot.slane %v1542, 4
      %v1560 = vsel %vm446, 0.0, %v1559
      %v1561 = vrot.slane %v1546, 4
      %v1562 = vsel %vm446, 0.0, %v1561
      %v1563 = vrot.slane %v1554, 4
      %v1564 = vsel %vm446, 0.0, %v1563
      %v1565 = vrot.slane %v1558, 4
      %v1566 = vsel %vm446, 0.0, %v1565
      %v1567 = vrot.slane %v1498, 4
      %v1568 = vsel %vm446, %v1567, %v1490
      %v1569 = vrot.slane %v1490, 4
      %v1570 = vsel %vm446, %v1498, %v1569
      %v1572 = vunpack.c.l.s4 1983009808
      %v1573 = vunpack.c.0.s8 %v1572
      %v1574 = vperm.slane %v1568, %v1573
      %v1576 = vunpack.c.l.s4 1983009808
      %v1577 = vunpack.c.0.s8 %v1576
      %v1578 = vperm.slane %v1570, %v1577
      %v1579 = vrot.slane %v1502, 4
      %v1580 = vsel %vm446, %v1579, %v1494
      %v1581 = vrot.slane %v1494, 4
      %v1582 = vsel %vm446, %v1502, %v1581
      %v1584 = vunpack.c.l.s4 1983009808
      %v1585 = vunpack.c.0.s8 %v1584
      %v1586 = vperm.slane %v1580, %v1585
      %v1588 = vunpack.c.l.s4 1983009808
      %v1589 = vunpack.c.0.s8 %v1588
      %v1590 = vperm.slane %v1582, %v1589
      %v1591 = vrot.slane %v1586, 4
      %v1592 = vsel %vm446, %v1591, %v1574
      %v1593 = vrot.slane %v1574, 4
      %v1594 = vsel %vm446, %v1586, %v1593
      %v1596 = vunpack.c.l.s4 1934713408
      %v1597 = vunpack.c.0.s8 %v1596
      %v1598 = vperm.slane %v1592, %v1597
      %v1600 = vunpack.c.l.s4 1934713408
      %v1601 = vunpack.c.0.s8 %v1600
      %v1602 = vperm.slane %v1594, %v1601
      %v1603 = vrot.slane %v1590, 4
      %v1604 = vsel %vm446, %v1603, %v1578
      %v1605 = vrot.slane %v1578, 4
      %v1606 = vsel %vm446, %v1590, %v1605
      %v1608 = vunpack.c.l.s4 1934713408
      %v1609 = vunpack.c.0.s8 %v1608
      %v1610 = vperm.slane %v1604, %v1609
      %v1612 = vunpack.c.l.s4 1934713408
      %v1613 = vunpack.c.0.s8 %v1612
      %v1614 = vperm.slane %v1606, %v1613
      %v1615 = vrot.slane %v1598, 4
      %v1616 = vsel %vm446, 0.0, %v1615
      %v1617 = vrot.slane %v1602, 4
      %v1618 = vsel %vm446, 0.0, %v1617
      %v1619 = vrot.slane %v1610, 4
      %v1620 = vsel %vm446, 0.0, %v1619
      %v1621 = vrot.slane %v1614, 4
      %v1622 = vsel %vm446, 0.0, %v1621
      %1624 = vrot.lane.b32.xlu0 %v1560, 16
      %v1625 = vpop.permute.xlu0 %1624
      %1628 = vrot.lane.b32.xlu0 %v1546, 32
      %v1629 = vpop.permute.xlu0 %1628
      %1632 = vrot.lane.b32.xlu0 %v1562, 48
      %v1633 = vpop.permute.xlu0 %1632
      %1636 = vrot.lane.b32.xlu0 %v1554, 64
      %v1637 = vpop.permute.xlu0 %1636
      %1640 = vrot.lane.b32.xlu0 %v1564, 80
      %v1641 = vpop.permute.xlu0 %1640
      %1644 = vrot.lane.b32.xlu0 %v1558, 96
      %v1645 = vpop.permute.xlu0 %1644
      %1648 = vrot.lane.b32.xlu0 %v1566, 112
      %v1649 = vpop.permute.xlu0 %1648
      %1652 = vrot.lane.b32.xlu0 %v1616, 16
      %v1653 = vpop.permute.xlu0 %1652
      %1656 = vrot.lane.b32.xlu0 %v1602, 32
      %v1657 = vpop.permute.xlu0 %1656
      %1660 = vrot.lane.b32.xlu0 %v1618, 48
      %v1661 = vpop.permute.xlu0 %1660
      %1664 = vrot.lane.b32.xlu0 %v1610, 64
      %v1665 = vpop.permute.xlu0 %1664
      %1668 = vrot.lane.b32.xlu0 %v1620, 80
      %v1669 = vpop.permute.xlu0 %1668
      %1672 = vrot.lane.b32.xlu0 %v1614, 96
      %v1673 = vpop.permute.xlu0 %1672
      %1676 = vrot.lane.b32.xlu0 %v1622, 112
      %v1677 = vpop.permute.xlu0 %1676
      %v1679 = vsel %vm614, %v1542, %v1625
      %v1680 = vsel %vm616, %v1679, %v1629
      %v1681 = vsel %vm618, %v1680, %v1633
      %v1682 = vsel %vm620, %v1681, %v1637
      %v1683 = vsel %vm622, %v1682, %v1641
      %v1684 = vsel %vm624, %v1683, %v1645
      %v1685 = vsel %vm626, %v1684, %v1649
      %v1686 = vsel %vm614, %v1598, %v1653
      %v1687 = vsel %vm616, %v1686, %v1657
      %v1688 = vsel %vm618, %v1687, %v1661
      %v1689 = vsel %vm620, %v1688, %v1665
      %v1690 = vsel %vm622, %v1689, %v1669
      %v1691 = vsel %vm624, %v1690, %v1673
      %v1692 = vsel %vm626, %v1691, %v1677
      %1694 = vrot.lane.b32.xlu0 %v1478, 112
      %v1695 = vpop.permute.xlu0 %1694
      %v1696 = vsel %vm852, %v1695, 0
      %v1699 = vsel %vm855, %v1685, 0
      %v1702 = vsel %vm855, %v1692, 0
      %1704 = vmatpush.msra.mxu0 0.0
      %1705 = vmatpush.msra.mxu0 0.0
      %1706 = vmatpush.msra.mxu0 0.0
      %1707 = vmatpush.msra.mxu0 0.0
      %1708 = vmatpush.msra.mxu0 0.0
      %1709 = vmatpush.msra.mxu0 0.0
      %1710 = vmatpush.msra.mxu0 0.0
      %1711 = vmatpush.msra.mxu0 0.0
      %1712 = vmatpush.msra.mxu0 0.0
      %1713 = vmatpush.msra.mxu0 0.0
      %1714 = vmatpush.msra.mxu0 0.0
      %1715 = vmatpush.msra.mxu0 0.0
      %1716 = vmatpush.msra.mxu0 0.0
      %1717 = vmatpush.msra.mxu0 0.0
      %1718 = vmatpush.msra.mxu0 0.0
      %1719 = vmatpush.msra.mxu0 %v1699
      %1720 = vmatmul.f32.gmra.mxu0 %v1696
      %v1721 = vpop.f32.mrf.mxu0
      %v1722 = vadd.f32 0.0, %v1721
      %1723 = vdwg.mxu0
      %1724 = vmatpush.msra.mxu0 0.0
      %1725 = vmatpush.msra.mxu0 0.0
      %1726 = vmatpush.msra.mxu0 0.0
      %1727 = vmatpush.msra.mxu0 0.0
      %1728 = vmatpush.msra.mxu0 0.0
      %1729 = vmatpush.msra.mxu0 0.0
      %1730 = vmatpush.msra.mxu0 0.0
      %1731 = vmatpush.msra.mxu0 0.0
      %1732 = vmatpush.msra.mxu0 0.0
      %1733 = vmatpush.msra.mxu0 0.0
      %1734 = vmatpush.msra.mxu0 0.0
      %1735 = vmatpush.msra.mxu0 0.0
      %1736 = vmatpush.msra.mxu0 0.0
      %1737 = vmatpush.msra.mxu0 0.0
      %1738 = vmatpush.msra.mxu0 0.0
      %1739 = vmatpush.msra.mxu0 %v1702
      %1740 = vmatmul.f32.gmra.mxu0 %v1696
      %v1741 = vpop.f32.mrf.mxu0
      %v1742 = vadd.f32 0.0, %v1741
      %1743 = vdwg.mxu0
      %v1744 = vadd.f32 %v1468, %v1722
      %v1745 = vadd.f32 %v1469, %v1742
      %v1746 = vld [vmem:[#allocation2 + $0x1] sm:$0xff]
      %v1747 = vld [vmem:[#allocation2 + $0x9] sm:$0xff]
      %v1748 = vld [vmem:[#allocation2 + $0x19] sm:$0xff]
      %v1749 = vld [vmem:[#allocation2 + $0x21] sm:$0xff]
      %v1750 = vld [vmem:[#allocation2 + $0x31] sm:$0xff]
      %v1751 = vld [vmem:[#allocation2 + $0x39] sm:$0xff]
      %v1752 = vld [vmem:[#allocation2 + $0x49] sm:$0xff]
      %v1753 = vld [vmem:[#allocation2 + $0x51] sm:$0xff]
      %v1754 = vld [vmem:[%s1] sm:$0xf]
      %1763 = vrot.lane.b32.xlu0 %v1746, 126
      %v1764 = vpop.permute.xlu0 %1763
      %1765 = vrot.lane.b32.xlu0 %v1747, 126
      %v1766 = vpop.permute.xlu0 %1765
      %1767 = vrot.lane.b32.xlu0 %v1748, 126
      %v1768 = vpop.permute.xlu0 %1767
      %1769 = vrot.lane.b32.xlu0 %v1749, 126
      %v1770 = vpop.permute.xlu0 %1769
      %1771 = vrot.lane.b32.xlu0 %v1750, 126
      %v1772 = vpop.permute.xlu0 %1771
      %1773 = vrot.lane.b32.xlu0 %v1751, 126
      %v1774 = vpop.permute.xlu0 %1773
      %1775 = vrot.lane.b32.xlu0 %v1752, 126
      %v1776 = vpop.permute.xlu0 %1775
      %1777 = vrot.lane.b32.xlu0 %v1753, 126
      %v1778 = vpop.permute.xlu0 %1777
      %v1787 = vrot.slane %v1772, 4
      %v1788 = vsel %vm446, %v1787, %v1764
      %v1789 = vrot.slane %v1764, 4
      %v1790 = vsel %vm446, %v1772, %v1789
      %v1792 = vunpack.c.l.s4 1983009808
      %v1793 = vunpack.c.0.s8 %v1792
      %v1794 = vperm.slane %v1788, %v1793
      %v1796 = vunpack.c.l.s4 1983009808
      %v1797 = vunpack.c.0.s8 %v1796
      %v1798 = vperm.slane %v1790, %v1797
      %v1799 = vrot.slane %v1776, 4
      %v1800 = vsel %vm446, %v1799, %v1768
      %v1801 = vrot.slane %v1768, 4
      %v1802 = vsel %vm446, %v1776, %v1801
      %v1804 = vunpack.c.l.s4 1983009808
      %v1805 = vunpack.c.0.s8 %v1804
      %v1806 = vperm.slane %v1800, %v1805
      %v1808 = vunpack.c.l.s4 1983009808
      %v1809 = vunpack.c.0.s8 %v1808
      %v1810 = vperm.slane %v1802, %v1809
      %v1811 = vrot.slane %v1806, 4
      %v1812 = vsel %vm446, %v1811, %v1794
      %v1813 = vrot.slane %v1794, 4
      %v1814 = vsel %vm446, %v1806, %v1813
      %v1816 = vunpack.c.l.s4 1934713408
      %v1817 = vunpack.c.0.s8 %v1816
      %v1818 = vperm.slane %v1812, %v1817
      %v1820 = vunpack.c.l.s4 1934713408
      %v1821 = vunpack.c.0.s8 %v1820
      %v1822 = vperm.slane %v1814, %v1821
      %v1823 = vrot.slane %v1810, 4
      %v1824 = vsel %vm446, %v1823, %v1798
      %v1825 = vrot.slane %v1798, 4
      %v1826 = vsel %vm446, %v1810, %v1825
      %v1828 = vunpack.c.l.s4 1934713408
      %v1829 = vunpack.c.0.s8 %v1828
      %v1830 = vperm.slane %v1824, %v1829
      %v1832 = vunpack.c.l.s4 1934713408
      %v1833 = vunpack.c.0.s8 %v1832
      %v1834 = vperm.slane %v1826, %v1833
      %v1835 = vrot.slane %v1818, 4
      %v1836 = vsel %vm446, 0.0, %v1835
      %v1837 = vrot.slane %v1822, 4
      %v1838 = vsel %vm446, 0.0, %v1837
      %v1839 = vrot.slane %v1830, 4
      %v1840 = vsel %vm446, 0.0, %v1839
      %v1841 = vrot.slane %v1834, 4
      %v1842 = vsel %vm446, 0.0, %v1841
      %v1843 = vrot.slane %v1774, 4
      %v1844 = vsel %vm446, %v1843, %v1766
      %v1845 = vrot.slane %v1766, 4
      %v1846 = vsel %vm446, %v1774, %v1845
      %v1848 = vunpack.c.l.s4 1983009808
      %v1849 = vunpack.c.0.s8 %v1848
      %v1850 = vperm.slane %v1844, %v1849
      %v1852 = vunpack.c.l.s4 1983009808
      %v1853 = vunpack.c.0.s8 %v1852
      %v1854 = vperm.slane %v1846, %v1853
      %v1855 = vrot.slane %v1778, 4
      %v1856 = vsel %vm446, %v1855, %v1770
      %v1857 = vrot.slane %v1770, 4
      %v1858 = vsel %vm446, %v1778, %v1857
      %v1860 = vunpack.c.l.s4 1983009808
      %v1861 = vunpack.c.0.s8 %v1860
      %v1862 = vperm.slane %v1856, %v1861
      %v1864 = vunpack.c.l.s4 1983009808
      %v1865 = vunpack.c.0.s8 %v1864
      %v1866 = vperm.slane %v1858, %v1865
      %v1867 = vrot.slane %v1862, 4
      %v1868 = vsel %vm446, %v1867, %v1850
      %v1869 = vrot.slane %v1850, 4
      %v1870 = vsel %vm446, %v1862, %v1869
      %v1872 = vunpack.c.l.s4 1934713408
      %v1873 = vunpack.c.0.s8 %v1872
      %v1874 = vperm.slane %v1868, %v1873
      %v1876 = vunpack.c.l.s4 1934713408
      %v1877 = vunpack.c.0.s8 %v1876
      %v1878 = vperm.slane %v1870, %v1877
      %v1879 = vrot.slane %v1866, 4
      %v1880 = vsel %vm446, %v1879, %v1854
      %v1881 = vrot.slane %v1854, 4
      %v1882 = vsel %vm446, %v1866, %v1881
      %v1884 = vunpack.c.l.s4 1934713408
      %v1885 = vunpack.c.0.s8 %v1884
      %v1886 = vperm.slane %v1880, %v1885
      %v1888 = vunpack.c.l.s4 1934713408
      %v1889 = vunpack.c.0.s8 %v1888
      %v1890 = vperm.slane %v1882, %v1889
      %v1891 = vrot.slane %v1874, 4
      %v1892 = vsel %vm446, 0.0, %v1891
      %v1893 = vrot.slane %v1878, 4
      %v1894 = vsel %vm446, 0.0, %v1893
      %v1895 = vrot.slane %v1886, 4
      %v1896 = vsel %vm446, 0.0, %v1895
      %v1897 = vrot.slane %v1890, 4
      %v1898 = vsel %vm446, 0.0, %v1897
      %1900 = vrot.lane.b32.xlu0 %v1836, 16
      %v1901 = vpop.permute.xlu0 %1900
      %1904 = vrot.lane.b32.xlu0 %v1822, 32
      %v1905 = vpop.permute.xlu0 %1904
      %1908 = vrot.lane.b32.xlu0 %v1838, 48
      %v1909 = vpop.permute.xlu0 %1908
      %1912 = vrot.lane.b32.xlu0 %v1830, 64
      %v1913 = vpop.permute.xlu0 %1912
      %1916 = vrot.lane.b32.xlu0 %v1840, 80
      %v1917 = vpop.permute.xlu0 %1916
      %1920 = vrot.lane.b32.xlu0 %v1834, 96
      %v1921 = vpop.permute.xlu0 %1920
      %1924 = vrot.lane.b32.xlu0 %v1842, 112
      %v1925 = vpop.permute.xlu0 %1924
      %1928 = vrot.lane.b32.xlu0 %v1892, 16
      %v1929 = vpop.permute.xlu0 %1928
      %1932 = vrot.lane.b32.xlu0 %v1878, 32
      %v1933 = vpop.permute.xlu0 %1932
      %1936 = vrot.lane.b32.xlu0 %v1894, 48
      %v1937 = vpop.permute.xlu0 %1936
      %1940 = vrot.lane.b32.xlu0 %v1886, 64
      %v1941 = vpop.permute.xlu0 %1940
      %1944 = vrot.lane.b32.xlu0 %v1896, 80
      %v1945 = vpop.permute.xlu0 %1944
      %1948 = vrot.lane.b32.xlu0 %v1890, 96
      %v1949 = vpop.permute.xlu0 %1948
      %1952 = vrot.lane.b32.xlu0 %v1898, 112
      %v1953 = vpop.permute.xlu0 %1952
      %v1955 = vsel %vm614, %v1818, %v1901
      %v1956 = vsel %vm616, %v1955, %v1905
      %v1957 = vsel %vm618, %v1956, %v1909
      %v1958 = vsel %vm620, %v1957, %v1913
      %v1959 = vsel %vm622, %v1958, %v1917
      %v1960 = vsel %vm624, %v1959, %v1921
      %v1961 = vsel %vm626, %v1960, %v1925
      %v1962 = vsel %vm614, %v1874, %v1929
      %v1963 = vsel %vm616, %v1962, %v1933
      %v1964 = vsel %vm618, %v1963, %v1937
      %v1965 = vsel %vm620, %v1964, %v1941
      %v1966 = vsel %vm622, %v1965, %v1945
      %v1967 = vsel %vm624, %v1966, %v1949
      %v1968 = vsel %vm626, %v1967, %v1953
      %1970 = vrot.lane.b32.xlu0 %v1754, 108
      %v1971 = vpop.permute.xlu0 %1970
      %v1972 = vsel %vm852, %v1971, 0
      %v1975 = vsel %vm855, %v1961, 0
      %v1978 = vsel %vm855, %v1968, 0
      %1980 = vmatpush.msra.mxu0 0.0
      %1981 = vmatpush.msra.mxu0 0.0
      %1982 = vmatpush.msra.mxu0 0.0
      %1983 = vmatpush.msra.mxu0 0.0
      %1984 = vmatpush.msra.mxu0 0.0
      %1985 = vmatpush.msra.mxu0 0.0
      %1986 = vmatpush.msra.mxu0 0.0
      %1987 = vmatpush.msra.mxu0 0.0
      %1988 = vmatpush.msra.mxu0 0.0
      %1989 = vmatpush.msra.mxu0 0.0
      %1990 = vmatpush.msra.mxu0 0.0
      %1991 = vmatpush.msra.mxu0 0.0
      %1992 = vmatpush.msra.mxu0 0.0
      %1993 = vmatpush.msra.mxu0 0.0
      %1994 = vmatpush.msra.mxu0 0.0
      %1995 = vmatpush.msra.mxu0 %v1975
      %1996 = vmatmul.f32.gmra.mxu0 %v1972
      %v1997 = vpop.f32.mrf.mxu0
      %v1998 = vadd.f32 0.0, %v1997
      %1999 = vdwg.mxu0
      %2000 = vmatpush.msra.mxu0 0.0
      %2001 = vmatpush.msra.mxu0 0.0
      %2002 = vmatpush.msra.mxu0 0.0
      %2003 = vmatpush.msra.mxu0 0.0
      %2004 = vmatpush.msra.mxu0 0.0
      %2005 = vmatpush.msra.mxu0 0.0
      %2006 = vmatpush.msra.mxu0 0.0
      %2007 = vmatpush.msra.mxu0 0.0
      %2008 = vmatpush.msra.mxu0 0.0
      %2009 = vmatpush.msra.mxu0 0.0
      %2010 = vmatpush.msra.mxu0 0.0
      %2011 = vmatpush.msra.mxu0 0.0
      %2012 = vmatpush.msra.mxu0 0.0
      %2013 = vmatpush.msra.mxu0 0.0
      %2014 = vmatpush.msra.mxu0 0.0
      %2015 = vmatpush.msra.mxu0 %v1978
      %2016 = vmatmul.f32.gmra.mxu0 %v1972
      %v2017 = vpop.f32.mrf.mxu0
      %v2018 = vadd.f32 0.0, %v2017
      %2019 = vdwg.mxu0
      %v2020 = vadd.f32 %v1744, %v1998
      %v2021 = vadd.f32 %v1745, %v2018
      %v2022 = vld [vmem:[#allocation2 + $0x2] sm:$0xff]
      %v2023 = vld [vmem:[#allocation2 + $0xa] sm:$0xff]
      %v2024 = vld [vmem:[#allocation2 + $0x1a] sm:$0xff]
      %v2025 = vld [vmem:[#allocation2 + $0x22] sm:$0xff]
      %v2026 = vld [vmem:[#allocation2 + $0x32] sm:$0xff]
      %v2027 = vld [vmem:[#allocation2 + $0x3a] sm:$0xff]
      %v2028 = vld [vmem:[#allocation2 + $0x4a] sm:$0xff]
      %v2029 = vld [vmem:[#allocation2 + $0x52] sm:$0xff]
      %v2030 = vld [vmem:[%s1] sm:$0xf]
      %v2031 = vrot.slane %v2026, 4
      %v2032 = vsel %vm446, %v2031, %v2022
      %v2033 = vrot.slane %v2022, 4
      %v2034 = vsel %vm446, %v2026, %v2033
      %v2036 = vunpack.c.l.s4 1983009808
      %v2037 = vunpack.c.0.s8 %v2036
      %v2038 = vperm.slane %v2032, %v2037
      %v2040 = vunpack.c.l.s4 1983009808
      %v2041 = vunpack.c.0.s8 %v2040
      %v2042 = vperm.slane %v2034, %v2041
      %v2043 = vrot.slane %v2028, 4
      %v2044 = vsel %vm446, %v2043, %v2024
      %v2045 = vrot.slane %v2024, 4
      %v2046 = vsel %vm446, %v2028, %v2045
      %v2048 = vunpack.c.l.s4 1983009808
      %v2049 = vunpack.c.0.s8 %v2048
      %v2050 = vperm.slane %v2044, %v2049
      %v2052 = vunpack.c.l.s4 1983009808
      %v2053 = vunpack.c.0.s8 %v2052
      %v2054 = vperm.slane %v2046, %v2053
      %v2055 = vrot.slane %v2050, 4
      %v2056 = vsel %vm446, %v2055, %v2038
      %v2057 = vrot.slane %v2038, 4
      %v2058 = vsel %vm446, %v2050, %v2057
      %v2060 = vunpack.c.l.s4 1934713408
      %v2061 = vunpack.c.0.s8 %v2060
      %v2062 = vperm.slane %v2056, %v2061
      %v2064 = vunpack.c.l.s4 1934713408
      %v2065 = vunpack.c.0.s8 %v2064
      %v2066 = vperm.slane %v2058, %v2065
      %v2067 = vrot.slane %v2054, 4
      %v2068 = vsel %vm446, %v2067, %v2042
      %v2069 = vrot.slane %v2042, 4
      %v2070 = vsel %vm446, %v2054, %v2069
      %v2072 = vunpack.c.l.s4 1934713408
      %v2073 = vunpack.c.0.s8 %v2072
      %v2074 = vperm.slane %v2068, %v2073
      %v2076 = vunpack.c.l.s4 1934713408
      %v2077 = vunpack.c.0.s8 %v2076
      %v2078 = vperm.slane %v2070, %v2077
      %v2079 = vrot.slane %v2062, 4
      %v2080 = vsel %vm446, 0.0, %v2079
      %v2081 = vrot.slane %v2066, 4
      %v2082 = vsel %vm446, 0.0, %v2081
      %v2083 = vrot.slane %v2074, 4
      %v2084 = vsel %vm446, 0.0, %v2083
      %v2085 = vrot.slane %v2078, 4
      %v2086 = vsel %vm446, 0.0, %v2085
      %v2087 = vrot.slane %v2027, 4
      %v2088 = vsel %vm446, %v2087, %v2023
      %v2089 = vrot.slane %v2023, 4
      %v2090 = vsel %vm446, %v2027, %v2089
      %v2092 = vunpack.c.l.s4 1983009808
      %v2093 = vunpack.c.0.s8 %v2092
      %v2094 = vperm.slane %v2088, %v2093
      %v2096 = vunpack.c.l.s4 1983009808
      %v2097 = vunpack.c.0.s8 %v2096
      %v2098 = vperm.slane %v2090, %v2097
      %v2099 = vrot.slane %v2029, 4
      %v2100 = vsel %vm446, %v2099, %v2025
      %v2101 = vrot.slane %v2025, 4
      %v2102 = vsel %vm446, %v2029, %v2101
      %v2104 = vunpack.c.l.s4 1983009808
      %v2105 = vunpack.c.0.s8 %v2104
      %v2106 = vperm.slane %v2100, %v2105
      %v2108 = vunpack.c.l.s4 1983009808
      %v2109 = vunpack.c.0.s8 %v2108
      %v2110 = vperm.slane %v2102, %v2109
      %v2111 = vrot.slane %v2106, 4
      %v2112 = vsel %vm446, %v2111, %v2094
      %v2113 = vrot.slane %v2094, 4
      %v2114 = vsel %vm446, %v2106, %v2113
      %v2116 = vunpack.c.l.s4 1934713408
      %v2117 = vunpack.c.0.s8 %v2116
      %v2118 = vperm.slane %v2112, %v2117
      %v2120 = vunpack.c.l.s4 1934713408
      %v2121 = vunpack.c.0.s8 %v2120
      %v2122 = vperm.slane %v2114, %v2121
      %v2123 = vrot.slane %v2110, 4
      %v2124 = vsel %vm446, %v2123, %v2098
      %v2125 = vrot.slane %v2098, 4
      %v2126 = vsel %vm446, %v2110, %v2125
      %v2128 = vunpack.c.l.s4 1934713408
      %v2129 = vunpack.c.0.s8 %v2128
      %v2130 = vperm.slane %v2124, %v2129
      %v2132 = vunpack.c.l.s4 1934713408
      %v2133 = vunpack.c.0.s8 %v2132
      %v2134 = vperm.slane %v2126, %v2133
      %v2135 = vrot.slane %v2118, 4
      %v2136 = vsel %vm446, 0.0, %v2135
      %v2137 = vrot.slane %v2122, 4
      %v2138 = vsel %vm446, 0.0, %v2137
      %v2139 = vrot.slane %v2130, 4
      %v2140 = vsel %vm446, 0.0, %v2139
      %v2141 = vrot.slane %v2134, 4
      %v2142 = vsel %vm446, 0.0, %v2141
      %2144 = vrot.lane.b32.xlu0 %v2080, 16
      %v2145 = vpop.permute.xlu0 %2144
      %2148 = vrot.lane.b32.xlu0 %v2066, 32
      %v2149 = vpop.permute.xlu0 %2148
      %2152 = vrot.lane.b32.xlu0 %v2082, 48
      %v2153 = vpop.permute.xlu0 %2152
      %2156 = vrot.lane.b32.xlu0 %v2074, 64
      %v2157 = vpop.permute.xlu0 %2156
      %2160 = vrot.lane.b32.xlu0 %v2084, 80
      %v2161 = vpop.permute.xlu0 %2160
      %2164 = vrot.lane.b32.xlu0 %v2078, 96
      %v2165 = vpop.permute.xlu0 %2164
      %2168 = vrot.lane.b32.xlu0 %v2086, 112
      %v2169 = vpop.permute.xlu0 %2168
      %2172 = vrot.lane.b32.xlu0 %v2136, 16
      %v2173 = vpop.permute.xlu0 %2172
      %2176 = vrot.lane.b32.xlu0 %v2122, 32
      %v2177 = vpop.permute.xlu0 %2176
      %2180 = vrot.lane.b32.xlu0 %v2138, 48
      %v2181 = vpop.permute.xlu0 %2180
      %2184 = vrot.lane.b32.xlu0 %v2130, 64
      %v2185 = vpop.permute.xlu0 %2184
      %2188 = vrot.lane.b32.xlu0 %v2140, 80
      %v2189 = vpop.permute.xlu0 %2188
      %2192 = vrot.lane.b32.xlu0 %v2134, 96
      %v2193 = vpop.permute.xlu0 %2192
      %2196 = vrot.lane.b32.xlu0 %v2142, 112
      %v2197 = vpop.permute.xlu0 %2196
      %v2199 = vsel %vm614, %v2062, %v2145
      %v2200 = vsel %vm616, %v2199, %v2149
      %v2201 = vsel %vm618, %v2200, %v2153
      %v2202 = vsel %vm620, %v2201, %v2157
      %v2203 = vsel %vm622, %v2202, %v2161
      %v2204 = vsel %vm624, %v2203, %v2165
      %v2205 = vsel %vm626, %v2204, %v2169
      %v2206 = vsel %vm614, %v2118, %v2173
      %v2207 = vsel %vm616, %v2206, %v2177
      %v2208 = vsel %vm618, %v2207, %v2181
      %v2209 = vsel %vm620, %v2208, %v2185
      %v2210 = vsel %vm622, %v2209, %v2189
      %v2211 = vsel %vm624, %v2210, %v2193
      %v2212 = vsel %vm626, %v2211, %v2197
      %2214 = vrot.lane.b32.xlu0 %v2030, 104
      %v2215 = vpop.permute.xlu0 %2214
      %v2216 = vsel %vm852, %v2215, 0
      %v2219 = vsel %vm855, %v2205, 0
      %v2222 = vsel %vm855, %v2212, 0
      %2224 = vmatpush.msra.mxu0 0.0
      %2225 = vmatpush.msra.mxu0 0.0
      %2226 = vmatpush.msra.mxu0 0.0
      %2227 = vmatpush.msra.mxu0 0.0
      %2228 = vmatpush.msra.mxu0 0.0
      %2229 = vmatpush.msra.mxu0 0.0
      %2230 = vmatpush.msra.mxu0 0.0
      %2231 = vmatpush.msra.mxu0 0.0
      %2232 = vmatpush.msra.mxu0 0.0
      %2233 = vmatpush.msra.mxu0 0.0
      %2234 = vmatpush.msra.mxu0 0.0
      %2235 = vmatpush.msra.mxu0 0.0
      %2236 = vmatpush.msra.mxu0 0.0
      %2237 = vmatpush.msra.mxu0 0.0
      %2238 = vmatpush.msra.mxu0 0.0
      %2239 = vmatpush.msra.mxu0 %v2219
      %2240 = vmatmul.f32.gmra.mxu0 %v2216
      %v2241 = vpop.f32.mrf.mxu0
      %v2242 = vadd.f32 0.0, %v2241
      %2243 = vdwg.mxu0
      %2244 = vmatpush.msra.mxu0 0.0
      %2245 = vmatpush.msra.mxu0 0.0
      %2246 = vmatpush.msra.mxu0 0.0
      %2247 = vmatpush.msra.mxu0 0.0
      %2248 = vmatpush.msra.mxu0 0.0
      %2249 = vmatpush.msra.mxu0 0.0
      %2250 = vmatpush.msra.mxu0 0.0
      %2251 = vmatpush.msra.mxu0 0.0
      %2252 = vmatpush.msra.mxu0 0.0
      %2253 = vmatpush.msra.mxu0 0.0
      %2254 = vmatpush.msra.mxu0 0.0
      %2255 = vmatpush.msra.mxu0 0.0
      %2256 = vmatpush.msra.mxu0 0.0
      %2257 = vmatpush.msra.mxu0 0.0
      %2258 = vmatpush.msra.mxu0 0.0
      %2259 = vmatpush.msra.mxu0 %v2222
      %2260 = vmatmul.f32.gmra.mxu0 %v2216
      %v2261 = vpop.f32.mrf.mxu0
      %v2262 = vadd.f32 0.0, %v2261
      %2263 = vdwg.mxu0
      %v2264 = vadd.f32 %v2020, %v2242
      %v2265 = vadd.f32 %v2021, %v2262
      %v2266 = vld [vmem:[#allocation2 + $0x2] sm:$0xff]
      %v2267 = vld [vmem:[#allocation2 + $0xa] sm:$0xff]
      %v2268 = vld [vmem:[#allocation2 + $0x1a] sm:$0xff]
      %v2269 = vld [vmem:[#allocation2 + $0x22] sm:$0xff]
      %v2270 = vld [vmem:[#allocation2 + $0x32] sm:$0xff]
      %v2271 = vld [vmem:[#allocation2 + $0x3a] sm:$0xff]
      %v2272 = vld [vmem:[#allocation2 + $0x4a] sm:$0xff]
      %v2273 = vld [vmem:[#allocation2 + $0x52] sm:$0xff]
      %v2274 = vld [vmem:[%s1] sm:$0xf]
      %2283 = vrot.lane.b32.xlu0 %v2266, 127
      %v2284 = vpop.permute.xlu0 %2283
      %2285 = vrot.lane.b32.xlu0 %v2267, 127
      %v2286 = vpop.permute.xlu0 %2285
      %2287 = vrot.lane.b32.xlu0 %v2268, 127
      %v2288 = vpop.permute.xlu0 %2287
      %2289 = vrot.lane.b32.xlu0 %v2269, 127
      %v2290 = vpop.permute.xlu0 %2289
      %2291 = vrot.lane.b32.xlu0 %v2270, 127
      %v2292 = vpop.permute.xlu0 %2291
      %2293 = vrot.lane.b32.xlu0 %v2271, 127
      %v2294 = vpop.permute.xlu0 %2293
      %2295 = vrot.lane.b32.xlu0 %v2272, 127
      %v2296 = vpop.permute.xlu0 %2295
      %2297 = vrot.lane.b32.xlu0 %v2273, 127
      %v2298 = vpop.permute.xlu0 %2297
      %v2307 = vrot.slane %v2292, 4
      %v2308 = vsel %vm446, %v2307, %v2284
      %v2309 = vrot.slane %v2284, 4
      %v2310 = vsel %vm446, %v2292, %v2309
      %v2312 = vunpack.c.l.s4 1983009808
      %v2313 = vunpack.c.0.s8 %v2312
      %v2314 = vperm.slane %v2308, %v2313
      %v2316 = vunpack.c.l.s4 1983009808
      %v2317 = vunpack.c.0.s8 %v2316
      %v2318 = vperm.slane %v2310, %v2317
      %v2319 = vrot.slane %v2296, 4
      %v2320 = vsel %vm446, %v2319, %v2288
      %v2321 = vrot.slane %v2288, 4
      %v2322 = vsel %vm446, %v2296, %v2321
      %v2324 = vunpack.c.l.s4 1983009808
      %v2325 = vunpack.c.0.s8 %v2324
      %v2326 = vperm.slane %v2320, %v2325
      %v2328 = vunpack.c.l.s4 1983009808
      %v2329 = vunpack.c.0.s8 %v2328
      %v2330 = vperm.slane %v2322, %v2329
      %v2331 = vrot.slane %v2326, 4
      %v2332 = vsel %vm446, %v2331, %v2314
      %v2333 = vrot.slane %v2314, 4
      %v2334 = vsel %vm446, %v2326, %v2333
      %v2336 = vunpack.c.l.s4 1934713408
      %v2337 = vunpack.c.0.s8 %v2336
      %v2338 = vperm.slane %v2332, %v2337
      %v2340 = vunpack.c.l.s4 1934713408
      %v2341 = vunpack.c.0.s8 %v2340
      %v2342 = vperm.slane %v2334, %v2341
      %v2343 = vrot.slane %v2330, 4
      %v2344 = vsel %vm446, %v2343, %v2318
      %v2345 = vrot.slane %v2318, 4
      %v2346 = vsel %vm446, %v2330, %v2345
      %v2348 = vunpack.c.l.s4 1934713408
      %v2349 = vunpack.c.0.s8 %v2348
      %v2350 = vperm.slane %v2344, %v2349
      %v2352 = vunpack.c.l.s4 1934713408
      %v2353 = vunpack.c.0.s8 %v2352
      %v2354 = vperm.slane %v2346, %v2353
      %v2355 = vrot.slane %v2338, 4
      %v2356 = vsel %vm446, 0.0, %v2355
      %v2357 = vrot.slane %v2342, 4
      %v2358 = vsel %vm446, 0.0, %v2357
      %v2359 = vrot.slane %v2350, 4
      %v2360 = vsel %vm446, 0.0, %v2359
      %v2361 = vrot.slane %v2354, 4
      %v2362 = vsel %vm446, 0.0, %v2361
      %v2363 = vrot.slane %v2294, 4
      %v2364 = vsel %vm446, %v2363, %v2286
      %v2365 = vrot.slane %v2286, 4
      %v2366 = vsel %vm446, %v2294, %v2365
      %v2368 = vunpack.c.l.s4 1983009808
      %v2369 = vunpack.c.0.s8 %v2368
      %v2370 = vperm.slane %v2364, %v2369
      %v2372 = vunpack.c.l.s4 1983009808
      %v2373 = vunpack.c.0.s8 %v2372
      %v2374 = vperm.slane %v2366, %v2373
      %v2375 = vrot.slane %v2298, 4
      %v2376 = vsel %vm446, %v2375, %v2290
      %v2377 = vrot.slane %v2290, 4
      %v2378 = vsel %vm446, %v2298, %v2377
      %v2380 = vunpack.c.l.s4 1983009808
      %v2381 = vunpack.c.0.s8 %v2380
      %v2382 = vperm.slane %v2376, %v2381
      %v2384 = vunpack.c.l.s4 1983009808
      %v2385 = vunpack.c.0.s8 %v2384
      %v2386 = vperm.slane %v2378, %v2385
      %v2387 = vrot.slane %v2382, 4
      %v2388 = vsel %vm446, %v2387, %v2370
      %v2389 = vrot.slane %v2370, 4
      %v2390 = vsel %vm446, %v2382, %v2389
      %v2392 = vunpack.c.l.s4 1934713408
      %v2393 = vunpack.c.0.s8 %v2392
      %v2394 = vperm.slane %v2388, %v2393
      %v2396 = vunpack.c.l.s4 1934713408
      %v2397 = vunpack.c.0.s8 %v2396
      %v2398 = vperm.slane %v2390, %v2397
      %v2399 = vrot.slane %v2386, 4
      %v2400 = vsel %vm446, %v2399, %v2374
      %v2401 = vrot.slane %v2374, 4
      %v2402 = vsel %vm446, %v2386, %v2401
      %v2404 = vunpack.c.l.s4 1934713408
      %v2405 = vunpack.c.0.s8 %v2404
      %v2406 = vperm.slane %v2400, %v2405
      %v2408 = vunpack.c.l.s4 1934713408
      %v2409 = vunpack.c.0.s8 %v2408
      %v2410 = vperm.slane %v2402, %v2409
      %v2411 = vrot.slane %v2394, 4
      %v2412 = vsel %vm446, 0.0, %v2411
      %v2413 = vrot.slane %v2398, 4
      %v2414 = vsel %vm446, 0.0, %v2413
      %v2415 = vrot.slane %v2406, 4
      %v2416 = vsel %vm446, 0.0, %v2415
      %v2417 = vrot.slane %v2410, 4
      %v2418 = vsel %vm446, 0.0, %v2417
      %2420 = vrot.lane.b32.xlu0 %v2356, 16
      %v2421 = vpop.permute.xlu0 %2420
      %2424 = vrot.lane.b32.xlu0 %v2342, 32
      %v2425 = vpop.permute.xlu0 %2424
      %2428 = vrot.lane.b32.xlu0 %v2358, 48
      %v2429 = vpop.permute.xlu0 %2428
      %2432 = vrot.lane.b32.xlu0 %v2350, 64
      %v2433 = vpop.permute.xlu0 %2432
      %2436 = vrot.lane.b32.xlu0 %v2360, 80
      %v2437 = vpop.permute.xlu0 %2436
      %2440 = vrot.lane.b32.xlu0 %v2354, 96
      %v2441 = vpop.permute.xlu0 %2440
      %2444 = vrot.lane.b32.xlu0 %v2362, 112
      %v2445 = vpop.permute.xlu0 %2444
      %2448 = vrot.lane.b32.xlu0 %v2412, 16
      %v2449 = vpop.permute.xlu0 %2448
      %2452 = vrot.lane.b32.xlu0 %v2398, 32
      %v2453 = vpop.permute.xlu0 %2452
      %2456 = vrot.lane.b32.xlu0 %v2414, 48
      %v2457 = vpop.permute.xlu0 %2456
      %2460 = vrot.lane.b32.xlu0 %v2406, 64
      %v2461 = vpop.permute.xlu0 %2460
      %2464 = vrot.lane.b32.xlu0 %v2416, 80
      %v2465 = vpop.permute.xlu0 %2464
      %2468 = vrot.lane.b32.xlu0 %v2410, 96
      %v2469 = vpop.permute.xlu0 %2468
      %2472 = vrot.lane.b32.xlu0 %v2418, 112
      %v2473 = vpop.permute.xlu0 %2472
      %v2475 = vsel %vm614, %v2338, %v2421
      %v2476 = vsel %vm616, %v2475, %v2425
      %v2477 = vsel %vm618, %v2476, %v2429
      %v2478 = vsel %vm620, %v2477, %v2433
      %v2479 = vsel %vm622, %v2478, %v2437
      %v2480 = vsel %vm624, %v2479, %v2441
      %v2481 = vsel %vm626, %v2480, %v2445
      %v2482 = vsel %vm614, %v2394, %v2449
      %v2483 = vsel %vm616, %v2482, %v2453
      %v2484 = vsel %vm618, %v2483, %v2457
      %v2485 = vsel %vm620, %v2484, %v2461
      %v2486 = vsel %vm622, %v2485, %v2465
      %v2487 = vsel %vm624, %v2486, %v2469
      %v2488 = vsel %vm626, %v2487, %v2473
      %2490 = vrot.lane.b32.xlu0 %v2274, 100
      %v2491 = vpop.permute.xlu0 %2490
      %v2492 = vsel %vm852, %v2491, 0
      %v2495 = vsel %vm855, %v2481, 0
      %v2498 = vsel %vm855, %v2488, 0
      %2500 = vmatpush.msra.mxu0 0.0
      %2501 = vmatpush.msra.mxu0 0.0
      %2502 = vmatpush.msra.mxu0 0.0
      %2503 = vmatpush.msra.mxu0 0.0
      %2504 = vmatpush.msra.mxu0 0.0
      %2505 = vmatpush.msra.mxu0 0.0
      %2506 = vmatpush.msra.mxu0 0.0
      %2507 = vmatpush.msra.mxu0 0.0
      %2508 = vmatpush.msra.mxu0 0.0
      %2509 = vmatpush.msra.mxu0 0.0
      %2510 = vmatpush.msra.mxu0 0.0
      %2511 = vmatpush.msra.mxu0 0.0
      %2512 = vmatpush.msra.mxu0 0.0
      %2513 = vmatpush.msra.mxu0 0.0
      %2514 = vmatpush.msra.mxu0 0.0
      %2515 = vmatpush.msra.mxu0 %v2495
      %2516 = vmatmul.f32.gmra.mxu0 %v2492
      %v2517 = vpop.f32.mrf.mxu0
      %v2518 = vadd.f32 0.0, %v2517
      %2519 = vdwg.mxu0
      %2520 = vmatpush.msra.mxu0 0.0
      %2521 = vmatpush.msra.mxu0 0.0
      %2522 = vmatpush.msra.mxu0 0.0
      %2523 = vmatpush.msra.mxu0 0.0
      %2524 = vmatpush.msra.mxu0 0.0
      %2525 = vmatpush.msra.mxu0 0.0
      %2526 = vmatpush.msra.mxu0 0.0
      %2527 = vmatpush.msra.mxu0 0.0
      %2528 = vmatpush.msra.mxu0 0.0
      %2529 = vmatpush.msra.mxu0 0.0
      %2530 = vmatpush.msra.mxu0 0.0
      %2531 = vmatpush.msra.mxu0 0.0
      %2532 = vmatpush.msra.mxu0 0.0
      %2533 = vmatpush.msra.mxu0 0.0
      %2534 = vmatpush.msra.mxu0 0.0
      %2535 = vmatpush.msra.mxu0 %v2498
      %2536 = vmatmul.f32.gmra.mxu0 %v2492
      %v2537 = vpop.f32.mrf.mxu0
      %v2538 = vadd.f32 0.0, %v2537
      %2539 = vdwg.mxu0
      %v2540 = vadd.f32 %v2264, %v2518
      %v2541 = vadd.f32 %v2265, %v2538
      %v2542 = vld [vmem:[#allocation2 + $0x2] sm:$0xff]
      %v2543 = vld [vmem:[#allocation2 + $0xa] sm:$0xff]
      %v2544 = vld [vmem:[#allocation2 + $0x1a] sm:$0xff]
      %v2545 = vld [vmem:[#allocation2 + $0x22] sm:$0xff]
      %v2546 = vld [vmem:[#allocation2 + $0x32] sm:$0xff]
      %v2547 = vld [vmem:[#allocation2 + $0x3a] sm:$0xff]
      %v2548 = vld [vmem:[#allocation2 + $0x4a] sm:$0xff]
      %v2549 = vld [vmem:[#allocation2 + $0x52] sm:$0xff]
      %v2550 = vld [vmem:[%s1] sm:$0xf]
      %2559 = vrot.lane.b32.xlu0 %v2542, 126
      %v2560 = vpop.permute.xlu0 %2559
      %2561 = vrot.lane.b32.xlu0 %v2543, 126
      %v2562 = vpop.permute.xlu0 %2561
      %2563 = vrot.lane.b32.xlu0 %v2544, 126
      %v2564 = vpop.permute.xlu0 %2563
      %2565 = vrot.lane.b32.xlu0 %v2545, 126
      %v2566 = vpop.permute.xlu0 %2565
      %2567 = vrot.lane.b32.xlu0 %v2546, 126
      %v2568 = vpop.permute.xlu0 %2567
      %2569 = vrot.lane.b32.xlu0 %v2547, 126
      %v2570 = vpop.permute.xlu0 %2569
      %2571 = vrot.lane.b32.xlu0 %v2548, 126
      %v2572 = vpop.permute.xlu0 %2571
      %2573 = vrot.lane.b32.xlu0 %v2549, 126
      %v2574 = vpop.permute.xlu0 %2573
      %v2583 = vrot.slane %v2568, 4
      %v2584 = vsel %vm446, %v2583, %v2560
      %v2585 = vrot.slane %v2560, 4
      %v2586 = vsel %vm446, %v2568, %v2585
      %v2588 = vunpack.c.l.s4 1983009808
      %v2589 = vunpack.c.0.s8 %v2588
      %v2590 = vperm.slane %v2584, %v2589
      %v2592 = vunpack.c.l.s4 1983009808
      %v2593 = vunpack.c.0.s8 %v2592
      %v2594 = vperm.slane %v2586, %v2593
      %v2595 = vrot.slane %v2572, 4
      %v2596 = vsel %vm446, %v2595, %v2564
      %v2597 = vrot.slane %v2564, 4
      %v2598 = vsel %vm446, %v2572, %v2597
      %v2600 = vunpack.c.l.s4 1983009808
      %v2601 = vunpack.c.0.s8 %v2600
      %v2602 = vperm.slane %v2596, %v2601
      %v2604 = vunpack.c.l.s4 1983009808
      %v2605 = vunpack.c.0.s8 %v2604
      %v2606 = vperm.slane %v2598, %v2605
      %v2607 = vrot.slane %v2602, 4
      %v2608 = vsel %vm446, %v2607, %v2590
      %v2609 = vrot.slane %v2590, 4
      %v2610 = vsel %vm446, %v2602, %v2609
      %v2612 = vunpack.c.l.s4 1934713408
      %v2613 = vunpack.c.0.s8 %v2612
      %v2614 = vperm.slane %v2608, %v2613
      %v2616 = vunpack.c.l.s4 1934713408
      %v2617 = vunpack.c.0.s8 %v2616
      %v2618 = vperm.slane %v2610, %v2617
      %v2619 = vrot.slane %v2606, 4
      %v2620 = vsel %vm446, %v2619, %v2594
      %v2621 = vrot.slane %v2594, 4
      %v2622 = vsel %vm446, %v2606, %v2621
      %v2624 = vunpack.c.l.s4 1934713408
      %v2625 = vunpack.c.0.s8 %v2624
      %v2626 = vperm.slane %v2620, %v2625
      %v2628 = vunpack.c.l.s4 1934713408
      %v2629 = vunpack.c.0.s8 %v2628
      %v2630 = vperm.slane %v2622, %v2629
      %v2631 = vrot.slane %v2614, 4
      %v2632 = vsel %vm446, 0.0, %v2631
      %v2633 = vrot.slane %v2618, 4
      %v2634 = vsel %vm446, 0.0, %v2633
      %v2635 = vrot.slane %v2626, 4
      %v2636 = vsel %vm446, 0.0, %v2635
      %v2637 = vrot.slane %v2630, 4
      %v2638 = vsel %vm446, 0.0, %v2637
      %v2639 = vrot.slane %v2570, 4
      %v2640 = vsel %vm446, %v2639, %v2562
      %v2641 = vrot.slane %v2562, 4
      %v2642 = vsel %vm446, %v2570, %v2641
      %v2644 = vunpack.c.l.s4 1983009808
      %v2645 = vunpack.c.0.s8 %v2644
      %v2646 = vperm.slane %v2640, %v2645
      %v2648 = vunpack.c.l.s4 1983009808
      %v2649 = vunpack.c.0.s8 %v2648
      %v2650 = vperm.slane %v2642, %v2649
      %v2651 = vrot.slane %v2574, 4
      %v2652 = vsel %vm446, %v2651, %v2566
      %v2653 = vrot.slane %v2566, 4
      %v2654 = vsel %vm446, %v2574, %v2653
      %v2656 = vunpack.c.l.s4 1983009808
      %v2657 = vunpack.c.0.s8 %v2656
      %v2658 = vperm.slane %v2652, %v2657
      %v2660 = vunpack.c.l.s4 1983009808
      %v2661 = vunpack.c.0.s8 %v2660
      %v2662 = vperm.slane %v2654, %v2661
      %v2663 = vrot.slane %v2658, 4
      %v2664 = vsel %vm446, %v2663, %v2646
      %v2665 = vrot.slane %v2646, 4
      %v2666 = vsel %vm446, %v2658, %v2665
      %v2668 = vunpack.c.l.s4 1934713408
      %v2669 = vunpack.c.0.s8 %v2668
      %v2670 = vperm.slane %v2664, %v2669
      %v2672 = vunpack.c.l.s4 1934713408
      %v2673 = vunpack.c.0.s8 %v2672
      %v2674 = vperm.slane %v2666, %v2673
      %v2675 = vrot.slane %v2662, 4
      %v2676 = vsel %vm446, %v2675, %v2650
      %v2677 = vrot.slane %v2650, 4
      %v2678 = vsel %vm446, %v2662, %v2677
      %v2680 = vunpack.c.l.s4 1934713408
      %v2681 = vunpack.c.0.s8 %v2680
      %v2682 = vperm.slane %v2676, %v2681
      %v2684 = vunpack.c.l.s4 1934713408
      %v2685 = vunpack.c.0.s8 %v2684
      %v2686 = vperm.slane %v2678, %v2685
      %v2687 = vrot.slane %v2670, 4
      %v2688 = vsel %vm446, 0.0, %v2687
      %v2689 = vrot.slane %v2674, 4
      %v2690 = vsel %vm446, 0.0, %v2689
      %v2691 = vrot.slane %v2682, 4
      %v2692 = vsel %vm446, 0.0, %v2691
      %v2693 = vrot.slane %v2686, 4
      %v2694 = vsel %vm446, 0.0, %v2693
      %2696 = vrot.lane.b32.xlu0 %v2632, 16
      %v2697 = vpop.permute.xlu0 %2696
      %2700 = vrot.lane.b32.xlu0 %v2618, 32
      %v2701 = vpop.permute.xlu0 %2700
      %2704 = vrot.lane.b32.xlu0 %v2634, 48
      %v2705 = vpop.permute.xlu0 %2704
      %2708 = vrot.lane.b32.xlu0 %v2626, 64
      %v2709 = vpop.permute.xlu0 %2708
      %2712 = vrot.lane.b32.xlu0 %v2636, 80
      %v2713 = vpop.permute.xlu0 %2712
      %2716 = vrot.lane.b32.xlu0 %v2630, 96
      %v2717 = vpop.permute.xlu0 %2716
      %2720 = vrot.lane.b32.xlu0 %v2638, 112
      %v2721 = vpop.permute.xlu0 %2720
      %2724 = vrot.lane.b32.xlu0 %v2688, 16
      %v2725 = vpop.permute.xlu0 %2724
      %2728 = vrot.lane.b32.xlu0 %v2674, 32
      %v2729 = vpop.permute.xlu0 %2728
      %2732 = vrot.lane.b32.xlu0 %v2690, 48
      %v2733 = vpop.permute.xlu0 %2732
      %2736 = vrot.lane.b32.xlu0 %v2682, 64
      %v2737 = vpop.permute.xlu0 %2736
      %2740 = vrot.lane.b32.xlu0 %v2692, 80
      %v2741 = vpop.permute.xlu0 %2740
      %2744 = vrot.lane.b32.xlu0 %v2686, 96
      %v2745 = vpop.permute.xlu0 %2744
      %2748 = vrot.lane.b32.xlu0 %v2694, 112
      %v2749 = vpop.permute.xlu0 %2748
      %v2751 = vsel %vm614, %v2614, %v2697
      %v2752 = vsel %vm616, %v2751, %v2701
      %v2753 = vsel %vm618, %v2752, %v2705
      %v2754 = vsel %vm620, %v2753, %v2709
      %v2755 = vsel %vm622, %v2754, %v2713
      %v2756 = vsel %vm624, %v2755, %v2717
      %v2757 = vsel %vm626, %v2756, %v2721
      %v2758 = vsel %vm614, %v2670, %v2725
      %v2759 = vsel %vm616, %v2758, %v2729
      %v2760 = vsel %vm618, %v2759, %v2733
      %v2761 = vsel %vm620, %v2760, %v2737
      %v2762 = vsel %vm622, %v2761, %v2741
      %v2763 = vsel %vm624, %v2762, %v2745
      %v2764 = vsel %vm626, %v2763, %v2749
      %2766 = vrot.lane.b32.xlu0 %v2550, 96
      %v2767 = vpop.permute.xlu0 %2766
      %v2768 = vsel %vm852, %v2767, 0
      %v2771 = vsel %vm855, %v2757, 0
      %v2774 = vsel %vm855, %v2764, 0
      %2776 = vmatpush.msra.mxu0 0.0
      %2777 = vmatpush.msra.mxu0 0.0
      %2778 = vmatpush.msra.mxu0 0.0
      %2779 = vmatpush.msra.mxu0 0.0
      %2780 = vmatpush.msra.mxu0 0.0
      %2781 = vmatpush.msra.mxu0 0.0
      %2782 = vmatpush.msra.mxu0 0.0
      %2783 = vmatpush.msra.mxu0 0.0
      %2784 = vmatpush.msra.mxu0 0.0
      %2785 = vmatpush.msra.mxu0 0.0
      %2786 = vmatpush.msra.mxu0 0.0
      %2787 = vmatpush.msra.mxu0 0.0
      %2788 = vmatpush.msra.mxu0 0.0
      %2789 = vmatpush.msra.mxu0 0.0
      %2790 = vmatpush.msra.mxu0 0.0
      %2791 = vmatpush.msra.mxu0 %v2771
      %2792 = vmatmul.f32.gmra.mxu0 %v2768
      %v2793 = vpop.f32.mrf.mxu0
      %v2794 = vadd.f32 0.0, %v2793
      %2795 = vdwg.mxu0
      %2796 = vmatpush.msra.mxu0 0.0
      %2797 = vmatpush.msra.mxu0 0.0
      %2798 = vmatpush.msra.mxu0 0.0
      %2799 = vmatpush.msra.mxu0 0.0
      %2800 = vmatpush.msra.mxu0 0.0
      %2801 = vmatpush.msra.mxu0 0.0
      %2802 = vmatpush.msra.mxu0 0.0
      %2803 = vmatpush.msra.mxu0 0.0
      %2804 = vmatpush.msra.mxu0 0.0
      %2805 = vmatpush.msra.mxu0 0.0
      %2806 = vmatpush.msra.mxu0 0.0
      %2807 = vmatpush.msra.mxu0 0.0
      %2808 = vmatpush.msra.mxu0 0.0
      %2809 = vmatpush.msra.mxu0 0.0
      %2810 = vmatpush.msra.mxu0 0.0
      %2811 = vmatpush.msra.mxu0 %v2774
      %2812 = vmatmul.f32.gmra.mxu0 %v2768
      %v2813 = vpop.f32.mrf.mxu0
      %v2814 = vadd.f32 0.0, %v2813
      %2815 = vdwg.mxu0
      %v2816 = vadd.f32 %v2540, %v2794
      %v2817 = vadd.f32 %v2541, %v2814
      %v2818 = vmax.f32 %v2816, 0.0
      %v2819 = vmax.f32 %v2817, 0.0
      %2821 = vrot.lane.b32.xlu0 %v2818, 112
      %v2822 = vpop.permute.xlu0 %2821
      %2824 = vrot.lane.b32.xlu0 %v2818, 96
      %v2825 = vpop.permute.xlu0 %2824
      %2827 = vrot.lane.b32.xlu0 %v2818, 80
      %v2828 = vpop.permute.xlu0 %2827
      %2830 = vrot.lane.b32.xlu0 %v2818, 64
      %v2831 = vpop.permute.xlu0 %2830
      %2833 = vrot.lane.b32.xlu0 %v2818, 48
      %v2834 = vpop.permute.xlu0 %2833
      %2836 = vrot.lane.b32.xlu0 %v2818, 32
      %v2837 = vpop.permute.xlu0 %2836
      %2839 = vrot.lane.b32.xlu0 %v2818, 16
      %v2840 = vpop.permute.xlu0 %2839
      %2843 = vrot.lane.b32.xlu0 %v2819, 112
      %v2844 = vpop.permute.xlu0 %2843
      %2846 = vrot.lane.b32.xlu0 %v2819, 96
      %v2847 = vpop.permute.xlu0 %2846
      %2849 = vrot.lane.b32.xlu0 %v2819, 80
      %v2850 = vpop.permute.xlu0 %2849
      %2852 = vrot.lane.b32.xlu0 %v2819, 64
      %v2853 = vpop.permute.xlu0 %2852
      %2855 = vrot.lane.b32.xlu0 %v2819, 48
      %v2856 = vpop.permute.xlu0 %2855
      %2858 = vrot.lane.b32.xlu0 %v2819, 32
      %v2859 = vpop.permute.xlu0 %2858
      %2861 = vrot.lane.b32.xlu0 %v2819, 16
      %v2862 = vpop.permute.xlu0 %2861
      %v2864 = vrot.slane %v2825, 4
      %v2865 = vsel %vm446, %v2864, %v2818
      %v2867 = vunpack.c.l.s4 1983009808
      %v2868 = vunpack.c.0.s8 %v2867
      %v2869 = vperm.slane %v2865, %v2868
      %v2870 = vrot.slane %v2828, 4
      %v2871 = vsel %vm446, %v2870, %v2822
      %v2873 = vunpack.c.l.s4 1983009808
      %v2874 = vunpack.c.0.s8 %v2873
      %v2875 = vperm.slane %v2871, %v2874
      %v2876 = vrot.slane %v2837, 4
      %v2877 = vsel %vm446, %v2876, %v2831
      %v2879 = vunpack.c.l.s4 1983009808
      %v2880 = vunpack.c.0.s8 %v2879
      %v2881 = vperm.slane %v2877, %v2880
      %v2882 = vrot.slane %v2840, 4
      %v2883 = vsel %vm446, %v2882, %v2834
      %v2885 = vunpack.c.l.s4 1983009808
      %v2886 = vunpack.c.0.s8 %v2885
      %v2887 = vperm.slane %v2883, %v2886
      %v2888 = vrot.slane %v2875, 4
      %v2889 = vsel %vm446, %v2888, %v2869
      %v2890 = vrot.slane %v2869, 4
      %v2891 = vsel %vm446, %v2875, %v2890
      %v2893 = vunpack.c.l.s4 1934713408
      %v2894 = vunpack.c.0.s8 %v2893
      %v2895 = vperm.slane %v2889, %v2894
      %v2897 = vunpack.c.l.s4 1934713408
      %v2898 = vunpack.c.0.s8 %v2897
      %v2899 = vperm.slane %v2891, %v2898
      %v2900 = vrot.slane %v2887, 4
      %v2901 = vsel %vm446, %v2900, %v2881
      %v2902 = vrot.slane %v2881, 4
      %v2903 = vsel %vm446, %v2887, %v2902
      %v2905 = vunpack.c.l.s4 1934713408
      %v2906 = vunpack.c.0.s8 %v2905
      %v2907 = vperm.slane %v2901, %v2906
      %v2909 = vunpack.c.l.s4 1934713408
      %v2910 = vunpack.c.0.s8 %v2909
      %v2911 = vperm.slane %v2903, %v2910
      %v2912 = vrot.slane %v2907, 4
      %v2913 = vsel %vm446, %v2912, %v2895
      %v2914 = vrot.slane %v2895, 4
      %v2915 = vsel %vm446, %v2907, %v2914
      %v2916 = vrot.slane %v2911, 4
      %v2917 = vsel %vm446, %v2916, %v2899
      %v2918 = vrot.slane %v2899, 4
      %v2919 = vsel %vm446, %v2911, %v2918
      %v2920 = vrot.slane %v2847, 4
      %v2921 = vsel %vm446, %v2920, %v2819
      %v2923 = vunpack.c.l.s4 1983009808
      %v2924 = vunpack.c.0.s8 %v2923
      %v2925 = vperm.slane %v2921, %v2924
      %v2926 = vrot.slane %v2850, 4
      %v2927 = vsel %vm446, %v2926, %v2844
      %v2929 = vunpack.c.l.s4 1983009808
      %v2930 = vunpack.c.0.s8 %v2929
      %v2931 = vperm.slane %v2927, %v2930
      %v2932 = vrot.slane %v2859, 4
      %v2933 = vsel %vm446, %v2932, %v2853
      %v2935 = vunpack.c.l.s4 1983009808
      %v2936 = vunpack.c.0.s8 %v2935
      %v2937 = vperm.slane %v2933, %v2936
      %v2938 = vrot.slane %v2862, 4
      %v2939 = vsel %vm446, %v2938, %v2856
      %v2941 = vunpack.c.l.s4 1983009808
      %v2942 = vunpack.c.0.s8 %v2941
      %v2943 = vperm.slane %v2939, %v2942
      %v2944 = vrot.slane %v2931, 4
      %v2945 = vsel %vm446, %v2944, %v2925
      %v2946 = vrot.slane %v2925, 4
      %v2947 = vsel %vm446, %v2931, %v2946
      %v2949 = vunpack.c.l.s4 1934713408
      %v2950 = vunpack.c.0.s8 %v2949
      %v2951 = vperm.slane %v2945, %v2950
      %v2953 = vunpack.c.l.s4 1934713408
      %v2954 = vunpack.c.0.s8 %v2953
      %v2955 = vperm.slane %v2947, %v2954
      %v2956 = vrot.slane %v2943, 4
      %v2957 = vsel %vm446, %v2956, %v2937
      %v2958 = vrot.slane %v2937, 4
      %v2959 = vsel %vm446, %v2943, %v2958
      %v2961 = vunpack.c.l.s4 1934713408
      %v2962 = vunpack.c.0.s8 %v2961
      %v2963 = vperm.slane %v2957, %v2962
      %v2965 = vunpack.c.l.s4 1934713408
      %v2966 = vunpack.c.0.s8 %v2965
      %v2967 = vperm.slane %v2959, %v2966
      %v2968 = vrot.slane %v2963, 4
      %v2969 = vsel %vm446, %v2968, %v2951
      %v2970 = vrot.slane %v2951, 4
      %v2971 = vsel %vm446, %v2963, %v2970
      %v2972 = vrot.slane %v2967, 4
      %v2973 = vsel %vm446, %v2972, %v2955
      %v2974 = vrot.slane %v2955, 4
      %v2975 = vsel %vm446, %v2967, %v2974
      %2976 = vst.msk [vmem:[#allocation3] sm:$0x1] %vm297, 0.0
      %2977 = vst.msk [vmem:[#allocation3 + $0x18] sm:$0x1] %vm297, 0.0
      %2978 = vst.msk [vmem:[#allocation3 + $0x30] sm:$0x1] %vm297, 0.0
      %2979 = vst.msk [vmem:[#allocation3 + $0x48] sm:$0x1] %vm297, 0.0
      %2980 = vst.msk [vmem:[#allocation3 + $0x11] sm:$0x1] %vm297, 0.0
      %2981 = vst.msk [vmem:[#allocation3 + $0x29] sm:$0x1] %vm297, 0.0
      %2982 = vst.msk [vmem:[#allocation3 + $0x41] sm:$0x1] %vm297, 0.0
      %2983 = vst.msk [vmem:[#allocation3 + $0x59] sm:$0x1] %vm297, 0.0
      %2984 = vst.msk [vmem:[#allocation3 + $0x1] sm:$0xff] %vm306, 0.0
      %2985 = vst.msk [vmem:[#allocation3 + $0x9] sm:$0xff] %vm306, 0.0
      %2986 = vst.msk [vmem:[#allocation3 + $0x19] sm:$0xff] %vm306, 0.0
      %2987 = vst.msk [vmem:[#allocation3 + $0x21] sm:$0xff] %vm306, 0.0
      %2988 = vst.msk [vmem:[#allocation3 + $0x31] sm:$0xff] %vm306, 0.0
      %2989 = vst.msk [vmem:[#allocation3 + $0x39] sm:$0xff] %vm306, 0.0
      %2990 = vst.msk [vmem:[#allocation3 + $0x49] sm:$0xff] %vm306, 0.0
      %2991 = vst.msk [vmem:[#allocation3 + $0x51] sm:$0xff] %vm306, 0.0
      %2992 = vst.msk [vmem:[#allocation3 + $0x1] sm:$0xff] %vm315, 0.0
      %2993 = vst.msk [vmem:[#allocation3 + $0x9] sm:$0xff] %vm315, 0.0
      %2994 = vst.msk [vmem:[#allocation3 + $0x19] sm:$0xff] %vm315, 0.0
      %2995 = vst.msk [vmem:[#allocation3 + $0x21] sm:$0xff] %vm315, 0.0
      %2996 = vst.msk [vmem:[#allocation3 + $0x31] sm:$0xff] %vm315, 0.0
      %2997 = vst.msk [vmem:[#allocation3 + $0x39] sm:$0xff] %vm315, 0.0
      %2998 = vst.msk [vmem:[#allocation3 + $0x49] sm:$0xff] %vm315, 0.0
      %2999 = vst.msk [vmem:[#allocation3 + $0x51] sm:$0xff] %vm315, 0.0
      %3008 = vrot.lane.b32.xlu0 %v2913, 1
      %v3009 = vpop.permute.xlu0 %3008
      %3010 = vrot.lane.b32.xlu0 %v2969, 1
      %v3011 = vpop.permute.xlu0 %3010
      %3012 = vrot.lane.b32.xlu0 %v2915, 1
      %v3013 = vpop.permute.xlu0 %3012
      %3014 = vrot.lane.b32.xlu0 %v2971, 1
      %v3015 = vpop.permute.xlu0 %3014
      %3016 = vrot.lane.b32.xlu0 %v2917, 1
      %v3017 = vpop.permute.xlu0 %3016
      %3018 = vrot.lane.b32.xlu0 %v2973, 1
      %v3019 = vpop.permute.xlu0 %3018
      %3020 = vrot.lane.b32.xlu0 %v2919, 1
      %v3021 = vpop.permute.xlu0 %3020
      %3022 = vrot.lane.b32.xlu0 %v2975, 1
      %v3023 = vpop.permute.xlu0 %3022
      %3032 = vst.msk [vmem:[#allocation3 + $0x1] sm:$0xff] %vm427, %v3009
      %3033 = vst.msk [vmem:[#allocation3 + $0x9] sm:$0xff] %vm427, %v3011
      %3034 = vst.msk [vmem:[#allocation3 + $0x19] sm:$0xff] %vm427, %v3013
      %3035 = vst.msk [vmem:[#allocation3 + $0x21] sm:$0xff] %vm427, %v3015
      %3036 = vst.msk [vmem:[#allocation3 + $0x31] sm:$0xff] %vm427, %v3017
      %3037 = vst.msk [vmem:[#allocation3 + $0x39] sm:$0xff] %vm427, %v3019
      %3038 = vst.msk [vmem:[#allocation3 + $0x49] sm:$0xff] %vm427, %v3021
      %3039 = vst.msk [vmem:[#allocation3 + $0x51] sm:$0xff] %vm427, %v3023
      %v3040 = vld [vmem:[#allocation3] sm:$0xff]
      %v3041 = vld [vmem:[#allocation3 + $0x8] sm:$0xff]
      %v3042 = vld [vmem:[#allocation3 + $0x18] sm:$0xff]
      %v3043 = vld [vmem:[#allocation3 + $0x20] sm:$0xff]
      %v3044 = vld [vmem:[#allocation3 + $0x30] sm:$0xff]
      %v3045 = vld [vmem:[#allocation3 + $0x38] sm:$0xff]
      %v3046 = vld [vmem:[#allocation3 + $0x48] sm:$0xff]
      %v3047 = vld [vmem:[#allocation3 + $0x50] sm:$0xff]
      %v3048 = vld [vmem:[%s2] sm:$0xf]
      %v3049 = vrot.slane %v3044, 4
      %v3050 = vsel %vm446, %v3049, %v3040
      %v3051 = vrot.slane %v3040, 4
      %v3052 = vsel %vm446, %v3044, %v3051
      %v3054 = vunpack.c.l.s4 1983009808
      %v3055 = vunpack.c.0.s8 %v3054
      %v3056 = vperm.slane %v3050, %v3055
      %v3058 = vunpack.c.l.s4 1983009808
      %v3059 = vunpack.c.0.s8 %v3058
      %v3060 = vperm.slane %v3052, %v3059
      %v3061 = vrot.slane %v3046, 4
      %v3062 = vsel %vm446, %v3061, %v3042
      %v3063 = vrot.slane %v3042, 4
      %v3064 = vsel %vm446, %v3046, %v3063
      %v3066 = vunpack.c.l.s4 1983009808
      %v3067 = vunpack.c.0.s8 %v3066
      %v3068 = vperm.slane %v3062, %v3067
      %v3070 = vunpack.c.l.s4 1983009808
      %v3071 = vunpack.c.0.s8 %v3070
      %v3072 = vperm.slane %v3064, %v3071
      %v3073 = vrot.slane %v3068, 4
      %v3074 = vsel %vm446, %v3073, %v3056
      %v3075 = vrot.slane %v3056, 4
      %v3076 = vsel %vm446, %v3068, %v3075
      %v3078 = vunpack.c.l.s4 1934713408
      %v3079 = vunpack.c.0.s8 %v3078
      %v3080 = vperm.slane %v3074, %v3079
      %v3082 = vunpack.c.l.s4 1934713408
      %v3083 = vunpack.c.0.s8 %v3082
      %v3084 = vperm.slane %v3076, %v3083
      %v3085 = vrot.slane %v3072, 4
      %v3086 = vsel %vm446, %v3085, %v3060
      %v3087 = vrot.slane %v3060, 4
      %v3088 = vsel %vm446, %v3072, %v3087
      %v3090 = vunpack.c.l.s4 1934713408
      %v3091 = vunpack.c.0.s8 %v3090
      %v3092 = vperm.slane %v3086, %v3091
      %v3094 = vunpack.c.l.s4 1934713408
      %v3095 = vunpack.c.0.s8 %v3094
      %v3096 = vperm.slane %v3088, %v3095
      %v3097 = vrot.slane %v3080, 4
      %v3098 = vsel %vm446, 0.0, %v3097
      %v3099 = vrot.slane %v3084, 4
      %v3100 = vsel %vm446, 0.0, %v3099
      %v3101 = vrot.slane %v3092, 4
      %v3102 = vsel %vm446, 0.0, %v3101
      %v3103 = vrot.slane %v3096, 4
      %v3104 = vsel %vm446, 0.0, %v3103
      %v3105 = vrot.slane %v3045, 4
      %v3106 = vsel %vm446, %v3105, %v3041
      %v3107 = vrot.slane %v3041, 4
      %v3108 = vsel %vm446, %v3045, %v3107
      %v3110 = vunpack.c.l.s4 1983009808
      %v3111 = vunpack.c.0.s8 %v3110
      %v3112 = vperm.slane %v3106, %v3111
      %v3114 = vunpack.c.l.s4 1983009808
      %v3115 = vunpack.c.0.s8 %v3114
      %v3116 = vperm.slane %v3108, %v3115
      %v3117 = vrot.slane %v3047, 4
      %v3118 = vsel %vm446, %v3117, %v3043
      %v3119 = vrot.slane %v3043, 4
      %v3120 = vsel %vm446, %v3047, %v3119
      %v3122 = vunpack.c.l.s4 1983009808
      %v3123 = vunpack.c.0.s8 %v3122
      %v3124 = vperm.slane %v3118, %v3123
      %v3126 = vunpack.c.l.s4 1983009808
      %v3127 = vunpack.c.0.s8 %v3126
      %v3128 = vperm.slane %v3120, %v3127
      %v3129 = vrot.slane %v3124, 4
      %v3130 = vsel %vm446, %v3129, %v3112
      %v3131 = vrot.slane %v3112, 4
      %v3132 = vsel %vm446, %v3124, %v3131
      %v3134 = vunpack.c.l.s4 1934713408
      %v3135 = vunpack.c.0.s8 %v3134
      %v3136 = vperm.slane %v3130, %v3135
      %v3138 = vunpack.c.l.s4 1934713408
      %v3139 = vunpack.c.0.s8 %v3138
      %v3140 = vperm.slane %v3132, %v3139
      %v3141 = vrot.slane %v3128, 4
      %v3142 = vsel %vm446, %v3141, %v3116
      %v3143 = vrot.slane %v3116, 4
      %v3144 = vsel %vm446, %v3128, %v3143
      %v3146 = vunpack.c.l.s4 1934713408
      %v3147 = vunpack.c.0.s8 %v3146
      %v3148 = vperm.slane %v3142, %v3147
      %v3150 = vunpack.c.l.s4 1934713408
      %v3151 = vunpack.c.0.s8 %v3150
      %v3152 = vperm.slane %v3144, %v3151
      %v3153 = vrot.slane %v3136, 4
      %v3154 = vsel %vm446, 0.0, %v3153
      %v3155 = vrot.slane %v3140, 4
      %v3156 = vsel %vm446, 0.0, %v3155
      %v3157 = vrot.slane %v3148, 4
      %v3158 = vsel %vm446, 0.0, %v3157
      %v3159 = vrot.slane %v3152, 4
      %v3160 = vsel %vm446, 0.0, %v3159
      %3162 = vrot.lane.b32.xlu0 %v3098, 16
      %v3163 = vpop.permute.xlu0 %3162
      %3166 = vrot.lane.b32.xlu0 %v3084, 32
      %v3167 = vpop.permute.xlu0 %3166
      %3170 = vrot.lane.b32.xlu0 %v3100, 48
      %v3171 = vpop.permute.xlu0 %3170
      %3174 = vrot.lane.b32.xlu0 %v3092, 64
      %v3175 = vpop.permute.xlu0 %3174
      %3178 = vrot.lane.b32.xlu0 %v3102, 80
      %v3179 = vpop.permute.xlu0 %3178
      %3182 = vrot.lane.b32.xlu0 %v3096, 96
      %v3183 = vpop.permute.xlu0 %3182
      %3186 = vrot.lane.b32.xlu0 %v3104, 112
      %v3187 = vpop.permute.xlu0 %3186
      %3190 = vrot.lane.b32.xlu0 %v3154, 16
      %v3191 = vpop.permute.xlu0 %3190
      %3194 = vrot.lane.b32.xlu0 %v3140, 32
      %v3195 = vpop.permute.xlu0 %3194
      %3198 = vrot.lane.b32.xlu0 %v3156, 48
      %v3199 = vpop.permute.xlu0 %3198
      %3202 = vrot.lane.b32.xlu0 %v3148, 64
      %v3203 = vpop.permute.xlu0 %3202
      %3206 = vrot.lane.b32.xlu0 %v3158, 80
      %v3207 = vpop.permute.xlu0 %3206
      %3210 = vrot.lane.b32.xlu0 %v3152, 96
      %v3211 = vpop.permute.xlu0 %3210
      %3214 = vrot.lane.b32.xlu0 %v3160, 112
      %v3215 = vpop.permute.xlu0 %3214
      %v3217 = vsel %vm614, %v3080, %v3163
      %v3218 = vsel %vm616, %v3217, %v3167
      %v3219 = vsel %vm618, %v3218, %v3171
      %v3220 = vsel %vm620, %v3219, %v3175
      %v3221 = vsel %vm622, %v3220, %v3179
      %v3222 = vsel %vm624, %v3221, %v3183
      %v3223 = vsel %vm626, %v3222, %v3187
      %v3224 = vsel %vm614, %v3136, %v3191
      %v3225 = vsel %vm616, %v3224, %v3195
      %v3226 = vsel %vm618, %v3225, %v3199
      %v3227 = vsel %vm620, %v3226, %v3203
      %v3228 = vsel %vm622, %v3227, %v3207
      %v3229 = vsel %vm624, %v3228, %v3211
      %v3230 = vsel %vm626, %v3229, %v3215
      %3239 = vrot.lane.b32.xlu0 %v3040, 127
      %v3240 = vpop.permute.xlu0 %3239
      %3241 = vrot.lane.b32.xlu0 %v3041, 127
      %v3242 = vpop.permute.xlu0 %3241
      %3243 = vrot.lane.b32.xlu0 %v3042, 127
      %v3244 = vpop.permute.xlu0 %3243
      %3245 = vrot.lane.b32.xlu0 %v3043, 127
      %v3246 = vpop.permute.xlu0 %3245
      %3247 = vrot.lane.b32.xlu0 %v3044, 127
      %v3248 = vpop.permute.xlu0 %3247
      %3249 = vrot.lane.b32.xlu0 %v3045, 127
      %v3250 = vpop.permute.xlu0 %3249
      %3251 = vrot.lane.b32.xlu0 %v3046, 127
      %v3252 = vpop.permute.xlu0 %3251
      %3253 = vrot.lane.b32.xlu0 %v3047, 127
      %v3254 = vpop.permute.xlu0 %3253
      %v3263 = vrot.slane %v3248, 4
      %v3264 = vsel %vm446, %v3263, %v3240
      %v3265 = vrot.slane %v3240, 4
      %v3266 = vsel %vm446, %v3248, %v3265
      %v3268 = vunpack.c.l.s4 1983009808
      %v3269 = vunpack.c.0.s8 %v3268
      %v3270 = vperm.slane %v3264, %v3269
      %v3272 = vunpack.c.l.s4 1983009808
      %v3273 = vunpack.c.0.s8 %v3272
      %v3274 = vperm.slane %v3266, %v3273
      %v3275 = vrot.slane %v3252, 4
      %v3276 = vsel %vm446, %v3275, %v3244
      %v3277 = vrot.slane %v3244, 4
      %v3278 = vsel %vm446, %v3252, %v3277
      %v3280 = vunpack.c.l.s4 1983009808
      %v3281 = vunpack.c.0.s8 %v3280
      %v3282 = vperm.slane %v3276, %v3281
      %v3284 = vunpack.c.l.s4 1983009808
      %v3285 = vunpack.c.0.s8 %v3284
      %v3286 = vperm.slane %v3278, %v3285
      %v3287 = vrot.slane %v3282, 4
      %v3288 = vsel %vm446, %v3287, %v3270
      %v3289 = vrot.slane %v3270, 4
      %v3290 = vsel %vm446, %v3282, %v3289
      %v3292 = vunpack.c.l.s4 1934713408
      %v3293 = vunpack.c.0.s8 %v3292
      %v3294 = vperm.slane %v3288, %v3293
      %v3296 = vunpack.c.l.s4 1934713408
      %v3297 = vunpack.c.0.s8 %v3296
      %v3298 = vperm.slane %v3290, %v3297
      %v3299 = vrot.slane %v3286, 4
      %v3300 = vsel %vm446, %v3299, %v3274
      %v3301 = vrot.slane %v3274, 4
      %v3302 = vsel %vm446, %v3286, %v3301
      %v3304 = vunpack.c.l.s4 1934713408
      %v3305 = vunpack.c.0.s8 %v3304
      %v3306 = vperm.slane %v3300, %v3305
      %v3308 = vunpack.c.l.s4 1934713408
      %v3309 = vunpack.c.0.s8 %v3308
      %v3310 = vperm.slane %v3302, %v3309
      %v3311 = vrot.slane %v3294, 4
      %v3312 = vsel %vm446, 0.0, %v3311
      %v3313 = vrot.slane %v3298, 4
      %v3314 = vsel %vm446, 0.0, %v3313
      %v3315 = vrot.slane %v3306, 4
      %v3316 = vsel %vm446, 0.0, %v3315
      %v3317 = vrot.slane %v3310, 4
      %v3318 = vsel %vm446, 0.0, %v3317
      %v3319 = vrot.slane %v3250, 4
      %v3320 = vsel %vm446, %v3319, %v3242
      %v3321 = vrot.slane %v3242, 4
      %v3322 = vsel %vm446, %v3250, %v3321
      %v3324 = vunpack.c.l.s4 1983009808
      %v3325 = vunpack.c.0.s8 %v3324
      %v3326 = vperm.slane %v3320, %v3325
      %v3328 = vunpack.c.l.s4 1983009808
      %v3329 = vunpack.c.0.s8 %v3328
      %v3330 = vperm.slane %v3322, %v3329
      %v3331 = vrot.slane %v3254, 4
      %v3332 = vsel %vm446, %v3331, %v3246
      %v3333 = vrot.slane %v3246, 4
      %v3334 = vsel %vm446, %v3254, %v3333
      %v3336 = vunpack.c.l.s4 1983009808
      %v3337 = vunpack.c.0.s8 %v3336
      %v3338 = vperm.slane %v3332, %v3337
      %v3340 = vunpack.c.l.s4 1983009808
      %v3341 = vunpack.c.0.s8 %v3340
      %v3342 = vperm.slane %v3334, %v3341
      %v3343 = vrot.slane %v3338, 4
      %v3344 = vsel %vm446, %v3343, %v3326
      %v3345 = vrot.slane %v3326, 4
      %v3346 = vsel %vm446, %v3338, %v3345
      %v3348 = vunpack.c.l.s4 1934713408
      %v3349 = vunpack.c.0.s8 %v3348
      %v3350 = vperm.slane %v3344, %v3349
      %v3352 = vunpack.c.l.s4 1934713408
      %v3353 = vunpack.c.0.s8 %v3352
      %v3354 = vperm.slane %v3346, %v3353
      %v3355 = vrot.slane %v3342, 4
      %v3356 = vsel %vm446, %v3355, %v3330
      %v3357 = vrot.slane %v3330, 4
      %v3358 = vsel %vm446, %v3342, %v3357
      %v3360 = vunpack.c.l.s4 1934713408
      %v3361 = vunpack.c.0.s8 %v3360
      %v3362 = vperm.slane %v3356, %v3361
      %v3364 = vunpack.c.l.s4 1934713408
      %v3365 = vunpack.c.0.s8 %v3364
      %v3366 = vperm.slane %v3358, %v3365
      %v3367 = vrot.slane %v3350, 4
      %v3368 = vsel %vm446, 0.0, %v3367
      %v3369 = vrot.slane %v3354, 4
      %v3370 = vsel %vm446, 0.0, %v3369
      %v3371 = vrot.slane %v3362, 4
      %v3372 = vsel %vm446, 0.0, %v3371
      %v3373 = vrot.slane %v3366, 4
      %v3374 = vsel %vm446, 0.0, %v3373
      %3376 = vrot.lane.b32.xlu0 %v3312, 16
      %v3377 = vpop.permute.xlu0 %3376
      %3380 = vrot.lane.b32.xlu0 %v3298, 32
      %v3381 = vpop.permute.xlu0 %3380
      %3384 = vrot.lane.b32.xlu0 %v3314, 48
      %v3385 = vpop.permute.xlu0 %3384
      %3388 = vrot.lane.b32.xlu0 %v3306, 64
      %v3389 = vpop.permute.xlu0 %3388
      %3392 = vrot.lane.b32.xlu0 %v3316, 80
      %v3393 = vpop.permute.xlu0 %3392
      %3396 = vrot.lane.b32.xlu0 %v3310, 96
      %v3397 = vpop.permute.xlu0 %3396
      %3400 = vrot.lane.b32.xlu0 %v3318, 112
      %v3401 = vpop.permute.xlu0 %3400
      %3404 = vrot.lane.b32.xlu0 %v3368, 16
      %v3405 = vpop.permute.xlu0 %3404
      %3408 = vrot.lane.b32.xlu0 %v3354, 32
      %v3409 = vpop.permute.xlu0 %3408
      %3412 = vrot.lane.b32.xlu0 %v3370, 48
      %v3413 = vpop.permute.xlu0 %3412
      %3416 = vrot.lane.b32.xlu0 %v3362, 64
      %v3417 = vpop.permute.xlu0 %3416
      %3420 = vrot.lane.b32.xlu0 %v3372, 80
      %v3421 = vpop.permute.xlu0 %3420
      %3424 = vrot.lane.b32.xlu0 %v3366, 96
      %v3425 = vpop.permute.xlu0 %3424
      %3428 = vrot.lane.b32.xlu0 %v3374, 112
      %v3429 = vpop.permute.xlu0 %3428
      %v3431 = vsel %vm614, %v3294, %v3377
      %v3432 = vsel %vm616, %v3431, %v3381
      %v3433 = vsel %vm618, %v3432, %v3385
      %v3434 = vsel %vm620, %v3433, %v3389
      %v3435 = vsel %vm622, %v3434, %v3393
      %v3436 = vsel %vm624, %v3435, %v3397
      %v3437 = vsel %vm626, %v3436, %v3401
      %v3438 = vsel %vm614, %v3350, %v3405
      %v3439 = vsel %vm616, %v3438, %v3409
      %v3440 = vsel %vm618, %v3439, %v3413
      %v3441 = vsel %vm620, %v3440, %v3417
      %v3442 = vsel %vm622, %v3441, %v3421
      %v3443 = vsel %vm624, %v3442, %v3425
      %v3444 = vsel %vm626, %v3443, %v3429
      %3446 = vrot.lane.b32.xlu0 %v3048, 124
      %v3447 = vpop.permute.xlu0 %3446
      %v3448 = vsel %vm852, %v3447, 0
      %v3451 = vsel %vm855, %v3437, 0
      %v3454 = vsel %vm855, %v3444, 0
      %3456 = vmatpush.msra.mxu0 0.0
      %3457 = vmatpush.msra.mxu0 0.0
      %3458 = vmatpush.msra.mxu0 0.0
      %3459 = vmatpush.msra.mxu0 0.0
      %3460 = vmatpush.msra.mxu0 0.0
      %3461 = vmatpush.msra.mxu0 0.0
      %3462 = vmatpush.msra.mxu0 0.0
      %3463 = vmatpush.msra.mxu0 0.0
      %3464 = vmatpush.msra.mxu0 0.0
      %3465 = vmatpush.msra.mxu0 0.0
      %3466 = vmatpush.msra.mxu0 0.0
      %3467 = vmatpush.msra.mxu0 0.0
      %3468 = vmatpush.msra.mxu0 0.0
      %3469 = vmatpush.msra.mxu0 0.0
      %3470 = vmatpush.msra.mxu0 0.0
      %3471 = vmatpush.msra.mxu0 %v3451
      %3472 = vmatmul.f32.gmra.mxu0 %v3448
      %v3473 = vpop.f32.mrf.mxu0
      %v3474 = vadd.f32 0.0, %v3473
      %3475 = vdwg.mxu0
      %3476 = vmatpush.msra.mxu0 0.0
      %3477 = vmatpush.msra.mxu0 0.0
      %3478 = vmatpush.msra.mxu0 0.0
      %3479 = vmatpush.msra.mxu0 0.0
      %3480 = vmatpush.msra.mxu0 0.0
      %3481 = vmatpush.msra.mxu0 0.0
      %3482 = vmatpush.msra.mxu0 0.0
      %3483 = vmatpush.msra.mxu0 0.0
      %3484 = vmatpush.msra.mxu0 0.0
      %3485 = vmatpush.msra.mxu0 0.0
      %3486 = vmatpush.msra.mxu0 0.0
      %3487 = vmatpush.msra.mxu0 0.0
      %3488 = vmatpush.msra.mxu0 0.0
      %3489 = vmatpush.msra.mxu0 0.0
      %3490 = vmatpush.msra.mxu0 0.0
      %3491 = vmatpush.msra.mxu0 %v3454
      %3492 = vmatmul.f32.gmra.mxu0 %v3448
      %v3493 = vpop.f32.mrf.mxu0
      %v3494 = vadd.f32 0.0, %v3493
      %3495 = vdwg.mxu0
      %v3496 = vsel %vm852, %v3048, 0
      %v3499 = vsel %vm855, %v3223, 0
      %v3502 = vsel %vm855, %v3230, 0
      %3504 = vmatpush.msra.mxu0 0.0
      %3505 = vmatpush.msra.mxu0 0.0
      %3506 = vmatpush.msra.mxu0 0.0
      %3507 = vmatpush.msra.mxu0 0.0
      %3508 = vmatpush.msra.mxu0 0.0
      %3509 = vmatpush.msra.mxu0 0.0
      %3510 = vmatpush.msra.mxu0 0.0
      %3511 = vmatpush.msra.mxu0 0.0
      %3512 = vmatpush.msra.mxu0 0.0
      %3513 = vmatpush.msra.mxu0 0.0
      %3514 = vmatpush.msra.mxu0 0.0
      %3515 = vmatpush.msra.mxu0 0.0
      %3516 = vmatpush.msra.mxu0 0.0
      %3517 = vmatpush.msra.mxu0 0.0
      %3518 = vmatpush.msra.mxu0 0.0
      %3519 = vmatpush.msra.mxu0 %v3499
      %3520 = vmatmul.f32.gmra.mxu0 %v3496
      %v3521 = vpop.f32.mrf.mxu0
      %v3522 = vadd.f32 %v3474, %v3521
      %3523 = vdwg.mxu0
      %3524 = vmatpush.msra.mxu0 0.0
      %3525 = vmatpush.msra.mxu0 0.0
      %3526 = vmatpush.msra.mxu0 0.0
      %3527 = vmatpush.msra.mxu0 0.0
      %3528 = vmatpush.msra.mxu0 0.0
      %3529 = vmatpush.msra.mxu0 0.0
      %3530 = vmatpush.msra.mxu0 0.0
      %3531 = vmatpush.msra.mxu0 0.0
      %3532 = vmatpush.msra.mxu0 0.0
      %3533 = vmatpush.msra.mxu0 0.0
      %3534 = vmatpush.msra.mxu0 0.0
      %3535 = vmatpush.msra.mxu0 0.0
      %3536 = vmatpush.msra.mxu0 0.0
      %3537 = vmatpush.msra.mxu0 0.0
      %3538 = vmatpush.msra.mxu0 0.0
      %3539 = vmatpush.msra.mxu0 %v3502
      %3540 = vmatmul.f32.gmra.mxu0 %v3496
      %v3541 = vpop.f32.mrf.mxu0
      %v3542 = vadd.f32 %v3494, %v3541
      %3543 = vdwg.mxu0
      %v3544 = vld [vmem:[#allocation3] sm:$0xff]
      %v3545 = vld [vmem:[#allocation3 + $0x8] sm:$0xff]
      %v3546 = vld [vmem:[#allocation3 + $0x18] sm:$0xff]
      %v3547 = vld [vmem:[#allocation3 + $0x20] sm:$0xff]
      %v3548 = vld [vmem:[#allocation3 + $0x30] sm:$0xff]
      %v3549 = vld [vmem:[#allocation3 + $0x38] sm:$0xff]
      %v3550 = vld [vmem:[#allocation3 + $0x48] sm:$0xff]
      %v3551 = vld [vmem:[#allocation3 + $0x50] sm:$0xff]
      %v3552 = vld [vmem:[%s2] sm:$0xf]
      %3561 = vrot.lane.b32.xlu0 %v3544, 126
      %v3562 = vpop.permute.xlu0 %3561
      %3563 = vrot.lane.b32.xlu0 %v3545, 126
      %v3564 = vpop.permute.xlu0 %3563
      %3565 = vrot.lane.b32.xlu0 %v3546, 126
      %v3566 = vpop.permute.xlu0 %3565
      %3567 = vrot.lane.b32.xlu0 %v3547, 126
      %v3568 = vpop.permute.xlu0 %3567
      %3569 = vrot.lane.b32.xlu0 %v3548, 126
      %v3570 = vpop.permute.xlu0 %3569
      %3571 = vrot.lane.b32.xlu0 %v3549, 126
      %v3572 = vpop.permute.xlu0 %3571
      %3573 = vrot.lane.b32.xlu0 %v3550, 126
      %v3574 = vpop.permute.xlu0 %3573
      %3575 = vrot.lane.b32.xlu0 %v3551, 126
      %v3576 = vpop.permute.xlu0 %3575
      %v3585 = vrot.slane %v3570, 4
      %v3586 = vsel %vm446, %v3585, %v3562
      %v3587 = vrot.slane %v3562, 4
      %v3588 = vsel %vm446, %v3570, %v3587
      %v3590 = vunpack.c.l.s4 1983009808
      %v3591 = vunpack.c.0.s8 %v3590
      %v3592 = vperm.slane %v3586, %v3591
      %v3594 = vunpack.c.l.s4 1983009808
      %v3595 = vunpack.c.0.s8 %v3594
      %v3596 = vperm.slane %v3588, %v3595
      %v3597 = vrot.slane %v3574, 4
      %v3598 = vsel %vm446, %v3597, %v3566
      %v3599 = vrot.slane %v3566, 4
      %v3600 = vsel %vm446, %v3574, %v3599
      %v3602 = vunpack.c.l.s4 1983009808
      %v3603 = vunpack.c.0.s8 %v3602
      %v3604 = vperm.slane %v3598, %v3603
      %v3606 = vunpack.c.l.s4 1983009808
      %v3607 = vunpack.c.0.s8 %v3606
      %v3608 = vperm.slane %v3600, %v3607
      %v3609 = vrot.slane %v3604, 4
      %v3610 = vsel %vm446, %v3609, %v3592
      %v3611 = vrot.slane %v3592, 4
      %v3612 = vsel %vm446, %v3604, %v3611
      %v3614 = vunpack.c.l.s4 1934713408
      %v3615 = vunpack.c.0.s8 %v3614
      %v3616 = vperm.slane %v3610, %v3615
      %v3618 = vunpack.c.l.s4 1934713408
      %v3619 = vunpack.c.0.s8 %v3618
      %v3620 = vperm.slane %v3612, %v3619
      %v3621 = vrot.slane %v3608, 4
      %v3622 = vsel %vm446, %v3621, %v3596
      %v3623 = vrot.slane %v3596, 4
      %v3624 = vsel %vm446, %v3608, %v3623
      %v3626 = vunpack.c.l.s4 1934713408
      %v3627 = vunpack.c.0.s8 %v3626
      %v3628 = vperm.slane %v3622, %v3627
      %v3630 = vunpack.c.l.s4 1934713408
      %v3631 = vunpack.c.0.s8 %v3630
      %v3632 = vperm.slane %v3624, %v3631
      %v3633 = vrot.slane %v3616, 4
      %v3634 = vsel %vm446, 0.0, %v3633
      %v3635 = vrot.slane %v3620, 4
      %v3636 = vsel %vm446, 0.0, %v3635
      %v3637 = vrot.slane %v3628, 4
      %v3638 = vsel %vm446, 0.0, %v3637
      %v3639 = vrot.slane %v3632, 4
      %v3640 = vsel %vm446, 0.0, %v3639
      %v3641 = vrot.slane %v3572, 4
      %v3642 = vsel %vm446, %v3641, %v3564
      %v3643 = vrot.slane %v3564, 4
      %v3644 = vsel %vm446, %v3572, %v3643
      %v3646 = vunpack.c.l.s4 1983009808
      %v3647 = vunpack.c.0.s8 %v3646
      %v3648 = vperm.slane %v3642, %v3647
      %v3650 = vunpack.c.l.s4 1983009808
      %v3651 = vunpack.c.0.s8 %v3650
      %v3652 = vperm.slane %v3644, %v3651
      %v3653 = vrot.slane %v3576, 4
      %v3654 = vsel %vm446, %v3653, %v3568
      %v3655 = vrot.slane %v3568, 4
      %v3656 = vsel %vm446, %v3576, %v3655
      %v3658 = vunpack.c.l.s4 1983009808
      %v3659 = vunpack.c.0.s8 %v3658
      %v3660 = vperm.slane %v3654, %v3659
      %v3662 = vunpack.c.l.s4 1983009808
      %v3663 = vunpack.c.0.s8 %v3662
      %v3664 = vperm.slane %v3656, %v3663
      %v3665 = vrot.slane %v3660, 4
      %v3666 = vsel %vm446, %v3665, %v3648
      %v3667 = vrot.slane %v3648, 4
      %v3668 = vsel %vm446, %v3660, %v3667
      %v3670 = vunpack.c.l.s4 1934713408
      %v3671 = vunpack.c.0.s8 %v3670
      %v3672 = vperm.slane %v3666, %v3671
      %v3674 = vunpack.c.l.s4 1934713408
      %v3675 = vunpack.c.0.s8 %v3674
      %v3676 = vperm.slane %v3668, %v3675
      %v3677 = vrot.slane %v3664, 4
      %v3678 = vsel %vm446, %v3677, %v3652
      %v3679 = vrot.slane %v3652, 4
      %v3680 = vsel %vm446, %v3664, %v3679
      %v3682 = vunpack.c.l.s4 1934713408
      %v3683 = vunpack.c.0.s8 %v3682
      %v3684 = vperm.slane %v3678, %v3683
      %v3686 = vunpack.c.l.s4 1934713408
      %v3687 = vunpack.c.0.s8 %v3686
      %v3688 = vperm.slane %v3680, %v3687
      %v3689 = vrot.slane %v3672, 4
      %v3690 = vsel %vm446, 0.0, %v3689
      %v3691 = vrot.slane %v3676, 4
      %v3692 = vsel %vm446, 0.0, %v3691
      %v3693 = vrot.slane %v3684, 4
      %v3694 = vsel %vm446, 0.0, %v3693
      %v3695 = vrot.slane %v3688, 4
      %v3696 = vsel %vm446, 0.0, %v3695
      %3698 = vrot.lane.b32.xlu0 %v3634, 16
      %v3699 = vpop.permute.xlu0 %3698
      %3702 = vrot.lane.b32.xlu0 %v3620, 32
      %v3703 = vpop.permute.xlu0 %3702
      %3706 = vrot.lane.b32.xlu0 %v3636, 48
      %v3707 = vpop.permute.xlu0 %3706
      %3710 = vrot.lane.b32.xlu0 %v3628, 64
      %v3711 = vpop.permute.xlu0 %3710
      %3714 = vrot.lane.b32.xlu0 %v3638, 80
      %v3715 = vpop.permute.xlu0 %3714
      %3718 = vrot.lane.b32.xlu0 %v3632, 96
      %v3719 = vpop.permute.xlu0 %3718
      %3722 = vrot.lane.b32.xlu0 %v3640, 112
      %v3723 = vpop.permute.xlu0 %3722
      %3726 = vrot.lane.b32.xlu0 %v3690, 16
      %v3727 = vpop.permute.xlu0 %3726
      %3730 = vrot.lane.b32.xlu0 %v3676, 32
      %v3731 = vpop.permute.xlu0 %3730
      %3734 = vrot.lane.b32.xlu0 %v3692, 48
      %v3735 = vpop.permute.xlu0 %3734
      %3738 = vrot.lane.b32.xlu0 %v3684, 64
      %v3739 = vpop.permute.xlu0 %3738
      %3742 = vrot.lane.b32.xlu0 %v3694, 80
      %v3743 = vpop.permute.xlu0 %3742
      %3746 = vrot.lane.b32.xlu0 %v3688, 96
      %v3747 = vpop.permute.xlu0 %3746
      %3750 = vrot.lane.b32.xlu0 %v3696, 112
      %v3751 = vpop.permute.xlu0 %3750
      %v3753 = vsel %vm614, %v3616, %v3699
      %v3754 = vsel %vm616, %v3753, %v3703
      %v3755 = vsel %vm618, %v3754, %v3707
      %v3756 = vsel %vm620, %v3755, %v3711
      %v3757 = vsel %vm622, %v3756, %v3715
      %v3758 = vsel %vm624, %v3757, %v3719
      %v3759 = vsel %vm626, %v3758, %v3723
      %v3760 = vsel %vm614, %v3672, %v3727
      %v3761 = vsel %vm616, %v3760, %v3731
      %v3762 = vsel %vm618, %v3761, %v3735
      %v3763 = vsel %vm620, %v3762, %v3739
      %v3764 = vsel %vm622, %v3763, %v3743
      %v3765 = vsel %vm624, %v3764, %v3747
      %v3766 = vsel %vm626, %v3765, %v3751
      %3768 = vrot.lane.b32.xlu0 %v3552, 120
      %v3769 = vpop.permute.xlu0 %3768
      %v3770 = vsel %vm852, %v3769, 0
      %v3773 = vsel %vm855, %v3759, 0
      %v3776 = vsel %vm855, %v3766, 0
      %3778 = vmatpush.msra.mxu0 0.0
      %3779 = vmatpush.msra.mxu0 0.0
      %3780 = vmatpush.msra.mxu0 0.0
      %3781 = vmatpush.msra.mxu0 0.0
      %3782 = vmatpush.msra.mxu0 0.0
      %3783 = vmatpush.msra.mxu0 0.0
      %3784 = vmatpush.msra.mxu0 0.0
      %3785 = vmatpush.msra.mxu0 0.0
      %3786 = vmatpush.msra.mxu0 0.0
      %3787 = vmatpush.msra.mxu0 0.0
      %3788 = vmatpush.msra.mxu0 0.0
      %3789 = vmatpush.msra.mxu0 0.0
      %3790 = vmatpush.msra.mxu0 0.0
      %3791 = vmatpush.msra.mxu0 0.0
      %3792 = vmatpush.msra.mxu0 0.0
      %3793 = vmatpush.msra.mxu0 %v3773
      %3794 = vmatmul.f32.gmra.mxu0 %v3770
      %v3795 = vpop.f32.mrf.mxu0
      %v3796 = vadd.f32 0.0, %v3795
      %3797 = vdwg.mxu0
      %3798 = vmatpush.msra.mxu0 0.0
      %3799 = vmatpush.msra.mxu0 0.0
      %3800 = vmatpush.msra.mxu0 0.0
      %3801 = vmatpush.msra.mxu0 0.0
      %3802 = vmatpush.msra.mxu0 0.0
      %3803 = vmatpush.msra.mxu0 0.0
      %3804 = vmatpush.msra.mxu0 0.0
      %3805 = vmatpush.msra.mxu0 0.0
      %3806 = vmatpush.msra.mxu0 0.0
      %3807 = vmatpush.msra.mxu0 0.0
      %3808 = vmatpush.msra.mxu0 0.0
      %3809 = vmatpush.msra.mxu0 0.0
      %3810 = vmatpush.msra.mxu0 0.0
      %3811 = vmatpush.msra.mxu0 0.0
      %3812 = vmatpush.msra.mxu0 0.0
      %3813 = vmatpush.msra.mxu0 %v3776
      %3814 = vmatmul.f32.gmra.mxu0 %v3770
      %v3815 = vpop.f32.mrf.mxu0
      %v3816 = vadd.f32 0.0, %v3815
      %3817 = vdwg.mxu0
      %v3818 = vadd.f32 %v3522, %v3796
      %v3819 = vadd.f32 %v3542, %v3816
      %v3820 = vld [vmem:[#allocation3 + $0x1] sm:$0xff]
      %v3821 = vld [vmem:[#allocation3 + $0x9] sm:$0xff]
      %v3822 = vld [vmem:[#allocation3 + $0x19] sm:$0xff]
      %v3823 = vld [vmem:[#allocation3 + $0x21] sm:$0xff]
      %v3824 = vld [vmem:[#allocation3 + $0x31] sm:$0xff]
      %v3825 = vld [vmem:[#allocation3 + $0x39] sm:$0xff]
      %v3826 = vld [vmem:[#allocation3 + $0x49] sm:$0xff]
      %v3827 = vld [vmem:[#allocation3 + $0x51] sm:$0xff]
      %v3828 = vld [vmem:[%s2] sm:$0xf]
      %v3829 = vrot.slane %v3824, 4
      %v3830 = vsel %vm446, %v3829, %v3820
      %v3831 = vrot.slane %v3820, 4
      %v3832 = vsel %vm446, %v3824, %v3831
      %v3834 = vunpack.c.l.s4 1983009808
      %v3835 = vunpack.c.0.s8 %v3834
      %v3836 = vperm.slane %v3830, %v3835
      %v3838 = vunpack.c.l.s4 1983009808
      %v3839 = vunpack.c.0.s8 %v3838
      %v3840 = vperm.slane %v3832, %v3839
      %v3841 = vrot.slane %v3826, 4
      %v3842 = vsel %vm446, %v3841, %v3822
      %v3843 = vrot.slane %v3822, 4
      %v3844 = vsel %vm446, %v3826, %v3843
      %v3846 = vunpack.c.l.s4 1983009808
      %v3847 = vunpack.c.0.s8 %v3846
      %v3848 = vperm.slane %v3842, %v3847
      %v3850 = vunpack.c.l.s4 1983009808
      %v3851 = vunpack.c.0.s8 %v3850
      %v3852 = vperm.slane %v3844, %v3851
      %v3853 = vrot.slane %v3848, 4
      %v3854 = vsel %vm446, %v3853, %v3836
      %v3855 = vrot.slane %v3836, 4
      %v3856 = vsel %vm446, %v3848, %v3855
      %v3858 = vunpack.c.l.s4 1934713408
      %v3859 = vunpack.c.0.s8 %v3858
      %v3860 = vperm.slane %v3854, %v3859
      %v3862 = vunpack.c.l.s4 1934713408
      %v3863 = vunpack.c.0.s8 %v3862
      %v3864 = vperm.slane %v3856, %v3863
      %v3865 = vrot.slane %v3852, 4
      %v3866 = vsel %vm446, %v3865, %v3840
      %v3867 = vrot.slane %v3840, 4
      %v3868 = vsel %vm446, %v3852, %v3867
      %v3870 = vunpack.c.l.s4 1934713408
      %v3871 = vunpack.c.0.s8 %v3870
      %v3872 = vperm.slane %v3866, %v3871
      %v3874 = vunpack.c.l.s4 1934713408
      %v3875 = vunpack.c.0.s8 %v3874
      %v3876 = vperm.slane %v3868, %v3875
      %v3877 = vrot.slane %v3860, 4
      %v3878 = vsel %vm446, 0.0, %v3877
      %v3879 = vrot.slane %v3864, 4
      %v3880 = vsel %vm446, 0.0, %v3879
      %v3881 = vrot.slane %v3872, 4
      %v3882 = vsel %vm446, 0.0, %v3881
      %v3883 = vrot.slane %v3876, 4
      %v3884 = vsel %vm446, 0.0, %v3883
      %v3885 = vrot.slane %v3825, 4
      %v3886 = vsel %vm446, %v3885, %v3821
      %v3887 = vrot.slane %v3821, 4
      %v3888 = vsel %vm446, %v3825, %v3887
      %v3890 = vunpack.c.l.s4 1983009808
      %v3891 = vunpack.c.0.s8 %v3890
      %v3892 = vperm.slane %v3886, %v3891
      %v3894 = vunpack.c.l.s4 1983009808
      %v3895 = vunpack.c.0.s8 %v3894
      %v3896 = vperm.slane %v3888, %v3895
      %v3897 = vrot.slane %v3827, 4
      %v3898 = vsel %vm446, %v3897, %v3823
      %v3899 = vrot.slane %v3823, 4
      %v3900 = vsel %vm446, %v3827, %v3899
      %v3902 = vunpack.c.l.s4 1983009808
      %v3903 = vunpack.c.0.s8 %v3902
      %v3904 = vperm.slane %v3898, %v3903
      %v3906 = vunpack.c.l.s4 1983009808
      %v3907 = vunpack.c.0.s8 %v3906
      %v3908 = vperm.slane %v3900, %v3907
      %v3909 = vrot.slane %v3904, 4
      %v3910 = vsel %vm446, %v3909, %v3892
      %v3911 = vrot.slane %v3892, 4
      %v3912 = vsel %vm446, %v3904, %v3911
      %v3914 = vunpack.c.l.s4 1934713408
      %v3915 = vunpack.c.0.s8 %v3914
      %v3916 = vperm.slane %v3910, %v3915
      %v3918 = vunpack.c.l.s4 1934713408
      %v3919 = vunpack.c.0.s8 %v3918
      %v3920 = vperm.slane %v3912, %v3919
      %v3921 = vrot.slane %v3908, 4
      %v3922 = vsel %vm446, %v3921, %v3896
      %v3923 = vrot.slane %v3896, 4
      %v3924 = vsel %vm446, %v3908, %v3923
      %v3926 = vunpack.c.l.s4 1934713408
      %v3927 = vunpack.c.0.s8 %v3926
      %v3928 = vperm.slane %v3922, %v3927
      %v3930 = vunpack.c.l.s4 1934713408
      %v3931 = vunpack.c.0.s8 %v3930
      %v3932 = vperm.slane %v3924, %v3931
      %v3933 = vrot.slane %v3916, 4
      %v3934 = vsel %vm446, 0.0, %v3933
      %v3935 = vrot.slane %v3920, 4
      %v3936 = vsel %vm446, 0.0, %v3935
      %v3937 = vrot.slane %v3928, 4
      %v3938 = vsel %vm446, 0.0, %v3937
      %v3939 = vrot.slane %v3932, 4
      %v3940 = vsel %vm446, 0.0, %v3939
      %3942 = vrot.lane.b32.xlu0 %v3878, 16
      %v3943 = vpop.permute.xlu0 %3942
      %3946 = vrot.lane.b32.xlu0 %v3864, 32
      %v3947 = vpop.permute.xlu0 %3946
      %3950 = vrot.lane.b32.xlu0 %v3880, 48
      %v3951 = vpop.permute.xlu0 %3950
      %3954 = vrot.lane.b32.xlu0 %v3872, 64
      %v3955 = vpop.permute.xlu0 %3954
      %3958 = vrot.lane.b32.xlu0 %v3882, 80
      %v3959 = vpop.permute.xlu0 %3958
      %3962 = vrot.lane.b32.xlu0 %v3876, 96
      %v3963 = vpop.permute.xlu0 %3962
      %3966 = vrot.lane.b32.xlu0 %v3884, 112
      %v3967 = vpop.permute.xlu0 %3966
      %3970 = vrot.lane.b32.xlu0 %v3934, 16
      %v3971 = vpop.permute.xlu0 %3970
      %3974 = vrot.lane.b32.xlu0 %v3920, 32
      %v3975 = vpop.permute.xlu0 %3974
      %3978 = vrot.lane.b32.xlu0 %v3936, 48
      %v3979 = vpop.permute.xlu0 %3978
      %3982 = vrot.lane.b32.xlu0 %v3928, 64
      %v3983 = vpop.permute.xlu0 %3982
      %3986 = vrot.lane.b32.xlu0 %v3938, 80
      %v3987 = vpop.permute.xlu0 %3986
      %3990 = vrot.lane.b32.xlu0 %v3932, 96
      %v3991 = vpop.permute.xlu0 %3990
      %3994 = vrot.lane.b32.xlu0 %v3940, 112
      %v3995 = vpop.permute.xlu0 %3994
      %v3997 = vsel %vm614, %v3860, %v3943
      %v3998 = vsel %vm616, %v3997, %v3947
      %v3999 = vsel %vm618, %v3998, %v3951
      %v4000 = vsel %vm620, %v3999, %v3955
      %v4001 = vsel %vm622, %v4000, %v3959
      %v4002 = vsel %vm624, %v4001, %v3963
      %v4003 = vsel %vm626, %v4002, %v3967
      %v4004 = vsel %vm614, %v3916, %v3971
      %v4005 = vsel %vm616, %v4004, %v3975
      %v4006 = vsel %vm618, %v4005, %v3979
      %v4007 = vsel %vm620, %v4006, %v3983
      %v4008 = vsel %vm622, %v4007, %v3987
      %v4009 = vsel %vm624, %v4008, %v3991
      %v4010 = vsel %vm626, %v4009, %v3995
      %4012 = vrot.lane.b32.xlu0 %v3828, 116
      %v4013 = vpop.permute.xlu0 %4012
      %v4014 = vsel %vm852, %v4013, 0
      %v4017 = vsel %vm855, %v4003, 0
      %v4020 = vsel %vm855, %v4010, 0
      %4022 = vmatpush.msra.mxu0 0.0
      %4023 = vmatpush.msra.mxu0 0.0
      %4024 = vmatpush.msra.mxu0 0.0
      %4025 = vmatpush.msra.mxu0 0.0
      %4026 = vmatpush.msra.mxu0 0.0
      %4027 = vmatpush.msra.mxu0 0.0
      %4028 = vmatpush.msra.mxu0 0.0
      %4029 = vmatpush.msra.mxu0 0.0
      %4030 = vmatpush.msra.mxu0 0.0
      %4031 = vmatpush.msra.mxu0 0.0
      %4032 = vmatpush.msra.mxu0 0.0
      %4033 = vmatpush.msra.mxu0 0.0
      %4034 = vmatpush.msra.mxu0 0.0
      %4035 = vmatpush.msra.mxu0 0.0
      %4036 = vmatpush.msra.mxu0 0.0
      %4037 = vmatpush.msra.mxu0 %v4017
      %4038 = vmatmul.f32.gmra.mxu0 %v4014
      %v4039 = vpop.f32.mrf.mxu0
      %v4040 = vadd.f32 0.0, %v4039
      %4041 = vdwg.mxu0
      %4042 = vmatpush.msra.mxu0 0.0
      %4043 = vmatpush.msra.mxu0 0.0
      %4044 = vmatpush.msra.mxu0 0.0
      %4045 = vmatpush.msra.mxu0 0.0
      %4046 = vmatpush.msra.mxu0 0.0
      %4047 = vmatpush.msra.mxu0 0.0
      %4048 = vmatpush.msra.mxu0 0.0
      %4049 = vmatpush.msra.mxu0 0.0
      %4050 = vmatpush.msra.mxu0 0.0
      %4051 = vmatpush.msra.mxu0 0.0
      %4052 = vmatpush.msra.mxu0 0.0
      %4053 = vmatpush.msra.mxu0 0.0
      %4054 = vmatpush.msra.mxu0 0.0
      %4055 = vmatpush.msra.mxu0 0.0
      %4056 = vmatpush.msra.mxu0 0.0
      %4057 = vmatpush.msra.mxu0 %v4020
      %4058 = vmatmul.f32.gmra.mxu0 %v4014
      %v4059 = vpop.f32.mrf.mxu0
      %v4060 = vadd.f32 0.0, %v4059
      %4061 = vdwg.mxu0
      %v4062 = vadd.f32 %v3818, %v4040
      %v4063 = vadd.f32 %v3819, %v4060
      %v4064 = vld [vmem:[#allocation3 + $0x1] sm:$0xff]
      %v4065 = vld [vmem:[#allocation3 + $0x9] sm:$0xff]
      %v4066 = vld [vmem:[#allocation3 + $0x19] sm:$0xff]
      %v4067 = vld [vmem:[#allocation3 + $0x21] sm:$0xff]
      %v4068 = vld [vmem:[#allocation3 + $0x31] sm:$0xff]
      %v4069 = vld [vmem:[#allocation3 + $0x39] sm:$0xff]
      %v4070 = vld [vmem:[#allocation3 + $0x49] sm:$0xff]
      %v4071 = vld [vmem:[#allocation3 + $0x51] sm:$0xff]
      %v4072 = vld [vmem:[%s2] sm:$0xf]
      %4081 = vrot.lane.b32.xlu0 %v4064, 127
      %v4082 = vpop.permute.xlu0 %4081
      %4083 = vrot.lane.b32.xlu0 %v4065, 127
      %v4084 = vpop.permute.xlu0 %4083
      %4085 = vrot.lane.b32.xlu0 %v4066, 127
      %v4086 = vpop.permute.xlu0 %4085
      %4087 = vrot.lane.b32.xlu0 %v4067, 127
      %v4088 = vpop.permute.xlu0 %4087
      %4089 = vrot.lane.b32.xlu0 %v4068, 127
      %v4090 = vpop.permute.xlu0 %4089
      %4091 = vrot.lane.b32.xlu0 %v4069, 127
      %v4092 = vpop.permute.xlu0 %4091
      %4093 = vrot.lane.b32.xlu0 %v4070, 127
      %v4094 = vpop.permute.xlu0 %4093
      %4095 = vrot.lane.b32.xlu0 %v4071, 127
      %v4096 = vpop.permute.xlu0 %4095
      %v4105 = vrot.slane %v4090, 4
      %v4106 = vsel %vm446, %v4105, %v4082
      %v4107 = vrot.slane %v4082, 4
      %v4108 = vsel %vm446, %v4090, %v4107
      %v4110 = vunpack.c.l.s4 1983009808
      %v4111 = vunpack.c.0.s8 %v4110
      %v4112 = vperm.slane %v4106, %v4111
      %v4114 = vunpack.c.l.s4 1983009808
      %v4115 = vunpack.c.0.s8 %v4114
      %v4116 = vperm.slane %v4108, %v4115
      %v4117 = vrot.slane %v4094, 4
      %v4118 = vsel %vm446, %v4117, %v4086
      %v4119 = vrot.slane %v4086, 4
      %v4120 = vsel %vm446, %v4094, %v4119
      %v4122 = vunpack.c.l.s4 1983009808
      %v4123 = vunpack.c.0.s8 %v4122
      %v4124 = vperm.slane %v4118, %v4123
      %v4126 = vunpack.c.l.s4 1983009808
      %v4127 = vunpack.c.0.s8 %v4126
      %v4128 = vperm.slane %v4120, %v4127
      %v4129 = vrot.slane %v4124, 4
      %v4130 = vsel %vm446, %v4129, %v4112
      %v4131 = vrot.slane %v4112, 4
      %v4132 = vsel %vm446, %v4124, %v4131
      %v4134 = vunpack.c.l.s4 1934713408
      %v4135 = vunpack.c.0.s8 %v4134
      %v4136 = vperm.slane %v4130, %v4135
      %v4138 = vunpack.c.l.s4 1934713408
      %v4139 = vunpack.c.0.s8 %v4138
      %v4140 = vperm.slane %v4132, %v4139
      %v4141 = vrot.slane %v4128, 4
      %v4142 = vsel %vm446, %v4141, %v4116
      %v4143 = vrot.slane %v4116, 4
      %v4144 = vsel %vm446, %v4128, %v4143
      %v4146 = vunpack.c.l.s4 1934713408
      %v4147 = vunpack.c.0.s8 %v4146
      %v4148 = vperm.slane %v4142, %v4147
      %v4150 = vunpack.c.l.s4 1934713408
      %v4151 = vunpack.c.0.s8 %v4150
      %v4152 = vperm.slane %v4144, %v4151
      %v4153 = vrot.slane %v4136, 4
      %v4154 = vsel %vm446, 0.0, %v4153
      %v4155 = vrot.slane %v4140, 4
      %v4156 = vsel %vm446, 0.0, %v4155
      %v4157 = vrot.slane %v4148, 4
      %v4158 = vsel %vm446, 0.0, %v4157
      %v4159 = vrot.slane %v4152, 4
      %v4160 = vsel %vm446, 0.0, %v4159
      %v4161 = vrot.slane %v4092, 4
      %v4162 = vsel %vm446, %v4161, %v4084
      %v4163 = vrot.slane %v4084, 4
      %v4164 = vsel %vm446, %v4092, %v4163
      %v4166 = vunpack.c.l.s4 1983009808
      %v4167 = vunpack.c.0.s8 %v4166
      %v4168 = vperm.slane %v4162, %v4167
      %v4170 = vunpack.c.l.s4 1983009808
      %v4171 = vunpack.c.0.s8 %v4170
      %v4172 = vperm.slane %v4164, %v4171
      %v4173 = vrot.slane %v4096, 4
      %v4174 = vsel %vm446, %v4173, %v4088
      %v4175 = vrot.slane %v4088, 4
      %v4176 = vsel %vm446, %v4096, %v4175
      %v4178 = vunpack.c.l.s4 1983009808
      %v4179 = vunpack.c.0.s8 %v4178
      %v4180 = vperm.slane %v4174, %v4179
      %v4182 = vunpack.c.l.s4 1983009808
      %v4183 = vunpack.c.0.s8 %v4182
      %v4184 = vperm.slane %v4176, %v4183
      %v4185 = vrot.slane %v4180, 4
      %v4186 = vsel %vm446, %v4185, %v4168
      %v4187 = vrot.slane %v4168, 4
      %v4188 = vsel %vm446, %v4180, %v4187
      %v4190 = vunpack.c.l.s4 1934713408
      %v4191 = vunpack.c.0.s8 %v4190
      %v4192 = vperm.slane %v4186, %v4191
      %v4194 = vunpack.c.l.s4 1934713408
      %v4195 = vunpack.c.0.s8 %v4194
      %v4196 = vperm.slane %v4188, %v4195
      %v4197 = vrot.slane %v4184, 4
      %v4198 = vsel %vm446, %v4197, %v4172
      %v4199 = vrot.slane %v4172, 4
      %v4200 = vsel %vm446, %v4184, %v4199
      %v4202 = vunpack.c.l.s4 1934713408
      %v4203 = vunpack.c.0.s8 %v4202
      %v4204 = vperm.slane %v4198, %v4203
      %v4206 = vunpack.c.l.s4 1934713408
      %v4207 = vunpack.c.0.s8 %v4206
      %v4208 = vperm.slane %v4200, %v4207
      %v4209 = vrot.slane %v4192, 4
      %v4210 = vsel %vm446, 0.0, %v4209
      %v4211 = vrot.slane %v4196, 4
      %v4212 = vsel %vm446, 0.0, %v4211
      %v4213 = vrot.slane %v4204, 4
      %v4214 = vsel %vm446, 0.0, %v4213
      %v4215 = vrot.slane %v4208, 4
      %v4216 = vsel %vm446, 0.0, %v4215
      %4218 = vrot.lane.b32.xlu0 %v4154, 16
      %v4219 = vpop.permute.xlu0 %4218
      %4222 = vrot.lane.b32.xlu0 %v4140, 32
      %v4223 = vpop.permute.xlu0 %4222
      %4226 = vrot.lane.b32.xlu0 %v4156, 48
      %v4227 = vpop.permute.xlu0 %4226
      %4230 = vrot.lane.b32.xlu0 %v4148, 64
      %v4231 = vpop.permute.xlu0 %4230
      %4234 = vrot.lane.b32.xlu0 %v4158, 80
      %v4235 = vpop.permute.xlu0 %4234
      %4238 = vrot.lane.b32.xlu0 %v4152, 96
      %v4239 = vpop.permute.xlu0 %4238
      %4242 = vrot.lane.b32.xlu0 %v4160, 112
      %v4243 = vpop.permute.xlu0 %4242
      %4246 = vrot.lane.b32.xlu0 %v4210, 16
      %v4247 = vpop.permute.xlu0 %4246
      %4250 = vrot.lane.b32.xlu0 %v4196, 32
      %v4251 = vpop.permute.xlu0 %4250
      %4254 = vrot.lane.b32.xlu0 %v4212, 48
      %v4255 = vpop.permute.xlu0 %4254
      %4258 = vrot.lane.b32.xlu0 %v4204, 64
      %v4259 = vpop.permute.xlu0 %4258
      %4262 = vrot.lane.b32.xlu0 %v4214, 80
      %v4263 = vpop.permute.xlu0 %4262
      %4266 = vrot.lane.b32.xlu0 %v4208, 96
      %v4267 = vpop.permute.xlu0 %4266
      %4270 = vrot.lane.b32.xlu0 %v4216, 112
      %v4271 = vpop.permute.xlu0 %4270
      %v4273 = vsel %vm614, %v4136, %v4219
      %v4274 = vsel %vm616, %v4273, %v4223
      %v4275 = vsel %vm618, %v4274, %v4227
      %v4276 = vsel %vm620, %v4275, %v4231
      %v4277 = vsel %vm622, %v4276, %v4235
      %v4278 = vsel %vm624, %v4277, %v4239
      %v4279 = vsel %vm626, %v4278, %v4243
      %v4280 = vsel %vm614, %v4192, %v4247
      %v4281 = vsel %vm616, %v4280, %v4251
      %v4282 = vsel %vm618, %v4281, %v4255
      %v4283 = vsel %vm620, %v4282, %v4259
      %v4284 = vsel %vm622, %v4283, %v4263
      %v4285 = vsel %vm624, %v4284, %v4267
      %v4286 = vsel %vm626, %v4285, %v4271
      %4288 = vrot.lane.b32.xlu0 %v4072, 112
      %v4289 = vpop.permute.xlu0 %4288
      %v4290 = vsel %vm852, %v4289, 0
      %v4293 = vsel %vm855, %v4279, 0
      %v4296 = vsel %vm855, %v4286, 0
      %4298 = vmatpush.msra.mxu0 0.0
      %4299 = vmatpush.msra.mxu0 0.0
      %4300 = vmatpush.msra.mxu0 0.0
      %4301 = vmatpush.msra.mxu0 0.0
      %4302 = vmatpush.msra.mxu0 0.0
      %4303 = vmatpush.msra.mxu0 0.0
      %4304 = vmatpush.msra.mxu0 0.0
      %4305 = vmatpush.msra.mxu0 0.0
      %4306 = vmatpush.msra.mxu0 0.0
      %4307 = vmatpush.msra.mxu0 0.0
      %4308 = vmatpush.msra.mxu0 0.0
      %4309 = vmatpush.msra.mxu0 0.0
      %4310 = vmatpush.msra.mxu0 0.0
      %4311 = vmatpush.msra.mxu0 0.0
      %4312 = vmatpush.msra.mxu0 0.0
      %4313 = vmatpush.msra.mxu0 %v4293
      %4314 = vmatmul.f32.gmra.mxu0 %v4290
      %v4315 = vpop.f32.mrf.mxu0
      %v4316 = vadd.f32 0.0, %v4315
      %4317 = vdwg.mxu0
      %4318 = vmatpush.msra.mxu0 0.0
      %4319 = vmatpush.msra.mxu0 0.0
      %4320 = vmatpush.msra.mxu0 0.0
      %4321 = vmatpush.msra.mxu0 0.0
      %4322 = vmatpush.msra.mxu0 0.0
      %4323 = vmatpush.msra.mxu0 0.0
      %4324 = vmatpush.msra.mxu0 0.0
      %4325 = vmatpush.msra.mxu0 0.0
      %4326 = vmatpush.msra.mxu0 0.0
      %4327 = vmatpush.msra.mxu0 0.0
      %4328 = vmatpush.msra.mxu0 0.0
      %4329 = vmatpush.msra.mxu0 0.0
      %4330 = vmatpush.msra.mxu0 0.0
      %4331 = vmatpush.msra.mxu0 0.0
      %4332 = vmatpush.msra.mxu0 0.0
      %4333 = vmatpush.msra.mxu0 %v4296
      %4334 = vmatmul.f32.gmra.mxu0 %v4290
      %v4335 = vpop.f32.mrf.mxu0
      %v4336 = vadd.f32 0.0, %v4335
      %4337 = vdwg.mxu0
      %v4338 = vadd.f32 %v4062, %v4316
      %v4339 = vadd.f32 %v4063, %v4336
      %v4340 = vld [vmem:[#allocation3 + $0x1] sm:$0xff]
      %v4341 = vld [vmem:[#allocation3 + $0x9] sm:$0xff]
      %v4342 = vld [vmem:[#allocation3 + $0x19] sm:$0xff]
      %v4343 = vld [vmem:[#allocation3 + $0x21] sm:$0xff]
      %v4344 = vld [vmem:[#allocation3 + $0x31] sm:$0xff]
      %v4345 = vld [vmem:[#allocation3 + $0x39] sm:$0xff]
      %v4346 = vld [vmem:[#allocation3 + $0x49] sm:$0xff]
      %v4347 = vld [vmem:[#allocation3 + $0x51] sm:$0xff]
      %v4348 = vld [vmem:[%s2] sm:$0xf]
      %4357 = vrot.lane.b32.xlu0 %v4340, 126
      %v4358 = vpop.permute.xlu0 %4357
      %4359 = vrot.lane.b32.xlu0 %v4341, 126
      %v4360 = vpop.permute.xlu0 %4359
      %4361 = vrot.lane.b32.xlu0 %v4342, 126
      %v4362 = vpop.permute.xlu0 %4361
      %4363 = vrot.lane.b32.xlu0 %v4343, 126
      %v4364 = vpop.permute.xlu0 %4363
      %4365 = vrot.lane.b32.xlu0 %v4344, 126
      %v4366 = vpop.permute.xlu0 %4365
      %4367 = vrot.lane.b32.xlu0 %v4345, 126
      %v4368 = vpop.permute.xlu0 %4367
      %4369 = vrot.lane.b32.xlu0 %v4346, 126
      %v4370 = vpop.permute.xlu0 %4369
      %4371 = vrot.lane.b32.xlu0 %v4347, 126
      %v4372 = vpop.permute.xlu0 %4371
      %v4381 = vrot.slane %v4366, 4
      %v4382 = vsel %vm446, %v4381, %v4358
      %v4383 = vrot.slane %v4358, 4
      %v4384 = vsel %vm446, %v4366, %v4383
      %v4386 = vunpack.c.l.s4 1983009808
      %v4387 = vunpack.c.0.s8 %v4386
      %v4388 = vperm.slane %v4382, %v4387
      %v4390 = vunpack.c.l.s4 1983009808
      %v4391 = vunpack.c.0.s8 %v4390
      %v4392 = vperm.slane %v4384, %v4391
      %v4393 = vrot.slane %v4370, 4
      %v4394 = vsel %vm446, %v4393, %v4362
      %v4395 = vrot.slane %v4362, 4
      %v4396 = vsel %vm446, %v4370, %v4395
      %v4398 = vunpack.c.l.s4 1983009808
      %v4399 = vunpack.c.0.s8 %v4398
      %v4400 = vperm.slane %v4394, %v4399
      %v4402 = vunpack.c.l.s4 1983009808
      %v4403 = vunpack.c.0.s8 %v4402
      %v4404 = vperm.slane %v4396, %v4403
      %v4405 = vrot.slane %v4400, 4
      %v4406 = vsel %vm446, %v4405, %v4388
      %v4407 = vrot.slane %v4388, 4
      %v4408 = vsel %vm446, %v4400, %v4407
      %v4410 = vunpack.c.l.s4 1934713408
      %v4411 = vunpack.c.0.s8 %v4410
      %v4412 = vperm.slane %v4406, %v4411
      %v4414 = vunpack.c.l.s4 1934713408
      %v4415 = vunpack.c.0.s8 %v4414
      %v4416 = vperm.slane %v4408, %v4415
      %v4417 = vrot.slane %v4404, 4
      %v4418 = vsel %vm446, %v4417, %v4392
      %v4419 = vrot.slane %v4392, 4
      %v4420 = vsel %vm446, %v4404, %v4419
      %v4422 = vunpack.c.l.s4 1934713408
      %v4423 = vunpack.c.0.s8 %v4422
      %v4424 = vperm.slane %v4418, %v4423
      %v4426 = vunpack.c.l.s4 1934713408
      %v4427 = vunpack.c.0.s8 %v4426
      %v4428 = vperm.slane %v4420, %v4427
      %v4429 = vrot.slane %v4412, 4
      %v4430 = vsel %vm446, 0.0, %v4429
      %v4431 = vrot.slane %v4416, 4
      %v4432 = vsel %vm446, 0.0, %v4431
      %v4433 = vrot.slane %v4424, 4
      %v4434 = vsel %vm446, 0.0, %v4433
      %v4435 = vrot.slane %v4428, 4
      %v4436 = vsel %vm446, 0.0, %v4435
      %v4437 = vrot.slane %v4368, 4
      %v4438 = vsel %vm446, %v4437, %v4360
      %v4439 = vrot.slane %v4360, 4
      %v4440 = vsel %vm446, %v4368, %v4439
      %v4442 = vunpack.c.l.s4 1983009808
      %v4443 = vunpack.c.0.s8 %v4442
      %v4444 = vperm.slane %v4438, %v4443
      %v4446 = vunpack.c.l.s4 1983009808
      %v4447 = vunpack.c.0.s8 %v4446
      %v4448 = vperm.slane %v4440, %v4447
      %v4449 = vrot.slane %v4372, 4
      %v4450 = vsel %vm446, %v4449, %v4364
      %v4451 = vrot.slane %v4364, 4
      %v4452 = vsel %vm446, %v4372, %v4451
      %v4454 = vunpack.c.l.s4 1983009808
      %v4455 = vunpack.c.0.s8 %v4454
      %v4456 = vperm.slane %v4450, %v4455
      %v4458 = vunpack.c.l.s4 1983009808
      %v4459 = vunpack.c.0.s8 %v4458
      %v4460 = vperm.slane %v4452, %v4459
      %v4461 = vrot.slane %v4456, 4
      %v4462 = vsel %vm446, %v4461, %v4444
      %v4463 = vrot.slane %v4444, 4
      %v4464 = vsel %vm446, %v4456, %v4463
      %v4466 = vunpack.c.l.s4 1934713408
      %v4467 = vunpack.c.0.s8 %v4466
      %v4468 = vperm.slane %v4462, %v4467
      %v4470 = vunpack.c.l.s4 1934713408
      %v4471 = vunpack.c.0.s8 %v4470
      %v4472 = vperm.slane %v4464, %v4471
      %v4473 = vrot.slane %v4460, 4
      %v4474 = vsel %vm446, %v4473, %v4448
      %v4475 = vrot.slane %v4448, 4
      %v4476 = vsel %vm446, %v4460, %v4475
      %v4478 = vunpack.c.l.s4 1934713408
      %v4479 = vunpack.c.0.s8 %v4478
      %v4480 = vperm.slane %v4474, %v4479
      %v4482 = vunpack.c.l.s4 1934713408
      %v4483 = vunpack.c.0.s8 %v4482
      %v4484 = vperm.slane %v4476, %v4483
      %v4485 = vrot.slane %v4468, 4
      %v4486 = vsel %vm446, 0.0, %v4485
      %v4487 = vrot.slane %v4472, 4
      %v4488 = vsel %vm446, 0.0, %v4487
      %v4489 = vrot.slane %v4480, 4
      %v4490 = vsel %vm446, 0.0, %v4489
      %v4491 = vrot.slane %v4484, 4
      %v4492 = vsel %vm446, 0.0, %v4491
      %4494 = vrot.lane.b32.xlu0 %v4430, 16
      %v4495 = vpop.permute.xlu0 %4494
      %4498 = vrot.lane.b32.xlu0 %v4416, 32
      %v4499 = vpop.permute.xlu0 %4498
      %4502 = vrot.lane.b32.xlu0 %v4432, 48
      %v4503 = vpop.permute.xlu0 %4502
      %4506 = vrot.lane.b32.xlu0 %v4424, 64
      %v4507 = vpop.permute.xlu0 %4506
      %4510 = vrot.lane.b32.xlu0 %v4434, 80
      %v4511 = vpop.permute.xlu0 %4510
      %4514 = vrot.lane.b32.xlu0 %v4428, 96
      %v4515 = vpop.permute.xlu0 %4514
      %4518 = vrot.lane.b32.xlu0 %v4436, 112
      %v4519 = vpop.permute.xlu0 %4518
      %4522 = vrot.lane.b32.xlu0 %v4486, 16
      %v4523 = vpop.permute.xlu0 %4522
      %4526 = vrot.lane.b32.xlu0 %v4472, 32
      %v4527 = vpop.permute.xlu0 %4526
      %4530 = vrot.lane.b32.xlu0 %v4488, 48
      %v4531 = vpop.permute.xlu0 %4530
      %4534 = vrot.lane.b32.xlu0 %v4480, 64
      %v4535 = vpop.permute.xlu0 %4534
      %4538 = vrot.lane.b32.xlu0 %v4490, 80
      %v4539 = vpop.permute.xlu0 %4538
      %4542 = vrot.lane.b32.xlu0 %v4484, 96
      %v4543 = vpop.permute.xlu0 %4542
      %4546 = vrot.lane.b32.xlu0 %v4492, 112
      %v4547 = vpop.permute.xlu0 %4546
      %v4549 = vsel %vm614, %v4412, %v4495
      %v4550 = vsel %vm616, %v4549, %v4499
      %v4551 = vsel %vm618, %v4550, %v4503
      %v4552 = vsel %vm620, %v4551, %v4507
      %v4553 = vsel %vm622, %v4552, %v4511
      %v4554 = vsel %vm624, %v4553, %v4515
      %v4555 = vsel %vm626, %v4554, %v4519
      %v4556 = vsel %vm614, %v4468, %v4523
      %v4557 = vsel %vm616, %v4556, %v4527
      %v4558 = vsel %vm618, %v4557, %v4531
      %v4559 = vsel %vm620, %v4558, %v4535
      %v4560 = vsel %vm622, %v4559, %v4539
      %v4561 = vsel %vm624, %v4560, %v4543
      %v4562 = vsel %vm626, %v4561, %v4547
      %4564 = vrot.lane.b32.xlu0 %v4348, 108
      %v4565 = vpop.permute.xlu0 %4564
      %v4566 = vsel %vm852, %v4565, 0
      %v4569 = vsel %vm855, %v4555, 0
      %v4572 = vsel %vm855, %v4562, 0
      %4574 = vmatpush.msra.mxu0 0.0
      %4575 = vmatpush.msra.mxu0 0.0
      %4576 = vmatpush.msra.mxu0 0.0
      %4577 = vmatpush.msra.mxu0 0.0
      %4578 = vmatpush.msra.mxu0 0.0
      %4579 = vmatpush.msra.mxu0 0.0
      %4580 = vmatpush.msra.mxu0 0.0
      %4581 = vmatpush.msra.mxu0 0.0
      %4582 = vmatpush.msra.mxu0 0.0
      %4583 = vmatpush.msra.mxu0 0.0
      %4584 = vmatpush.msra.mxu0 0.0
      %4585 = vmatpush.msra.mxu0 0.0
      %4586 = vmatpush.msra.mxu0 0.0
      %4587 = vmatpush.msra.mxu0 0.0
      %4588 = vmatpush.msra.mxu0 0.0
      %4589 = vmatpush.msra.mxu0 %v4569
      %4590 = vmatmul.f32.gmra.mxu0 %v4566
      %v4591 = vpop.f32.mrf.mxu0
      %v4592 = vadd.f32 0.0, %v4591
      %4593 = vdwg.mxu0
      %4594 = vmatpush.msra.mxu0 0.0
      %4595 = vmatpush.msra.mxu0 0.0
      %4596 = vmatpush.msra.mxu0 0.0
      %4597 = vmatpush.msra.mxu0 0.0
      %4598 = vmatpush.msra.mxu0 0.0
      %4599 = vmatpush.msra.mxu0 0.0
      %4600 = vmatpush.msra.mxu0 0.0
      %4601 = vmatpush.msra.mxu0 0.0
      %4602 = vmatpush.msra.mxu0 0.0
      %4603 = vmatpush.msra.mxu0 0.0
      %4604 = vmatpush.msra.mxu0 0.0
      %4605 = vmatpush.msra.mxu0 0.0
      %4606 = vmatpush.msra.mxu0 0.0
      %4607 = vmatpush.msra.mxu0 0.0
      %4608 = vmatpush.msra.mxu0 0.0
      %4609 = vmatpush.msra.mxu0 %v4572
      %4610 = vmatmul.f32.gmra.mxu0 %v4566
      %v4611 = vpop.f32.mrf.mxu0
      %v4612 = vadd.f32 0.0, %v4611
      %4613 = vdwg.mxu0
      %v4614 = vadd.f32 %v4338, %v4592
      %v4615 = vadd.f32 %v4339, %v4612
      %v4616 = vld [vmem:[#allocation3 + $0x2] sm:$0xff]
      %v4617 = vld [vmem:[#allocation3 + $0xa] sm:$0xff]
      %v4618 = vld [vmem:[#allocation3 + $0x1a] sm:$0xff]
      %v4619 = vld [vmem:[#allocation3 + $0x22] sm:$0xff]
      %v4620 = vld [vmem:[#allocation3 + $0x32] sm:$0xff]
      %v4621 = vld [vmem:[#allocation3 + $0x3a] sm:$0xff]
      %v4622 = vld [vmem:[#allocation3 + $0x4a] sm:$0xff]
      %v4623 = vld [vmem:[#allocation3 + $0x52] sm:$0xff]
      %v4624 = vld [vmem:[%s2] sm:$0xf]
      %v4625 = vrot.slane %v4620, 4
      %v4626 = vsel %vm446, %v4625, %v4616
      %v4627 = vrot.slane %v4616, 4
      %v4628 = vsel %vm446, %v4620, %v4627
      %v4630 = vunpack.c.l.s4 1983009808
      %v4631 = vunpack.c.0.s8 %v4630
      %v4632 = vperm.slane %v4626, %v4631
      %v4634 = vunpack.c.l.s4 1983009808
      %v4635 = vunpack.c.0.s8 %v4634
      %v4636 = vperm.slane %v4628, %v4635
      %v4637 = vrot.slane %v4622, 4
      %v4638 = vsel %vm446, %v4637, %v4618
      %v4639 = vrot.slane %v4618, 4
      %v4640 = vsel %vm446, %v4622, %v4639
      %v4642 = vunpack.c.l.s4 1983009808
      %v4643 = vunpack.c.0.s8 %v4642
      %v4644 = vperm.slane %v4638, %v4643
      %v4646 = vunpack.c.l.s4 1983009808
      %v4647 = vunpack.c.0.s8 %v4646
      %v4648 = vperm.slane %v4640, %v4647
      %v4649 = vrot.slane %v4644, 4
      %v4650 = vsel %vm446, %v4649, %v4632
      %v4651 = vrot.slane %v4632, 4
      %v4652 = vsel %vm446, %v4644, %v4651
      %v4654 = vunpack.c.l.s4 1934713408
      %v4655 = vunpack.c.0.s8 %v4654
      %v4656 = vperm.slane %v4650, %v4655
      %v4658 = vunpack.c.l.s4 1934713408
      %v4659 = vunpack.c.0.s8 %v4658
      %v4660 = vperm.slane %v4652, %v4659
      %v4661 = vrot.slane %v4648, 4
      %v4662 = vsel %vm446, %v4661, %v4636
      %v4663 = vrot.slane %v4636, 4
      %v4664 = vsel %vm446, %v4648, %v4663
      %v4666 = vunpack.c.l.s4 1934713408
      %v4667 = vunpack.c.0.s8 %v4666
      %v4668 = vperm.slane %v4662, %v4667
      %v4670 = vunpack.c.l.s4 1934713408
      %v4671 = vunpack.c.0.s8 %v4670
      %v4672 = vperm.slane %v4664, %v4671
      %v4673 = vrot.slane %v4656, 4
      %v4674 = vsel %vm446, 0.0, %v4673
      %v4675 = vrot.slane %v4660, 4
      %v4676 = vsel %vm446, 0.0, %v4675
      %v4677 = vrot.slane %v4668, 4
      %v4678 = vsel %vm446, 0.0, %v4677
      %v4679 = vrot.slane %v4672, 4
      %v4680 = vsel %vm446, 0.0, %v4679
      %v4681 = vrot.slane %v4621, 4
      %v4682 = vsel %vm446, %v4681, %v4617
      %v4683 = vrot.slane %v4617, 4
      %v4684 = vsel %vm446, %v4621, %v4683
      %v4686 = vunpack.c.l.s4 1983009808
      %v4687 = vunpack.c.0.s8 %v4686
      %v4688 = vperm.slane %v4682, %v4687
      %v4690 = vunpack.c.l.s4 1983009808
      %v4691 = vunpack.c.0.s8 %v4690
      %v4692 = vperm.slane %v4684, %v4691
      %v4693 = vrot.slane %v4623, 4
      %v4694 = vsel %vm446, %v4693, %v4619
      %v4695 = vrot.slane %v4619, 4
      %v4696 = vsel %vm446, %v4623, %v4695
      %v4698 = vunpack.c.l.s4 1983009808
      %v4699 = vunpack.c.0.s8 %v4698
      %v4700 = vperm.slane %v4694, %v4699
      %v4702 = vunpack.c.l.s4 1983009808
      %v4703 = vunpack.c.0.s8 %v4702
      %v4704 = vperm.slane %v4696, %v4703
      %v4705 = vrot.slane %v4700, 4
      %v4706 = vsel %vm446, %v4705, %v4688
      %v4707 = vrot.slane %v4688, 4
      %v4708 = vsel %vm446, %v4700, %v4707
      %v4710 = vunpack.c.l.s4 1934713408
      %v4711 = vunpack.c.0.s8 %v4710
      %v4712 = vperm.slane %v4706, %v4711
      %v4714 = vunpack.c.l.s4 1934713408
      %v4715 = vunpack.c.0.s8 %v4714
      %v4716 = vperm.slane %v4708, %v4715
      %v4717 = vrot.slane %v4704, 4
      %v4718 = vsel %vm446, %v4717, %v4692
      %v4719 = vrot.slane %v4692, 4
      %v4720 = vsel %vm446, %v4704, %v4719
      %v4722 = vunpack.c.l.s4 1934713408
      %v4723 = vunpack.c.0.s8 %v4722
      %v4724 = vperm.slane %v4718, %v4723
      %v4726 = vunpack.c.l.s4 1934713408
      %v4727 = vunpack.c.0.s8 %v4726
      %v4728 = vperm.slane %v4720, %v4727
      %v4729 = vrot.slane %v4712, 4
      %v4730 = vsel %vm446, 0.0, %v4729
      %v4731 = vrot.slane %v4716, 4
      %v4732 = vsel %vm446, 0.0, %v4731
      %v4733 = vrot.slane %v4724, 4
      %v4734 = vsel %vm446, 0.0, %v4733
      %v4735 = vrot.slane %v4728, 4
      %v4736 = vsel %vm446, 0.0, %v4735
      %4738 = vrot.lane.b32.xlu0 %v4674, 16
      %v4739 = vpop.permute.xlu0 %4738
      %4742 = vrot.lane.b32.xlu0 %v4660, 32
      %v4743 = vpop.permute.xlu0 %4742
      %4746 = vrot.lane.b32.xlu0 %v4676, 48
      %v4747 = vpop.permute.xlu0 %4746
      %4750 = vrot.lane.b32.xlu0 %v4668, 64
      %v4751 = vpop.permute.xlu0 %4750
      %4754 = vrot.lane.b32.xlu0 %v4678, 80
      %v4755 = vpop.permute.xlu0 %4754
      %4758 = vrot.lane.b32.xlu0 %v4672, 96
      %v4759 = vpop.permute.xlu0 %4758
      %4762 = vrot.lane.b32.xlu0 %v4680, 112
      %v4763 = vpop.permute.xlu0 %4762
      %4766 = vrot.lane.b32.xlu0 %v4730, 16
      %v4767 = vpop.permute.xlu0 %4766
      %4770 = vrot.lane.b32.xlu0 %v4716, 32
      %v4771 = vpop.permute.xlu0 %4770
      %4774 = vrot.lane.b32.xlu0 %v4732, 48
      %v4775 = vpop.permute.xlu0 %4774
      %4778 = vrot.lane.b32.xlu0 %v4724, 64
      %v4779 = vpop.permute.xlu0 %4778
      %4782 = vrot.lane.b32.xlu0 %v4734, 80
      %v4783 = vpop.permute.xlu0 %4782
      %4786 = vrot.lane.b32.xlu0 %v4728, 96
      %v4787 = vpop.permute.xlu0 %4786
      %4790 = vrot.lane.b32.xlu0 %v4736, 112
      %v4791 = vpop.permute.xlu0 %4790
      %v4793 = vsel %vm614, %v4656, %v4739
      %v4794 = vsel %vm616, %v4793, %v4743
      %v4795 = vsel %vm618, %v4794, %v4747
      %v4796 = vsel %vm620, %v4795, %v4751
      %v4797 = vsel %vm622, %v4796, %v4755
      %v4798 = vsel %vm624, %v4797, %v4759
      %v4799 = vsel %vm626, %v4798, %v4763
      %v4800 = vsel %vm614, %v4712, %v4767
      %v4801 = vsel %vm616, %v4800, %v4771
      %v4802 = vsel %vm618, %v4801, %v4775
      %v4803 = vsel %vm620, %v4802, %v4779
      %v4804 = vsel %vm622, %v4803, %v4783
      %v4805 = vsel %vm624, %v4804, %v4787
      %v4806 = vsel %vm626, %v4805, %v4791
      %4808 = vrot.lane.b32.xlu0 %v4624, 104
      %v4809 = vpop.permute.xlu0 %4808
      %v4810 = vsel %vm852, %v4809, 0
      %v4813 = vsel %vm855, %v4799, 0
      %v4816 = vsel %vm855, %v4806, 0
      %4818 = vmatpush.msra.mxu0 0.0
      %4819 = vmatpush.msra.mxu0 0.0
      %4820 = vmatpush.msra.mxu0 0.0
      %4821 = vmatpush.msra.mxu0 0.0
      %4822 = vmatpush.msra.mxu0 0.0
      %4823 = vmatpush.msra.mxu0 0.0
      %4824 = vmatpush.msra.mxu0 0.0
      %4825 = vmatpush.msra.mxu0 0.0
      %4826 = vmatpush.msra.mxu0 0.0
      %4827 = vmatpush.msra.mxu0 0.0
      %4828 = vmatpush.msra.mxu0 0.0
      %4829 = vmatpush.msra.mxu0 0.0
      %4830 = vmatpush.msra.mxu0 0.0
      %4831 = vmatpush.msra.mxu0 0.0
      %4832 = vmatpush.msra.mxu0 0.0
      %4833 = vmatpush.msra.mxu0 %v4813
      %4834 = vmatmul.f32.gmra.mxu0 %v4810
      %v4835 = vpop.f32.mrf.mxu0
      %v4836 = vadd.f32 0.0, %v4835
      %4837 = vdwg.mxu0
      %4838 = vmatpush.msra.mxu0 0.0
      %4839 = vmatpush.msra.mxu0 0.0
      %4840 = vmatpush.msra.mxu0 0.0
      %4841 = vmatpush.msra.mxu0 0.0
      %4842 = vmatpush.msra.mxu0 0.0
      %4843 = vmatpush.msra.mxu0 0.0
      %4844 = vmatpush.msra.mxu0 0.0
      %4845 = vmatpush.msra.mxu0 0.0
      %4846 = vmatpush.msra.mxu0 0.0
      %4847 = vmatpush.msra.mxu0 0.0
      %4848 = vmatpush.msra.mxu0 0.0
      %4849 = vmatpush.msra.mxu0 0.0
      %4850 = vmatpush.msra.mxu0 0.0
      %4851 = vmatpush.msra.mxu0 0.0
      %4852 = vmatpush.msra.mxu0 0.0
      %4853 = vmatpush.msra.mxu0 %v4816
      %4854 = vmatmul.f32.gmra.mxu0 %v4810
      %v4855 = vpop.f32.mrf.mxu0
      %v4856 = vadd.f32 0.0, %v4855
      %4857 = vdwg.mxu0
      %v4858 = vadd.f32 %v4614, %v4836
      %v4859 = vadd.f32 %v4615, %v4856
      %v4860 = vld [vmem:[#allocation3 + $0x2] sm:$0xff]
      %v4861 = vld [vmem:[#allocation3 + $0xa] sm:$0xff]
      %v4862 = vld [vmem:[#allocation3 + $0x1a] sm:$0xff]
      %v4863 = vld [vmem:[#allocation3 + $0x22] sm:$0xff]
      %v4864 = vld [vmem:[#allocation3 + $0x32] sm:$0xff]
      %v4865 = vld [vmem:[#allocation3 + $0x3a] sm:$0xff]
      %v4866 = vld [vmem:[#allocation3 + $0x4a] sm:$0xff]
      %v4867 = vld [vmem:[#allocation3 + $0x52] sm:$0xff]
      %v4868 = vld [vmem:[%s2] sm:$0xf]
      %4877 = vrot.lane.b32.xlu0 %v4860, 127
      %v4878 = vpop.permute.xlu0 %4877
      %4879 = vrot.lane.b32.xlu0 %v4861, 127
      %v4880 = vpop.permute.xlu0 %4879
      %4881 = vrot.lane.b32.xlu0 %v4862, 127
      %v4882 = vpop.permute.xlu0 %4881
      %4883 = vrot.lane.b32.xlu0 %v4863, 127
      %v4884 = vpop.permute.xlu0 %4883
      %4885 = vrot.lane.b32.xlu0 %v4864, 127
      %v4886 = vpop.permute.xlu0 %4885
      %4887 = vrot.lane.b32.xlu0 %v4865, 127
      %v4888 = vpop.permute.xlu0 %4887
      %4889 = vrot.lane.b32.xlu0 %v4866, 127
      %v4890 = vpop.permute.xlu0 %4889
      %4891 = vrot.lane.b32.xlu0 %v4867, 127
      %v4892 = vpop.permute.xlu0 %4891
      %v4901 = vrot.slane %v4886, 4
      %v4902 = vsel %vm446, %v4901, %v4878
      %v4903 = vrot.slane %v4878, 4
      %v4904 = vsel %vm446, %v4886, %v4903
      %v4906 = vunpack.c.l.s4 1983009808
      %v4907 = vunpack.c.0.s8 %v4906
      %v4908 = vperm.slane %v4902, %v4907
      %v4910 = vunpack.c.l.s4 1983009808
      %v4911 = vunpack.c.0.s8 %v4910
      %v4912 = vperm.slane %v4904, %v4911
      %v4913 = vrot.slane %v4890, 4
      %v4914 = vsel %vm446, %v4913, %v4882
      %v4915 = vrot.slane %v4882, 4
      %v4916 = vsel %vm446, %v4890, %v4915
      %v4918 = vunpack.c.l.s4 1983009808
      %v4919 = vunpack.c.0.s8 %v4918
      %v4920 = vperm.slane %v4914, %v4919
      %v4922 = vunpack.c.l.s4 1983009808
      %v4923 = vunpack.c.0.s8 %v4922
      %v4924 = vperm.slane %v4916, %v4923
      %v4925 = vrot.slane %v4920, 4
      %v4926 = vsel %vm446, %v4925, %v4908
      %v4927 = vrot.slane %v4908, 4
      %v4928 = vsel %vm446, %v4920, %v4927
      %v4930 = vunpack.c.l.s4 1934713408
      %v4931 = vunpack.c.0.s8 %v4930
      %v4932 = vperm.slane %v4926, %v4931
      %v4934 = vunpack.c.l.s4 1934713408
      %v4935 = vunpack.c.0.s8 %v4934
      %v4936 = vperm.slane %v4928, %v4935
      %v4937 = vrot.slane %v4924, 4
      %v4938 = vsel %vm446, %v4937, %v4912
      %v4939 = vrot.slane %v4912, 4
      %v4940 = vsel %vm446, %v4924, %v4939
      %v4942 = vunpack.c.l.s4 1934713408
      %v4943 = vunpack.c.0.s8 %v4942
      %v4944 = vperm.slane %v4938, %v4943
      %v4946 = vunpack.c.l.s4 1934713408
      %v4947 = vunpack.c.0.s8 %v4946
      %v4948 = vperm.slane %v4940, %v4947
      %v4949 = vrot.slane %v4932, 4
      %v4950 = vsel %vm446, 0.0, %v4949
      %v4951 = vrot.slane %v4936, 4
      %v4952 = vsel %vm446, 0.0, %v4951
      %v4953 = vrot.slane %v4944, 4
      %v4954 = vsel %vm446, 0.0, %v4953
      %v4955 = vrot.slane %v4948, 4
      %v4956 = vsel %vm446, 0.0, %v4955
      %v4957 = vrot.slane %v4888, 4
      %v4958 = vsel %vm446, %v4957, %v4880
      %v4959 = vrot.slane %v4880, 4
      %v4960 = vsel %vm446, %v4888, %v4959
      %v4962 = vunpack.c.l.s4 1983009808
      %v4963 = vunpack.c.0.s8 %v4962
      %v4964 = vperm.slane %v4958, %v4963
      %v4966 = vunpack.c.l.s4 1983009808
      %v4967 = vunpack.c.0.s8 %v4966
      %v4968 = vperm.slane %v4960, %v4967
      %v4969 = vrot.slane %v4892, 4
      %v4970 = vsel %vm446, %v4969, %v4884
      %v4971 = vrot.slane %v4884, 4
      %v4972 = vsel %vm446, %v4892, %v4971
      %v4974 = vunpack.c.l.s4 1983009808
      %v4975 = vunpack.c.0.s8 %v4974
      %v4976 = vperm.slane %v4970, %v4975
      %v4978 = vunpack.c.l.s4 1983009808
      %v4979 = vunpack.c.0.s8 %v4978
      %v4980 = vperm.slane %v4972, %v4979
      %v4981 = vrot.slane %v4976, 4
      %v4982 = vsel %vm446, %v4981, %v4964
      %v4983 = vrot.slane %v4964, 4
      %v4984 = vsel %vm446, %v4976, %v4983
      %v4986 = vunpack.c.l.s4 1934713408
      %v4987 = vunpack.c.0.s8 %v4986
      %v4988 = vperm.slane %v4982, %v4987
      %v4990 = vunpack.c.l.s4 1934713408
      %v4991 = vunpack.c.0.s8 %v4990
      %v4992 = vperm.slane %v4984, %v4991
      %v4993 = vrot.slane %v4980, 4
      %v4994 = vsel %vm446, %v4993, %v4968
      %v4995 = vrot.slane %v4968, 4
      %v4996 = vsel %vm446, %v4980, %v4995
      %v4998 = vunpack.c.l.s4 1934713408
      %v4999 = vunpack.c.0.s8 %v4998
      %v5000 = vperm.slane %v4994, %v4999
      %v5002 = vunpack.c.l.s4 1934713408
      %v5003 = vunpack.c.0.s8 %v5002
      %v5004 = vperm.slane %v4996, %v5003
      %v5005 = vrot.slane %v4988, 4
      %v5006 = vsel %vm446, 0.0, %v5005
      %v5007 = vrot.slane %v4992, 4
      %v5008 = vsel %vm446, 0.0, %v5007
      %v5009 = vrot.slane %v5000, 4
      %v5010 = vsel %vm446, 0.0, %v5009
      %v5011 = vrot.slane %v5004, 4
      %v5012 = vsel %vm446, 0.0, %v5011
      %5014 = vrot.lane.b32.xlu0 %v4950, 16
      %v5015 = vpop.permute.xlu0 %5014
      %5018 = vrot.lane.b32.xlu0 %v4936, 32
      %v5019 = vpop.permute.xlu0 %5018
      %5022 = vrot.lane.b32.xlu0 %v4952, 48
      %v5023 = vpop.permute.xlu0 %5022
      %5026 = vrot.lane.b32.xlu0 %v4944, 64
      %v5027 = vpop.permute.xlu0 %5026
      %5030 = vrot.lane.b32.xlu0 %v4954, 80
      %v5031 = vpop.permute.xlu0 %5030
      %5034 = vrot.lane.b32.xlu0 %v4948, 96
      %v5035 = vpop.permute.xlu0 %5034
      %5038 = vrot.lane.b32.xlu0 %v4956, 112
      %v5039 = vpop.permute.xlu0 %5038
      %5042 = vrot.lane.b32.xlu0 %v5006, 16
      %v5043 = vpop.permute.xlu0 %5042
      %5046 = vrot.lane.b32.xlu0 %v4992, 32
      %v5047 = vpop.permute.xlu0 %5046
      %5050 = vrot.lane.b32.xlu0 %v5008, 48
      %v5051 = vpop.permute.xlu0 %5050
      %5054 = vrot.lane.b32.xlu0 %v5000, 64
      %v5055 = vpop.permute.xlu0 %5054
      %5058 = vrot.lane.b32.xlu0 %v5010, 80
      %v5059 = vpop.permute.xlu0 %5058
      %5062 = vrot.lane.b32.xlu0 %v5004, 96
      %v5063 = vpop.permute.xlu0 %5062
      %5066 = vrot.lane.b32.xlu0 %v5012, 112
      %v5067 = vpop.permute.xlu0 %5066
      %v5069 = vsel %vm614, %v4932, %v5015
      %v5070 = vsel %vm616, %v5069, %v5019
      %v5071 = vsel %vm618, %v5070, %v5023
      %v5072 = vsel %vm620, %v5071, %v5027
      %v5073 = vsel %vm622, %v5072, %v5031
      %v5074 = vsel %vm624, %v5073, %v5035
      %v5075 = vsel %vm626, %v5074, %v5039
      %v5076 = vsel %vm614, %v4988, %v5043
      %v5077 = vsel %vm616, %v5076, %v5047
      %v5078 = vsel %vm618, %v5077, %v5051
      %v5079 = vsel %vm620, %v5078, %v5055
      %v5080 = vsel %vm622, %v5079, %v5059
      %v5081 = vsel %vm624, %v5080, %v5063
      %v5082 = vsel %vm626, %v5081, %v5067
      %5084 = vrot.lane.b32.xlu0 %v4868, 100
      %v5085 = vpop.permute.xlu0 %5084
      %v5086 = vsel %vm852, %v5085, 0
      %v5089 = vsel %vm855, %v5075, 0
      %v5092 = vsel %vm855, %v5082, 0
      %5094 = vmatpush.msra.mxu0 0.0
      %5095 = vmatpush.msra.mxu0 0.0
      %5096 = vmatpush.msra.mxu0 0.0
      %5097 = vmatpush.msra.mxu0 0.0
      %5098 = vmatpush.msra.mxu0 0.0
      %5099 = vmatpush.msra.mxu0 0.0
      %5100 = vmatpush.msra.mxu0 0.0
      %5101 = vmatpush.msra.mxu0 0.0
      %5102 = vmatpush.msra.mxu0 0.0
      %5103 = vmatpush.msra.mxu0 0.0
      %5104 = vmatpush.msra.mxu0 0.0
      %5105 = vmatpush.msra.mxu0 0.0
      %5106 = vmatpush.msra.mxu0 0.0
      %5107 = vmatpush.msra.mxu0 0.0
      %5108 = vmatpush.msra.mxu0 0.0
      %5109 = vmatpush.msra.mxu0 %v5089
      %5110 = vmatmul.f32.gmra.mxu0 %v5086
      %v5111 = vpop.f32.mrf.mxu0
      %v5112 = vadd.f32 0.0, %v5111
      %5113 = vdwg.mxu0
      %5114 = vmatpush.msra.mxu0 0.0
      %5115 = vmatpush.msra.mxu0 0.0
      %5116 = vmatpush.msra.mxu0 0.0
      %5117 = vmatpush.msra.mxu0 0.0
      %5118 = vmatpush.msra.mxu0 0.0
      %5119 = vmatpush.msra.mxu0 0.0
      %5120 = vmatpush.msra.mxu0 0.0
      %5121 = vmatpush.msra.mxu0 0.0
      %5122 = vmatpush.msra.mxu0 0.0
      %5123 = vmatpush.msra.mxu0 0.0
      %5124 = vmatpush.msra.mxu0 0.0
      %5125 = vmatpush.msra.mxu0 0.0
      %5126 = vmatpush.msra.mxu0 0.0
      %5127 = vmatpush.msra.mxu0 0.0
      %5128 = vmatpush.msra.mxu0 0.0
      %5129 = vmatpush.msra.mxu0 %v5092
      %5130 = vmatmul.f32.gmra.mxu0 %v5086
      %v5131 = vpop.f32.mrf.mxu0
      %v5132 = vadd.f32 0.0, %v5131
      %5133 = vdwg.mxu0
      %v5134 = vadd.f32 %v4858, %v5112
      %v5135 = vadd.f32 %v4859, %v5132
      %v5136 = vld [vmem:[#allocation3 + $0x2] sm:$0xff]
      %v5137 = vld [vmem:[#allocation3 + $0xa] sm:$0xff]
      %v5138 = vld [vmem:[#allocation3 + $0x1a] sm:$0xff]
      %v5139 = vld [vmem:[#allocation3 + $0x22] sm:$0xff]
      %v5140 = vld [vmem:[#allocation3 + $0x32] sm:$0xff]
      %v5141 = vld [vmem:[#allocation3 + $0x3a] sm:$0xff]
      %v5142 = vld [vmem:[#allocation3 + $0x4a] sm:$0xff]
      %v5143 = vld [vmem:[#allocation3 + $0x52] sm:$0xff]
      %v5144 = vld [vmem:[%s2] sm:$0xf]
      %5153 = vrot.lane.b32.xlu0 %v5136, 126
      %v5154 = vpop.permute.xlu0 %5153
      %5155 = vrot.lane.b32.xlu0 %v5137, 126
      %v5156 = vpop.permute.xlu0 %5155
      %5157 = vrot.lane.b32.xlu0 %v5138, 126
      %v5158 = vpop.permute.xlu0 %5157
      %5159 = vrot.lane.b32.xlu0 %v5139, 126
      %v5160 = vpop.permute.xlu0 %5159
      %5161 = vrot.lane.b32.xlu0 %v5140, 126
      %v5162 = vpop.permute.xlu0 %5161
      %5163 = vrot.lane.b32.xlu0 %v5141, 126
      %v5164 = vpop.permute.xlu0 %5163
      %5165 = vrot.lane.b32.xlu0 %v5142, 126
      %v5166 = vpop.permute.xlu0 %5165
      %5167 = vrot.lane.b32.xlu0 %v5143, 126
      %v5168 = vpop.permute.xlu0 %5167
      %v5177 = vrot.slane %v5162, 4
      %v5178 = vsel %vm446, %v5177, %v5154
      %v5179 = vrot.slane %v5154, 4
      %v5180 = vsel %vm446, %v5162, %v5179
      %v5182 = vunpack.c.l.s4 1983009808
      %v5183 = vunpack.c.0.s8 %v5182
      %v5184 = vperm.slane %v5178, %v5183
      %v5186 = vunpack.c.l.s4 1983009808
      %v5187 = vunpack.c.0.s8 %v5186
      %v5188 = vperm.slane %v5180, %v5187
      %v5189 = vrot.slane %v5166, 4
      %v5190 = vsel %vm446, %v5189, %v5158
      %v5191 = vrot.slane %v5158, 4
      %v5192 = vsel %vm446, %v5166, %v5191
      %v5194 = vunpack.c.l.s4 1983009808
      %v5195 = vunpack.c.0.s8 %v5194
      %v5196 = vperm.slane %v5190, %v5195
      %v5198 = vunpack.c.l.s4 1983009808
      %v5199 = vunpack.c.0.s8 %v5198
      %v5200 = vperm.slane %v5192, %v5199
      %v5201 = vrot.slane %v5196, 4
      %v5202 = vsel %vm446, %v5201, %v5184
      %v5203 = vrot.slane %v5184, 4
      %v5204 = vsel %vm446, %v5196, %v5203
      %v5206 = vunpack.c.l.s4 1934713408
      %v5207 = vunpack.c.0.s8 %v5206
      %v5208 = vperm.slane %v5202, %v5207
      %v5210 = vunpack.c.l.s4 1934713408
      %v5211 = vunpack.c.0.s8 %v5210
      %v5212 = vperm.slane %v5204, %v5211
      %v5213 = vrot.slane %v5200, 4
      %v5214 = vsel %vm446, %v5213, %v5188
      %v5215 = vrot.slane %v5188, 4
      %v5216 = vsel %vm446, %v5200, %v5215
      %v5218 = vunpack.c.l.s4 1934713408
      %v5219 = vunpack.c.0.s8 %v5218
      %v5220 = vperm.slane %v5214, %v5219
      %v5222 = vunpack.c.l.s4 1934713408
      %v5223 = vunpack.c.0.s8 %v5222
      %v5224 = vperm.slane %v5216, %v5223
      %v5225 = vrot.slane %v5208, 4
      %v5226 = vsel %vm446, 0.0, %v5225
      %v5227 = vrot.slane %v5212, 4
      %v5228 = vsel %vm446, 0.0, %v5227
      %v5229 = vrot.slane %v5220, 4
      %v5230 = vsel %vm446, 0.0, %v5229
      %v5231 = vrot.slane %v5224, 4
      %v5232 = vsel %vm446, 0.0, %v5231
      %v5233 = vrot.slane %v5164, 4
      %v5234 = vsel %vm446, %v5233, %v5156
      %v5235 = vrot.slane %v5156, 4
      %v5236 = vsel %vm446, %v5164, %v5235
      %v5238 = vunpack.c.l.s4 1983009808
      %v5239 = vunpack.c.0.s8 %v5238
      %v5240 = vperm.slane %v5234, %v5239
      %v5242 = vunpack.c.l.s4 1983009808
      %v5243 = vunpack.c.0.s8 %v5242
      %v5244 = vperm.slane %v5236, %v5243
      %v5245 = vrot.slane %v5168, 4
      %v5246 = vsel %vm446, %v5245, %v5160
      %v5247 = vrot.slane %v5160, 4
      %v5248 = vsel %vm446, %v5168, %v5247
      %v5250 = vunpack.c.l.s4 1983009808
      %v5251 = vunpack.c.0.s8 %v5250
      %v5252 = vperm.slane %v5246, %v5251
      %v5254 = vunpack.c.l.s4 1983009808
      %v5255 = vunpack.c.0.s8 %v5254
      %v5256 = vperm.slane %v5248, %v5255
      %v5257 = vrot.slane %v5252, 4
      %v5258 = vsel %vm446, %v5257, %v5240
      %v5259 = vrot.slane %v5240, 4
      %v5260 = vsel %vm446, %v5252, %v5259
      %v5262 = vunpack.c.l.s4 1934713408
      %v5263 = vunpack.c.0.s8 %v5262
      %v5264 = vperm.slane %v5258, %v5263
      %v5266 = vunpack.c.l.s4 1934713408
      %v5267 = vunpack.c.0.s8 %v5266
      %v5268 = vperm.slane %v5260, %v5267
      %v5269 = vrot.slane %v5256, 4
      %v5270 = vsel %vm446, %v5269, %v5244
      %v5271 = vrot.slane %v5244, 4
      %v5272 = vsel %vm446, %v5256, %v5271
      %v5274 = vunpack.c.l.s4 1934713408
      %v5275 = vunpack.c.0.s8 %v5274
      %v5276 = vperm.slane %v5270, %v5275
      %v5278 = vunpack.c.l.s4 1934713408
      %v5279 = vunpack.c.0.s8 %v5278
      %v5280 = vperm.slane %v5272, %v5279
      %v5281 = vrot.slane %v5264, 4
      %v5282 = vsel %vm446, 0.0, %v5281
      %v5283 = vrot.slane %v5268, 4
      %v5284 = vsel %vm446, 0.0, %v5283
      %v5285 = vrot.slane %v5276, 4
      %v5286 = vsel %vm446, 0.0, %v5285
      %v5287 = vrot.slane %v5280, 4
      %v5288 = vsel %vm446, 0.0, %v5287
      %5290 = vrot.lane.b32.xlu0 %v5226, 16
      %v5291 = vpop.permute.xlu0 %5290
      %5294 = vrot.lane.b32.xlu0 %v5212, 32
      %v5295 = vpop.permute.xlu0 %5294
      %5298 = vrot.lane.b32.xlu0 %v5228, 48
      %v5299 = vpop.permute.xlu0 %5298
      %5302 = vrot.lane.b32.xlu0 %v5220, 64
      %v5303 = vpop.permute.xlu0 %5302
      %5306 = vrot.lane.b32.xlu0 %v5230, 80
      %v5307 = vpop.permute.xlu0 %5306
      %5310 = vrot.lane.b32.xlu0 %v5224, 96
      %v5311 = vpop.permute.xlu0 %5310
      %5314 = vrot.lane.b32.xlu0 %v5232, 112
      %v5315 = vpop.permute.xlu0 %5314
      %5318 = vrot.lane.b32.xlu0 %v5282, 16
      %v5319 = vpop.permute.xlu0 %5318
      %5322 = vrot.lane.b32.xlu0 %v5268, 32
      %v5323 = vpop.permute.xlu0 %5322
      %5326 = vrot.lane.b32.xlu0 %v5284, 48
      %v5327 = vpop.permute.xlu0 %5326
      %5330 = vrot.lane.b32.xlu0 %v5276, 64
      %v5331 = vpop.permute.xlu0 %5330
      %5334 = vrot.lane.b32.xlu0 %v5286, 80
      %v5335 = vpop.permute.xlu0 %5334
      %5338 = vrot.lane.b32.xlu0 %v5280, 96
      %v5339 = vpop.permute.xlu0 %5338
      %5342 = vrot.lane.b32.xlu0 %v5288, 112
      %v5343 = vpop.permute.xlu0 %5342
      %v5345 = vsel %vm614, %v5208, %v5291
      %v5346 = vsel %vm616, %v5345, %v5295
      %v5347 = vsel %vm618, %v5346, %v5299
      %v5348 = vsel %vm620, %v5347, %v5303
      %v5349 = vsel %vm622, %v5348, %v5307
      %v5350 = vsel %vm624, %v5349, %v5311
      %v5351 = vsel %vm626, %v5350, %v5315
      %v5352 = vsel %vm614, %v5264, %v5319
      %v5353 = vsel %vm616, %v5352, %v5323
      %v5354 = vsel %vm618, %v5353, %v5327
      %v5355 = vsel %vm620, %v5354, %v5331
      %v5356 = vsel %vm622, %v5355, %v5335
      %v5357 = vsel %vm624, %v5356, %v5339
      %v5358 = vsel %vm626, %v5357, %v5343
      %5360 = vrot.lane.b32.xlu0 %v5144, 96
      %v5361 = vpop.permute.xlu0 %5360
      %v5362 = vsel %vm852, %v5361, 0
      %v5365 = vsel %vm855, %v5351, 0
      %v5368 = vsel %vm855, %v5358, 0
      %5370 = vmatpush.msra.mxu0 0.0
      %5371 = vmatpush.msra.mxu0 0.0
      %5372 = vmatpush.msra.mxu0 0.0
      %5373 = vmatpush.msra.mxu0 0.0
      %5374 = vmatpush.msra.mxu0 0.0
      %5375 = vmatpush.msra.mxu0 0.0
      %5376 = vmatpush.msra.mxu0 0.0
      %5377 = vmatpush.msra.mxu0 0.0
      %5378 = vmatpush.msra.mxu0 0.0
      %5379 = vmatpush.msra.mxu0 0.0
      %5380 = vmatpush.msra.mxu0 0.0
      %5381 = vmatpush.msra.mxu0 0.0
      %5382 = vmatpush.msra.mxu0 0.0
      %5383 = vmatpush.msra.mxu0 0.0
      %5384 = vmatpush.msra.mxu0 0.0
      %5385 = vmatpush.msra.mxu0 %v5365
      %5386 = vmatmul.f32.gmra.mxu0 %v5362
      %v5387 = vpop.f32.mrf.mxu0
      %v5388 = vadd.f32 0.0, %v5387
      %5389 = vdwg.mxu0
      %5390 = vmatpush.msra.mxu0 0.0
      %5391 = vmatpush.msra.mxu0 0.0
      %5392 = vmatpush.msra.mxu0 0.0
      %5393 = vmatpush.msra.mxu0 0.0
      %5394 = vmatpush.msra.mxu0 0.0
      %5395 = vmatpush.msra.mxu0 0.0
      %5396 = vmatpush.msra.mxu0 0.0
      %5397 = vmatpush.msra.mxu0 0.0
      %5398 = vmatpush.msra.mxu0 0.0
      %5399 = vmatpush.msra.mxu0 0.0
      %5400 = vmatpush.msra.mxu0 0.0
      %5401 = vmatpush.msra.mxu0 0.0
      %5402 = vmatpush.msra.mxu0 0.0
      %5403 = vmatpush.msra.mxu0 0.0
      %5404 = vmatpush.msra.mxu0 0.0
      %5405 = vmatpush.msra.mxu0 %v5368
      %5406 = vmatmul.f32.gmra.mxu0 %v5362
      %v5407 = vpop.f32.mrf.mxu0
      %v5408 = vadd.f32 0.0, %v5407
      %5409 = vdwg.mxu0
      %v5410 = vadd.f32 %v5134, %v5388
      %v5411 = vadd.f32 %v5135, %v5408
      %v5412 = vmax.f32 %v5410, 0.0
      %v5413 = vmax.f32 %v5411, 0.0
      %5415 = vrot.lane.b32.xlu0 %v5412, 112
      %v5416 = vpop.permute.xlu0 %5415
      %5418 = vrot.lane.b32.xlu0 %v5412, 96
      %v5419 = vpop.permute.xlu0 %5418
      %5421 = vrot.lane.b32.xlu0 %v5412, 80
      %v5422 = vpop.permute.xlu0 %5421
      %5424 = vrot.lane.b32.xlu0 %v5412, 64
      %v5425 = vpop.permute.xlu0 %5424
      %5427 = vrot.lane.b32.xlu0 %v5412, 48
      %v5428 = vpop.permute.xlu0 %5427
      %5430 = vrot.lane.b32.xlu0 %v5412, 32
      %v5431 = vpop.permute.xlu0 %5430
      %5433 = vrot.lane.b32.xlu0 %v5412, 16
      %v5434 = vpop.permute.xlu0 %5433
      %5437 = vrot.lane.b32.xlu0 %v5413, 112
      %v5438 = vpop.permute.xlu0 %5437
      %5440 = vrot.lane.b32.xlu0 %v5413, 96
      %v5441 = vpop.permute.xlu0 %5440
      %5443 = vrot.lane.b32.xlu0 %v5413, 80
      %v5444 = vpop.permute.xlu0 %5443
      %5446 = vrot.lane.b32.xlu0 %v5413, 64
      %v5447 = vpop.permute.xlu0 %5446
      %5449 = vrot.lane.b32.xlu0 %v5413, 48
      %v5450 = vpop.permute.xlu0 %5449
      %5452 = vrot.lane.b32.xlu0 %v5413, 32
      %v5453 = vpop.permute.xlu0 %5452
      %5455 = vrot.lane.b32.xlu0 %v5413, 16
      %v5456 = vpop.permute.xlu0 %5455
      %v5458 = vrot.slane %v5419, 4
      %v5459 = vsel %vm446, %v5458, %v5412
      %v5461 = vunpack.c.l.s4 1983009808
      %v5462 = vunpack.c.0.s8 %v5461
      %v5463 = vperm.slane %v5459, %v5462
      %v5464 = vrot.slane %v5422, 4
      %v5465 = vsel %vm446, %v5464, %v5416
      %v5467 = vunpack.c.l.s4 1983009808
      %v5468 = vunpack.c.0.s8 %v5467
      %v5469 = vperm.slane %v5465, %v5468
      %v5470 = vrot.slane %v5431, 4
      %v5471 = vsel %vm446, %v5470, %v5425
      %v5473 = vunpack.c.l.s4 1983009808
      %v5474 = vunpack.c.0.s8 %v5473
      %v5475 = vperm.slane %v5471, %v5474
      %v5476 = vrot.slane %v5434, 4
      %v5477 = vsel %vm446, %v5476, %v5428
      %v5479 = vunpack.c.l.s4 1983009808
      %v5480 = vunpack.c.0.s8 %v5479
      %v5481 = vperm.slane %v5477, %v5480
      %v5482 = vrot.slane %v5469, 4
      %v5483 = vsel %vm446, %v5482, %v5463
      %v5484 = vrot.slane %v5463, 4
      %v5485 = vsel %vm446, %v5469, %v5484
      %v5487 = vunpack.c.l.s4 1934713408
      %v5488 = vunpack.c.0.s8 %v5487
      %v5489 = vperm.slane %v5483, %v5488
      %v5491 = vunpack.c.l.s4 1934713408
      %v5492 = vunpack.c.0.s8 %v5491
      %v5493 = vperm.slane %v5485, %v5492
      %v5494 = vrot.slane %v5481, 4
      %v5495 = vsel %vm446, %v5494, %v5475
      %v5496 = vrot.slane %v5475, 4
      %v5497 = vsel %vm446, %v5481, %v5496
      %v5499 = vunpack.c.l.s4 1934713408
      %v5500 = vunpack.c.0.s8 %v5499
      %v5501 = vperm.slane %v5495, %v5500
      %v5503 = vunpack.c.l.s4 1934713408
      %v5504 = vunpack.c.0.s8 %v5503
      %v5505 = vperm.slane %v5497, %v5504
      %v5506 = vrot.slane %v5501, 4
      %v5507 = vsel %vm446, %v5506, %v5489
      %v5508 = vrot.slane %v5489, 4
      %v5509 = vsel %vm446, %v5501, %v5508
      %v5510 = vrot.slane %v5505, 4
      %v5511 = vsel %vm446, %v5510, %v5493
      %v5512 = vrot.slane %v5493, 4
      %v5513 = vsel %vm446, %v5505, %v5512
      %v5514 = vrot.slane %v5441, 4
      %v5515 = vsel %vm446, %v5514, %v5413
      %v5517 = vunpack.c.l.s4 1983009808
      %v5518 = vunpack.c.0.s8 %v5517
      %v5519 = vperm.slane %v5515, %v5518
      %v5520 = vrot.slane %v5444, 4
      %v5521 = vsel %vm446, %v5520, %v5438
      %v5523 = vunpack.c.l.s4 1983009808
      %v5524 = vunpack.c.0.s8 %v5523
      %v5525 = vperm.slane %v5521, %v5524
      %v5526 = vrot.slane %v5453, 4
      %v5527 = vsel %vm446, %v5526, %v5447
      %v5529 = vunpack.c.l.s4 1983009808
      %v5530 = vunpack.c.0.s8 %v5529
      %v5531 = vperm.slane %v5527, %v5530
      %v5532 = vrot.slane %v5456, 4
      %v5533 = vsel %vm446, %v5532, %v5450
      %v5535 = vunpack.c.l.s4 1983009808
      %v5536 = vunpack.c.0.s8 %v5535
      %v5537 = vperm.slane %v5533, %v5536
      %v5538 = vrot.slane %v5525, 4
      %v5539 = vsel %vm446, %v5538, %v5519
      %v5540 = vrot.slane %v5519, 4
      %v5541 = vsel %vm446, %v5525, %v5540
      %v5543 = vunpack.c.l.s4 1934713408
      %v5544 = vunpack.c.0.s8 %v5543
      %v5545 = vperm.slane %v5539, %v5544
      %v5547 = vunpack.c.l.s4 1934713408
      %v5548 = vunpack.c.0.s8 %v5547
      %v5549 = vperm.slane %v5541, %v5548
      %v5550 = vrot.slane %v5537, 4
      %v5551 = vsel %vm446, %v5550, %v5531
      %v5552 = vrot.slane %v5531, 4
      %v5553 = vsel %vm446, %v5537, %v5552
      %v5555 = vunpack.c.l.s4 1934713408
      %v5556 = vunpack.c.0.s8 %v5555
      %v5557 = vperm.slane %v5551, %v5556
      %v5559 = vunpack.c.l.s4 1934713408
      %v5560 = vunpack.c.0.s8 %v5559
      %v5561 = vperm.slane %v5553, %v5560
      %v5562 = vrot.slane %v5557, 4
      %v5563 = vsel %vm446, %v5562, %v5545
      %v5564 = vrot.slane %v5545, 4
      %v5565 = vsel %vm446, %v5557, %v5564
      %v5566 = vrot.slane %v5561, 4
      %v5567 = vsel %vm446, %v5566, %v5549
      %v5568 = vrot.slane %v5549, 4
      %v5569 = vsel %vm446, %v5561, %v5568
      %5570 = vst.msk [vmem:[#allocation3] sm:$0x1] %vm297, 0.0
      %5571 = vst.msk [vmem:[#allocation3 + $0x18] sm:$0x1] %vm297, 0.0
      %5572 = vst.msk [vmem:[#allocation3 + $0x30] sm:$0x1] %vm297, 0.0
      %5573 = vst.msk [vmem:[#allocation3 + $0x48] sm:$0x1] %vm297, 0.0
      %5574 = vst.msk [vmem:[#allocation3 + $0x11] sm:$0x1] %vm297, 0.0
      %5575 = vst.msk [vmem:[#allocation3 + $0x29] sm:$0x1] %vm297, 0.0
      %5576 = vst.msk [vmem:[#allocation3 + $0x41] sm:$0x1] %vm297, 0.0
      %5577 = vst.msk [vmem:[#allocation3 + $0x59] sm:$0x1] %vm297, 0.0
      %5578 = vst.msk [vmem:[#allocation3 + $0x1] sm:$0xff] %vm306, 0.0
      %5579 = vst.msk [vmem:[#allocation3 + $0x9] sm:$0xff] %vm306, 0.0
      %5580 = vst.msk [vmem:[#allocation3 + $0x19] sm:$0xff] %vm306, 0.0
      %5581 = vst.msk [vmem:[#allocation3 + $0x21] sm:$0xff] %vm306, 0.0
      %5582 = vst.msk [vmem:[#allocation3 + $0x31] sm:$0xff] %vm306, 0.0
      %5583 = vst.msk [vmem:[#allocation3 + $0x39] sm:$0xff] %vm306, 0.0
      %5584 = vst.msk [vmem:[#allocation3 + $0x49] sm:$0xff] %vm306, 0.0
      %5585 = vst.msk [vmem:[#allocation3 + $0x51] sm:$0xff] %vm306, 0.0
      %5586 = vst.msk [vmem:[#allocation3 + $0x1] sm:$0xff] %vm315, 0.0
      %5587 = vst.msk [vmem:[#allocation3 + $0x9] sm:$0xff] %vm315, 0.0
      %5588 = vst.msk [vmem:[#allocation3 + $0x19] sm:$0xff] %vm315, 0.0
      %5589 = vst.msk [vmem:[#allocation3 + $0x21] sm:$0xff] %vm315, 0.0
      %5590 = vst.msk [vmem:[#allocation3 + $0x31] sm:$0xff] %vm315, 0.0
      %5591 = vst.msk [vmem:[#allocation3 + $0x39] sm:$0xff] %vm315, 0.0
      %5592 = vst.msk [vmem:[#allocation3 + $0x49] sm:$0xff] %vm315, 0.0
      %5593 = vst.msk [vmem:[#allocation3 + $0x51] sm:$0xff] %vm315, 0.0
      %5602 = vrot.lane.b32.xlu0 %v5507, 1
      %v5603 = vpop.permute.xlu0 %5602
      %5604 = vrot.lane.b32.xlu0 %v5563, 1
      %v5605 = vpop.permute.xlu0 %5604
      %5606 = vrot.lane.b32.xlu0 %v5509, 1
      %v5607 = vpop.permute.xlu0 %5606
      %5608 = vrot.lane.b32.xlu0 %v5565, 1
      %v5609 = vpop.permute.xlu0 %5608
      %5610 = vrot.lane.b32.xlu0 %v5511, 1
      %v5611 = vpop.permute.xlu0 %5610
      %5612 = vrot.lane.b32.xlu0 %v5567, 1
      %v5613 = vpop.permute.xlu0 %5612
      %5614 = vrot.lane.b32.xlu0 %v5513, 1
      %v5615 = vpop.permute.xlu0 %5614
      %5616 = vrot.lane.b32.xlu0 %v5569, 1
      %v5617 = vpop.permute.xlu0 %5616
      %5626 = vst.msk [vmem:[#allocation3 + $0x1] sm:$0xff] %vm427, %v5603
      %5627 = vst.msk [vmem:[#allocation3 + $0x9] sm:$0xff] %vm427, %v5605
      %5628 = vst.msk [vmem:[#allocation3 + $0x19] sm:$0xff] %vm427, %v5607
      %5629 = vst.msk [vmem:[#allocation3 + $0x21] sm:$0xff] %vm427, %v5609
      %5630 = vst.msk [vmem:[#allocation3 + $0x31] sm:$0xff] %vm427, %v5611
      %5631 = vst.msk [vmem:[#allocation3 + $0x39] sm:$0xff] %vm427, %v5613
      %5632 = vst.msk [vmem:[#allocation3 + $0x49] sm:$0xff] %vm427, %v5615
      %5633 = vst.msk [vmem:[#allocation3 + $0x51] sm:$0xff] %vm427, %v5617
      %v5634 = vld [vmem:[#allocation3] sm:$0xff]
      %v5635 = vld [vmem:[#allocation3 + $0x8] sm:$0xff]
      %v5636 = vld [vmem:[#allocation3 + $0x18] sm:$0xff]
      %v5637 = vld [vmem:[#allocation3 + $0x20] sm:$0xff]
      %v5638 = vld [vmem:[#allocation3 + $0x30] sm:$0xff]
      %v5639 = vld [vmem:[#allocation3 + $0x38] sm:$0xff]
      %v5640 = vld [vmem:[#allocation3 + $0x48] sm:$0xff]
      %v5641 = vld [vmem:[#allocation3 + $0x50] sm:$0xff]
      %v5642 = vld [vmem:[%s3] sm:$0xf]
      %v5643 = vrot.slane %v5638, 4
      %v5644 = vsel %vm446, %v5643, %v5634
      %v5645 = vrot.slane %v5634, 4
      %v5646 = vsel %vm446, %v5638, %v5645
      %v5648 = vunpack.c.l.s4 1983009808
      %v5649 = vunpack.c.0.s8 %v5648
      %v5650 = vperm.slane %v5644, %v5649
      %v5652 = vunpack.c.l.s4 1983009808
      %v5653 = vunpack.c.0.s8 %v5652
      %v5654 = vperm.slane %v5646, %v5653
      %v5655 = vrot.slane %v5640, 4
      %v5656 = vsel %vm446, %v5655, %v5636
      %v5657 = vrot.slane %v5636, 4
      %v5658 = vsel %vm446, %v5640, %v5657
      %v5660 = vunpack.c.l.s4 1983009808
      %v5661 = vunpack.c.0.s8 %v5660
      %v5662 = vperm.slane %v5656, %v5661
      %v5664 = vunpack.c.l.s4 1983009808
      %v5665 = vunpack.c.0.s8 %v5664
      %v5666 = vperm.slane %v5658, %v5665
      %v5667 = vrot.slane %v5662, 4
      %v5668 = vsel %vm446, %v5667, %v5650
      %v5669 = vrot.slane %v5650, 4
      %v5670 = vsel %vm446, %v5662, %v5669
      %v5672 = vunpack.c.l.s4 1934713408
      %v5673 = vunpack.c.0.s8 %v5672
      %v5674 = vperm.slane %v5668, %v5673
      %v5676 = vunpack.c.l.s4 1934713408
      %v5677 = vunpack.c.0.s8 %v5676
      %v5678 = vperm.slane %v5670, %v5677
      %v5679 = vrot.slane %v5666, 4
      %v5680 = vsel %vm446, %v5679, %v5654
      %v5681 = vrot.slane %v5654, 4
      %v5682 = vsel %vm446, %v5666, %v5681
      %v5684 = vunpack.c.l.s4 1934713408
      %v5685 = vunpack.c.0.s8 %v5684
      %v5686 = vperm.slane %v5680, %v5685
      %v5688 = vunpack.c.l.s4 1934713408
      %v5689 = vunpack.c.0.s8 %v5688
      %v5690 = vperm.slane %v5682, %v5689
      %v5691 = vrot.slane %v5674, 4
      %v5692 = vsel %vm446, 0.0, %v5691
      %v5693 = vrot.slane %v5678, 4
      %v5694 = vsel %vm446, 0.0, %v5693
      %v5695 = vrot.slane %v5686, 4
      %v5696 = vsel %vm446, 0.0, %v5695
      %v5697 = vrot.slane %v5690, 4
      %v5698 = vsel %vm446, 0.0, %v5697
      %v5699 = vrot.slane %v5639, 4
      %v5700 = vsel %vm446, %v5699, %v5635
      %v5701 = vrot.slane %v5635, 4
      %v5702 = vsel %vm446, %v5639, %v5701
      %v5704 = vunpack.c.l.s4 1983009808
      %v5705 = vunpack.c.0.s8 %v5704
      %v5706 = vperm.slane %v5700, %v5705
      %v5708 = vunpack.c.l.s4 1983009808
      %v5709 = vunpack.c.0.s8 %v5708
      %v5710 = vperm.slane %v5702, %v5709
      %v5711 = vrot.slane %v5641, 4
      %v5712 = vsel %vm446, %v5711, %v5637
      %v5713 = vrot.slane %v5637, 4
      %v5714 = vsel %vm446, %v5641, %v5713
      %v5716 = vunpack.c.l.s4 1983009808
      %v5717 = vunpack.c.0.s8 %v5716
      %v5718 = vperm.slane %v5712, %v5717
      %v5720 = vunpack.c.l.s4 1983009808
      %v5721 = vunpack.c.0.s8 %v5720
      %v5722 = vperm.slane %v5714, %v5721
      %v5723 = vrot.slane %v5718, 4
      %v5724 = vsel %vm446, %v5723, %v5706
      %v5725 = vrot.slane %v5706, 4
      %v5726 = vsel %vm446, %v5718, %v5725
      %v5728 = vunpack.c.l.s4 1934713408
      %v5729 = vunpack.c.0.s8 %v5728
      %v5730 = vperm.slane %v5724, %v5729
      %v5732 = vunpack.c.l.s4 1934713408
      %v5733 = vunpack.c.0.s8 %v5732
      %v5734 = vperm.slane %v5726, %v5733
      %v5735 = vrot.slane %v5722, 4
      %v5736 = vsel %vm446, %v5735, %v5710
      %v5737 = vrot.slane %v5710, 4
      %v5738 = vsel %vm446, %v5722, %v5737
      %v5740 = vunpack.c.l.s4 1934713408
      %v5741 = vunpack.c.0.s8 %v5740
      %v5742 = vperm.slane %v5736, %v5741
      %v5744 = vunpack.c.l.s4 1934713408
      %v5745 = vunpack.c.0.s8 %v5744
      %v5746 = vperm.slane %v5738, %v5745
      %v5747 = vrot.slane %v5730, 4
      %v5748 = vsel %vm446, 0.0, %v5747
      %v5749 = vrot.slane %v5734, 4
      %v5750 = vsel %vm446, 0.0, %v5749
      %v5751 = vrot.slane %v5742, 4
      %v5752 = vsel %vm446, 0.0, %v5751
      %v5753 = vrot.slane %v5746, 4
      %v5754 = vsel %vm446, 0.0, %v5753
      %5756 = vrot.lane.b32.xlu0 %v5692, 16
      %v5757 = vpop.permute.xlu0 %5756
      %5760 = vrot.lane.b32.xlu0 %v5678, 32
      %v5761 = vpop.permute.xlu0 %5760
      %5764 = vrot.lane.b32.xlu0 %v5694, 48
      %v5765 = vpop.permute.xlu0 %5764
      %5768 = vrot.lane.b32.xlu0 %v5686, 64
      %v5769 = vpop.permute.xlu0 %5768
      %5772 = vrot.lane.b32.xlu0 %v5696, 80
      %v5773 = vpop.permute.xlu0 %5772
      %5776 = vrot.lane.b32.xlu0 %v5690, 96
      %v5777 = vpop.permute.xlu0 %5776
      %5780 = vrot.lane.b32.xlu0 %v5698, 112
      %v5781 = vpop.permute.xlu0 %5780
      %5784 = vrot.lane.b32.xlu0 %v5748, 16
      %v5785 = vpop.permute.xlu0 %5784
      %5788 = vrot.lane.b32.xlu0 %v5734, 32
      %v5789 = vpop.permute.xlu0 %5788
      %5792 = vrot.lane.b32.xlu0 %v5750, 48
      %v5793 = vpop.permute.xlu0 %5792
      %5796 = vrot.lane.b32.xlu0 %v5742, 64
      %v5797 = vpop.permute.xlu0 %5796
      %5800 = vrot.lane.b32.xlu0 %v5752, 80
      %v5801 = vpop.permute.xlu0 %5800
      %5804 = vrot.lane.b32.xlu0 %v5746, 96
      %v5805 = vpop.permute.xlu0 %5804
      %5808 = vrot.lane.b32.xlu0 %v5754, 112
      %v5809 = vpop.permute.xlu0 %5808
      %v5811 = vsel %vm614, %v5674, %v5757
      %v5812 = vsel %vm616, %v5811, %v5761
      %v5813 = vsel %vm618, %v5812, %v5765
      %v5814 = vsel %vm620, %v5813, %v5769
      %v5815 = vsel %vm622, %v5814, %v5773
      %v5816 = vsel %vm624, %v5815, %v5777
      %v5817 = vsel %vm626, %v5816, %v5781
      %v5818 = vsel %vm614, %v5730, %v5785
      %v5819 = vsel %vm616, %v5818, %v5789
      %v5820 = vsel %vm618, %v5819, %v5793
      %v5821 = vsel %vm620, %v5820, %v5797
      %v5822 = vsel %vm622, %v5821, %v5801
      %v5823 = vsel %vm624, %v5822, %v5805
      %v5824 = vsel %vm626, %v5823, %v5809
      %5833 = vrot.lane.b32.xlu0 %v5634, 127
      %v5834 = vpop.permute.xlu0 %5833
      %5835 = vrot.lane.b32.xlu0 %v5635, 127
      %v5836 = vpop.permute.xlu0 %5835
      %5837 = vrot.lane.b32.xlu0 %v5636, 127
      %v5838 = vpop.permute.xlu0 %5837
      %5839 = vrot.lane.b32.xlu0 %v5637, 127
      %v5840 = vpop.permute.xlu0 %5839
      %5841 = vrot.lane.b32.xlu0 %v5638, 127
      %v5842 = vpop.permute.xlu0 %5841
      %5843 = vrot.lane.b32.xlu0 %v5639, 127
      %v5844 = vpop.permute.xlu0 %5843
      %5845 = vrot.lane.b32.xlu0 %v5640, 127
      %v5846 = vpop.permute.xlu0 %5845
      %5847 = vrot.lane.b32.xlu0 %v5641, 127
      %v5848 = vpop.permute.xlu0 %5847
      %v5857 = vrot.slane %v5842, 4
      %v5858 = vsel %vm446, %v5857, %v5834
      %v5859 = vrot.slane %v5834, 4
      %v5860 = vsel %vm446, %v5842, %v5859
      %v5862 = vunpack.c.l.s4 1983009808
      %v5863 = vunpack.c.0.s8 %v5862
      %v5864 = vperm.slane %v5858, %v5863
      %v5866 = vunpack.c.l.s4 1983009808
      %v5867 = vunpack.c.0.s8 %v5866
      %v5868 = vperm.slane %v5860, %v5867
      %v5869 = vrot.slane %v5846, 4
      %v5870 = vsel %vm446, %v5869, %v5838
      %v5871 = vrot.slane %v5838, 4
      %v5872 = vsel %vm446, %v5846, %v5871
      %v5874 = vunpack.c.l.s4 1983009808
      %v5875 = vunpack.c.0.s8 %v5874
      %v5876 = vperm.slane %v5870, %v5875
      %v5878 = vunpack.c.l.s4 1983009808
      %v5879 = vunpack.c.0.s8 %v5878
      %v5880 = vperm.slane %v5872, %v5879
      %v5881 = vrot.slane %v5876, 4
      %v5882 = vsel %vm446, %v5881, %v5864
      %v5883 = vrot.slane %v5864, 4
      %v5884 = vsel %vm446, %v5876, %v5883
      %v5886 = vunpack.c.l.s4 1934713408
      %v5887 = vunpack.c.0.s8 %v5886
      %v5888 = vperm.slane %v5882, %v5887
      %v5890 = vunpack.c.l.s4 1934713408
      %v5891 = vunpack.c.0.s8 %v5890
      %v5892 = vperm.slane %v5884, %v5891
      %v5893 = vrot.slane %v5880, 4
      %v5894 = vsel %vm446, %v5893, %v5868
      %v5895 = vrot.slane %v5868, 4
      %v5896 = vsel %vm446, %v5880, %v5895
      %v5898 = vunpack.c.l.s4 1934713408
      %v5899 = vunpack.c.0.s8 %v5898
      %v5900 = vperm.slane %v5894, %v5899
      %v5902 = vunpack.c.l.s4 1934713408
      %v5903 = vunpack.c.0.s8 %v5902
      %v5904 = vperm.slane %v5896, %v5903
      %v5905 = vrot.slane %v5888, 4
      %v5906 = vsel %vm446, 0.0, %v5905
      %v5907 = vrot.slane %v5892, 4
      %v5908 = vsel %vm446, 0.0, %v5907
      %v5909 = vrot.slane %v5900, 4
      %v5910 = vsel %vm446, 0.0, %v5909
      %v5911 = vrot.slane %v5904, 4
      %v5912 = vsel %vm446, 0.0, %v5911
      %v5913 = vrot.slane %v5844, 4
      %v5914 = vsel %vm446, %v5913, %v5836
      %v5915 = vrot.slane %v5836, 4
      %v5916 = vsel %vm446, %v5844, %v5915
      %v5918 = vunpack.c.l.s4 1983009808
      %v5919 = vunpack.c.0.s8 %v5918
      %v5920 = vperm.slane %v5914, %v5919
      %v5922 = vunpack.c.l.s4 1983009808
      %v5923 = vunpack.c.0.s8 %v5922
      %v5924 = vperm.slane %v5916, %v5923
      %v5925 = vrot.slane %v5848, 4
      %v5926 = vsel %vm446, %v5925, %v5840
      %v5927 = vrot.slane %v5840, 4
      %v5928 = vsel %vm446, %v5848, %v5927
      %v5930 = vunpack.c.l.s4 1983009808
      %v5931 = vunpack.c.0.s8 %v5930
      %v5932 = vperm.slane %v5926, %v5931
      %v5934 = vunpack.c.l.s4 1983009808
      %v5935 = vunpack.c.0.s8 %v5934
      %v5936 = vperm.slane %v5928, %v5935
      %v5937 = vrot.slane %v5932, 4
      %v5938 = vsel %vm446, %v5937, %v5920
      %v5939 = vrot.slane %v5920, 4
      %v5940 = vsel %vm446, %v5932, %v5939
      %v5942 = vunpack.c.l.s4 1934713408
      %v5943 = vunpack.c.0.s8 %v5942
      %v5944 = vperm.slane %v5938, %v5943
      %v5946 = vunpack.c.l.s4 1934713408
      %v5947 = vunpack.c.0.s8 %v5946
      %v5948 = vperm.slane %v5940, %v5947
      %v5949 = vrot.slane %v5936, 4
      %v5950 = vsel %vm446, %v5949, %v5924
      %v5951 = vrot.slane %v5924, 4
      %v5952 = vsel %vm446, %v5936, %v5951
      %v5954 = vunpack.c.l.s4 1934713408
      %v5955 = vunpack.c.0.s8 %v5954
      %v5956 = vperm.slane %v5950, %v5955
      %v5958 = vunpack.c.l.s4 1934713408
      %v5959 = vunpack.c.0.s8 %v5958
      %v5960 = vperm.slane %v5952, %v5959
      %v5961 = vrot.slane %v5944, 4
      %v5962 = vsel %vm446, 0.0, %v5961
      %v5963 = vrot.slane %v5948, 4
      %v5964 = vsel %vm446, 0.0, %v5963
      %v5965 = vrot.slane %v5956, 4
      %v5966 = vsel %vm446, 0.0, %v5965
      %v5967 = vrot.slane %v5960, 4
      %v5968 = vsel %vm446, 0.0, %v5967
      %5970 = vrot.lane.b32.xlu0 %v5906, 16
      %v5971 = vpop.permute.xlu0 %5970
      %5974 = vrot.lane.b32.xlu0 %v5892, 32
      %v5975 = vpop.permute.xlu0 %5974
      %5978 = vrot.lane.b32.xlu0 %v5908, 48
      %v5979 = vpop.permute.xlu0 %5978
      %5982 = vrot.lane.b32.xlu0 %v5900, 64
      %v5983 = vpop.permute.xlu0 %5982
      %5986 = vrot.lane.b32.xlu0 %v5910, 80
      %v5987 = vpop.permute.xlu0 %5986
      %5990 = vrot.lane.b32.xlu0 %v5904, 96
      %v5991 = vpop.permute.xlu0 %5990
      %5994 = vrot.lane.b32.xlu0 %v5912, 112
      %v5995 = vpop.permute.xlu0 %5994
      %5998 = vrot.lane.b32.xlu0 %v5962, 16
      %v5999 = vpop.permute.xlu0 %5998
      %6002 = vrot.lane.b32.xlu0 %v5948, 32
      %v6003 = vpop.permute.xlu0 %6002
      %6006 = vrot.lane.b32.xlu0 %v5964, 48
      %v6007 = vpop.permute.xlu0 %6006
      %6010 = vrot.lane.b32.xlu0 %v5956, 64
      %v6011 = vpop.permute.xlu0 %6010
      %6014 = vrot.lane.b32.xlu0 %v5966, 80
      %v6015 = vpop.permute.xlu0 %6014
      %6018 = vrot.lane.b32.xlu0 %v5960, 96
      %v6019 = vpop.permute.xlu0 %6018
      %6022 = vrot.lane.b32.xlu0 %v5968, 112
      %v6023 = vpop.permute.xlu0 %6022
      %v6025 = vsel %vm614, %v5888, %v5971
      %v6026 = vsel %vm616, %v6025, %v5975
      %v6027 = vsel %vm618, %v6026, %v5979
      %v6028 = vsel %vm620, %v6027, %v5983
      %v6029 = vsel %vm622, %v6028, %v5987
      %v6030 = vsel %vm624, %v6029, %v5991
      %v6031 = vsel %vm626, %v6030, %v5995
      %v6032 = vsel %vm614, %v5944, %v5999
      %v6033 = vsel %vm616, %v6032, %v6003
      %v6034 = vsel %vm618, %v6033, %v6007
      %v6035 = vsel %vm620, %v6034, %v6011
      %v6036 = vsel %vm622, %v6035, %v6015
      %v6037 = vsel %vm624, %v6036, %v6019
      %v6038 = vsel %vm626, %v6037, %v6023
      %6040 = vrot.lane.b32.xlu0 %v5642, 124
      %v6041 = vpop.permute.xlu0 %6040
      %v6042 = vsel %vm852, %v6041, 0
      %v6045 = vsel %vm855, %v6031, 0
      %v6048 = vsel %vm855, %v6038, 0
      %6050 = vmatpush.msra.mxu0 0.0
      %6051 = vmatpush.msra.mxu0 0.0
      %6052 = vmatpush.msra.mxu0 0.0
      %6053 = vmatpush.msra.mxu0 0.0
      %6054 = vmatpush.msra.mxu0 0.0
      %6055 = vmatpush.msra.mxu0 0.0
      %6056 = vmatpush.msra.mxu0 0.0
      %6057 = vmatpush.msra.mxu0 0.0
      %6058 = vmatpush.msra.mxu0 0.0
      %6059 = vmatpush.msra.mxu0 0.0
      %6060 = vmatpush.msra.mxu0 0.0
      %6061 = vmatpush.msra.mxu0 0.0
      %6062 = vmatpush.msra.mxu0 0.0
      %6063 = vmatpush.msra.mxu0 0.0
      %6064 = vmatpush.msra.mxu0 0.0
      %6065 = vmatpush.msra.mxu0 %v6045
      %6066 = vmatmul.f32.gmra.mxu0 %v6042
      %v6067 = vpop.f32.mrf.mxu0
      %v6068 = vadd.f32 0.0, %v6067
      %6069 = vdwg.mxu0
      %6070 = vmatpush.msra.mxu0 0.0
      %6071 = vmatpush.msra.mxu0 0.0
      %6072 = vmatpush.msra.mxu0 0.0
      %6073 = vmatpush.msra.mxu0 0.0
      %6074 = vmatpush.msra.mxu0 0.0
      %6075 = vmatpush.msra.mxu0 0.0
      %6076 = vmatpush.msra.mxu0 0.0
      %6077 = vmatpush.msra.mxu0 0.0
      %6078 = vmatpush.msra.mxu0 0.0
      %6079 = vmatpush.msra.mxu0 0.0
      %6080 = vmatpush.msra.mxu0 0.0
      %6081 = vmatpush.msra.mxu0 0.0
      %6082 = vmatpush.msra.mxu0 0.0
      %6083 = vmatpush.msra.mxu0 0.0
      %6084 = vmatpush.msra.mxu0 0.0
      %6085 = vmatpush.msra.mxu0 %v6048
      %6086 = vmatmul.f32.gmra.mxu0 %v6042
      %v6087 = vpop.f32.mrf.mxu0
      %v6088 = vadd.f32 0.0, %v6087
      %6089 = vdwg.mxu0
      %v6090 = vsel %vm852, %v5642, 0
      %v6093 = vsel %vm855, %v5817, 0
      %v6096 = vsel %vm855, %v5824, 0
      %6098 = vmatpush.msra.mxu0 0.0
      %6099 = vmatpush.msra.mxu0 0.0
      %6100 = vmatpush.msra.mxu0 0.0
      %6101 = vmatpush.msra.mxu0 0.0
      %6102 = vmatpush.msra.mxu0 0.0
      %6103 = vmatpush.msra.mxu0 0.0
      %6104 = vmatpush.msra.mxu0 0.0
      %6105 = vmatpush.msra.mxu0 0.0
      %6106 = vmatpush.msra.mxu0 0.0
      %6107 = vmatpush.msra.mxu0 0.0
      %6108 = vmatpush.msra.mxu0 0.0
      %6109 = vmatpush.msra.mxu0 0.0
      %6110 = vmatpush.msra.mxu0 0.0
      %6111 = vmatpush.msra.mxu0 0.0
      %6112 = vmatpush.msra.mxu0 0.0
      %6113 = vmatpush.msra.mxu0 %v6093
      %6114 = vmatmul.f32.gmra.mxu0 %v6090
      %v6115 = vpop.f32.mrf.mxu0
      %v6116 = vadd.f32 %v6068, %v6115
      %6117 = vdwg.mxu0
      %6118 = vmatpush.msra.mxu0 0.0
      %6119 = vmatpush.msra.mxu0 0.0
      %6120 = vmatpush.msra.mxu0 0.0
      %6121 = vmatpush.msra.mxu0 0.0
      %6122 = vmatpush.msra.mxu0 0.0
      %6123 = vmatpush.msra.mxu0 0.0
      %6124 = vmatpush.msra.mxu0 0.0
      %6125 = vmatpush.msra.mxu0 0.0
      %6126 = vmatpush.msra.mxu0 0.0
      %6127 = vmatpush.msra.mxu0 0.0
      %6128 = vmatpush.msra.mxu0 0.0
      %6129 = vmatpush.msra.mxu0 0.0
      %6130 = vmatpush.msra.mxu0 0.0
      %6131 = vmatpush.msra.mxu0 0.0
      %6132 = vmatpush.msra.mxu0 0.0
      %6133 = vmatpush.msra.mxu0 %v6096
      %6134 = vmatmul.f32.gmra.mxu0 %v6090
      %v6135 = vpop.f32.mrf.mxu0
      %v6136 = vadd.f32 %v6088, %v6135
      %6137 = vdwg.mxu0
      %v6138 = vld [vmem:[#allocation3] sm:$0xff]
      %v6139 = vld [vmem:[#allocation3 + $0x8] sm:$0xff]
      %v6140 = vld [vmem:[#allocation3 + $0x18] sm:$0xff]
      %v6141 = vld [vmem:[#allocation3 + $0x20] sm:$0xff]
      %v6142 = vld [vmem:[#allocation3 + $0x30] sm:$0xff]
      %v6143 = vld [vmem:[#allocation3 + $0x38] sm:$0xff]
      %v6144 = vld [vmem:[#allocation3 + $0x48] sm:$0xff]
      %v6145 = vld [vmem:[#allocation3 + $0x50] sm:$0xff]
      %v6146 = vld [vmem:[%s3] sm:$0xf]
      %6155 = vrot.lane.b32.xlu0 %v6138, 126
      %v6156 = vpop.permute.xlu0 %6155
      %6157 = vrot.lane.b32.xlu0 %v6139, 126
      %v6158 = vpop.permute.xlu0 %6157
      %6159 = vrot.lane.b32.xlu0 %v6140, 126
      %v6160 = vpop.permute.xlu0 %6159
      %6161 = vrot.lane.b32.xlu0 %v6141, 126
      %v6162 = vpop.permute.xlu0 %6161
      %6163 = vrot.lane.b32.xlu0 %v6142, 126
      %v6164 = vpop.permute.xlu0 %6163
      %6165 = vrot.lane.b32.xlu0 %v6143, 126
      %v6166 = vpop.permute.xlu0 %6165
      %6167 = vrot.lane.b32.xlu0 %v6144, 126
      %v6168 = vpop.permute.xlu0 %6167
      %6169 = vrot.lane.b32.xlu0 %v6145, 126
      %v6170 = vpop.permute.xlu0 %6169
      %v6179 = vrot.slane %v6164, 4
      %v6180 = vsel %vm446, %v6179, %v6156
      %v6181 = vrot.slane %v6156, 4
      %v6182 = vsel %vm446, %v6164, %v6181
      %v6184 = vunpack.c.l.s4 1983009808
      %v6185 = vunpack.c.0.s8 %v6184
      %v6186 = vperm.slane %v6180, %v6185
      %v6188 = vunpack.c.l.s4 1983009808
      %v6189 = vunpack.c.0.s8 %v6188
      %v6190 = vperm.slane %v6182, %v6189
      %v6191 = vrot.slane %v6168, 4
      %v6192 = vsel %vm446, %v6191, %v6160
      %v6193 = vrot.slane %v6160, 4
      %v6194 = vsel %vm446, %v6168, %v6193
      %v6196 = vunpack.c.l.s4 1983009808
      %v6197 = vunpack.c.0.s8 %v6196
      %v6198 = vperm.slane %v6192, %v6197
      %v6200 = vunpack.c.l.s4 1983009808
      %v6201 = vunpack.c.0.s8 %v6200
      %v6202 = vperm.slane %v6194, %v6201
      %v6203 = vrot.slane %v6198, 4
      %v6204 = vsel %vm446, %v6203, %v6186
      %v6205 = vrot.slane %v6186, 4
      %v6206 = vsel %vm446, %v6198, %v6205
      %v6208 = vunpack.c.l.s4 1934713408
      %v6209 = vunpack.c.0.s8 %v6208
      %v6210 = vperm.slane %v6204, %v6209
      %v6212 = vunpack.c.l.s4 1934713408
      %v6213 = vunpack.c.0.s8 %v6212
      %v6214 = vperm.slane %v6206, %v6213
      %v6215 = vrot.slane %v6202, 4
      %v6216 = vsel %vm446, %v6215, %v6190
      %v6217 = vrot.slane %v6190, 4
      %v6218 = vsel %vm446, %v6202, %v6217
      %v6220 = vunpack.c.l.s4 1934713408
      %v6221 = vunpack.c.0.s8 %v6220
      %v6222 = vperm.slane %v6216, %v6221
      %v6224 = vunpack.c.l.s4 1934713408
      %v6225 = vunpack.c.0.s8 %v6224
      %v6226 = vperm.slane %v6218, %v6225
      %v6227 = vrot.slane %v6210, 4
      %v6228 = vsel %vm446, 0.0, %v6227
      %v6229 = vrot.slane %v6214, 4
      %v6230 = vsel %vm446, 0.0, %v6229
      %v6231 = vrot.slane %v6222, 4
      %v6232 = vsel %vm446, 0.0, %v6231
      %v6233 = vrot.slane %v6226, 4
      %v6234 = vsel %vm446, 0.0, %v6233
      %v6235 = vrot.slane %v6166, 4
      %v6236 = vsel %vm446, %v6235, %v6158
      %v6237 = vrot.slane %v6158, 4
      %v6238 = vsel %vm446, %v6166, %v6237
      %v6240 = vunpack.c.l.s4 1983009808
      %v6241 = vunpack.c.0.s8 %v6240
      %v6242 = vperm.slane %v6236, %v6241
      %v6244 = vunpack.c.l.s4 1983009808
      %v6245 = vunpack.c.0.s8 %v6244
      %v6246 = vperm.slane %v6238, %v6245
      %v6247 = vrot.slane %v6170, 4
      %v6248 = vsel %vm446, %v6247, %v6162
      %v6249 = vrot.slane %v6162, 4
      %v6250 = vsel %vm446, %v6170, %v6249
      %v6252 = vunpack.c.l.s4 1983009808
      %v6253 = vunpack.c.0.s8 %v6252
      %v6254 = vperm.slane %v6248, %v6253
      %v6256 = vunpack.c.l.s4 1983009808
      %v6257 = vunpack.c.0.s8 %v6256
      %v6258 = vperm.slane %v6250, %v6257
      %v6259 = vrot.slane %v6254, 4
      %v6260 = vsel %vm446, %v6259, %v6242
      %v6261 = vrot.slane %v6242, 4
      %v6262 = vsel %vm446, %v6254, %v6261
      %v6264 = vunpack.c.l.s4 1934713408
      %v6265 = vunpack.c.0.s8 %v6264
      %v6266 = vperm.slane %v6260, %v6265
      %v6268 = vunpack.c.l.s4 1934713408
      %v6269 = vunpack.c.0.s8 %v6268
      %v6270 = vperm.slane %v6262, %v6269
      %v6271 = vrot.slane %v6258, 4
      %v6272 = vsel %vm446, %v6271, %v6246
      %v6273 = vrot.slane %v6246, 4
      %v6274 = vsel %vm446, %v6258, %v6273
      %v6276 = vunpack.c.l.s4 1934713408
      %v6277 = vunpack.c.0.s8 %v6276
      %v6278 = vperm.slane %v6272, %v6277
      %v6280 = vunpack.c.l.s4 1934713408
      %v6281 = vunpack.c.0.s8 %v6280
      %v6282 = vperm.slane %v6274, %v6281
      %v6283 = vrot.slane %v6266, 4
      %v6284 = vsel %vm446, 0.0, %v6283
      %v6285 = vrot.slane %v6270, 4
      %v6286 = vsel %vm446, 0.0, %v6285
      %v6287 = vrot.slane %v6278, 4
      %v6288 = vsel %vm446, 0.0, %v6287
      %v6289 = vrot.slane %v6282, 4
      %v6290 = vsel %vm446, 0.0, %v6289
      %6292 = vrot.lane.b32.xlu0 %v6228, 16
      %v6293 = vpop.permute.xlu0 %6292
      %6296 = vrot.lane.b32.xlu0 %v6214, 32
      %v6297 = vpop.permute.xlu0 %6296
      %6300 = vrot.lane.b32.xlu0 %v6230, 48
      %v6301 = vpop.permute.xlu0 %6300
      %6304 = vrot.lane.b32.xlu0 %v6222, 64
      %v6305 = vpop.permute.xlu0 %6304
      %6308 = vrot.lane.b32.xlu0 %v6232, 80
      %v6309 = vpop.permute.xlu0 %6308
      %6312 = vrot.lane.b32.xlu0 %v6226, 96
      %v6313 = vpop.permute.xlu0 %6312
      %6316 = vrot.lane.b32.xlu0 %v6234, 112
      %v6317 = vpop.permute.xlu0 %6316
      %6320 = vrot.lane.b32.xlu0 %v6284, 16
      %v6321 = vpop.permute.xlu0 %6320
      %6324 = vrot.lane.b32.xlu0 %v6270, 32
      %v6325 = vpop.permute.xlu0 %6324
      %6328 = vrot.lane.b32.xlu0 %v6286, 48
      %v6329 = vpop.permute.xlu0 %6328
      %6332 = vrot.lane.b32.xlu0 %v6278, 64
      %v6333 = vpop.permute.xlu0 %6332
      %6336 = vrot.lane.b32.xlu0 %v6288, 80
      %v6337 = vpop.permute.xlu0 %6336
      %6340 = vrot.lane.b32.xlu0 %v6282, 96
      %v6341 = vpop.permute.xlu0 %6340
      %6344 = vrot.lane.b32.xlu0 %v6290, 112
      %v6345 = vpop.permute.xlu0 %6344
      %v6347 = vsel %vm614, %v6210, %v6293
      %v6348 = vsel %vm616, %v6347, %v6297
      %v6349 = vsel %vm618, %v6348, %v6301
      %v6350 = vsel %vm620, %v6349, %v6305
      %v6351 = vsel %vm622, %v6350, %v6309
      %v6352 = vsel %vm624, %v6351, %v6313
      %v6353 = vsel %vm626, %v6352, %v6317
      %v6354 = vsel %vm614, %v6266, %v6321
      %v6355 = vsel %vm616, %v6354, %v6325
      %v6356 = vsel %vm618, %v6355, %v6329
      %v6357 = vsel %vm620, %v6356, %v6333
      %v6358 = vsel %vm622, %v6357, %v6337
      %v6359 = vsel %vm624, %v6358, %v6341
      %v6360 = vsel %vm626, %v6359, %v6345
      %6362 = vrot.lane.b32.xlu0 %v6146, 120
      %v6363 = vpop.permute.xlu0 %6362
      %v6364 = vsel %vm852, %v6363, 0
      %v6367 = vsel %vm855, %v6353, 0
      %v6370 = vsel %vm855, %v6360, 0
      %6372 = vmatpush.msra.mxu0 0.0
      %6373 = vmatpush.msra.mxu0 0.0
      %6374 = vmatpush.msra.mxu0 0.0
      %6375 = vmatpush.msra.mxu0 0.0
      %6376 = vmatpush.msra.mxu0 0.0
      %6377 = vmatpush.msra.mxu0 0.0
      %6378 = vmatpush.msra.mxu0 0.0
      %6379 = vmatpush.msra.mxu0 0.0
      %6380 = vmatpush.msra.mxu0 0.0
      %6381 = vmatpush.msra.mxu0 0.0
      %6382 = vmatpush.msra.mxu0 0.0
      %6383 = vmatpush.msra.mxu0 0.0
      %6384 = vmatpush.msra.mxu0 0.0
      %6385 = vmatpush.msra.mxu0 0.0
      %6386 = vmatpush.msra.mxu0 0.0
      %6387 = vmatpush.msra.mxu0 %v6367
      %6388 = vmatmul.f32.gmra.mxu0 %v6364
      %v6389 = vpop.f32.mrf.mxu0
      %v6390 = vadd.f32 0.0, %v6389
      %6391 = vdwg.mxu0
      %6392 = vmatpush.msra.mxu0 0.0
      %6393 = vmatpush.msra.mxu0 0.0
      %6394 = vmatpush.msra.mxu0 0.0
      %6395 = vmatpush.msra.mxu0 0.0
      %6396 = vmatpush.msra.mxu0 0.0
      %6397 = vmatpush.msra.mxu0 0.0
      %6398 = vmatpush.msra.mxu0 0.0
      %6399 = vmatpush.msra.mxu0 0.0
      %6400 = vmatpush.msra.mxu0 0.0
      %6401 = vmatpush.msra.mxu0 0.0
      %6402 = vmatpush.msra.mxu0 0.0
      %6403 = vmatpush.msra.mxu0 0.0
      %6404 = vmatpush.msra.mxu0 0.0
      %6405 = vmatpush.msra.mxu0 0.0
      %6406 = vmatpush.msra.mxu0 0.0
      %6407 = vmatpush.msra.mxu0 %v6370
      %6408 = vmatmul.f32.gmra.mxu0 %v6364
      %v6409 = vpop.f32.mrf.mxu0
      %v6410 = vadd.f32 0.0, %v6409
      %6411 = vdwg.mxu0
      %v6412 = vadd.f32 %v6116, %v6390
      %v6413 = vadd.f32 %v6136, %v6410
      %v6414 = vld [vmem:[#allocation3 + $0x1] sm:$0xff]
      %v6415 = vld [vmem:[#allocation3 + $0x9] sm:$0xff]
      %v6416 = vld [vmem:[#allocation3 + $0x19] sm:$0xff]
      %v6417 = vld [vmem:[#allocation3 + $0x21] sm:$0xff]
      %v6418 = vld [vmem:[#allocation3 + $0x31] sm:$0xff]
      %v6419 = vld [vmem:[#allocation3 + $0x39] sm:$0xff]
      %v6420 = vld [vmem:[#allocation3 + $0x49] sm:$0xff]
      %v6421 = vld [vmem:[#allocation3 + $0x51] sm:$0xff]
      %v6422 = vld [vmem:[%s3] sm:$0xf]
      %v6423 = vrot.slane %v6418, 4
      %v6424 = vsel %vm446, %v6423, %v6414
      %v6425 = vrot.slane %v6414, 4
      %v6426 = vsel %vm446, %v6418, %v6425
      %v6428 = vunpack.c.l.s4 1983009808
      %v6429 = vunpack.c.0.s8 %v6428
      %v6430 = vperm.slane %v6424, %v6429
      %v6432 = vunpack.c.l.s4 1983009808
      %v6433 = vunpack.c.0.s8 %v6432
      %v6434 = vperm.slane %v6426, %v6433
      %v6435 = vrot.slane %v6420, 4
      %v6436 = vsel %vm446, %v6435, %v6416
      %v6437 = vrot.slane %v6416, 4
      %v6438 = vsel %vm446, %v6420, %v6437
      %v6440 = vunpack.c.l.s4 1983009808
      %v6441 = vunpack.c.0.s8 %v6440
      %v6442 = vperm.slane %v6436, %v6441
      %v6444 = vunpack.c.l.s4 1983009808
      %v6445 = vunpack.c.0.s8 %v6444
      %v6446 = vperm.slane %v6438, %v6445
      %v6447 = vrot.slane %v6442, 4
      %v6448 = vsel %vm446, %v6447, %v6430
      %v6449 = vrot.slane %v6430, 4
      %v6450 = vsel %vm446, %v6442, %v6449
      %v6452 = vunpack.c.l.s4 1934713408
      %v6453 = vunpack.c.0.s8 %v6452
      %v6454 = vperm.slane %v6448, %v6453
      %v6456 = vunpack.c.l.s4 1934713408
      %v6457 = vunpack.c.0.s8 %v6456
      %v6458 = vperm.slane %v6450, %v6457
      %v6459 = vrot.slane %v6446, 4
      %v6460 = vsel %vm446, %v6459, %v6434
      %v6461 = vrot.slane %v6434, 4
      %v6462 = vsel %vm446, %v6446, %v6461
      %v6464 = vunpack.c.l.s4 1934713408
      %v6465 = vunpack.c.0.s8 %v6464
      %v6466 = vperm.slane %v6460, %v6465
      %v6468 = vunpack.c.l.s4 1934713408
      %v6469 = vunpack.c.0.s8 %v6468
      %v6470 = vperm.slane %v6462, %v6469
      %v6471 = vrot.slane %v6454, 4
      %v6472 = vsel %vm446, 0.0, %v6471
      %v6473 = vrot.slane %v6458, 4
      %v6474 = vsel %vm446, 0.0, %v6473
      %v6475 = vrot.slane %v6466, 4
      %v6476 = vsel %vm446, 0.0, %v6475
      %v6477 = vrot.slane %v6470, 4
      %v6478 = vsel %vm446, 0.0, %v6477
      %v6479 = vrot.slane %v6419, 4
      %v6480 = vsel %vm446, %v6479, %v6415
      %v6481 = vrot.slane %v6415, 4
      %v6482 = vsel %vm446, %v6419, %v6481
      %v6484 = vunpack.c.l.s4 1983009808
      %v6485 = vunpack.c.0.s8 %v6484
      %v6486 = vperm.slane %v6480, %v6485
      %v6488 = vunpack.c.l.s4 1983009808
      %v6489 = vunpack.c.0.s8 %v6488
      %v6490 = vperm.slane %v6482, %v6489
      %v6491 = vrot.slane %v6421, 4
      %v6492 = vsel %vm446, %v6491, %v6417
      %v6493 = vrot.slane %v6417, 4
      %v6494 = vsel %vm446, %v6421, %v6493
      %v6496 = vunpack.c.l.s4 1983009808
      %v6497 = vunpack.c.0.s8 %v6496
      %v6498 = vperm.slane %v6492, %v6497
      %v6500 = vunpack.c.l.s4 1983009808
      %v6501 = vunpack.c.0.s8 %v6500
      %v6502 = vperm.slane %v6494, %v6501
      %v6503 = vrot.slane %v6498, 4
      %v6504 = vsel %vm446, %v6503, %v6486
      %v6505 = vrot.slane %v6486, 4
      %v6506 = vsel %vm446, %v6498, %v6505
      %v6508 = vunpack.c.l.s4 1934713408
      %v6509 = vunpack.c.0.s8 %v6508
      %v6510 = vperm.slane %v6504, %v6509
      %v6512 = vunpack.c.l.s4 1934713408
      %v6513 = vunpack.c.0.s8 %v6512
      %v6514 = vperm.slane %v6506, %v6513
      %v6515 = vrot.slane %v6502, 4
      %v6516 = vsel %vm446, %v6515, %v6490
      %v6517 = vrot.slane %v6490, 4
      %v6518 = vsel %vm446, %v6502, %v6517
      %v6520 = vunpack.c.l.s4 1934713408
      %v6521 = vunpack.c.0.s8 %v6520
      %v6522 = vperm.slane %v6516, %v6521
      %v6524 = vunpack.c.l.s4 1934713408
      %v6525 = vunpack.c.0.s8 %v6524
      %v6526 = vperm.slane %v6518, %v6525
      %v6527 = vrot.slane %v6510, 4
      %v6528 = vsel %vm446, 0.0, %v6527
      %v6529 = vrot.slane %v6514, 4
      %v6530 = vsel %vm446, 0.0, %v6529
      %v6531 = vrot.slane %v6522, 4
      %v6532 = vsel %vm446, 0.0, %v6531
      %v6533 = vrot.slane %v6526, 4
      %v6534 = vsel %vm446, 0.0, %v6533
      %6536 = vrot.lane.b32.xlu0 %v6472, 16
      %v6537 = vpop.permute.xlu0 %6536
      %6540 = vrot.lane.b32.xlu0 %v6458, 32
      %v6541 = vpop.permute.xlu0 %6540
      %6544 = vrot.lane.b32.xlu0 %v6474, 48
      %v6545 = vpop.permute.xlu0 %6544
      %6548 = vrot.lane.b32.xlu0 %v6466, 64
      %v6549 = vpop.permute.xlu0 %6548
      %6552 = vrot.lane.b32.xlu0 %v6476, 80
      %v6553 = vpop.permute.xlu0 %6552
      %6556 = vrot.lane.b32.xlu0 %v6470, 96
      %v6557 = vpop.permute.xlu0 %6556
      %6560 = vrot.lane.b32.xlu0 %v6478, 112
      %v6561 = vpop.permute.xlu0 %6560
      %6564 = vrot.lane.b32.xlu0 %v6528, 16
      %v6565 = vpop.permute.xlu0 %6564
      %6568 = vrot.lane.b32.xlu0 %v6514, 32
      %v6569 = vpop.permute.xlu0 %6568
      %6572 = vrot.lane.b32.xlu0 %v6530, 48
      %v6573 = vpop.permute.xlu0 %6572
      %6576 = vrot.lane.b32.xlu0 %v6522, 64
      %v6577 = vpop.permute.xlu0 %6576
      %6580 = vrot.lane.b32.xlu0 %v6532, 80
      %v6581 = vpop.permute.xlu0 %6580
      %6584 = vrot.lane.b32.xlu0 %v6526, 96
      %v6585 = vpop.permute.xlu0 %6584
      %6588 = vrot.lane.b32.xlu0 %v6534, 112
      %v6589 = vpop.permute.xlu0 %6588
      %v6591 = vsel %vm614, %v6454, %v6537
      %v6592 = vsel %vm616, %v6591, %v6541
      %v6593 = vsel %vm618, %v6592, %v6545
      %v6594 = vsel %vm620, %v6593, %v6549
      %v6595 = vsel %vm622, %v6594, %v6553
      %v6596 = vsel %vm624, %v6595, %v6557
      %v6597 = vsel %vm626, %v6596, %v6561
      %v6598 = vsel %vm614, %v6510, %v6565
      %v6599 = vsel %vm616, %v6598, %v6569
      %v6600 = vsel %vm618, %v6599, %v6573
      %v6601 = vsel %vm620, %v6600, %v6577
      %v6602 = vsel %vm622, %v6601, %v6581
      %v6603 = vsel %vm624, %v6602, %v6585
      %v6604 = vsel %vm626, %v6603, %v6589
      %6606 = vrot.lane.b32.xlu0 %v6422, 116
      %v6607 = vpop.permute.xlu0 %6606
      %v6608 = vsel %vm852, %v6607, 0
      %v6611 = vsel %vm855, %v6597, 0
      %v6614 = vsel %vm855, %v6604, 0
      %6616 = vmatpush.msra.mxu0 0.0
      %6617 = vmatpush.msra.mxu0 0.0
      %6618 = vmatpush.msra.mxu0 0.0
      %6619 = vmatpush.msra.mxu0 0.0
      %6620 = vmatpush.msra.mxu0 0.0
      %6621 = vmatpush.msra.mxu0 0.0
      %6622 = vmatpush.msra.mxu0 0.0
      %6623 = vmatpush.msra.mxu0 0.0
      %6624 = vmatpush.msra.mxu0 0.0
      %6625 = vmatpush.msra.mxu0 0.0
      %6626 = vmatpush.msra.mxu0 0.0
      %6627 = vmatpush.msra.mxu0 0.0
      %6628 = vmatpush.msra.mxu0 0.0
      %6629 = vmatpush.msra.mxu0 0.0
      %6630 = vmatpush.msra.mxu0 0.0
      %6631 = vmatpush.msra.mxu0 %v6611
      %6632 = vmatmul.f32.gmra.mxu0 %v6608
      %v6633 = vpop.f32.mrf.mxu0
      %v6634 = vadd.f32 0.0, %v6633
      %6635 = vdwg.mxu0
      %6636 = vmatpush.msra.mxu0 0.0
      %6637 = vmatpush.msra.mxu0 0.0
      %6638 = vmatpush.msra.mxu0 0.0
      %6639 = vmatpush.msra.mxu0 0.0
      %6640 = vmatpush.msra.mxu0 0.0
      %6641 = vmatpush.msra.mxu0 0.0
      %6642 = vmatpush.msra.mxu0 0.0
      %6643 = vmatpush.msra.mxu0 0.0
      %6644 = vmatpush.msra.mxu0 0.0
      %6645 = vmatpush.msra.mxu0 0.0
      %6646 = vmatpush.msra.mxu0 0.0
      %6647 = vmatpush.msra.mxu0 0.0
      %6648 = vmatpush.msra.mxu0 0.0
      %6649 = vmatpush.msra.mxu0 0.0
      %6650 = vmatpush.msra.mxu0 0.0
      %6651 = vmatpush.msra.mxu0 %v6614
      %6652 = vmatmul.f32.gmra.mxu0 %v6608
      %v6653 = vpop.f32.mrf.mxu0
      %v6654 = vadd.f32 0.0, %v6653
      %6655 = vdwg.mxu0
      %v6656 = vadd.f32 %v6412, %v6634
      %v6657 = vadd.f32 %v6413, %v6654
      %v6658 = vld [vmem:[#allocation3 + $0x1] sm:$0xff]
      %v6659 = vld [vmem:[#allocation3 + $0x9] sm:$0xff]
      %v6660 = vld [vmem:[#allocation3 + $0x19] sm:$0xff]
      %v6661 = vld [vmem:[#allocation3 + $0x21] sm:$0xff]
      %v6662 = vld [vmem:[#allocation3 + $0x31] sm:$0xff]
      %v6663 = vld [vmem:[#allocation3 + $0x39] sm:$0xff]
      %v6664 = vld [vmem:[#allocation3 + $0x49] sm:$0xff]
      %v6665 = vld [vmem:[#allocation3 + $0x51] sm:$0xff]
      %v6666 = vld [vmem:[%s3] sm:$0xf]
      %6675 = vrot.lane.b32.xlu0 %v6658, 127
      %v6676 = vpop.permute.xlu0 %6675
      %6677 = vrot.lane.b32.xlu0 %v6659, 127
      %v6678 = vpop.permute.xlu0 %6677
      %6679 = vrot.lane.b32.xlu0 %v6660, 127
      %v6680 = vpop.permute.xlu0 %6679
      %6681 = vrot.lane.b32.xlu0 %v6661, 127
      %v6682 = vpop.permute.xlu0 %6681
      %6683 = vrot.lane.b32.xlu0 %v6662, 127
      %v6684 = vpop.permute.xlu0 %6683
      %6685 = vrot.lane.b32.xlu0 %v6663, 127
      %v6686 = vpop.permute.xlu0 %6685
      %6687 = vrot.lane.b32.xlu0 %v6664, 127
      %v6688 = vpop.permute.xlu0 %6687
      %6689 = vrot.lane.b32.xlu0 %v6665, 127
      %v6690 = vpop.permute.xlu0 %6689
      %v6699 = vrot.slane %v6684, 4
      %v6700 = vsel %vm446, %v6699, %v6676
      %v6701 = vrot.slane %v6676, 4
      %v6702 = vsel %vm446, %v6684, %v6701
      %v6704 = vunpack.c.l.s4 1983009808
      %v6705 = vunpack.c.0.s8 %v6704
      %v6706 = vperm.slane %v6700, %v6705
      %v6708 = vunpack.c.l.s4 1983009808
      %v6709 = vunpack.c.0.s8 %v6708
      %v6710 = vperm.slane %v6702, %v6709
      %v6711 = vrot.slane %v6688, 4
      %v6712 = vsel %vm446, %v6711, %v6680
      %v6713 = vrot.slane %v6680, 4
      %v6714 = vsel %vm446, %v6688, %v6713
      %v6716 = vunpack.c.l.s4 1983009808
      %v6717 = vunpack.c.0.s8 %v6716
      %v6718 = vperm.slane %v6712, %v6717
      %v6720 = vunpack.c.l.s4 1983009808
      %v6721 = vunpack.c.0.s8 %v6720
      %v6722 = vperm.slane %v6714, %v6721
      %v6723 = vrot.slane %v6718, 4
      %v6724 = vsel %vm446, %v6723, %v6706
      %v6725 = vrot.slane %v6706, 4
      %v6726 = vsel %vm446, %v6718, %v6725
      %v6728 = vunpack.c.l.s4 1934713408
      %v6729 = vunpack.c.0.s8 %v6728
      %v6730 = vperm.slane %v6724, %v6729
      %v6732 = vunpack.c.l.s4 1934713408
      %v6733 = vunpack.c.0.s8 %v6732
      %v6734 = vperm.slane %v6726, %v6733
      %v6735 = vrot.slane %v6722, 4
      %v6736 = vsel %vm446, %v6735, %v6710
      %v6737 = vrot.slane %v6710, 4
      %v6738 = vsel %vm446, %v6722, %v6737
      %v6740 = vunpack.c.l.s4 1934713408
      %v6741 = vunpack.c.0.s8 %v6740
      %v6742 = vperm.slane %v6736, %v6741
      %v6744 = vunpack.c.l.s4 1934713408
      %v6745 = vunpack.c.0.s8 %v6744
      %v6746 = vperm.slane %v6738, %v6745
      %v6747 = vrot.slane %v6730, 4
      %v6748 = vsel %vm446, 0.0, %v6747
      %v6749 = vrot.slane %v6734, 4
      %v6750 = vsel %vm446, 0.0, %v6749
      %v6751 = vrot.slane %v6742, 4
      %v6752 = vsel %vm446, 0.0, %v6751
      %v6753 = vrot.slane %v6746, 4
      %v6754 = vsel %vm446, 0.0, %v6753
      %v6755 = vrot.slane %v6686, 4
      %v6756 = vsel %vm446, %v6755, %v6678
      %v6757 = vrot.slane %v6678, 4
      %v6758 = vsel %vm446, %v6686, %v6757
      %v6760 = vunpack.c.l.s4 1983009808
      %v6761 = vunpack.c.0.s8 %v6760
      %v6762 = vperm.slane %v6756, %v6761
      %v6764 = vunpack.c.l.s4 1983009808
      %v6765 = vunpack.c.0.s8 %v6764
      %v6766 = vperm.slane %v6758, %v6765
      %v6767 = vrot.slane %v6690, 4
      %v6768 = vsel %vm446, %v6767, %v6682
      %v6769 = vrot.slane %v6682, 4
      %v6770 = vsel %vm446, %v6690, %v6769
      %v6772 = vunpack.c.l.s4 1983009808
      %v6773 = vunpack.c.0.s8 %v6772
      %v6774 = vperm.slane %v6768, %v6773
      %v6776 = vunpack.c.l.s4 1983009808
      %v6777 = vunpack.c.0.s8 %v6776
      %v6778 = vperm.slane %v6770, %v6777
      %v6779 = vrot.slane %v6774, 4
      %v6780 = vsel %vm446, %v6779, %v6762
      %v6781 = vrot.slane %v6762, 4
      %v6782 = vsel %vm446, %v6774, %v6781
      %v6784 = vunpack.c.l.s4 1934713408
      %v6785 = vunpack.c.0.s8 %v6784
      %v6786 = vperm.slane %v6780, %v6785
      %v6788 = vunpack.c.l.s4 1934713408
      %v6789 = vunpack.c.0.s8 %v6788
      %v6790 = vperm.slane %v6782, %v6789
      %v6791 = vrot.slane %v6778, 4
      %v6792 = vsel %vm446, %v6791, %v6766
      %v6793 = vrot.slane %v6766, 4
      %v6794 = vsel %vm446, %v6778, %v6793
      %v6796 = vunpack.c.l.s4 1934713408
      %v6797 = vunpack.c.0.s8 %v6796
      %v6798 = vperm.slane %v6792, %v6797
      %v6800 = vunpack.c.l.s4 1934713408
      %v6801 = vunpack.c.0.s8 %v6800
      %v6802 = vperm.slane %v6794, %v6801
      %v6803 = vrot.slane %v6786, 4
      %v6804 = vsel %vm446, 0.0, %v6803
      %v6805 = vrot.slane %v6790, 4
      %v6806 = vsel %vm446, 0.0, %v6805
      %v6807 = vrot.slane %v6798, 4
      %v6808 = vsel %vm446, 0.0, %v6807
      %v6809 = vrot.slane %v6802, 4
      %v6810 = vsel %vm446, 0.0, %v6809
      %6812 = vrot.lane.b32.xlu0 %v6748, 16
      %v6813 = vpop.permute.xlu0 %6812
      %6816 = vrot.lane.b32.xlu0 %v6734, 32
      %v6817 = vpop.permute.xlu0 %6816
      %6820 = vrot.lane.b32.xlu0 %v6750, 48
      %v6821 = vpop.permute.xlu0 %6820
      %6824 = vrot.lane.b32.xlu0 %v6742, 64
      %v6825 = vpop.permute.xlu0 %6824
      %6828 = vrot.lane.b32.xlu0 %v6752, 80
      %v6829 = vpop.permute.xlu0 %6828
      %6832 = vrot.lane.b32.xlu0 %v6746, 96
      %v6833 = vpop.permute.xlu0 %6832
      %6836 = vrot.lane.b32.xlu0 %v6754, 112
      %v6837 = vpop.permute.xlu0 %6836
      %6840 = vrot.lane.b32.xlu0 %v6804, 16
      %v6841 = vpop.permute.xlu0 %6840
      %6844 = vrot.lane.b32.xlu0 %v6790, 32
      %v6845 = vpop.permute.xlu0 %6844
      %6848 = vrot.lane.b32.xlu0 %v6806, 48
      %v6849 = vpop.permute.xlu0 %6848
      %6852 = vrot.lane.b32.xlu0 %v6798, 64
      %v6853 = vpop.permute.xlu0 %6852
      %6856 = vrot.lane.b32.xlu0 %v6808, 80
      %v6857 = vpop.permute.xlu0 %6856
      %6860 = vrot.lane.b32.xlu0 %v6802, 96
      %v6861 = vpop.permute.xlu0 %6860
      %6864 = vrot.lane.b32.xlu0 %v6810, 112
      %v6865 = vpop.permute.xlu0 %6864
      %v6867 = vsel %vm614, %v6730, %v6813
      %v6868 = vsel %vm616, %v6867, %v6817
      %v6869 = vsel %vm618, %v6868, %v6821
      %v6870 = vsel %vm620, %v6869, %v6825
      %v6871 = vsel %vm622, %v6870, %v6829
      %v6872 = vsel %vm624, %v6871, %v6833
      %v6873 = vsel %vm626, %v6872, %v6837
      %v6874 = vsel %vm614, %v6786, %v6841
      %v6875 = vsel %vm616, %v6874, %v6845
      %v6876 = vsel %vm618, %v6875, %v6849
      %v6877 = vsel %vm620, %v6876, %v6853
      %v6878 = vsel %vm622, %v6877, %v6857
      %v6879 = vsel %vm624, %v6878, %v6861
      %v6880 = vsel %vm626, %v6879, %v6865
      %6882 = vrot.lane.b32.xlu0 %v6666, 112
      %v6883 = vpop.permute.xlu0 %6882
      %v6884 = vsel %vm852, %v6883, 0
      %v6887 = vsel %vm855, %v6873, 0
      %v6890 = vsel %vm855, %v6880, 0
      %6892 = vmatpush.msra.mxu0 0.0
      %6893 = vmatpush.msra.mxu0 0.0
      %6894 = vmatpush.msra.mxu0 0.0
      %6895 = vmatpush.msra.mxu0 0.0
      %6896 = vmatpush.msra.mxu0 0.0
      %6897 = vmatpush.msra.mxu0 0.0
      %6898 = vmatpush.msra.mxu0 0.0
      %6899 = vmatpush.msra.mxu0 0.0
      %6900 = vmatpush.msra.mxu0 0.0
      %6901 = vmatpush.msra.mxu0 0.0
      %6902 = vmatpush.msra.mxu0 0.0
      %6903 = vmatpush.msra.mxu0 0.0
      %6904 = vmatpush.msra.mxu0 0.0
      %6905 = vmatpush.msra.mxu0 0.0
      %6906 = vmatpush.msra.mxu0 0.0
      %6907 = vmatpush.msra.mxu0 %v6887
      %6908 = vmatmul.f32.gmra.mxu0 %v6884
      %v6909 = vpop.f32.mrf.mxu0
      %v6910 = vadd.f32 0.0, %v6909
      %6911 = vdwg.mxu0
      %6912 = vmatpush.msra.mxu0 0.0
      %6913 = vmatpush.msra.mxu0 0.0
      %6914 = vmatpush.msra.mxu0 0.0
      %6915 = vmatpush.msra.mxu0 0.0
      %6916 = vmatpush.msra.mxu0 0.0
      %6917 = vmatpush.msra.mxu0 0.0
      %6918 = vmatpush.msra.mxu0 0.0
      %6919 = vmatpush.msra.mxu0 0.0
      %6920 = vmatpush.msra.mxu0 0.0
      %6921 = vmatpush.msra.mxu0 0.0
      %6922 = vmatpush.msra.mxu0 0.0
      %6923 = vmatpush.msra.mxu0 0.0
      %6924 = vmatpush.msra.mxu0 0.0
      %6925 = vmatpush.msra.mxu0 0.0
      %6926 = vmatpush.msra.mxu0 0.0
      %6927 = vmatpush.msra.mxu0 %v6890
      %6928 = vmatmul.f32.gmra.mxu0 %v6884
      %v6929 = vpop.f32.mrf.mxu0
      %v6930 = vadd.f32 0.0, %v6929
      %6931 = vdwg.mxu0
      %v6932 = vadd.f32 %v6656, %v6910
      %v6933 = vadd.f32 %v6657, %v6930
      %v6934 = vld [vmem:[#allocation3 + $0x1] sm:$0xff]
      %v6935 = vld [vmem:[#allocation3 + $0x9] sm:$0xff]
      %v6936 = vld [vmem:[#allocation3 + $0x19] sm:$0xff]
      %v6937 = vld [vmem:[#allocation3 + $0x21] sm:$0xff]
      %v6938 = vld [vmem:[#allocation3 + $0x31] sm:$0xff]
      %v6939 = vld [vmem:[#allocation3 + $0x39] sm:$0xff]
      %v6940 = vld [vmem:[#allocation3 + $0x49] sm:$0xff]
      %v6941 = vld [vmem:[#allocation3 + $0x51] sm:$0xff]
      %v6942 = vld [vmem:[%s3] sm:$0xf]
      %6951 = vrot.lane.b32.xlu0 %v6934, 126
      %v6952 = vpop.permute.xlu0 %6951
      %6953 = vrot.lane.b32.xlu0 %v6935, 126
      %v6954 = vpop.permute.xlu0 %6953
      %6955 = vrot.lane.b32.xlu0 %v6936, 126
      %v6956 = vpop.permute.xlu0 %6955
      %6957 = vrot.lane.b32.xlu0 %v6937, 126
      %v6958 = vpop.permute.xlu0 %6957
      %6959 = vrot.lane.b32.xlu0 %v6938, 126
      %v6960 = vpop.permute.xlu0 %6959
      %6961 = vrot.lane.b32.xlu0 %v6939, 126
      %v6962 = vpop.permute.xlu0 %6961
      %6963 = vrot.lane.b32.xlu0 %v6940, 126
      %v6964 = vpop.permute.xlu0 %6963
      %6965 = vrot.lane.b32.xlu0 %v6941, 126
      %v6966 = vpop.permute.xlu0 %6965
      %v6975 = vrot.slane %v6960, 4
      %v6976 = vsel %vm446, %v6975, %v6952
      %v6977 = vrot.slane %v6952, 4
      %v6978 = vsel %vm446, %v6960, %v6977
      %v6980 = vunpack.c.l.s4 1983009808
      %v6981 = vunpack.c.0.s8 %v6980
      %v6982 = vperm.slane %v6976, %v6981
      %v6984 = vunpack.c.l.s4 1983009808
      %v6985 = vunpack.c.0.s8 %v6984
      %v6986 = vperm.slane %v6978, %v6985
      %v6987 = vrot.slane %v6964, 4
      %v6988 = vsel %vm446, %v6987, %v6956
      %v6989 = vrot.slane %v6956, 4
      %v6990 = vsel %vm446, %v6964, %v6989
      %v6992 = vunpack.c.l.s4 1983009808
      %v6993 = vunpack.c.0.s8 %v6992
      %v6994 = vperm.slane %v6988, %v6993
      %v6996 = vunpack.c.l.s4 1983009808
      %v6997 = vunpack.c.0.s8 %v6996
      %v6998 = vperm.slane %v6990, %v6997
      %v6999 = vrot.slane %v6994, 4
      %v7000 = vsel %vm446, %v6999, %v6982
      %v7001 = vrot.slane %v6982, 4
      %v7002 = vsel %vm446, %v6994, %v7001
      %v7004 = vunpack.c.l.s4 1934713408
      %v7005 = vunpack.c.0.s8 %v7004
      %v7006 = vperm.slane %v7000, %v7005
      %v7008 = vunpack.c.l.s4 1934713408
      %v7009 = vunpack.c.0.s8 %v7008
      %v7010 = vperm.slane %v7002, %v7009
      %v7011 = vrot.slane %v6998, 4
      %v7012 = vsel %vm446, %v7011, %v6986
      %v7013 = vrot.slane %v6986, 4
      %v7014 = vsel %vm446, %v6998, %v7013
      %v7016 = vunpack.c.l.s4 1934713408
      %v7017 = vunpack.c.0.s8 %v7016
      %v7018 = vperm.slane %v7012, %v7017
      %v7020 = vunpack.c.l.s4 1934713408
      %v7021 = vunpack.c.0.s8 %v7020
      %v7022 = vperm.slane %v7014, %v7021
      %v7023 = vrot.slane %v7006, 4
      %v7024 = vsel %vm446, 0.0, %v7023
      %v7025 = vrot.slane %v7010, 4
      %v7026 = vsel %vm446, 0.0, %v7025
      %v7027 = vrot.slane %v7018, 4
      %v7028 = vsel %vm446, 0.0, %v7027
      %v7029 = vrot.slane %v7022, 4
      %v7030 = vsel %vm446, 0.0, %v7029
      %v7031 = vrot.slane %v6962, 4
      %v7032 = vsel %vm446, %v7031, %v6954
      %v7033 = vrot.slane %v6954, 4
      %v7034 = vsel %vm446, %v6962, %v7033
      %v7036 = vunpack.c.l.s4 1983009808
      %v7037 = vunpack.c.0.s8 %v7036
      %v7038 = vperm.slane %v7032, %v7037
      %v7040 = vunpack.c.l.s4 1983009808
      %v7041 = vunpack.c.0.s8 %v7040
      %v7042 = vperm.slane %v7034, %v7041
      %v7043 = vrot.slane %v6966, 4
      %v7044 = vsel %vm446, %v7043, %v6958
      %v7045 = vrot.slane %v6958, 4
      %v7046 = vsel %vm446, %v6966, %v7045
      %v7048 = vunpack.c.l.s4 1983009808
      %v7049 = vunpack.c.0.s8 %v7048
      %v7050 = vperm.slane %v7044, %v7049
      %v7052 = vunpack.c.l.s4 1983009808
      %v7053 = vunpack.c.0.s8 %v7052
      %v7054 = vperm.slane %v7046, %v7053
      %v7055 = vrot.slane %v7050, 4
      %v7056 = vsel %vm446, %v7055, %v7038
      %v7057 = vrot.slane %v7038, 4
      %v7058 = vsel %vm446, %v7050, %v7057
      %v7060 = vunpack.c.l.s4 1934713408
      %v7061 = vunpack.c.0.s8 %v7060
      %v7062 = vperm.slane %v7056, %v7061
      %v7064 = vunpack.c.l.s4 1934713408
      %v7065 = vunpack.c.0.s8 %v7064
      %v7066 = vperm.slane %v7058, %v7065
      %v7067 = vrot.slane %v7054, 4
      %v7068 = vsel %vm446, %v7067, %v7042
      %v7069 = vrot.slane %v7042, 4
      %v7070 = vsel %vm446, %v7054, %v7069
      %v7072 = vunpack.c.l.s4 1934713408
      %v7073 = vunpack.c.0.s8 %v7072
      %v7074 = vperm.slane %v7068, %v7073
      %v7076 = vunpack.c.l.s4 1934713408
      %v7077 = vunpack.c.0.s8 %v7076
      %v7078 = vperm.slane %v7070, %v7077
      %v7079 = vrot.slane %v7062, 4
      %v7080 = vsel %vm446, 0.0, %v7079
      %v7081 = vrot.slane %v7066, 4
      %v7082 = vsel %vm446, 0.0, %v7081
      %v7083 = vrot.slane %v7074, 4
      %v7084 = vsel %vm446, 0.0, %v7083
      %v7085 = vrot.slane %v7078, 4
      %v7086 = vsel %vm446, 0.0, %v7085
      %7088 = vrot.lane.b32.xlu0 %v7024, 16
      %v7089 = vpop.permute.xlu0 %7088
      %7092 = vrot.lane.b32.xlu0 %v7010, 32
      %v7093 = vpop.permute.xlu0 %7092
      %7096 = vrot.lane.b32.xlu0 %v7026, 48
      %v7097 = vpop.permute.xlu0 %7096
      %7100 = vrot.lane.b32.xlu0 %v7018, 64
      %v7101 = vpop.permute.xlu0 %7100
      %7104 = vrot.lane.b32.xlu0 %v7028, 80
      %v7105 = vpop.permute.xlu0 %7104
      %7108 = vrot.lane.b32.xlu0 %v7022, 96
      %v7109 = vpop.permute.xlu0 %7108
      %7112 = vrot.lane.b32.xlu0 %v7030, 112
      %v7113 = vpop.permute.xlu0 %7112
      %7116 = vrot.lane.b32.xlu0 %v7080, 16
      %v7117 = vpop.permute.xlu0 %7116
      %7120 = vrot.lane.b32.xlu0 %v7066, 32
      %v7121 = vpop.permute.xlu0 %7120
      %7124 = vrot.lane.b32.xlu0 %v7082, 48
      %v7125 = vpop.permute.xlu0 %7124
      %7128 = vrot.lane.b32.xlu0 %v7074, 64
      %v7129 = vpop.permute.xlu0 %7128
      %7132 = vrot.lane.b32.xlu0 %v7084, 80
      %v7133 = vpop.permute.xlu0 %7132
      %7136 = vrot.lane.b32.xlu0 %v7078, 96
      %v7137 = vpop.permute.xlu0 %7136
      %7140 = vrot.lane.b32.xlu0 %v7086, 112
      %v7141 = vpop.permute.xlu0 %7140
      %v7143 = vsel %vm614, %v7006, %v7089
      %v7144 = vsel %vm616, %v7143, %v7093
      %v7145 = vsel %vm618, %v7144, %v7097
      %v7146 = vsel %vm620, %v7145, %v7101
      %v7147 = vsel %vm622, %v7146, %v7105
      %v7148 = vsel %vm624, %v7147, %v7109
      %v7149 = vsel %vm626, %v7148, %v7113
      %v7150 = vsel %vm614, %v7062, %v7117
      %v7151 = vsel %vm616, %v7150, %v7121
      %v7152 = vsel %vm618, %v7151, %v7125
      %v7153 = vsel %vm620, %v7152, %v7129
      %v7154 = vsel %vm622, %v7153, %v7133
      %v7155 = vsel %vm624, %v7154, %v7137
      %v7156 = vsel %vm626, %v7155, %v7141
      %7158 = vrot.lane.b32.xlu0 %v6942, 108
      %v7159 = vpop.permute.xlu0 %7158
      %v7160 = vsel %vm852, %v7159, 0
      %v7163 = vsel %vm855, %v7149, 0
      %v7166 = vsel %vm855, %v7156, 0
      %7168 = vmatpush.msra.mxu0 0.0
      %7169 = vmatpush.msra.mxu0 0.0
      %7170 = vmatpush.msra.mxu0 0.0
      %7171 = vmatpush.msra.mxu0 0.0
      %7172 = vmatpush.msra.mxu0 0.0
      %7173 = vmatpush.msra.mxu0 0.0
      %7174 = vmatpush.msra.mxu0 0.0
      %7175 = vmatpush.msra.mxu0 0.0
      %7176 = vmatpush.msra.mxu0 0.0
      %7177 = vmatpush.msra.mxu0 0.0
      %7178 = vmatpush.msra.mxu0 0.0
      %7179 = vmatpush.msra.mxu0 0.0
      %7180 = vmatpush.msra.mxu0 0.0
      %7181 = vmatpush.msra.mxu0 0.0
      %7182 = vmatpush.msra.mxu0 0.0
      %7183 = vmatpush.msra.mxu0 %v7163
      %7184 = vmatmul.f32.gmra.mxu0 %v7160
      %v7185 = vpop.f32.mrf.mxu0
      %v7186 = vadd.f32 0.0, %v7185
      %7187 = vdwg.mxu0
      %7188 = vmatpush.msra.mxu0 0.0
      %7189 = vmatpush.msra.mxu0 0.0
      %7190 = vmatpush.msra.mxu0 0.0
      %7191 = vmatpush.msra.mxu0 0.0
      %7192 = vmatpush.msra.mxu0 0.0
      %7193 = vmatpush.msra.mxu0 0.0
      %7194 = vmatpush.msra.mxu0 0.0
      %7195 = vmatpush.msra.mxu0 0.0
      %7196 = vmatpush.msra.mxu0 0.0
      %7197 = vmatpush.msra.mxu0 0.0
      %7198 = vmatpush.msra.mxu0 0.0
      %7199 = vmatpush.msra.mxu0 0.0
      %7200 = vmatpush.msra.mxu0 0.0
      %7201 = vmatpush.msra.mxu0 0.0
      %7202 = vmatpush.msra.mxu0 0.0
      %7203 = vmatpush.msra.mxu0 %v7166
      %7204 = vmatmul.f32.gmra.mxu0 %v7160
      %v7205 = vpop.f32.mrf.mxu0
      %v7206 = vadd.f32 0.0, %v7205
      %7207 = vdwg.mxu0
      %v7208 = vadd.f32 %v6932, %v7186
      %v7209 = vadd.f32 %v6933, %v7206
      %v7210 = vld [vmem:[#allocation3 + $0x2] sm:$0xff]
      %v7211 = vld [vmem:[#allocation3 + $0xa] sm:$0xff]
      %v7212 = vld [vmem:[#allocation3 + $0x1a] sm:$0xff]
      %v7213 = vld [vmem:[#allocation3 + $0x22] sm:$0xff]
      %v7214 = vld [vmem:[#allocation3 + $0x32] sm:$0xff]
      %v7215 = vld [vmem:[#allocation3 + $0x3a] sm:$0xff]
      %v7216 = vld [vmem:[#allocation3 + $0x4a] sm:$0xff]
      %v7217 = vld [vmem:[#allocation3 + $0x52] sm:$0xff]
      %v7218 = vld [vmem:[%s3] sm:$0xf]
      %v7219 = vrot.slane %v7214, 4
      %v7220 = vsel %vm446, %v7219, %v7210
      %v7221 = vrot.slane %v7210, 4
      %v7222 = vsel %vm446, %v7214, %v7221
      %v7224 = vunpack.c.l.s4 1983009808
      %v7225 = vunpack.c.0.s8 %v7224
      %v7226 = vperm.slane %v7220, %v7225
      %v7228 = vunpack.c.l.s4 1983009808
      %v7229 = vunpack.c.0.s8 %v7228
      %v7230 = vperm.slane %v7222, %v7229
      %v7231 = vrot.slane %v7216, 4
      %v7232 = vsel %vm446, %v7231, %v7212
      %v7233 = vrot.slane %v7212, 4
      %v7234 = vsel %vm446, %v7216, %v7233
      %v7236 = vunpack.c.l.s4 1983009808
      %v7237 = vunpack.c.0.s8 %v7236
      %v7238 = vperm.slane %v7232, %v7237
      %v7240 = vunpack.c.l.s4 1983009808
      %v7241 = vunpack.c.0.s8 %v7240
      %v7242 = vperm.slane %v7234, %v7241
      %v7243 = vrot.slane %v7238, 4
      %v7244 = vsel %vm446, %v7243, %v7226
      %v7245 = vrot.slane %v7226, 4
      %v7246 = vsel %vm446, %v7238, %v7245
      %v7248 = vunpack.c.l.s4 1934713408
      %v7249 = vunpack.c.0.s8 %v7248
      %v7250 = vperm.slane %v7244, %v7249
      %v7252 = vunpack.c.l.s4 1934713408
      %v7253 = vunpack.c.0.s8 %v7252
      %v7254 = vperm.slane %v7246, %v7253
      %v7255 = vrot.slane %v7242, 4
      %v7256 = vsel %vm446, %v7255, %v7230
      %v7257 = vrot.slane %v7230, 4
      %v7258 = vsel %vm446, %v7242, %v7257
      %v7260 = vunpack.c.l.s4 1934713408
      %v7261 = vunpack.c.0.s8 %v7260
      %v7262 = vperm.slane %v7256, %v7261
      %v7264 = vunpack.c.l.s4 1934713408
      %v7265 = vunpack.c.0.s8 %v7264
      %v7266 = vperm.slane %v7258, %v7265
      %v7267 = vrot.slane %v7250, 4
      %v7268 = vsel %vm446, 0.0, %v7267
      %v7269 = vrot.slane %v7254, 4
      %v7270 = vsel %vm446, 0.0, %v7269
      %v7271 = vrot.slane %v7262, 4
      %v7272 = vsel %vm446, 0.0, %v7271
      %v7273 = vrot.slane %v7266, 4
      %v7274 = vsel %vm446, 0.0, %v7273
      %v7275 = vrot.slane %v7215, 4
      %v7276 = vsel %vm446, %v7275, %v7211
      %v7277 = vrot.slane %v7211, 4
      %v7278 = vsel %vm446, %v7215, %v7277
      %v7280 = vunpack.c.l.s4 1983009808
      %v7281 = vunpack.c.0.s8 %v7280
      %v7282 = vperm.slane %v7276, %v7281
      %v7284 = vunpack.c.l.s4 1983009808
      %v7285 = vunpack.c.0.s8 %v7284
      %v7286 = vperm.slane %v7278, %v7285
      %v7287 = vrot.slane %v7217, 4
      %v7288 = vsel %vm446, %v7287, %v7213
      %v7289 = vrot.slane %v7213, 4
      %v7290 = vsel %vm446, %v7217, %v7289
      %v7292 = vunpack.c.l.s4 1983009808
      %v7293 = vunpack.c.0.s8 %v7292
      %v7294 = vperm.slane %v7288, %v7293
      %v7296 = vunpack.c.l.s4 1983009808
      %v7297 = vunpack.c.0.s8 %v7296
      %v7298 = vperm.slane %v7290, %v7297
      %v7299 = vrot.slane %v7294, 4
      %v7300 = vsel %vm446, %v7299, %v7282
      %v7301 = vrot.slane %v7282, 4
      %v7302 = vsel %vm446, %v7294, %v7301
      %v7304 = vunpack.c.l.s4 1934713408
      %v7305 = vunpack.c.0.s8 %v7304
      %v7306 = vperm.slane %v7300, %v7305
      %v7308 = vunpack.c.l.s4 1934713408
      %v7309 = vunpack.c.0.s8 %v7308
      %v7310 = vperm.slane %v7302, %v7309
      %v7311 = vrot.slane %v7298, 4
      %v7312 = vsel %vm446, %v7311, %v7286
      %v7313 = vrot.slane %v7286, 4
      %v7314 = vsel %vm446, %v7298, %v7313
      %v7316 = vunpack.c.l.s4 1934713408
      %v7317 = vunpack.c.0.s8 %v7316
      %v7318 = vperm.slane %v7312, %v7317
      %v7320 = vunpack.c.l.s4 1934713408
      %v7321 = vunpack.c.0.s8 %v7320
      %v7322 = vperm.slane %v7314, %v7321
      %v7323 = vrot.slane %v7306, 4
      %v7324 = vsel %vm446, 0.0, %v7323
      %v7325 = vrot.slane %v7310, 4
      %v7326 = vsel %vm446, 0.0, %v7325
      %v7327 = vrot.slane %v7318, 4
      %v7328 = vsel %vm446, 0.0, %v7327
      %v7329 = vrot.slane %v7322, 4
      %v7330 = vsel %vm446, 0.0, %v7329
      %7332 = vrot.lane.b32.xlu0 %v7268, 16
      %v7333 = vpop.permute.xlu0 %7332
      %7336 = vrot.lane.b32.xlu0 %v7254, 32
      %v7337 = vpop.permute.xlu0 %7336
      %7340 = vrot.lane.b32.xlu0 %v7270, 48
      %v7341 = vpop.permute.xlu0 %7340
      %7344 = vrot.lane.b32.xlu0 %v7262, 64
      %v7345 = vpop.permute.xlu0 %7344
      %7348 = vrot.lane.b32.xlu0 %v7272, 80
      %v7349 = vpop.permute.xlu0 %7348
      %7352 = vrot.lane.b32.xlu0 %v7266, 96
      %v7353 = vpop.permute.xlu0 %7352
      %7356 = vrot.lane.b32.xlu0 %v7274, 112
      %v7357 = vpop.permute.xlu0 %7356
      %7360 = vrot.lane.b32.xlu0 %v7324, 16
      %v7361 = vpop.permute.xlu0 %7360
      %7364 = vrot.lane.b32.xlu0 %v7310, 32
      %v7365 = vpop.permute.xlu0 %7364
      %7368 = vrot.lane.b32.xlu0 %v7326, 48
      %v7369 = vpop.permute.xlu0 %7368
      %7372 = vrot.lane.b32.xlu0 %v7318, 64
      %v7373 = vpop.permute.xlu0 %7372
      %7376 = vrot.lane.b32.xlu0 %v7328, 80
      %v7377 = vpop.permute.xlu0 %7376
      %7380 = vrot.lane.b32.xlu0 %v7322, 96
      %v7381 = vpop.permute.xlu0 %7380
      %7384 = vrot.lane.b32.xlu0 %v7330, 112
      %v7385 = vpop.permute.xlu0 %7384
      %v7387 = vsel %vm614, %v7250, %v7333
      %v7388 = vsel %vm616, %v7387, %v7337
      %v7389 = vsel %vm618, %v7388, %v7341
      %v7390 = vsel %vm620, %v7389, %v7345
      %v7391 = vsel %vm622, %v7390, %v7349
      %v7392 = vsel %vm624, %v7391, %v7353
      %v7393 = vsel %vm626, %v7392, %v7357
      %v7394 = vsel %vm614, %v7306, %v7361
      %v7395 = vsel %vm616, %v7394, %v7365
      %v7396 = vsel %vm618, %v7395, %v7369
      %v7397 = vsel %vm620, %v7396, %v7373
      %v7398 = vsel %vm622, %v7397, %v7377
      %v7399 = vsel %vm624, %v7398, %v7381
      %v7400 = vsel %vm626, %v7399, %v7385
      %7402 = vrot.lane.b32.xlu0 %v7218, 104
      %v7403 = vpop.permute.xlu0 %7402
      %v7404 = vsel %vm852, %v7403, 0
      %v7407 = vsel %vm855, %v7393, 0
      %v7410 = vsel %vm855, %v7400, 0
      %7412 = vmatpush.msra.mxu0 0.0
      %7413 = vmatpush.msra.mxu0 0.0
      %7414 = vmatpush.msra.mxu0 0.0
      %7415 = vmatpush.msra.mxu0 0.0
      %7416 = vmatpush.msra.mxu0 0.0
      %7417 = vmatpush.msra.mxu0 0.0
      %7418 = vmatpush.msra.mxu0 0.0
      %7419 = vmatpush.msra.mxu0 0.0
      %7420 = vmatpush.msra.mxu0 0.0
      %7421 = vmatpush.msra.mxu0 0.0
      %7422 = vmatpush.msra.mxu0 0.0
      %7423 = vmatpush.msra.mxu0 0.0
      %7424 = vmatpush.msra.mxu0 0.0
      %7425 = vmatpush.msra.mxu0 0.0
      %7426 = vmatpush.msra.mxu0 0.0
      %7427 = vmatpush.msra.mxu0 %v7407
      %7428 = vmatmul.f32.gmra.mxu0 %v7404
      %v7429 = vpop.f32.mrf.mxu0
      %v7430 = vadd.f32 0.0, %v7429
      %7431 = vdwg.mxu0
      %7432 = vmatpush.msra.mxu0 0.0
      %7433 = vmatpush.msra.mxu0 0.0
      %7434 = vmatpush.msra.mxu0 0.0
      %7435 = vmatpush.msra.mxu0 0.0
      %7436 = vmatpush.msra.mxu0 0.0
      %7437 = vmatpush.msra.mxu0 0.0
      %7438 = vmatpush.msra.mxu0 0.0
      %7439 = vmatpush.msra.mxu0 0.0
      %7440 = vmatpush.msra.mxu0 0.0
      %7441 = vmatpush.msra.mxu0 0.0
      %7442 = vmatpush.msra.mxu0 0.0
      %7443 = vmatpush.msra.mxu0 0.0
      %7444 = vmatpush.msra.mxu0 0.0
      %7445 = vmatpush.msra.mxu0 0.0
      %7446 = vmatpush.msra.mxu0 0.0
      %7447 = vmatpush.msra.mxu0 %v7410
      %7448 = vmatmul.f32.gmra.mxu0 %v7404
      %v7449 = vpop.f32.mrf.mxu0
      %v7450 = vadd.f32 0.0, %v7449
      %7451 = vdwg.mxu0
      %v7452 = vadd.f32 %v7208, %v7430
      %v7453 = vadd.f32 %v7209, %v7450
      %v7454 = vld [vmem:[#allocation3 + $0x2] sm:$0xff]
      %v7455 = vld [vmem:[#allocation3 + $0xa] sm:$0xff]
      %v7456 = vld [vmem:[#allocation3 + $0x1a] sm:$0xff]
      %v7457 = vld [vmem:[#allocation3 + $0x22] sm:$0xff]
      %v7458 = vld [vmem:[#allocation3 + $0x32] sm:$0xff]
      %v7459 = vld [vmem:[#allocation3 + $0x3a] sm:$0xff]
      %v7460 = vld [vmem:[#allocation3 + $0x4a] sm:$0xff]
      %v7461 = vld [vmem:[#allocation3 + $0x52] sm:$0xff]
      %v7462 = vld [vmem:[%s3] sm:$0xf]
      %7471 = vrot.lane.b32.xlu0 %v7454, 127
      %v7472 = vpop.permute.xlu0 %7471
      %7473 = vrot.lane.b32.xlu0 %v7455, 127
      %v7474 = vpop.permute.xlu0 %7473
      %7475 = vrot.lane.b32.xlu0 %v7456, 127
      %v7476 = vpop.permute.xlu0 %7475
      %7477 = vrot.lane.b32.xlu0 %v7457, 127
      %v7478 = vpop.permute.xlu0 %7477
      %7479 = vrot.lane.b32.xlu0 %v7458, 127
      %v7480 = vpop.permute.xlu0 %7479
      %7481 = vrot.lane.b32.xlu0 %v7459, 127
      %v7482 = vpop.permute.xlu0 %7481
      %7483 = vrot.lane.b32.xlu0 %v7460, 127
      %v7484 = vpop.permute.xlu0 %7483
      %7485 = vrot.lane.b32.xlu0 %v7461, 127
      %v7486 = vpop.permute.xlu0 %7485
      %v7495 = vrot.slane %v7480, 4
      %v7496 = vsel %vm446, %v7495, %v7472
      %v7497 = vrot.slane %v7472, 4
      %v7498 = vsel %vm446, %v7480, %v7497
      %v7500 = vunpack.c.l.s4 1983009808
      %v7501 = vunpack.c.0.s8 %v7500
      %v7502 = vperm.slane %v7496, %v7501
      %v7504 = vunpack.c.l.s4 1983009808
      %v7505 = vunpack.c.0.s8 %v7504
      %v7506 = vperm.slane %v7498, %v7505
      %v7507 = vrot.slane %v7484, 4
      %v7508 = vsel %vm446, %v7507, %v7476
      %v7509 = vrot.slane %v7476, 4
      %v7510 = vsel %vm446, %v7484, %v7509
      %v7512 = vunpack.c.l.s4 1983009808
      %v7513 = vunpack.c.0.s8 %v7512
      %v7514 = vperm.slane %v7508, %v7513
      %v7516 = vunpack.c.l.s4 1983009808
      %v7517 = vunpack.c.0.s8 %v7516
      %v7518 = vperm.slane %v7510, %v7517
      %v7519 = vrot.slane %v7514, 4
      %v7520 = vsel %vm446, %v7519, %v7502
      %v7521 = vrot.slane %v7502, 4
      %v7522 = vsel %vm446, %v7514, %v7521
      %v7524 = vunpack.c.l.s4 1934713408
      %v7525 = vunpack.c.0.s8 %v7524
      %v7526 = vperm.slane %v7520, %v7525
      %v7528 = vunpack.c.l.s4 1934713408
      %v7529 = vunpack.c.0.s8 %v7528
      %v7530 = vperm.slane %v7522, %v7529
      %v7531 = vrot.slane %v7518, 4
      %v7532 = vsel %vm446, %v7531, %v7506
      %v7533 = vrot.slane %v7506, 4
      %v7534 = vsel %vm446, %v7518, %v7533
      %v7536 = vunpack.c.l.s4 1934713408
      %v7537 = vunpack.c.0.s8 %v7536
      %v7538 = vperm.slane %v7532, %v7537
      %v7540 = vunpack.c.l.s4 1934713408
      %v7541 = vunpack.c.0.s8 %v7540
      %v7542 = vperm.slane %v7534, %v7541
      %v7543 = vrot.slane %v7526, 4
      %v7544 = vsel %vm446, 0.0, %v7543
      %v7545 = vrot.slane %v7530, 4
      %v7546 = vsel %vm446, 0.0, %v7545
      %v7547 = vrot.slane %v7538, 4
      %v7548 = vsel %vm446, 0.0, %v7547
      %v7549 = vrot.slane %v7542, 4
      %v7550 = vsel %vm446, 0.0, %v7549
      %v7551 = vrot.slane %v7482, 4
      %v7552 = vsel %vm446, %v7551, %v7474
      %v7553 = vrot.slane %v7474, 4
      %v7554 = vsel %vm446, %v7482, %v7553
      %v7556 = vunpack.c.l.s4 1983009808
      %v7557 = vunpack.c.0.s8 %v7556
      %v7558 = vperm.slane %v7552, %v7557
      %v7560 = vunpack.c.l.s4 1983009808
      %v7561 = vunpack.c.0.s8 %v7560
      %v7562 = vperm.slane %v7554, %v7561
      %v7563 = vrot.slane %v7486, 4
      %v7564 = vsel %vm446, %v7563, %v7478
      %v7565 = vrot.slane %v7478, 4
      %v7566 = vsel %vm446, %v7486, %v7565
      %v7568 = vunpack.c.l.s4 1983009808
      %v7569 = vunpack.c.0.s8 %v7568
      %v7570 = vperm.slane %v7564, %v7569
      %v7572 = vunpack.c.l.s4 1983009808
      %v7573 = vunpack.c.0.s8 %v7572
      %v7574 = vperm.slane %v7566, %v7573
      %v7575 = vrot.slane %v7570, 4
      %v7576 = vsel %vm446, %v7575, %v7558
      %v7577 = vrot.slane %v7558, 4
      %v7578 = vsel %vm446, %v7570, %v7577
      %v7580 = vunpack.c.l.s4 1934713408
      %v7581 = vunpack.c.0.s8 %v7580
      %v7582 = vperm.slane %v7576, %v7581
      %v7584 = vunpack.c.l.s4 1934713408
      %v7585 = vunpack.c.0.s8 %v7584
      %v7586 = vperm.slane %v7578, %v7585
      %v7587 = vrot.slane %v7574, 4
      %v7588 = vsel %vm446, %v7587, %v7562
      %v7589 = vrot.slane %v7562, 4
      %v7590 = vsel %vm446, %v7574, %v7589
      %v7592 = vunpack.c.l.s4 1934713408
      %v7593 = vunpack.c.0.s8 %v7592
      %v7594 = vperm.slane %v7588, %v7593
      %v7596 = vunpack.c.l.s4 1934713408
      %v7597 = vunpack.c.0.s8 %v7596
      %v7598 = vperm.slane %v7590, %v7597
      %v7599 = vrot.slane %v7582, 4
      %v7600 = vsel %vm446, 0.0, %v7599
      %v7601 = vrot.slane %v7586, 4
      %v7602 = vsel %vm446, 0.0, %v7601
      %v7603 = vrot.slane %v7594, 4
      %v7604 = vsel %vm446, 0.0, %v7603
      %v7605 = vrot.slane %v7598, 4
      %v7606 = vsel %vm446, 0.0, %v7605
      %7608 = vrot.lane.b32.xlu0 %v7544, 16
      %v7609 = vpop.permute.xlu0 %7608
      %7612 = vrot.lane.b32.xlu0 %v7530, 32
      %v7613 = vpop.permute.xlu0 %7612
      %7616 = vrot.lane.b32.xlu0 %v7546, 48
      %v7617 = vpop.permute.xlu0 %7616
      %7620 = vrot.lane.b32.xlu0 %v7538, 64
      %v7621 = vpop.permute.xlu0 %7620
      %7624 = vrot.lane.b32.xlu0 %v7548, 80
      %v7625 = vpop.permute.xlu0 %7624
      %7628 = vrot.lane.b32.xlu0 %v7542, 96
      %v7629 = vpop.permute.xlu0 %7628
      %7632 = vrot.lane.b32.xlu0 %v7550, 112
      %v7633 = vpop.permute.xlu0 %7632
      %7636 = vrot.lane.b32.xlu0 %v7600, 16
      %v7637 = vpop.permute.xlu0 %7636
      %7640 = vrot.lane.b32.xlu0 %v7586, 32
      %v7641 = vpop.permute.xlu0 %7640
      %7644 = vrot.lane.b32.xlu0 %v7602, 48
      %v7645 = vpop.permute.xlu0 %7644
      %7648 = vrot.lane.b32.xlu0 %v7594, 64
      %v7649 = vpop.permute.xlu0 %7648
      %7652 = vrot.lane.b32.xlu0 %v7604, 80
      %v7653 = vpop.permute.xlu0 %7652
      %7656 = vrot.lane.b32.xlu0 %v7598, 96
      %v7657 = vpop.permute.xlu0 %7656
      %7660 = vrot.lane.b32.xlu0 %v7606, 112
      %v7661 = vpop.permute.xlu0 %7660
      %v7663 = vsel %vm614, %v7526, %v7609
      %v7664 = vsel %vm616, %v7663, %v7613
      %v7665 = vsel %vm618, %v7664, %v7617
      %v7666 = vsel %vm620, %v7665, %v7621
      %v7667 = vsel %vm622, %v7666, %v7625
      %v7668 = vsel %vm624, %v7667, %v7629
      %v7669 = vsel %vm626, %v7668, %v7633
      %v7670 = vsel %vm614, %v7582, %v7637
      %v7671 = vsel %vm616, %v7670, %v7641
      %v7672 = vsel %vm618, %v7671, %v7645
      %v7673 = vsel %vm620, %v7672, %v7649
      %v7674 = vsel %vm622, %v7673, %v7653
      %v7675 = vsel %vm624, %v7674, %v7657
      %v7676 = vsel %vm626, %v7675, %v7661
      %7678 = vrot.lane.b32.xlu0 %v7462, 100
      %v7679 = vpop.permute.xlu0 %7678
      %v7680 = vsel %vm852, %v7679, 0
      %v7683 = vsel %vm855, %v7669, 0
      %v7686 = vsel %vm855, %v7676, 0
      %7688 = vmatpush.msra.mxu0 0.0
      %7689 = vmatpush.msra.mxu0 0.0
      %7690 = vmatpush.msra.mxu0 0.0
      %7691 = vmatpush.msra.mxu0 0.0
      %7692 = vmatpush.msra.mxu0 0.0
      %7693 = vmatpush.msra.mxu0 0.0
      %7694 = vmatpush.msra.mxu0 0.0
      %7695 = vmatpush.msra.mxu0 0.0
      %7696 = vmatpush.msra.mxu0 0.0
      %7697 = vmatpush.msra.mxu0 0.0
      %7698 = vmatpush.msra.mxu0 0.0
      %7699 = vmatpush.msra.mxu0 0.0
      %7700 = vmatpush.msra.mxu0 0.0
      %7701 = vmatpush.msra.mxu0 0.0
      %7702 = vmatpush.msra.mxu0 0.0
      %7703 = vmatpush.msra.mxu0 %v7683
      %7704 = vmatmul.f32.gmra.mxu0 %v7680
      %v7705 = vpop.f32.mrf.mxu0
      %v7706 = vadd.f32 0.0, %v7705
      %7707 = vdwg.mxu0
      %7708 = vmatpush.msra.mxu0 0.0
      %7709 = vmatpush.msra.mxu0 0.0
      %7710 = vmatpush.msra.mxu0 0.0
      %7711 = vmatpush.msra.mxu0 0.0
      %7712 = vmatpush.msra.mxu0 0.0
      %7713 = vmatpush.msra.mxu0 0.0
      %7714 = vmatpush.msra.mxu0 0.0
      %7715 = vmatpush.msra.mxu0 0.0
      %7716 = vmatpush.msra.mxu0 0.0
      %7717 = vmatpush.msra.mxu0 0.0
      %7718 = vmatpush.msra.mxu0 0.0
      %7719 = vmatpush.msra.mxu0 0.0
      %7720 = vmatpush.msra.mxu0 0.0
      %7721 = vmatpush.msra.mxu0 0.0
      %7722 = vmatpush.msra.mxu0 0.0
      %7723 = vmatpush.msra.mxu0 %v7686
      %7724 = vmatmul.f32.gmra.mxu0 %v7680
      %v7725 = vpop.f32.mrf.mxu0
      %v7726 = vadd.f32 0.0, %v7725
      %7727 = vdwg.mxu0
      %v7728 = vadd.f32 %v7452, %v7706
      %v7729 = vadd.f32 %v7453, %v7726
      %v7730 = vld [vmem:[#allocation3 + $0x2] sm:$0xff]
      %v7731 = vld [vmem:[#allocation3 + $0xa] sm:$0xff]
      %v7732 = vld [vmem:[#allocation3 + $0x1a] sm:$0xff]
      %v7733 = vld [vmem:[#allocation3 + $0x22] sm:$0xff]
      %v7734 = vld [vmem:[#allocation3 + $0x32] sm:$0xff]
      %v7735 = vld [vmem:[#allocation3 + $0x3a] sm:$0xff]
      %v7736 = vld [vmem:[#allocation3 + $0x4a] sm:$0xff]
      %v7737 = vld [vmem:[#allocation3 + $0x52] sm:$0xff]
      %v7738 = vld [vmem:[%s3] sm:$0xf]
      %7747 = vrot.lane.b32.xlu0 %v7730, 126
      %v7748 = vpop.permute.xlu0 %7747
      %7749 = vrot.lane.b32.xlu0 %v7731, 126
      %v7750 = vpop.permute.xlu0 %7749
      %7751 = vrot.lane.b32.xlu0 %v7732, 126
      %v7752 = vpop.permute.xlu0 %7751
      %7753 = vrot.lane.b32.xlu0 %v7733, 126
      %v7754 = vpop.permute.xlu0 %7753
      %7755 = vrot.lane.b32.xlu0 %v7734, 126
      %v7756 = vpop.permute.xlu0 %7755
      %7757 = vrot.lane.b32.xlu0 %v7735, 126
      %v7758 = vpop.permute.xlu0 %7757
      %7759 = vrot.lane.b32.xlu0 %v7736, 126
      %v7760 = vpop.permute.xlu0 %7759
      %7761 = vrot.lane.b32.xlu0 %v7737, 126
      %v7762 = vpop.permute.xlu0 %7761
      %v7771 = vrot.slane %v7756, 4
      %v7772 = vsel %vm446, %v7771, %v7748
      %v7773 = vrot.slane %v7748, 4
      %v7774 = vsel %vm446, %v7756, %v7773
      %v7776 = vunpack.c.l.s4 1983009808
      %v7777 = vunpack.c.0.s8 %v7776
      %v7778 = vperm.slane %v7772, %v7777
      %v7780 = vunpack.c.l.s4 1983009808
      %v7781 = vunpack.c.0.s8 %v7780
      %v7782 = vperm.slane %v7774, %v7781
      %v7783 = vrot.slane %v7760, 4
      %v7784 = vsel %vm446, %v7783, %v7752
      %v7785 = vrot.slane %v7752, 4
      %v7786 = vsel %vm446, %v7760, %v7785
      %v7788 = vunpack.c.l.s4 1983009808
      %v7789 = vunpack.c.0.s8 %v7788
      %v7790 = vperm.slane %v7784, %v7789
      %v7792 = vunpack.c.l.s4 1983009808
      %v7793 = vunpack.c.0.s8 %v7792
      %v7794 = vperm.slane %v7786, %v7793
      %v7795 = vrot.slane %v7790, 4
      %v7796 = vsel %vm446, %v7795, %v7778
      %v7797 = vrot.slane %v7778, 4
      %v7798 = vsel %vm446, %v7790, %v7797
      %v7800 = vunpack.c.l.s4 1934713408
      %v7801 = vunpack.c.0.s8 %v7800
      %v7802 = vperm.slane %v7796, %v7801
      %v7804 = vunpack.c.l.s4 1934713408
      %v7805 = vunpack.c.0.s8 %v7804
      %v7806 = vperm.slane %v7798, %v7805
      %v7807 = vrot.slane %v7794, 4
      %v7808 = vsel %vm446, %v7807, %v7782
      %v7809 = vrot.slane %v7782, 4
      %v7810 = vsel %vm446, %v7794, %v7809
      %v7812 = vunpack.c.l.s4 1934713408
      %v7813 = vunpack.c.0.s8 %v7812
      %v7814 = vperm.slane %v7808, %v7813
      %v7816 = vunpack.c.l.s4 1934713408
      %v7817 = vunpack.c.0.s8 %v7816
      %v7818 = vperm.slane %v7810, %v7817
      %v7819 = vrot.slane %v7802, 4
      %v7820 = vsel %vm446, 0.0, %v7819
      %v7821 = vrot.slane %v7806, 4
      %v7822 = vsel %vm446, 0.0, %v7821
      %v7823 = vrot.slane %v7814, 4
      %v7824 = vsel %vm446, 0.0, %v7823
      %v7825 = vrot.slane %v7818, 4
      %v7826 = vsel %vm446, 0.0, %v7825
      %v7827 = vrot.slane %v7758, 4
      %v7828 = vsel %vm446, %v7827, %v7750
      %v7829 = vrot.slane %v7750, 4
      %v7830 = vsel %vm446, %v7758, %v7829
      %v7832 = vunpack.c.l.s4 1983009808
      %v7833 = vunpack.c.0.s8 %v7832
      %v7834 = vperm.slane %v7828, %v7833
      %v7836 = vunpack.c.l.s4 1983009808
      %v7837 = vunpack.c.0.s8 %v7836
      %v7838 = vperm.slane %v7830, %v7837
      %v7839 = vrot.slane %v7762, 4
      %v7840 = vsel %vm446, %v7839, %v7754
      %v7841 = vrot.slane %v7754, 4
      %v7842 = vsel %vm446, %v7762, %v7841
      %v7844 = vunpack.c.l.s4 1983009808
      %v7845 = vunpack.c.0.s8 %v7844
      %v7846 = vperm.slane %v7840, %v7845
      %v7848 = vunpack.c.l.s4 1983009808
      %v7849 = vunpack.c.0.s8 %v7848
      %v7850 = vperm.slane %v7842, %v7849
      %v7851 = vrot.slane %v7846, 4
      %v7852 = vsel %vm446, %v7851, %v7834
      %v7853 = vrot.slane %v7834, 4
      %v7854 = vsel %vm446, %v7846, %v7853
      %v7856 = vunpack.c.l.s4 1934713408
      %v7857 = vunpack.c.0.s8 %v7856
      %v7858 = vperm.slane %v7852, %v7857
      %v7860 = vunpack.c.l.s4 1934713408
      %v7861 = vunpack.c.0.s8 %v7860
      %v7862 = vperm.slane %v7854, %v7861
      %v7863 = vrot.slane %v7850, 4
      %v7864 = vsel %vm446, %v7863, %v7838
      %v7865 = vrot.slane %v7838, 4
      %v7866 = vsel %vm446, %v7850, %v7865
      %v7868 = vunpack.c.l.s4 1934713408
      %v7869 = vunpack.c.0.s8 %v7868
      %v7870 = vperm.slane %v7864, %v7869
      %v7872 = vunpack.c.l.s4 1934713408
      %v7873 = vunpack.c.0.s8 %v7872
      %v7874 = vperm.slane %v7866, %v7873
      %v7875 = vrot.slane %v7858, 4
      %v7876 = vsel %vm446, 0.0, %v7875
      %v7877 = vrot.slane %v7862, 4
      %v7878 = vsel %vm446, 0.0, %v7877
      %v7879 = vrot.slane %v7870, 4
      %v7880 = vsel %vm446, 0.0, %v7879
      %v7881 = vrot.slane %v7874, 4
      %v7882 = vsel %vm446, 0.0, %v7881
      %7884 = vrot.lane.b32.xlu0 %v7820, 16
      %v7885 = vpop.permute.xlu0 %7884
      %7888 = vrot.lane.b32.xlu0 %v7806, 32
      %v7889 = vpop.permute.xlu0 %7888
      %7892 = vrot.lane.b32.xlu0 %v7822, 48
      %v7893 = vpop.permute.xlu0 %7892
      %7896 = vrot.lane.b32.xlu0 %v7814, 64
      %v7897 = vpop.permute.xlu0 %7896
      %7900 = vrot.lane.b32.xlu0 %v7824, 80
      %v7901 = vpop.permute.xlu0 %7900
      %7904 = vrot.lane.b32.xlu0 %v7818, 96
      %v7905 = vpop.permute.xlu0 %7904
      %7908 = vrot.lane.b32.xlu0 %v7826, 112
      %v7909 = vpop.permute.xlu0 %7908
      %7912 = vrot.lane.b32.xlu0 %v7876, 16
      %v7913 = vpop.permute.xlu0 %7912
      %7916 = vrot.lane.b32.xlu0 %v7862, 32
      %v7917 = vpop.permute.xlu0 %7916
      %7920 = vrot.lane.b32.xlu0 %v7878, 48
      %v7921 = vpop.permute.xlu0 %7920
      %7924 = vrot.lane.b32.xlu0 %v7870, 64
      %v7925 = vpop.permute.xlu0 %7924
      %7928 = vrot.lane.b32.xlu0 %v7880, 80
      %v7929 = vpop.permute.xlu0 %7928
      %7932 = vrot.lane.b32.xlu0 %v7874, 96
      %v7933 = vpop.permute.xlu0 %7932
      %7936 = vrot.lane.b32.xlu0 %v7882, 112
      %v7937 = vpop.permute.xlu0 %7936
      %v7939 = vsel %vm614, %v7802, %v7885
      %v7940 = vsel %vm616, %v7939, %v7889
      %v7941 = vsel %vm618, %v7940, %v7893
      %v7942 = vsel %vm620, %v7941, %v7897
      %v7943 = vsel %vm622, %v7942, %v7901
      %v7944 = vsel %vm624, %v7943, %v7905
      %v7945 = vsel %vm626, %v7944, %v7909
      %v7946 = vsel %vm614, %v7858, %v7913
      %v7947 = vsel %vm616, %v7946, %v7917
      %v7948 = vsel %vm618, %v7947, %v7921
      %v7949 = vsel %vm620, %v7948, %v7925
      %v7950 = vsel %vm622, %v7949, %v7929
      %v7951 = vsel %vm624, %v7950, %v7933
      %v7952 = vsel %vm626, %v7951, %v7937
      %7954 = vrot.lane.b32.xlu0 %v7738, 96
      %v7955 = vpop.permute.xlu0 %7954
      %v7956 = vsel %vm852, %v7955, 0
      %v7959 = vsel %vm855, %v7945, 0
      %v7962 = vsel %vm855, %v7952, 0
      %7964 = vmatpush.msra.mxu0 0.0
      %7965 = vmatpush.msra.mxu0 0.0
      %7966 = vmatpush.msra.mxu0 0.0
      %7967 = vmatpush.msra.mxu0 0.0
      %7968 = vmatpush.msra.mxu0 0.0
      %7969 = vmatpush.msra.mxu0 0.0
      %7970 = vmatpush.msra.mxu0 0.0
      %7971 = vmatpush.msra.mxu0 0.0
      %7972 = vmatpush.msra.mxu0 0.0
      %7973 = vmatpush.msra.mxu0 0.0
      %7974 = vmatpush.msra.mxu0 0.0
      %7975 = vmatpush.msra.mxu0 0.0
      %7976 = vmatpush.msra.mxu0 0.0
      %7977 = vmatpush.msra.mxu0 0.0
      %7978 = vmatpush.msra.mxu0 0.0
      %7979 = vmatpush.msra.mxu0 %v7959
      %7980 = vmatmul.f32.gmra.mxu0 %v7956
      %v7981 = vpop.f32.mrf.mxu0
      %v7982 = vadd.f32 0.0, %v7981
      %7983 = vdwg.mxu0
      %7984 = vmatpush.msra.mxu0 0.0
      %7985 = vmatpush.msra.mxu0 0.0
      %7986 = vmatpush.msra.mxu0 0.0
      %7987 = vmatpush.msra.mxu0 0.0
      %7988 = vmatpush.msra.mxu0 0.0
      %7989 = vmatpush.msra.mxu0 0.0
      %7990 = vmatpush.msra.mxu0 0.0
      %7991 = vmatpush.msra.mxu0 0.0
      %7992 = vmatpush.msra.mxu0 0.0
      %7993 = vmatpush.msra.mxu0 0.0
      %7994 = vmatpush.msra.mxu0 0.0
      %7995 = vmatpush.msra.mxu0 0.0
      %7996 = vmatpush.msra.mxu0 0.0
      %7997 = vmatpush.msra.mxu0 0.0
      %7998 = vmatpush.msra.mxu0 0.0
      %7999 = vmatpush.msra.mxu0 %v7962
      %8000 = vmatmul.f32.gmra.mxu0 %v7956
      %v8001 = vpop.f32.mrf.mxu0
      %v8002 = vadd.f32 0.0, %v8001
      %8003 = vdwg.mxu0
      %v8004 = vadd.f32 %v7728, %v7982
      %v8005 = vadd.f32 %v7729, %v8002
      %v8006 = vmax.f32 %v8004, 0.0
      %v8007 = vmax.f32 %v8005, 0.0
      %8008 = vst [vmem:[%s197] sm:$0xf] %v8006
      %8009 = vst [vmem:[%s197 + $0x8] sm:$0xf] %v8007
      %s8010 = scalar_lea.vmem %s192, 1
      %v8011 = vld [vmem:[%s8010] ss:$2 sm:$0x3]
      %s8012 = scalar_lea.vmem %s192, 5
      %v8013 = vld [vmem:[%s8012] ss:$2 sm:$0x3]
      %s8014 = scalar_lea.vmem %s192, 9
      %v8015 = vld [vmem:[%s8014] ss:$2 sm:$0x3]
      %s8016 = scalar_lea.vmem %s192, 13
      %v8017 = vld [vmem:[%s8016] ss:$2 sm:$0x3]
      %s8022 = scalar_lea.vmem [#allocation1], 4
      %8023 = vst [vmem:[%s8022] ss:$9 sm:$0xff] %v8011
      %s8024 = scalar_lea.vmem [#allocation1], 5
      %8025 = vst [vmem:[%s8024] ss:$9 sm:$0xff] %v8013
      %s8026 = scalar_lea.vmem [#allocation1], 6
      %8027 = vst [vmem:[%s8026] ss:$9 sm:$0xff] %v8015
      %s8028 = scalar_lea.vmem [#allocation1], 7
      %8029 = vst [vmem:[%s8028] ss:$9 sm:$0xff] %v8017
      %v8030 = vld [vmem:[#allocation1] sm:$0xff]
      %v8031 = vld [vmem:[#allocation1 + $0x9] sm:$0xff]
      %8034 = vst [vmem:[%s197] sm:$0xf0] %v8030
      %8035 = vst [vmem:[%s197 + $0x8] sm:$0xf0] %v8031
      %p8036 = scmp.lt.s32.totalorder %s15, 1
      %s8037 = scalar_select %p8036, %s15, 1
      %s8038 = smul.addr %s8037, 2
      %s8039 = smul.addr %s8038, 8
      %s8040 = scalar_lea.vmem %s4, %s8039
      // Predicated region
      $region37: #{a_call__.1} parent=35 // pred_check
        %p8041 = pneg %p122
      $region38: #{a_call__.1} parent=35 // pred_check_branch
        %8043 = sbr.rel (%p8041) target = $region40
      $region39: #{a_call__.1} parent=35 // pred_region
        _
      $region40: #{a_call__.1} parent=35 // pred_fallthru
        _
    $region36: #{a_call__.1} parent=5 // pred_fallthru
      _
    %p8044 = scmp.le.s32.totalorder 2, %s10
    // Predicated region
    $region41: #{a_call__.1} parent=5 // pred_check
      %p8045 = pneg %p8044
    $region42: #{a_call__.1} parent=5 // pred_check_branch
      %8047 = sbr.rel (%p8045) target = $region44
    $region43: #{a_call__.1} parent=5 // pred_region
      %s8048 = ssub.s32 %s10, 2
      // Predicated region
      $region45: #{a_call__.1} parent=43 // pred_check
        %p8049 = pneg %p128
      $region46: #{a_call__.1} parent=43 // pred_check_branch
        %8051 = sbr.rel (%p8049) target = $region48
      $region47: #{a_call__.1} parent=43 // pred_region
        %p8052 = scmp.lt.s32.totalorder %s16, 1
        %s8053 = scalar_select %p8052, %s16, 1
        %s8054 = smul.addr %s8053, 2
        %s8055 = smul.addr %s8054, 8
        %s8056 = scalar_lea.vmem %s4, %s8055
      $region48: #{a_call__.1} parent=43 // pred_fallthru
        _
    $region44: #{a_call__.1} parent=5 // pred_fallthru
      _
  $region6: #{a_call__.1} parent=0 // loop_footer
    %s14 = sadd.s32 1, %s10
  $region7: #{a_call__.1} parent=0 // loop_footer_branch
    %9 = sbr.rel target = $region3
  $region8: #{a_call__.1} parent=0 // loop_exit
    _

</llo_original>
